<compile_context>
chip_gen: v7x
topology: tpu7x:2x2x1
jax: 0.10.0
libtpu: 0.0.40
codegen_flags: <defaults>
</compile_context>

<pallas_src>
import functools

import jax
import jax.numpy as jnp
from jax import lax
from jax.experimental import pallas as pl
from jax.experimental.pallas import tpu as pltpu

# -------------------- hyper-parameters (small, deterministic) --------------------
N_PHONEME = 16
EMB_DIM = 32          # character embedding dim
PRENET_H1 = 64        # PreNet hidden
PRENET_H2 = 32        # PreNet output (= CBHG input dim)
K_BANK = 4            # CBHG conv bank: kernel sizes 1..K
BANK_CH = 32          # channels per bank conv
PROJ_DIMS = (32, 32)  # CBHG conv projections (last == PRENET_H2 for the residual)
HIGHWAY_LAYERS = 4
GRU_H = 32            # per-direction GRU hidden
BN_EPS = 1e-3


# ============================ fused Pallas kernel ============================

def _tap(x, off, fill=0.0):
    """Register-only shifted copy: y[t] = x[t + off], `fill` outside [0, T).

    `off` is a small static int; uses pltpu.roll (XLU) + iota mask (VPU), no
    VMEM scratch and no partial stores.
    """
    T = x.shape[0]
    if off == 0:
        return x
    rolled = pltpu.roll(x, shift=(-off) % T, axis=0)       # cyclic: rolled[t] = x[(t+off) mod T]
    row = lax.broadcasted_iota(jnp.int32, x.shape, 0)
    keep = (row >= -off) if off < 0 else (row < T - off)
    return jnp.where(keep, rolled, fill)


def encoder_kernel(tok_ref, w1_ref, b1_ref, w2_ref, b2_ref,
                   bankw_ref, banks_ref, bankb_ref,
                   p1w_ref, p1s_ref, p1b_ref,
                   p2w_ref, p2s_ref, p2b_ref,
                   hww_ref, hwb_ref,
                   wih_ref, bih_ref, whh_ref, bhh_ref,
                   out_ref,
                   out_s,
                   *, T):
    D = PRENET_H2
    H = GRU_H

    # ---- embedding (folded into PreNet W1) + PreNet MLP ----
    tok = tok_ref[0]                                                   # (T, 1) int32
    onehot = (lax.broadcasted_iota(jnp.int32, (T, N_PHONEME), 1) == tok
              ).astype(jnp.float32)                                    # (T, V)
    h1 = jnp.maximum(
        jnp.dot(onehot, w1_ref[...], preferred_element_type=jnp.float32) + b1_ref[...],
        0.0)
    # TODO(synk): PreNet nn.Dropout(0.5) omitted (eval-mode identity; no train RNG).
    x = jnp.maximum(
        jnp.dot(h1, w2_ref[...], preferred_element_type=jnp.float32) + b2_ref[...],
        0.0)                                                           # (T, D)

    # ---- CBHG conv bank (kernel sizes 1..K) as ONE (T,128)@(128,128) im2col matmul ----
    # lane blocks hold x shifted by offsets [-2, -1, 0, +1]; out-of-range rows are zero.
    xtaps = jnp.concatenate([_tap(x, -2), _tap(x, -1), x, _tap(x, 1)], axis=-1)
    bank = jnp.dot(xtaps, bankw_ref[...], preferred_element_type=jnp.float32)
    bank = jnp.maximum(bank * banks_ref[...] + bankb_ref[...], 0.0)    # (T, K*BANK_CH)

    # ---- MaxPool1d(kernel=2, stride=1, padding=1)[:T]: out[t] = max(x[t-1], x[t]) ----
    pooled = jnp.maximum(bank, _tap(bank, -1, fill=-jnp.inf))

    # ---- conv projection 1 (k=3, padding 1, BN + ReLU) as im2col ----
    ptaps = jnp.concatenate([_tap(pooled, -1), pooled, _tap(pooled, 1)], axis=-1)
    proj1 = jnp.dot(ptaps, p1w_ref[...], preferred_element_type=jnp.float32)
    proj1 = jnp.maximum(proj1 * p1s_ref[...] + p1b_ref[...], 0.0)      # (T, P0)

    # ---- conv projection 2 (k=3, padding 1, BN, no activation) + residual ----
    p1taps = jnp.concatenate([_tap(proj1, -1), proj1, _tap(proj1, 1)], axis=-1)
    proj2 = jnp.dot(p1taps, p2w_ref[...], preferred_element_type=jnp.float32)
    hx = proj2 * p2s_ref[...] + p2b_ref[...] + x                       # (T, D)

    # ---- 4-layer Highway: [Wh | Wt] packed -> one matmul per layer ----
    for layer in range(HIGHWAY_LAYERS):
        hz = jnp.dot(hx, hww_ref[layer], preferred_element_type=jnp.float32) + hwb_ref[layer]
        tgate = jax.nn.sigmoid(hz[:, D:2 * D])
        hx = jnp.maximum(hz[:, 0:D], 0.0) * tgate + hx * (1.0 - tgate)

    # ---- bidirectional GRU: input gates hoisted; fwd+bwd hidden matmul fused ----
    gi = jnp.dot(hx, wih_ref[...], preferred_element_type=jnp.float32) + bih_ref[...]  # (T, 6H)
    gif = gi[:, 0:3 * H]          # forward  gates r|z|n
    gib = gi[:, 3 * H:6 * H]      # backward gates r|z|n

    def gru_update(gi_t, gh_t, h):
        r = jax.nn.sigmoid(gi_t[:, 0:H] + gh_t[:, 0:H])
        z = jax.nn.sigmoid(gi_t[:, H:2 * H] + gh_t[:, H:2 * H])
        n = jnp.tanh(gi_t[:, 2 * H:3 * H] + r * gh_t[:, 2 * H:3 * H])
        return (1.0 - z) * n + z * h

    # whh_ref is block-diagonal (2H, 6H): ONE matmul per step drives both directions.
    h_cat = jnp.zeros((1, 2 * H), jnp.float32)    # [h_fwd | h_bwd]
    for t in range(T):            # static unroll: full scheduler visibility, static stores
        rt = T - 1 - t
        gh = jnp.dot(h_cat, whh_ref[...], preferred_element_type=jnp.float32) + bhh_ref[...]
        h_f = gru_update(gif[t:t + 1, :], gh[:, 0:3 * H], h_cat[:, 0:H])
        h_b = gru_update(gib[rt:rt + 1, :], gh[:, 3 * H:6 * H], h_cat[:, H:2 * H])
        out_s[t:t + 1, 0:H] = h_f
        out_s[rt:rt + 1, H:2 * H] = h_b
        h_cat = jnp.concatenate([h_f, h_b], axis=-1)

    # ---- lane-dense (T, 2H) output block for this batch element ----
    out_ref[0] = out_s[...]


# ============================ weight packing (tiny, one-shot) ============================

def pack_params(params):
    D = PRENET_H2
    H = GRU_H
    KCb = K_BANK * BANK_CH
    P0, P1 = PROJ_DIMS

    # embedding folded into the first PreNet matmul
    w1 = jnp.dot(params['emb'], params['pre_w1'])                      # (V, H1)

    # conv-bank weights zero-packed into one im2col matrix (offsets -2..+1 along rows)
    bankw = jnp.zeros((4 * D, KCb), jnp.float32)
    for k in range(1, K_BANK + 1):
        for tap in range(k):
            o = (tap - k // 2) + 2                                     # offset -> lane-block id
            bankw = bankw.at[o * D:(o + 1) * D,
                             (k - 1) * BANK_CH:k * BANK_CH].set(params['bank_w'][k - 1, tap])
    banks = params['bank_scale'].reshape(1, KCb)
    bankb = params['bank_shift'].reshape(1, KCb)

    def cat_gates(g):  # (3, a, b) -> (a, 3b), gate order r|z|n preserved
        return jnp.concatenate([g[0], g[1], g[2]], axis=-1)

    gf, gb = params['gru_fwd'], params['gru_bwd']

    # block-diagonal hidden-to-hidden matrix: [h_f | h_b] @ whh -> [gh_f | gh_b]
    whh = jnp.zeros((2 * H, 6 * H), jnp.float32)
    whh = whh.at[0:H, 0:3 * H].set(cat_gates(gf['whh']))
    whh = whh.at[H:2 * H, 3 * H:6 * H].set(cat_gates(gb['whh']))
    bhh = jnp.concatenate([cat_gates(gf['bhh']), cat_gates(gb['bhh'])], axis=-1)      # (1, 6H)

    return dict(
        w1=w1, b1=params['pre_b1'], w2=params['pre_w2'], b2=params['pre_b2'],
        bankw=bankw, banks=banks, bankb=bankb,
        p1w=params['p1_w'].reshape(3 * KCb, P0),        # tap-major == im2col block order
        p1s=params['p1_scale'], p1b=params['p1_shift'],
        p2w=params['p2_w'].reshape(3 * P0, P1),
        p2s=params['p2_scale'], p2b=params['p2_shift'],
        hww=jnp.concatenate([params['hw_wh'], params['hw_wt']], axis=-1),   # (L, D, 2D)
        hwb=jnp.concatenate([params['hw_bh'], params['hw_bt']], axis=-1),   # (L, 1, 2D)
        wih=jnp.concatenate([cat_gates(gf['wih']), cat_gates(gb['wih'])], axis=-1),  # (D, 6H)
        bih=jnp.concatenate([cat_gates(gf['bih']), cat_gates(gb['bih'])], axis=-1),  # (1, 6H)
        whh=whh, bhh=bhh,
    )


# ============================ wrapper ============================

def _replicated_spec(shape):
    zeros = (0,) * len(shape)
    return pl.BlockSpec(shape, lambda b: zeros)


def encoder_forward(tokens, params):
    B, T = tokens.shape
    H = GRU_H

    p = pack_params(params)
    tok3 = tokens.astype(jnp.int32).reshape(B, T, 1)

    weight_args = (p['w1'], p['b1'], p['w2'], p['b2'],
                   p['bankw'], p['banks'], p['bankb'],
                   p['p1w'], p['p1s'], p['p1b'],
                   p['p2w'], p['p2s'], p['p2b'],
                   p['hww'], p['hwb'],
                   p['wih'], p['bih'], p['whh'], p['bhh'])

    in_specs = [pl.BlockSpec((1, T, 1), lambda b: (b, 0, 0))]
    in_specs += [_replicated_spec(w.shape) for w in weight_args]

    out = pl.pallas_call(
        functools.partial(encoder_kernel, T=T),
        out_shape=jax.ShapeDtypeStruct((B, T, 2 * H), jnp.float32),
        grid_spec=pltpu.PrefetchScalarGridSpec(
            num_scalar_prefetch=0,
            grid=(B,),
            in_specs=in_specs,
            out_specs=pl.BlockSpec((1, T, 2 * H), lambda b: (b, 0, 0)),
            scratch_shapes=[
                pltpu.VMEM((T, 2 * H), jnp.float32),     # bi-GRU output slab
            ]),
        compiler_params=pltpu.CompilerParams(
            dimension_semantics=("parallel",)),          # batch axis -> both TCs on v7x
    )(tok3, *weight_args)
    return out


# ============================ deterministic parameter init ============================

def init_params(key):
    keys = iter(jax.random.split(key, 64))

    def nrm(shape, scale=0.1):
        return (scale * jax.random.normal(next(keys), shape)).astype(jnp.float32)

    def bn_affine(channels, lead=()):
        # eval-mode BatchNorm folded into scale/shift
        gamma = 1.0 + nrm(lead + (1, channels), 0.05)
        beta = nrm(lead + (1, channels), 0.05)
        mean = nrm(lead + (1, channels), 0.05)
        var = 1.0 + jnp.abs(nrm(lead + (1, channels), 0.05))
        scale = gamma / jnp.sqrt(var + BN_EPS)
        shift = beta - mean * scale
        return scale.astype(jnp.float32), shift.astype(jnp.float32)

    D = PRENET_H2
    bank_scale, bank_shift = bn_affine(BANK_CH, (K_BANK,))
    p1_scale, p1_shift = bn_affine(PROJ_DIMS[0])
    p2_scale, p2_shift = bn_affine(PROJ_DIMS[1])

    params = dict(
        # embedding + prenet
        emb=nrm((N_PHONEME, EMB_DIM), 0.3),
        pre_w1=nrm((EMB_DIM, PRENET_H1)), pre_b1=nrm((1, PRENET_H1)),
        pre_w2=nrm((PRENET_H1, PRENET_H2)), pre_b2=nrm((1, PRENET_H2)),
        # conv bank (taps >= kernel size are zero-packed away by pack_params)
        bank_w=nrm((K_BANK, K_BANK, D, BANK_CH)),
        bank_scale=bank_scale, bank_shift=bank_shift,
        # conv projections
        p1_w=nrm((3, K_BANK * BANK_CH, PROJ_DIMS[0])),
        p1_scale=p1_scale, p1_shift=p1_shift,
        p2_w=nrm((3, PROJ_DIMS[0], PROJ_DIMS[1])),
        p2_scale=p2_scale, p2_shift=p2_shift,
        # highway
        hw_wh=nrm((HIGHWAY_LAYERS, D, D)), hw_bh=nrm((HIGHWAY_LAYERS, 1, D)),
        hw_wt=nrm((HIGHWAY_LAYERS, D, D)),
        hw_bt=(-1.0 + nrm((HIGHWAY_LAYERS, 1, D), 0.05)),
        # bidirectional GRU (gate order r, z, n)
        gru_fwd=dict(wih=nrm((3, D, GRU_H)), whh=nrm((3, GRU_H, GRU_H)),
                     bih=nrm((3, 1, GRU_H)), bhh=nrm((3, 1, GRU_H))),
        gru_bwd=dict(wih=nrm((3, D, GRU_H)), whh=nrm((3, GRU_H, GRU_H)),
                     bih=nrm((3, 1, GRU_H)), bhh=nrm((3, 1, GRU_H))),
    )
    return params


# ============================ main ============================

if __name__ == "__main__":
    key = jax.random.PRNGKey(0)
    pkey, tkey = jax.random.split(key)
    params = init_params(pkey)

    B, T = 2, 16
    tokens = jax.random.randint(tkey, (B, T), 0, N_PHONEME, dtype=jnp.int32)

    out = jax.jit(encoder_forward)(tokens, params)
    out = jax.block_until_ready(out)

    assert out.shape == (B, T, 2 * GRU_H), out.shape
    assert out.dtype == jnp.float32
    print("KERNEL_OK")
</pallas_src>

<mosaic_0001>
module attributes {stable_mosaic.version = 11 : i64} {
  func.func @encoder_kernel(%arg0: i32, %arg1: memref<1x16x1xi32, #tpu.memory_space<vmem>>, %arg2: memref<16x64xf32, #tpu.memory_space<vmem>>, %arg3: memref<1x64xf32, #tpu.memory_space<vmem>>, %arg4: memref<64x32xf32, #tpu.memory_space<vmem>>, %arg5: memref<1x32xf32, #tpu.memory_space<vmem>>, %arg6: memref<128x128xf32, #tpu.memory_space<vmem>>, %arg7: memref<1x128xf32, #tpu.memory_space<vmem>>, %arg8: memref<1x128xf32, #tpu.memory_space<vmem>>, %arg9: memref<384x32xf32, #tpu.memory_space<vmem>>, %arg10: memref<1x32xf32, #tpu.memory_space<vmem>>, %arg11: memref<1x32xf32, #tpu.memory_space<vmem>>, %arg12: memref<96x32xf32, #tpu.memory_space<vmem>>, %arg13: memref<1x32xf32, #tpu.memory_space<vmem>>, %arg14: memref<1x32xf32, #tpu.memory_space<vmem>>, %arg15: memref<4x32x64xf32, #tpu.memory_space<vmem>>, %arg16: memref<4x1x64xf32, #tpu.memory_space<vmem>>, %arg17: memref<32x192xf32, #tpu.memory_space<vmem>>, %arg18: memref<1x192xf32, #tpu.memory_space<vmem>>, %arg19: memref<64x192xf32, #tpu.memory_space<vmem>>, %arg20: memref<1x192xf32, #tpu.memory_space<vmem>>, %arg21: memref<1x16x64xf32, #tpu.memory_space<vmem>>, %arg22: memref<16x64xf32, #tpu.memory_space<vmem>>) attributes {dimension_semantics = [#tpu.dimension_semantics<parallel>], iteration_bounds = array<i64: 2>, scalar_prefetch = 0 : i64, scratch_operands = 1 : i64, tpu.core_type = #tpu.core_type<tc>, window_params = [{transform_indices = @transform_0, window_bounds = array<i64: 1, 16, 1>}, {pipeline_mode = #tpu.pipeline_mode<synchronous>, transform_indices = @transform_1, window_bounds = array<i64: 16, 64>}, {pipeline_mode = #tpu.pipeline_mode<synchronous>, transform_indices = @transform_2, window_bounds = array<i64: 1, 64>}, {pipeline_mode = #tpu.pipeline_mode<synchronous>, transform_indices = @transform_3, window_bounds = array<i64: 64, 32>}, {pipeline_mode = #tpu.pipeline_mode<synchronous>, transform_indices = @transform_4, window_bounds = array<i64: 1, 32>}, {pipeline_mode = #tpu.pipeline_mode<synchronous>, transform_indices = @transform_5, window_bounds = array<i64: 128, 128>}, {pipeline_mode = #tpu.pipeline_mode<synchronous>, transform_indices = @transform_6, window_bounds = array<i64: 1, 128>}, {pipeline_mode = #tpu.pipeline_mode<synchronous>, transform_indices = @transform_7, window_bounds = array<i64: 1, 128>}, {pipeline_mode = #tpu.pipeline_mode<synchronous>, transform_indices = @transform_8, window_bounds = array<i64: 384, 32>}, {pipeline_mode = #tpu.pipeline_mode<synchronous>, transform_indices = @transform_9, window_bounds = array<i64: 1, 32>}, {pipeline_mode = #tpu.pipeline_mode<synchronous>, transform_indices = @transform_10, window_bounds = array<i64: 1, 32>}, {pipeline_mode = #tpu.pipeline_mode<synchronous>, transform_indices = @transform_11, window_bounds = array<i64: 96, 32>}, {pipeline_mode = #tpu.pipeline_mode<synchronous>, transform_indices = @transform_12, window_bounds = array<i64: 1, 32>}, {pipeline_mode = #tpu.pipeline_mode<synchronous>, transform_indices = @transform_13, window_bounds = array<i64: 1, 32>}, {pipeline_mode = #tpu.pipeline_mode<synchronous>, transform_indices = @transform_14, window_bounds = array<i64: 4, 32, 64>}, {pipeline_mode = #tpu.pipeline_mode<synchronous>, transform_indices = @transform_15, window_bounds = array<i64: 4, 1, 64>}, {pipeline_mode = #tpu.pipeline_mode<synchronous>, transform_indices = @transform_16, window_bounds = array<i64: 32, 192>}, {pipeline_mode = #tpu.pipeline_mode<synchronous>, transform_indices = @transform_17, window_bounds = array<i64: 1, 192>}, {pipeline_mode = #tpu.pipeline_mode<synchronous>, transform_indices = @transform_18, window_bounds = array<i64: 64, 192>}, {pipeline_mode = #tpu.pipeline_mode<synchronous>, transform_indices = @transform_19, window_bounds = array<i64: 1, 192>}, {transform_indices = @transform_20, window_bounds = array<i64: 1, 16, 64>}]} {
    %c0 = arith.constant 0 : index
    %c0_0 = arith.constant 0 : index
    %c0_1 = arith.constant 0 : index
    %0 = vector.load %arg1[%c0, %c0_0, %c0_1] : memref<1x16x1xi32, #tpu.memory_space<vmem>>, vector<1x16x1xi32>
    %1 = vector.shape_cast %0 : vector<1x16x1xi32> to vector<16x1xi32>
    %2 = tpu.iota {dimensions = array<i32: 1>} : vector<16x16xi32>
    %3 = vector.broadcast %1 : vector<16x1xi32> to vector<16x16xi32>
    %4 = arith.cmpi eq, %2, %3 : vector<16x16xi32>
    %5 = arith.extui %4 : vector<16x16xi1> to vector<16x16xi32>
    %6 = arith.sitofp %5 : vector<16x16xi32> to vector<16x16xf32>
    %c0_2 = arith.constant 0 : index
    %c0_3 = arith.constant 0 : index
    %7 = vector.load %arg2[%c0_2, %c0_3] : memref<16x64xf32, #tpu.memory_space<vmem>>, vector<16x64xf32>
    %cst = arith.constant dense<0.000000e+00> : vector<16x64xf32>
    %8 = tpu.matmul %6, %7, %cst {dimension_numbers = #tpu.dot_dimension_numbers<[1], [0], [0], [1], [0, 0, 1, 1], [], []>} : vector<16x16xf32>, vector<16x64xf32>, vector<16x64xf32> -> vector<16x64xf32>
    %c0_4 = arith.constant 0 : index
    %c0_5 = arith.constant 0 : index
    %9 = vector.load %arg3[%c0_4, %c0_5] : memref<1x64xf32, #tpu.memory_space<vmem>>, vector<1x64xf32>
    %10 = vector.broadcast %9 : vector<1x64xf32> to vector<16x64xf32>
    %11 = arith.addf %8, %10 : vector<16x64xf32>
    %cst_6 = arith.constant 0.000000e+00 : f32
    %12 = vector.broadcast %cst_6 : f32 to vector<16x64xf32>
    %13 = arith.maximumf %11, %12 : vector<16x64xf32>
    %c0_7 = arith.constant 0 : index
    %c0_8 = arith.constant 0 : index
    %14 = vector.load %arg4[%c0_7, %c0_8] : memref<64x32xf32, #tpu.memory_space<vmem>>, vector<64x32xf32>
    %cst_9 = arith.constant dense<0.000000e+00> : vector<16x32xf32>
    %15 = tpu.matmul %13, %14, %cst_9 {dimension_numbers = #tpu.dot_dimension_numbers<[1], [0], [0], [1], [0, 0, 1, 1], [], []>} : vector<16x64xf32>, vector<64x32xf32>, vector<16x32xf32> -> vector<16x32xf32>
    %c0_10 = arith.constant 0 : index
    %c0_11 = arith.constant 0 : index
    %16 = vector.load %arg5[%c0_10, %c0_11] : memref<1x32xf32, #tpu.memory_space<vmem>>, vector<1x32xf32>
    %17 = vector.broadcast %16 : vector<1x32xf32> to vector<16x32xf32>
    %18 = arith.addf %15, %17 : vector<16x32xf32>
    %cst_12 = arith.constant 0.000000e+00 : f32
    %19 = vector.broadcast %cst_12 : f32 to vector<16x32xf32>
    %20 = arith.maximumf %18, %19 : vector<16x32xf32>
    %c2_i32 = arith.constant 2 : i32
    %21 = tpu.dynamic_rotate %20 by %c2_i32 dim 0 : vector<16x32xf32>, i32 -> vector<16x32xf32>
    %22 = tpu.iota {dimensions = array<i32: 0>} : vector<16x32xi32>
    %c2_i32_13 = arith.constant 2 : i32
    %23 = vector.broadcast %c2_i32_13 : i32 to vector<16x32xi32>
    %24 = arith.cmpi sge, %22, %23 : vector<16x32xi32>
    %cst_14 = arith.constant 0.000000e+00 : f32
    %25 = vector.broadcast %cst_14 : f32 to vector<16x32xf32>
    %26 = arith.select %24, %21, %25 : vector<16x32xi1>, vector<16x32xf32>
    %c1_i32 = arith.constant 1 : i32
    %27 = tpu.dynamic_rotate %20 by %c1_i32 dim 0 : vector<16x32xf32>, i32 -> vector<16x32xf32>
    %28 = tpu.iota {dimensions = array<i32: 0>} : vector<16x32xi32>
    %c1_i32_15 = arith.constant 1 : i32
    %29 = vector.broadcast %c1_i32_15 : i32 to vector<16x32xi32>
    %30 = arith.cmpi sge, %28, %29 : vector<16x32xi32>
    %cst_16 = arith.constant 0.000000e+00 : f32
    %31 = vector.broadcast %cst_16 : f32 to vector<16x32xf32>
    %32 = arith.select %30, %27, %31 : vector<16x32xi1>, vector<16x32xf32>
    %c15_i32 = arith.constant 15 : i32
    %33 = tpu.dynamic_rotate %20 by %c15_i32 dim 0 : vector<16x32xf32>, i32 -> vector<16x32xf32>
    %34 = tpu.iota {dimensions = array<i32: 0>} : vector<16x32xi32>
    %c15_i32_17 = arith.constant 15 : i32
    %35 = vector.broadcast %c15_i32_17 : i32 to vector<16x32xi32>
    %36 = arith.cmpi slt, %34, %35 : vector<16x32xi32>
    %cst_18 = arith.constant 0.000000e+00 : f32
    %37 = vector.broadcast %cst_18 : f32 to vector<16x32xf32>
    %38 = arith.select %36, %33, %37 : vector<16x32xi1>, vector<16x32xf32>
    %39 = tpu.concatenate %26, %32, %20, %38 in 1 : vector<16x32xf32>, vector<16x32xf32>, vector<16x32xf32>, vector<16x32xf32> -> vector<16x128xf32>
    %c0_19 = arith.constant 0 : index
    %c0_20 = arith.constant 0 : index
    %40 = vector.load %arg6[%c0_19, %c0_20] : memref<128x128xf32, #tpu.memory_space<vmem>>, vector<128x128xf32>
    %cst_21 = arith.constant dense<0.000000e+00> : vector<16x128xf32>
    %41 = tpu.matmul %39, %40, %cst_21 {dimension_numbers = #tpu.dot_dimension_numbers<[1], [0], [0], [1], [0, 0, 1, 1], [], []>} : vector<16x128xf32>, vector<128x128xf32>, vector<16x128xf32> -> vector<16x128xf32>
    %c0_22 = arith.constant 0 : index
    %c0_23 = arith.constant 0 : index
    %42 = vector.load %arg7[%c0_22, %c0_23] : memref<1x128xf32, #tpu.memory_space<vmem>>, vector<1x128xf32>
    %43 = vector.broadcast %42 : vector<1x128xf32> to vector<16x128xf32>
    %44 = arith.mulf %41, %43 : vector<16x128xf32>
    %c0_24 = arith.constant 0 : index
    %c0_25 = arith.constant 0 : index
    %45 = vector.load %arg8[%c0_24, %c0_25] : memref<1x128xf32, #tpu.memory_space<vmem>>, vector<1x128xf32>
    %46 = vector.broadcast %45 : vector<1x128xf32> to vector<16x128xf32>
    %47 = arith.addf %44, %46 : vector<16x128xf32>
    %cst_26 = arith.constant 0.000000e+00 : f32
    %48 = vector.broadcast %cst_26 : f32 to vector<16x128xf32>
    %49 = arith.maximumf %47, %48 : vector<16x128xf32>
    %c1_i32_27 = arith.constant 1 : i32
    %50 = tpu.dynamic_rotate %49 by %c1_i32_27 dim 0 : vector<16x128xf32>, i32 -> vector<16x128xf32>
    %51 = tpu.iota {dimensions = array<i32: 0>} : vector<16x128xi32>
    %c1_i32_28 = arith.constant 1 : i32
    %52 = vector.broadcast %c1_i32_28 : i32 to vector<16x128xi32>
    %53 = arith.cmpi sge, %51, %52 : vector<16x128xi32>
    %cst_29 = arith.constant 0xFF800000 : f32
    %54 = vector.broadcast %cst_29 : f32 to vector<16x128xf32>
    %55 = arith.select %53, %50, %54 : vector<16x128xi1>, vector<16x128xf32>
    %56 = arith.maximumf %49, %55 : vector<16x128xf32>
    %c1_i32_30 = arith.constant 1 : i32
    %57 = tpu.dynamic_rotate %56 by %c1_i32_30 dim 0 : vector<16x128xf32>, i32 -> vector<16x128xf32>
    %58 = tpu.iota {dimensions = array<i32: 0>} : vector<16x128xi32>
    %c1_i32_31 = arith.constant 1 : i32
    %59 = vector.broadcast %c1_i32_31 : i32 to vector<16x128xi32>
    %60 = arith.cmpi sge, %58, %59 : vector<16x128xi32>
    %cst_32 = arith.constant 0.000000e+00 : f32
    %61 = vector.broadcast %cst_32 : f32 to vector<16x128xf32>
    %62 = arith.select %60, %57, %61 : vector<16x128xi1>, vector<16x128xf32>
    %c15_i32_33 = arith.constant 15 : i32
    %63 = tpu.dynamic_rotate %56 by %c15_i32_33 dim 0 : vector<16x128xf32>, i32 -> vector<16x128xf32>
    %64 = tpu.iota {dimensions = array<i32: 0>} : vector<16x128xi32>
    %c15_i32_34 = arith.constant 15 : i32
    %65 = vector.broadcast %c15_i32_34 : i32 to vector<16x128xi32>
    %66 = arith.cmpi slt, %64, %65 : vector<16x128xi32>
    %cst_35 = arith.constant 0.000000e+00 : f32
    %67 = vector.broadcast %cst_35 : f32 to vector<16x128xf32>
    %68 = arith.select %66, %63, %67 : vector<16x128xi1>, vector<16x128xf32>
    %69 = tpu.concatenate %62, %56, %68 in 1 : vector<16x128xf32>, vector<16x128xf32>, vector<16x128xf32> -> vector<16x384xf32>
    %c0_36 = arith.constant 0 : index
    %c0_37 = arith.constant 0 : index
    %70 = vector.load %arg9[%c0_36, %c0_37] : memref<384x32xf32, #tpu.memory_space<vmem>>, vector<384x32xf32>
    %cst_38 = arith.constant dense<0.000000e+00> : vector<16x32xf32>
    %71 = tpu.matmul %69, %70, %cst_38 {dimension_numbers = #tpu.dot_dimension_numbers<[1], [0], [0], [1], [0, 0, 1, 1], [], []>} : vector<16x384xf32>, vector<384x32xf32>, vector<16x32xf32> -> vector<16x32xf32>
    %c0_39 = arith.constant 0 : index
    %c0_40 = arith.constant 0 : index
    %72 = vector.load %arg10[%c0_39, %c0_40] : memref<1x32xf32, #tpu.memory_space<vmem>>, vector<1x32xf32>
    %73 = vector.broadcast %72 : vector<1x32xf32> to vector<16x32xf32>
    %74 = arith.mulf %71, %73 : vector<16x32xf32>
    %c0_41 = arith.constant 0 : index
    %c0_42 = arith.constant 0 : index
    %75 = vector.load %arg11[%c0_41, %c0_42] : memref<1x32xf32, #tpu.memory_space<vmem>>, vector<1x32xf32>
    %76 = vector.broadcast %75 : vector<1x32xf32> to vector<16x32xf32>
    %77 = arith.addf %74, %76 : vector<16x32xf32>
    %cst_43 = arith.constant 0.000000e+00 : f32
    %78 = vector.broadcast %cst_43 : f32 to vector<16x32xf32>
    %79 = arith.maximumf %77, %78 : vector<16x32xf32>
    %c1_i32_44 = arith.constant 1 : i32
    %80 = tpu.dynamic_rotate %79 by %c1_i32_44 dim 0 : vector<16x32xf32>, i32 -> vector<16x32xf32>
    %81 = tpu.iota {dimensions = array<i32: 0>} : vector<16x32xi32>
    %c1_i32_45 = arith.constant 1 : i32
    %82 = vector.broadcast %c1_i32_45 : i32 to vector<16x32xi32>
    %83 = arith.cmpi sge, %81, %82 : vector<16x32xi32>
    %cst_46 = arith.constant 0.000000e+00 : f32
    %84 = vector.broadcast %cst_46 : f32 to vector<16x32xf32>
    %85 = arith.select %83, %80, %84 : vector<16x32xi1>, vector<16x32xf32>
    %c15_i32_47 = arith.constant 15 : i32
    %86 = tpu.dynamic_rotate %79 by %c15_i32_47 dim 0 : vector<16x32xf32>, i32 -> vector<16x32xf32>
    %87 = tpu.iota {dimensions = array<i32: 0>} : vector<16x32xi32>
    %c15_i32_48 = arith.constant 15 : i32
    %88 = vector.broadcast %c15_i32_48 : i32 to vector<16x32xi32>
    %89 = arith.cmpi slt, %87, %88 : vector<16x32xi32>
    %cst_49 = arith.constant 0.000000e+00 : f32
    %90 = vector.broadcast %cst_49 : f32 to vector<16x32xf32>
    %91 = arith.select %89, %86, %90 : vector<16x32xi1>, vector<16x32xf32>
    %92 = tpu.concatenate %85, %79, %91 in 1 : vector<16x32xf32>, vector<16x32xf32>, vector<16x32xf32> -> vector<16x96xf32>
    %c0_50 = arith.constant 0 : index
    %c0_51 = arith.constant 0 : index
    %93 = vector.load %arg12[%c0_50, %c0_51] : memref<96x32xf32, #tpu.memory_space<vmem>>, vector<96x32xf32>
    %cst_52 = arith.constant dense<0.000000e+00> : vector<16x32xf32>
    %94 = tpu.matmul %92, %93, %cst_52 {dimension_numbers = #tpu.dot_dimension_numbers<[1], [0], [0], [1], [0, 0, 1, 1], [], []>} : vector<16x96xf32>, vector<96x32xf32>, vector<16x32xf32> -> vector<16x32xf32>
    %c0_53 = arith.constant 0 : index
    %c0_54 = arith.constant 0 : index
    %95 = vector.load %arg13[%c0_53, %c0_54] : memref<1x32xf32, #tpu.memory_space<vmem>>, vector<1x32xf32>
    %96 = vector.broadcast %95 : vector<1x32xf32> to vector<16x32xf32>
    %97 = arith.mulf %94, %96 : vector<16x32xf32>
    %c0_55 = arith.constant 0 : index
    %c0_56 = arith.constant 0 : index
    %98 = vector.load %arg14[%c0_55, %c0_56] : memref<1x32xf32, #tpu.memory_space<vmem>>, vector<1x32xf32>
    %99 = vector.broadcast %98 : vector<1x32xf32> to vector<16x32xf32>
    %100 = arith.addf %97, %99 : vector<16x32xf32>
    %101 = arith.addf %100, %20 : vector<16x32xf32>
    %c0_57 = arith.constant 0 : index
    %c0_58 = arith.constant 0 : index
    %c0_59 = arith.constant 0 : index
    %102 = vector.load %arg15[%c0_57, %c0_58, %c0_59] : memref<4x32x64xf32, #tpu.memory_space<vmem>>, vector<1x32x64xf32>
    %103 = vector.shape_cast %102 : vector<1x32x64xf32> to vector<32x64xf32>
    %cst_60 = arith.constant dense<0.000000e+00> : vector<16x64xf32>
    %104 = tpu.matmul %101, %103, %cst_60 {dimension_numbers = #tpu.dot_dimension_numbers<[1], [0], [0], [1], [0, 0, 1, 1], [], []>} : vector<16x32xf32>, vector<32x64xf32>, vector<16x64xf32> -> vector<16x64xf32>
    %c0_61 = arith.constant 0 : index
    %c0_62 = arith.constant 0 : index
    %c0_63 = arith.constant 0 : index
    %105 = vector.load %arg16[%c0_61, %c0_62, %c0_63] : memref<4x1x64xf32, #tpu.memory_space<vmem>>, vector<1x1x64xf32>
    %106 = vector.shape_cast %105 : vector<1x1x64xf32> to vector<1x64xf32>
    %107 = vector.broadcast %106 : vector<1x64xf32> to vector<16x64xf32>
    %108 = arith.addf %104, %107 : vector<16x64xf32>
    %109 = vector.extract_strided_slice %108 {offsets = [0, 32], sizes = [16, 32], strides = [1, 1]} : vector<16x64xf32> to vector<16x32xf32>
    %110 = arith.negf %109 : vector<16x32xf32>
    %111 = math.exp %110 : vector<16x32xf32>
    %cst_64 = arith.constant 1.000000e+00 : f32
    %112 = vector.broadcast %cst_64 : f32 to vector<16x32xf32>
    %113 = arith.addf %112, %111 : vector<16x32xf32>
    %114 = arith.divf %112, %113 : vector<16x32xf32>
    %115 = vector.extract_strided_slice %108 {offsets = [0, 0], sizes = [16, 32], strides = [1, 1]} : vector<16x64xf32> to vector<16x32xf32>
    %cst_65 = arith.constant 0.000000e+00 : f32
    %116 = vector.broadcast %cst_65 : f32 to vector<16x32xf32>
    %117 = arith.maximumf %115, %116 : vector<16x32xf32>
    %118 = arith.mulf %117, %114 : vector<16x32xf32>
    %cst_66 = arith.constant 1.000000e+00 : f32
    %119 = vector.broadcast %cst_66 : f32 to vector<16x32xf32>
    %120 = arith.subf %119, %114 : vector<16x32xf32>
    %121 = arith.mulf %101, %120 : vector<16x32xf32>
    %122 = arith.addf %118, %121 : vector<16x32xf32>
    %c1 = arith.constant 1 : index
    %c0_67 = arith.constant 0 : index
    %c0_68 = arith.constant 0 : index
    %123 = vector.load %arg15[%c1, %c0_67, %c0_68] : memref<4x32x64xf32, #tpu.memory_space<vmem>>, vector<1x32x64xf32>
    %124 = vector.shape_cast %123 : vector<1x32x64xf32> to vector<32x64xf32>
    %cst_69 = arith.constant dense<0.000000e+00> : vector<16x64xf32>
    %125 = tpu.matmul %122, %124, %cst_69 {dimension_numbers = #tpu.dot_dimension_numbers<[1], [0], [0], [1], [0, 0, 1, 1], [], []>} : vector<16x32xf32>, vector<32x64xf32>, vector<16x64xf32> -> vector<16x64xf32>
    %c1_70 = arith.constant 1 : index
    %c0_71 = arith.constant 0 : index
    %c0_72 = arith.constant 0 : index
    %126 = vector.load %arg16[%c1_70, %c0_71, %c0_72] : memref<4x1x64xf32, #tpu.memory_space<vmem>>, vector<1x1x64xf32>
    %127 = vector.shape_cast %126 : vector<1x1x64xf32> to vector<1x64xf32>
    %128 = vector.broadcast %127 : vector<1x64xf32> to vector<16x64xf32>
    %129 = arith.addf %125, %128 : vector<16x64xf32>
    %130 = vector.extract_strided_slice %129 {offsets = [0, 32], sizes = [16, 32], strides = [1, 1]} : vector<16x64xf32> to vector<16x32xf32>
    %131 = arith.negf %130 : vector<16x32xf32>
    %132 = math.exp %131 : vector<16x32xf32>
    %cst_73 = arith.constant 1.000000e+00 : f32
    %133 = vector.broadcast %cst_73 : f32 to vector<16x32xf32>
    %134 = arith.addf %133, %132 : vector<16x32xf32>
    %135 = arith.divf %133, %134 : vector<16x32xf32>
    %136 = vector.extract_strided_slice %129 {offsets = [0, 0], sizes = [16, 32], strides = [1, 1]} : vector<16x64xf32> to vector<16x32xf32>
    %cst_74 = arith.constant 0.000000e+00 : f32
    %137 = vector.broadcast %cst_74 : f32 to vector<16x32xf32>
    %138 = arith.maximumf %136, %137 : vector<16x32xf32>
    %139 = arith.mulf %138, %135 : vector<16x32xf32>
    %cst_75 = arith.constant 1.000000e+00 : f32
    %140 = vector.broadcast %cst_75 : f32 to vector<16x32xf32>
    %141 = arith.subf %140, %135 : vector<16x32xf32>
    %142 = arith.mulf %122, %141 : vector<16x32xf32>
    %143 = arith.addf %139, %142 : vector<16x32xf32>
    %c2 = arith.constant 2 : index
    %c0_76 = arith.constant 0 : index
    %c0_77 = arith.constant 0 : index
    %144 = vector.load %arg15[%c2, %c0_76, %c0_77] : memref<4x32x64xf32, #tpu.memory_space<vmem>>, vector<1x32x64xf32>
    %145 = vector.shape_cast %144 : vector<1x32x64xf32> to vector<32x64xf32>
    %cst_78 = arith.constant dense<0.000000e+00> : vector<16x64xf32>
    %146 = tpu.matmul %143, %145, %cst_78 {dimension_numbers = #tpu.dot_dimension_numbers<[1], [0], [0], [1], [0, 0, 1, 1], [], []>} : vector<16x32xf32>, vector<32x64xf32>, vector<16x64xf32> -> vector<16x64xf32>
    %c2_79 = arith.constant 2 : index
    %c0_80 = arith.constant 0 : index
    %c0_81 = arith.constant 0 : index
    %147 = vector.load %arg16[%c2_79, %c0_80, %c0_81] : memref<4x1x64xf32, #tpu.memory_space<vmem>>, vector<1x1x64xf32>
    %148 = vector.shape_cast %147 : vector<1x1x64xf32> to vector<1x64xf32>
    %149 = vector.broadcast %148 : vector<1x64xf32> to vector<16x64xf32>
    %150 = arith.addf %146, %149 : vector<16x64xf32>
    %151 = vector.extract_strided_slice %150 {offsets = [0, 32], sizes = [16, 32], strides = [1, 1]} : vector<16x64xf32> to vector<16x32xf32>
    %152 = arith.negf %151 : vector<16x32xf32>
    %153 = math.exp %152 : vector<16x32xf32>
    %cst_82 = arith.constant 1.000000e+00 : f32
    %154 = vector.broadcast %cst_82 : f32 to vector<16x32xf32>
    %155 = arith.addf %154, %153 : vector<16x32xf32>
    %156 = arith.divf %154, %155 : vector<16x32xf32>
    %157 = vector.extract_strided_slice %150 {offsets = [0, 0], sizes = [16, 32], strides = [1, 1]} : vector<16x64xf32> to vector<16x32xf32>
    %cst_83 = arith.constant 0.000000e+00 : f32
    %158 = vector.broadcast %cst_83 : f32 to vector<16x32xf32>
    %159 = arith.maximumf %157, %158 : vector<16x32xf32>
    %160 = arith.mulf %159, %156 : vector<16x32xf32>
    %cst_84 = arith.constant 1.000000e+00 : f32
    %161 = vector.broadcast %cst_84 : f32 to vector<16x32xf32>
    %162 = arith.subf %161, %156 : vector<16x32xf32>
    %163 = arith.mulf %143, %162 : vector<16x32xf32>
    %164 = arith.addf %160, %163 : vector<16x32xf32>
    %c3 = arith.constant 3 : index
    %c0_85 = arith.constant 0 : index
    %c0_86 = arith.constant 0 : index
    %165 = vector.load %arg15[%c3, %c0_85, %c0_86] : memref<4x32x64xf32, #tpu.memory_space<vmem>>, vector<1x32x64xf32>
    %166 = vector.shape_cast %165 : vector<1x32x64xf32> to vector<32x64xf32>
    %cst_87 = arith.constant dense<0.000000e+00> : vector<16x64xf32>
    %167 = tpu.matmul %164, %166, %cst_87 {dimension_numbers = #tpu.dot_dimension_numbers<[1], [0], [0], [1], [0, 0, 1, 1], [], []>} : vector<16x32xf32>, vector<32x64xf32>, vector<16x64xf32> -> vector<16x64xf32>
    %c3_88 = arith.constant 3 : index
    %c0_89 = arith.constant 0 : index
    %c0_90 = arith.constant 0 : index
    %168 = vector.load %arg16[%c3_88, %c0_89, %c0_90] : memref<4x1x64xf32, #tpu.memory_space<vmem>>, vector<1x1x64xf32>
    %169 = vector.shape_cast %168 : vector<1x1x64xf32> to vector<1x64xf32>
    %170 = vector.broadcast %169 : vector<1x64xf32> to vector<16x64xf32>
    %171 = arith.addf %167, %170 : vector<16x64xf32>
    %172 = vector.extract_strided_slice %171 {offsets = [0, 32], sizes = [16, 32], strides = [1, 1]} : vector<16x64xf32> to vector<16x32xf32>
    %173 = arith.negf %172 : vector<16x32xf32>
    %174 = math.exp %173 : vector<16x32xf32>
    %cst_91 = arith.constant 1.000000e+00 : f32
    %175 = vector.broadcast %cst_91 : f32 to vector<16x32xf32>
    %176 = arith.addf %175, %174 : vector<16x32xf32>
    %177 = arith.divf %175, %176 : vector<16x32xf32>
    %178 = vector.extract_strided_slice %171 {offsets = [0, 0], sizes = [16, 32], strides = [1, 1]} : vector<16x64xf32> to vector<16x32xf32>
    %cst_92 = arith.constant 0.000000e+00 : f32
    %179 = vector.broadcast %cst_92 : f32 to vector<16x32xf32>
    %180 = arith.maximumf %178, %179 : vector<16x32xf32>
    %181 = arith.mulf %180, %177 : vector<16x32xf32>
    %cst_93 = arith.constant 1.000000e+00 : f32
    %182 = vector.broadcast %cst_93 : f32 to vector<16x32xf32>
    %183 = arith.subf %182, %177 : vector<16x32xf32>
    %184 = arith.mulf %164, %183 : vector<16x32xf32>
    %185 = arith.addf %181, %184 : vector<16x32xf32>
    %c0_94 = arith.constant 0 : index
    %c0_95 = arith.constant 0 : index
    %186 = vector.load %arg17[%c0_94, %c0_95] : memref<32x192xf32, #tpu.memory_space<vmem>>, vector<32x192xf32>
    %cst_96 = arith.constant dense<0.000000e+00> : vector<16x192xf32>
    %187 = tpu.matmul %185, %186, %cst_96 {dimension_numbers = #tpu.dot_dimension_numbers<[1], [0], [0], [1], [0, 0, 1, 1], [], []>} : vector<16x32xf32>, vector<32x192xf32>, vector<16x192xf32> -> vector<16x192xf32>
    %c0_97 = arith.constant 0 : index
    %c0_98 = arith.constant 0 : index
    %188 = vector.load %arg18[%c0_97, %c0_98] : memref<1x192xf32, #tpu.memory_space<vmem>>, vector<1x192xf32>
    %189 = vector.broadcast %188 : vector<1x192xf32> to vector<16x192xf32>
    %190 = arith.addf %187, %189 : vector<16x192xf32>
    %191 = vector.extract_strided_slice %190 {offsets = [0, 0], sizes = [16, 96], strides = [1, 1]} : vector<16x192xf32> to vector<16x96xf32>
    %192 = vector.extract_strided_slice %190 {offsets = [0, 96], sizes = [16, 96], strides = [1, 1]} : vector<16x192xf32> to vector<16x96xf32>
    %cst_99 = arith.constant 0.000000e+00 : f32
    %193 = vector.broadcast %cst_99 : f32 to vector<1x64xf32>
    %c0_100 = arith.constant 0 : index
    %c0_101 = arith.constant 0 : index
    %194 = vector.load %arg19[%c0_100, %c0_101] : memref<64x192xf32, #tpu.memory_space<vmem>>, vector<64x192xf32>
    %cst_102 = arith.constant dense<0.000000e+00> : vector<1x192xf32>
    %195 = tpu.matmul %193, %194, %cst_102 {dimension_numbers = #tpu.dot_dimension_numbers<[1], [0], [0], [1], [0, 0, 1, 1], [], []>} : vector<1x64xf32>, vector<64x192xf32>, vector<1x192xf32> -> vector<1x192xf32>
    %c0_103 = arith.constant 0 : index
    %c0_104 = arith.constant 0 : index
    %196 = vector.load %arg20[%c0_103, %c0_104] : memref<1x192xf32, #tpu.memory_space<vmem>>, vector<1x192xf32>
    %197 = arith.addf %195, %196 : vector<1x192xf32>
    %198 = vector.extract_strided_slice %191 {offsets = [0, 0], sizes = [1, 96], strides = [1, 1]} : vector<16x96xf32> to vector<1x96xf32>
    %199 = vector.extract_strided_slice %197 {offsets = [0, 0], sizes = [1, 96], strides = [1, 1]} : vector<1x192xf32> to vector<1x96xf32>
    %200 = vector.extract_strided_slice %193 {offsets = [0, 0], sizes = [1, 32], strides = [1, 1]} : vector<1x64xf32> to vector<1x32xf32>
    %201 = vector.extract_strided_slice %198 {offsets = [0, 0], sizes = [1, 32], strides = [1, 1]} : vector<1x96xf32> to vector<1x32xf32>
    %202 = vector.extract_strided_slice %199 {offsets = [0, 0], sizes = [1, 32], strides = [1, 1]} : vector<1x96xf32> to vector<1x32xf32>
    %203 = arith.addf %201, %202 : vector<1x32xf32>
    %204 = arith.negf %203 : vector<1x32xf32>
    %205 = math.exp %204 : vector<1x32xf32>
    %cst_105 = arith.constant 1.000000e+00 : f32
    %206 = vector.broadcast %cst_105 : f32 to vector<1x32xf32>
    %207 = arith.addf %206, %205 : vector<1x32xf32>
    %208 = arith.divf %206, %207 : vector<1x32xf32>
    %209 = vector.extract_strided_slice %198 {offsets = [0, 32], sizes = [1, 32], strides = [1, 1]} : vector<1x96xf32> to vector<1x32xf32>
    %210 = vector.extract_strided_slice %199 {offsets = [0, 32], sizes = [1, 32], strides = [1, 1]} : vector<1x96xf32> to vector<1x32xf32>
    %211 = arith.addf %209, %210 : vector<1x32xf32>
    %212 = arith.negf %211 : vector<1x32xf32>
    %213 = math.exp %212 : vector<1x32xf32>
    %cst_106 = arith.constant 1.000000e+00 : f32
    %214 = vector.broadcast %cst_106 : f32 to vector<1x32xf32>
    %215 = arith.addf %214, %213 : vector<1x32xf32>
    %216 = arith.divf %214, %215 : vector<1x32xf32>
    %217 = vector.extract_strided_slice %198 {offsets = [0, 64], sizes = [1, 32], strides = [1, 1]} : vector<1x96xf32> to vector<1x32xf32>
    %218 = vector.extract_strided_slice %199 {offsets = [0, 64], sizes = [1, 32], strides = [1, 1]} : vector<1x96xf32> to vector<1x32xf32>
    %219 = arith.mulf %208, %218 : vector<1x32xf32>
    %220 = arith.addf %217, %219 : vector<1x32xf32>
    %221 = math.tanh %220 : vector<1x32xf32>
    %cst_107 = arith.constant 1.000000e+00 : f32
    %222 = vector.broadcast %cst_107 : f32 to vector<1x32xf32>
    %223 = arith.subf %222, %216 : vector<1x32xf32>
    %224 = arith.mulf %223, %221 : vector<1x32xf32>
    %225 = arith.mulf %216, %200 : vector<1x32xf32>
    %226 = arith.addf %224, %225 : vector<1x32xf32>
    %227 = vector.extract_strided_slice %192 {offsets = [15, 0], sizes = [1, 96], strides = [1, 1]} : vector<16x96xf32> to vector<1x96xf32>
    %228 = vector.extract_strided_slice %197 {offsets = [0, 96], sizes = [1, 96], strides = [1, 1]} : vector<1x192xf32> to vector<1x96xf32>
    %229 = vector.extract_strided_slice %193 {offsets = [0, 32], sizes = [1, 32], strides = [1, 1]} : vector<1x64xf32> to vector<1x32xf32>
    %230 = vector.extract_strided_slice %227 {offsets = [0, 0], sizes = [1, 32], strides = [1, 1]} : vector<1x96xf32> to vector<1x32xf32>
    %231 = vector.extract_strided_slice %228 {offsets = [0, 0], sizes = [1, 32], strides = [1, 1]} : vector<1x96xf32> to vector<1x32xf32>
    %232 = arith.addf %230, %231 : vector<1x32xf32>
    %233 = arith.negf %232 : vector<1x32xf32>
    %234 = math.exp %233 : vector<1x32xf32>
    %cst_108 = arith.constant 1.000000e+00 : f32
    %235 = vector.broadcast %cst_108 : f32 to vector<1x32xf32>
    %236 = arith.addf %235, %234 : vector<1x32xf32>
    %237 = arith.divf %235, %236 : vector<1x32xf32>
    %238 = vector.extract_strided_slice %227 {offsets = [0, 32], sizes = [1, 32], strides = [1, 1]} : vector<1x96xf32> to vector<1x32xf32>
    %239 = vector.extract_strided_slice %228 {offsets = [0, 32], sizes = [1, 32], strides = [1, 1]} : vector<1x96xf32> to vector<1x32xf32>
    %240 = arith.addf %238, %239 : vector<1x32xf32>
    %241 = arith.negf %240 : vector<1x32xf32>
    %242 = math.exp %241 : vector<1x32xf32>
    %cst_109 = arith.constant 1.000000e+00 : f32
    %243 = vector.broadcast %cst_109 : f32 to vector<1x32xf32>
    %244 = arith.addf %243, %242 : vector<1x32xf32>
    %245 = arith.divf %243, %244 : vector<1x32xf32>
    %246 = vector.extract_strided_slice %227 {offsets = [0, 64], sizes = [1, 32], strides = [1, 1]} : vector<1x96xf32> to vector<1x32xf32>
    %247 = vector.extract_strided_slice %228 {offsets = [0, 64], sizes = [1, 32], strides = [1, 1]} : vector<1x96xf32> to vector<1x32xf32>
    %248 = arith.mulf %237, %247 : vector<1x32xf32>
    %249 = arith.addf %246, %248 : vector<1x32xf32>
    %250 = math.tanh %249 : vector<1x32xf32>
    %cst_110 = arith.constant 1.000000e+00 : f32
    %251 = vector.broadcast %cst_110 : f32 to vector<1x32xf32>
    %252 = arith.subf %251, %245 : vector<1x32xf32>
    %253 = arith.mulf %252, %250 : vector<1x32xf32>
    %254 = arith.mulf %245, %229 : vector<1x32xf32>
    %255 = arith.addf %253, %254 : vector<1x32xf32>
    %c0_111 = arith.constant 0 : index
    %c0_112 = arith.constant 0 : index
    %256 = vector.load %arg22[%c0_111, %c0_112] : memref<16x64xf32, #tpu.memory_space<vmem>>, vector<1x32xf32>
    tpu.vector_store %arg22[%c0_111, %c0_112], %226 {strides = array<i32>} : memref<16x64xf32, #tpu.memory_space<vmem>>, vector<1x32xf32>,
    %c15 = arith.constant 15 : index
    %c32 = arith.constant 32 : index
    %257 = vector.load %arg22[%c15, %c32] : memref<16x64xf32, #tpu.memory_space<vmem>>, vector<1x32xf32>
    tpu.vector_store %arg22[%c15, %c32], %255 {strides = array<i32>} : memref<16x64xf32, #tpu.memory_space<vmem>>, vector<1x32xf32>,
    %258 = tpu.concatenate %226, %255 in 1 : vector<1x32xf32>, vector<1x32xf32> -> vector<1x64xf32>
    %c0_113 = arith.constant 0 : index
    %c0_114 = arith.constant 0 : index
    %259 = vector.load %arg19[%c0_113, %c0_114] : memref<64x192xf32, #tpu.memory_space<vmem>>, vector<64x192xf32>
    %cst_115 = arith.constant dense<0.000000e+00> : vector<1x192xf32>
    %260 = tpu.matmul %258, %259, %cst_115 {dimension_numbers = #tpu.dot_dimension_numbers<[1], [0], [0], [1], [0, 0, 1, 1], [], []>} : vector<1x64xf32>, vector<64x192xf32>, vector<1x192xf32> -> vector<1x192xf32>
    %c0_116 = arith.constant 0 : index
    %c0_117 = arith.constant 0 : index
    %261 = vector.load %arg20[%c0_116, %c0_117] : memref<1x192xf32, #tpu.memory_space<vmem>>, vector<1x192xf32>
    %262 = arith.addf %260, %261 : vector<1x192xf32>
    %263 = vector.extract_strided_slice %191 {offsets = [1, 0], sizes = [1, 96], strides = [1, 1]} : vector<16x96xf32> to vector<1x96xf32>
    %264 = vector.extract_strided_slice %262 {offsets = [0, 0], sizes = [1, 96], strides = [1, 1]} : vector<1x192xf32> to vector<1x96xf32>
    %265 = vector.extract_strided_slice %258 {offsets = [0, 0], sizes = [1, 32], strides = [1, 1]} : vector<1x64xf32> to vector<1x32xf32>
    %266 = vector.extract_strided_slice %263 {offsets = [0, 0], sizes = [1, 32], strides = [1, 1]} : vector<1x96xf32> to vector<1x32xf32>
    %267 = vector.extract_strided_slice %264 {offsets = [0, 0], sizes = [1, 32], strides = [1, 1]} : vector<1x96xf32> to vector<1x32xf32>
    %268 = arith.addf %266, %267 : vector<1x32xf32>
    %269 = arith.negf %268 : vector<1x32xf32>
    %270 = math.exp %269 : vector<1x32xf32>
    %cst_118 = arith.constant 1.000000e+00 : f32
    %271 = vector.broadcast %cst_118 : f32 to vector<1x32xf32>
    %272 = arith.addf %271, %270 : vector<1x32xf32>
    %273 = arith.divf %271, %272 : vector<1x32xf32>
    %274 = vector.extract_strided_slice %263 {offsets = [0, 32], sizes = [1, 32], strides = [1, 1]} : vector<1x96xf32> to vector<1x32xf32>
    %275 = vector.extract_strided_slice %264 {offsets = [0, 32], sizes = [1, 32], strides = [1, 1]} : vector<1x96xf32> to vector<1x32xf32>
    %276 = arith.addf %274, %275 : vector<1x32xf32>
    %277 = arith.negf %276 : vector<1x32xf32>
    %278 = math.exp %277 : vector<1x32xf32>
    %cst_119 = arith.constant 1.000000e+00 : f32
    %279 = vector.broadcast %cst_119 : f32 to vector<1x32xf32>
    %280 = arith.addf %279, %278 : vector<1x32xf32>
    %281 = arith.divf %279, %280 : vector<1x32xf32>
    %282 = vector.extract_strided_slice %263 {offsets = [0, 64], sizes = [1, 32], strides = [1, 1]} : vector<1x96xf32> to vector<1x32xf32>
    %283 = vector.extract_strided_slice %264 {offsets = [0, 64], sizes = [1, 32], strides = [1, 1]} : vector<1x96xf32> to vector<1x32xf32>
    %284 = arith.mulf %273, %283 : vector<1x32xf32>
    %285 = arith.addf %282, %284 : vector<1x32xf32>
    %286 = math.tanh %285 : vector<1x32xf32>
    %cst_120 = arith.constant 1.000000e+00 : f32
    %287 = vector.broadcast %cst_120 : f32 to vector<1x32xf32>
    %288 = arith.subf %287, %281 : vector<1x32xf32>
    %289 = arith.mulf %288, %286 : vector<1x32xf32>
    %290 = arith.mulf %281, %265 : vector<1x32xf32>
    %291 = arith.addf %289, %290 : vector<1x32xf32>
    %292 = vector.extract_strided_slice %192 {offsets = [14, 0], sizes = [1, 96], strides = [1, 1]} : vector<16x96xf32> to vector<1x96xf32>
    %293 = vector.extract_strided_slice %262 {offsets = [0, 96], sizes = [1, 96], strides = [1, 1]} : vector<1x192xf32> to vector<1x96xf32>
    %294 = vector.extract_strided_slice %258 {offsets = [0, 32], sizes = [1, 32], strides = [1, 1]} : vector<1x64xf32> to vector<1x32xf32>
    %295 = vector.extract_strided_slice %292 {offsets = [0, 0], sizes = [1, 32], strides = [1, 1]} : vector<1x96xf32> to vector<1x32xf32>
    %296 = vector.extract_strided_slice %293 {offsets = [0, 0], sizes = [1, 32], strides = [1, 1]} : vector<1x96xf32> to vector<1x32xf32>
    %297 = arith.addf %295, %296 : vector<1x32xf32>
    %298 = arith.negf %297 : vector<1x32xf32>
    %299 = math.exp %298 : vector<1x32xf32>
    %cst_121 = arith.constant 1.000000e+00 : f32
    %300 = vector.broadcast %cst_121 : f32 to vector<1x32xf32>
    %301 = arith.addf %300, %299 : vector<1x32xf32>
    %302 = arith.divf %300, %301 : vector<1x32xf32>
    %303 = vector.extract_strided_slice %292 {offsets = [0, 32], sizes = [1, 32], strides = [1, 1]} : vector<1x96xf32> to vector<1x32xf32>
    %304 = vector.extract_strided_slice %293 {offsets = [0, 32], sizes = [1, 32], strides = [1, 1]} : vector<1x96xf32> to vector<1x32xf32>
    %305 = arith.addf %303, %304 : vector<1x32xf32>
    %306 = arith.negf %305 : vector<1x32xf32>
    %307 = math.exp %306 : vector<1x32xf32>
    %cst_122 = arith.constant 1.000000e+00 : f32
    %308 = vector.broadcast %cst_122 : f32 to vector<1x32xf32>
    %309 = arith.addf %308, %307 : vector<1x32xf32>
    %310 = arith.divf %308, %309 : vector<1x32xf32>
    %311 = vector.extract_strided_slice %292 {offsets = [0, 64], sizes = [1, 32], strides = [1, 1]} : vector<1x96xf32> to vector<1x32xf32>
    %312 = vector.extract_strided_slice %293 {offsets = [0, 64], sizes = [1, 32], strides = [1, 1]} : vector<1x96xf32> to vector<1x32xf32>
    %313 = arith.mulf %302, %312 : vector<1x32xf32>
    %314 = arith.addf %311, %313 : vector<1x32xf32>
    %315 = math.tanh %314 : vector<1x32xf32>
    %cst_123 = arith.constant 1.000000e+00 : f32
    %316 = vector.broadcast %cst_123 : f32 to vector<1x32xf32>
    %317 = arith.subf %316, %310 : vector<1x32xf32>
    %318 = arith.mulf %317, %315 : vector<1x32xf32>
    %319 = arith.mulf %310, %294 : vector<1x32xf32>
    %320 = arith.addf %318, %319 : vector<1x32xf32>
    %c1_124 = arith.constant 1 : index
    %c0_125 = arith.constant 0 : index
    %321 = vector.load %arg22[%c1_124, %c0_125] : memref<16x64xf32, #tpu.memory_space<vmem>>, vector<1x32xf32>
    tpu.vector_store %arg22[%c1_124, %c0_125], %291 {strides = array<i32>} : memref<16x64xf32, #tpu.memory_space<vmem>>, vector<1x32xf32>,
    %c14 = arith.constant 14 : index
    %c32_126 = arith.constant 32 : index
    %322 = vector.load %arg22[%c14, %c32_126] : memref<16x64xf32, #tpu.memory_space<vmem>>, vector<1x32xf32>
    tpu.vector_store %arg22[%c14, %c32_126], %320 {strides = array<i32>} : memref<16x64xf32, #tpu.memory_space<vmem>>, vector<1x32xf32>,
    %323 = tpu.concatenate %291, %320 in 1 : vector<1x32xf32>, vector<1x32xf32> -> vector<1x64xf32>
    %c0_127 = arith.constant 0 : index
    %c0_128 = arith.constant 0 : index
    %324 = vector.load %arg19[%c0_127, %c0_128] : memref<64x192xf32, #tpu.memory_space<vmem>>, vector<64x192xf32>
    %cst_129 = arith.constant dense<0.000000e+00> : vector<1x192xf32>
    %325 = tpu.matmul %323, %324, %cst_129 {dimension_numbers = #tpu.dot_dimension_numbers<[1], [0], [0], [1], [0, 0, 1, 1], [], []>} : vector<1x64xf32>, vector<64x192xf32>, vector<1x192xf32> -> vector<1x192xf32>
    %c0_130 = arith.constant 0 : index
    %c0_131 = arith.constant 0 : index
    %326 = vector.load %arg20[%c0_130, %c0_131] : memref<1x192xf32, #tpu.memory_space<vmem>>, vector<1x192xf32>
    %327 = arith.addf %325, %326 : vector<1x192xf32>
    %328 = vector.extract_strided_slice %191 {offsets = [2, 0], sizes = [1, 96], strides = [1, 1]} : vector<16x96xf32> to vector<1x96xf32>
    %329 = vector.extract_strided_slice %327 {offsets = [0, 0], sizes = [1, 96], strides = [1, 1]} : vector<1x192xf32> to vector<1x96xf32>
    %330 = vector.extract_strided_slice %323 {offsets = [0, 0], sizes = [1, 32], strides = [1, 1]} : vector<1x64xf32> to vector<1x32xf32>
    %331 = vector.extract_strided_slice %328 {offsets = [0, 0], sizes = [1, 32], strides = [1, 1]} : vector<1x96xf32> to vector<1x32xf32>
    %332 = vector.extract_strided_slice %329 {offsets = [0, 0], sizes = [1, 32], strides = [1, 1]} : vector<1x96xf32> to vector<1x32xf32>
    %333 = arith.addf %331, %332 : vector<1x32xf32>
    %334 = arith.negf %333 : vector<1x32xf32>
    %335 = math.exp %334 : vector<1x32xf32>
    %cst_132 = arith.constant 1.000000e+00 : f32
    %336 = vector.broadcast %cst_132 : f32 to vector<1x32xf32>
    %337 = arith.addf %336, %335 : vector<1x32xf32>
    %338 = arith.divf %336, %337 : vector<1x32xf32>
    %339 = vector.extract_strided_slice %328 {offsets = [0, 32], sizes = [1, 32], strides = [1, 1]} : vector<1x96xf32> to vector<1x32xf32>
    %340 = vector.extract_strided_slice %329 {offsets = [0, 32], sizes = [1, 32], strides = [1, 1]} : vector<1x96xf32> to vector<1x32xf32>
    %341 = arith.addf %339, %340 : vector<1x32xf32>
    %342 = arith.negf %341 : vector<1x32xf32>
    %343 = math.exp %342 : vector<1x32xf32>
    %cst_133 = arith.constant 1.000000e+00 : f32
    %344 = vector.broadcast %cst_133 : f32 to vector<1x32xf32>
    %345 = arith.addf %344, %343 : vector<1x32xf32>
    %346 = arith.divf %344, %345 : vector<1x32xf32>
    %347 = vector.extract_strided_slice %328 {offsets = [0, 64], sizes = [1, 32], strides = [1, 1]} : vector<1x96xf32> to vector<1x32xf32>
    %348 = vector.extract_strided_slice %329 {offsets = [0, 64], sizes = [1, 32], strides = [1, 1]} : vector<1x96xf32> to vector<1x32xf32>
    %349 = arith.mulf %338, %348 : vector<1x32xf32>
    %350 = arith.addf %347, %349 : vector<1x32xf32>
    %351 = math.tanh %350 : vector<1x32xf32>
    %cst_134 = arith.constant 1.000000e+00 : f32
    %352 = vector.broadcast %cst_134 : f32 to vector<1x32xf32>
    %353 = arith.subf %352, %346 : vector<1x32xf32>
    %354 = arith.mulf %353, %351 : vector<1x32xf32>
    %355 = arith.mulf %346, %330 : vector<1x32xf32>
    %356 = arith.addf %354, %355 : vector<1x32xf32>
    %357 = vector.extract_strided_slice %192 {offsets = [13, 0], sizes = [1, 96], strides = [1, 1]} : vector<16x96xf32> to vector<1x96xf32>
    %358 = vector.extract_strided_slice %327 {offsets = [0, 96], sizes = [1, 96], strides = [1, 1]} : vector<1x192xf32> to vector<1x96xf32>
    %359 = vector.extract_strided_slice %323 {offsets = [0, 32], sizes = [1, 32], strides = [1, 1]} : vector<1x64xf32> to vector<1x32xf32>
    %360 = vector.extract_strided_slice %357 {offsets = [0, 0], sizes = [1, 32], strides = [1, 1]} : vector<1x96xf32> to vector<1x32xf32>
    %361 = vector.extract_strided_slice %358 {offsets = [0, 0], sizes = [1, 32], strides = [1, 1]} : vector<1x96xf32> to vector<1x32xf32>
    %362 = arith.addf %360, %361 : vector<1x32xf32>
    %363 = arith.negf %362 : vector<1x32xf32>
    %364 = math.exp %363 : vector<1x32xf32>
    %cst_135 = arith.constant 1.000000e+00 : f32
    %365 = vector.broadcast %cst_135 : f32 to vector<1x32xf32>
    %366 = arith.addf %365, %364 : vector<1x32xf32>
    %367 = arith.divf %365, %366 : vector<1x32xf32>
    %368 = vector.extract_strided_slice %357 {offsets = [0, 32], sizes = [1, 32], strides = [1, 1]} : vector<1x96xf32> to vector<1x32xf32>
    %369 = vector.extract_strided_slice %358 {offsets = [0, 32], sizes = [1, 32], strides = [1, 1]} : vector<1x96xf32> to vector<1x32xf32>
    %370 = arith.addf %368, %369 : vector<1x32xf32>
    %371 = arith.negf %370 : vector<1x32xf32>
    %372 = math.exp %371 : vector<1x32xf32>
    %cst_136 = arith.constant 1.000000e+00 : f32
    %373 = vector.broadcast %cst_136 : f32 to vector<1x32xf32>
    %374 = arith.addf %373, %372 : vector<1x32xf32>
    %375 = arith.divf %373, %374 : vector<1x32xf32>
    %376 = vector.extract_strided_slice %357 {offsets = [0, 64], sizes = [1, 32], strides = [1, 1]} : vector<1x96xf32> to vector<1x32xf32>
    %377 = vector.extract_strided_slice %358 {offsets = [0, 64], sizes = [1, 32], strides = [1, 1]} : vector<1x96xf32> to vector<1x32xf32>
    %378 = arith.mulf %367, %377 : vector<1x32xf32>
    %379 = arith.addf %376, %378 : vector<1x32xf32>
    %380 = math.tanh %379 : vector<1x32xf32>
    %cst_137 = arith.constant 1.000000e+00 : f32
    %381 = vector.broadcast %cst_137 : f32 to vector<1x32xf32>
    %382 = arith.subf %381, %375 : vector<1x32xf32>
    %383 = arith.mulf %382, %380 : vector<1x32xf32>
    %384 = arith.mulf %375, %359 : vector<1x32xf32>
    %385 = arith.addf %383, %384 : vector<1x32xf32>
    %c2_138 = arith.constant 2 : index
    %c0_139 = arith.constant 0 : index
    %386 = vector.load %arg22[%c2_138, %c0_139] : memref<16x64xf32, #tpu.memory_space<vmem>>, vector<1x32xf32>
    tpu.vector_store %arg22[%c2_138, %c0_139], %356 {strides = array<i32>} : memref<16x64xf32, #tpu.memory_space<vmem>>, vector<1x32xf32>,
    %c13 = arith.constant 13 : index
    %c32_140 = arith.constant 32 : index
    %387 = vector.load %arg22[%c13, %c32_140] : memref<16x64xf32, #tpu.memory_space<vmem>>, vector<1x32xf32>
    tpu.vector_store %arg22[%c13, %c32_140], %385 {strides = array<i32>} : memref<16x64xf32, #tpu.memory_space<vmem>>, vector<1x32xf32>,
    %388 = tpu.concatenate %356, %385 in 1 : vector<1x32xf32>, vector<1x32xf32> -> vector<1x64xf32>
    %c0_141 = arith.constant 0 : index
    %c0_142 = arith.constant 0 : index
    %389 = vector.load %arg19[%c0_141, %c0_142] : memref<64x192xf32, #tpu.memory_space<vmem>>, vector<64x192xf32>
    %cst_143 = arith.constant dense<0.000000e+00> : vector<1x192xf32>
    %390 = tpu.matmul %388, %389, %cst_143 {dimension_numbers = #tpu.dot_dimension_numbers<[1], [0], [0], [1], [0, 0, 1, 1], [], []>} : vector<1x64xf32>, vector<64x192xf32>, vector<1x192xf32> -> vector<1x192xf32>
    %c0_144 = arith.constant 0 : index
    %c0_145 = arith.constant 0 : index
    %391 = vector.load %arg20[%c0_144, %c0_145] : memref<1x192xf32, #tpu.memory_space<vmem>>, vector<1x192xf32>
    %392 = arith.addf %390, %391 : vector<1x192xf32>
    %393 = vector.extract_strided_slice %191 {offsets = [3, 0], sizes = [1, 96], strides = [1, 1]} : vector<16x96xf32> to vector<1x96xf32>
    %394 = vector.extract_strided_slice %392 {offsets = [0, 0], sizes = [1, 96], strides = [1, 1]} : vector<1x192xf32> to vector<1x96xf32>
    %395 = vector.extract_strided_slice %388 {offsets = [0, 0], sizes = [1, 32], strides = [1, 1]} : vector<1x64xf32> to vector<1x32xf32>
    %396 = vector.extract_strided_slice %393 {offsets = [0, 0], sizes = [1, 32], strides = [1, 1]} : vector<1x96xf32> to vector<1x32xf32>
    %397 = vector.extract_strided_slice %394 {offsets = [0, 0], sizes = [1, 32], strides = [1, 1]} : vector<1x96xf32> to vector<1x32xf32>
    %398 = arith.addf %396, %397 : vector<1x32xf32>
    %399 = arith.negf %398 : vector<1x32xf32>
    %400 = math.exp %399 : vector<1x32xf32>
    %cst_146 = arith.constant 1.000000e+00 : f32
    %401 = vector.broadcast %cst_146 : f32 to vector<1x32xf32>
    %402 = arith.addf %401, %400 : vector<1x32xf32>
    %403 = arith.divf %401, %402 : vector<1x32xf32>
    %404 = vector.extract_strided_slice %393 {offsets = [0, 32], sizes = [1, 32], strides = [1, 1]} : vector<1x96xf32> to vector<1x32xf32>
    %405 = vector.extract_strided_slice %394 {offsets = [0, 32], sizes = [1, 32], strides = [1, 1]} : vector<1x96xf32> to vector<1x32xf32>
    %406 = arith.addf %404, %405 : vector<1x32xf32>
    %407 = arith.negf %406 : vector<1x32xf32>
    %408 = math.exp %407 : vector<1x32xf32>
    %cst_147 = arith.constant 1.000000e+00 : f32
    %409 = vector.broadcast %cst_147 : f32 to vector<1x32xf32>
    %410 = arith.addf %409, %408 : vector<1x32xf32>
    %411 = arith.divf %409, %410 : vector<1x32xf32>
    %412 = vector.extract_strided_slice %393 {offsets = [0, 64], sizes = [1, 32], strides = [1, 1]} : vector<1x96xf32> to vector<1x32xf32>
    %413 = vector.extract_strided_slice %394 {offsets = [0, 64], sizes = [1, 32], strides = [1, 1]} : vector<1x96xf32> to vector<1x32xf32>
    %414 = arith.mulf %403, %413 : vector<1x32xf32>
    %415 = arith.addf %412, %414 : vector<1x32xf32>
    %416 = math.tanh %415 : vector<1x32xf32>
    %cst_148 = arith.constant 1.000000e+00 : f32
    %417 = vector.broadcast %cst_148 : f32 to vector<1x32xf32>
    %418 = arith.subf %417, %411 : vector<1x32xf32>
    %419 = arith.mulf %418, %416 : vector<1x32xf32>
    %420 = arith.mulf %411, %395 : vector<1x32xf32>
    %421 = arith.addf %419, %420 : vector<1x32xf32>
    %422 = vector.extract_strided_slice %192 {offsets = [12, 0], sizes = [1, 96], strides = [1, 1]} : vector<16x96xf32> to vector<1x96xf32>
    %423 = vector.extract_strided_slice %392 {offsets = [0, 96], sizes = [1, 96], strides = [1, 1]} : vector<1x192xf32> to vector<1x96xf32>
    %424 = vector.extract_strided_slice %388 {offsets = [0, 32], sizes = [1, 32], strides = [1, 1]} : vector<1x64xf32> to vector<1x32xf32>
    %425 = vector.extract_strided_slice %422 {offsets = [0, 0], sizes = [1, 32], strides = [1, 1]} : vector<1x96xf32> to vector<1x32xf32>
    %426 = vector.extract_strided_slice %423 {offsets = [0, 0], sizes = [1, 32], strides = [1, 1]} : vector<1x96xf32> to vector<1x32xf32>
    %427 = arith.addf %425, %426 : vector<1x32xf32>
    %428 = arith.negf %427 : vector<1x32xf32>
    %429 = math.exp %428 : vector<1x32xf32>
    %cst_149 = arith.constant 1.000000e+00 : f32
    %430 = vector.broadcast %cst_149 : f32 to vector<1x32xf32>
    %431 = arith.addf %430, %429 : vector<1x32xf32>
    %432 = arith.divf %430, %431 : vector<1x32xf32>
    %433 = vector.extract_strided_slice %422 {offsets = [0, 32], sizes = [1, 32], strides = [1, 1]} : vector<1x96xf32> to vector<1x32xf32>
    %434 = vector.extract_strided_slice %423 {offsets = [0, 32], sizes = [1, 32], strides = [1, 1]} : vector<1x96xf32> to vector<1x32xf32>
    %435 = arith.addf %433, %434 : vector<1x32xf32>
    %436 = arith.negf %435 : vector<1x32xf32>
    %437 = math.exp %436 : vector<1x32xf32>
    %cst_150 = arith.constant 1.000000e+00 : f32
    %438 = vector.broadcast %cst_150 : f32 to vector<1x32xf32>
    %439 = arith.addf %438, %437 : vector<1x32xf32>
    %440 = arith.divf %438, %439 : vector<1x32xf32>
    %441 = vector.extract_strided_slice %422 {offsets = [0, 64], sizes = [1, 32], strides = [1, 1]} : vector<1x96xf32> to vector<1x32xf32>
    %442 = vector.extract_strided_slice %423 {offsets = [0, 64], sizes = [1, 32], strides = [1, 1]} : vector<1x96xf32> to vector<1x32xf32>
    %443 = arith.mulf %432, %442 : vector<1x32xf32>
    %444 = arith.addf %441, %443 : vector<1x32xf32>
    %445 = math.tanh %444 : vector<1x32xf32>
    %cst_151 = arith.constant 1.000000e+00 : f32
    %446 = vector.broadcast %cst_151 : f32 to vector<1x32xf32>
    %447 = arith.subf %446, %440 : vector<1x32xf32>
    %448 = arith.mulf %447, %445 : vector<1x32xf32>
    %449 = arith.mulf %440, %424 : vector<1x32xf32>
    %450 = arith.addf %448, %449 : vector<1x32xf32>
    %c3_152 = arith.constant 3 : index
    %c0_153 = arith.constant 0 : index
    %451 = vector.load %arg22[%c3_152, %c0_153] : memref<16x64xf32, #tpu.memory_space<vmem>>, vector<1x32xf32>
    tpu.vector_store %arg22[%c3_152, %c0_153], %421 {strides = array<i32>} : memref<16x64xf32, #tpu.memory_space<vmem>>, vector<1x32xf32>,
    %c12 = arith.constant 12 : index
    %c32_154 = arith.constant 32 : index
    %452 = vector.load %arg22[%c12, %c32_154] : memref<16x64xf32, #tpu.memory_space<vmem>>, vector<1x32xf32>
    tpu.vector_store %arg22[%c12, %c32_154], %450 {strides = array<i32>} : memref<16x64xf32, #tpu.memory_space<vmem>>, vector<1x32xf32>,
    %453 = tpu.concatenate %421, %450 in 1 : vector<1x32xf32>, vector<1x32xf32> -> vector<1x64xf32>
    %c0_155 = arith.constant 0 : index
    %c0_156 = arith.constant 0 : index
    %454 = vector.load %arg19[%c0_155, %c0_156] : memref<64x192xf32, #tpu.memory_space<vmem>>, vector<64x192xf32>
    %cst_157 = arith.constant dense<0.000000e+00> : vector<1x192xf32>
    %455 = tpu.matmul %453, %454, %cst_157 {dimension_numbers = #tpu.dot_dimension_numbers<[1], [0], [0], [1], [0, 0, 1, 1], [], []>} : vector<1x64xf32>, vector<64x192xf32>, vector<1x192xf32> -> vector<1x192xf32>
    %c0_158 = arith.constant 0 : index
    %c0_159 = arith.constant 0 : index
    %456 = vector.load %arg20[%c0_158, %c0_159] : memref<1x192xf32, #tpu.memory_space<vmem>>, vector<1x192xf32>
    %457 = arith.addf %455, %456 : vector<1x192xf32>
    %458 = vector.extract_strided_slice %191 {offsets = [4, 0], sizes = [1, 96], strides = [1, 1]} : vector<16x96xf32> to vector<1x96xf32>
    %459 = vector.extract_strided_slice %457 {offsets = [0, 0], sizes = [1, 96], strides = [1, 1]} : vector<1x192xf32> to vector<1x96xf32>
    %460 = vector.extract_strided_slice %453 {offsets = [0, 0], sizes = [1, 32], strides = [1, 1]} : vector<1x64xf32> to vector<1x32xf32>
    %461 = vector.extract_strided_slice %458 {offsets = [0, 0], sizes = [1, 32], strides = [1, 1]} : vector<1x96xf32> to vector<1x32xf32>
    %462 = vector.extract_strided_slice %459 {offsets = [0, 0], sizes = [1, 32], strides = [1, 1]} : vector<1x96xf32> to vector<1x32xf32>
    %463 = arith.addf %461, %462 : vector<1x32xf32>
    %464 = arith.negf %463 : vector<1x32xf32>
    %465 = math.exp %464 : vector<1x32xf32>
    %cst_160 = arith.constant 1.000000e+00 : f32
    %466 = vector.broadcast %cst_160 : f32 to vector<1x32xf32>
    %467 = arith.addf %466, %465 : vector<1x32xf32>
    %468 = arith.divf %466, %467 : vector<1x32xf32>
    %469 = vector.extract_strided_slice %458 {offsets = [0, 32], sizes = [1, 32], strides = [1, 1]} : vector<1x96xf32> to vector<1x32xf32>
    %470 = vector.extract_strided_slice %459 {offsets = [0, 32], sizes = [1, 32], strides = [1, 1]} : vector<1x96xf32> to vector<1x32xf32>
    %471 = arith.addf %469, %470 : vector<1x32xf32>
    %472 = arith.negf %471 : vector<1x32xf32>
    %473 = math.exp %472 : vector<1x32xf32>
    %cst_161 = arith.constant 1.000000e+00 : f32
    %474 = vector.broadcast %cst_161 : f32 to vector<1x32xf32>
    %475 = arith.addf %474, %473 : vector<1x32xf32>
    %476 = arith.divf %474, %475 : vector<1x32xf32>
    %477 = vector.extract_strided_slice %458 {offsets = [0, 64], sizes = [1, 32], strides = [1, 1]} : vector<1x96xf32> to vector<1x32xf32>
    %478 = vector.extract_strided_slice %459 {offsets = [0, 64], sizes = [1, 32], strides = [1, 1]} : vector<1x96xf32> to vector<1x32xf32>
    %479 = arith.mulf %468, %478 : vector<1x32xf32>
    %480 = arith.addf %477, %479 : vector<1x32xf32>
    %481 = math.tanh %480 : vector<1x32xf32>
    %cst_162 = arith.constant 1.000000e+00 : f32
    %482 = vector.broadcast %cst_162 : f32 to vector<1x32xf32>
    %483 = arith.subf %482, %476 : vector<1x32xf32>
    %484 = arith.mulf %483, %481 : vector<1x32xf32>
    %485 = arith.mulf %476, %460 : vector<1x32xf32>
    %486 = arith.addf %484, %485 : vector<1x32xf32>
    %487 = vector.extract_strided_slice %192 {offsets = [11, 0], sizes = [1, 96], strides = [1, 1]} : vector<16x96xf32> to vector<1x96xf32>
    %488 = vector.extract_strided_slice %457 {offsets = [0, 96], sizes = [1, 96], strides = [1, 1]} : vector<1x192xf32> to vector<1x96xf32>
    %489 = vector.extract_strided_slice %453 {offsets = [0, 32], sizes = [1, 32], strides = [1, 1]} : vector<1x64xf32> to vector<1x32xf32>
    %490 = vector.extract_strided_slice %487 {offsets = [0, 0], sizes = [1, 32], strides = [1, 1]} : vector<1x96xf32> to vector<1x32xf32>
    %491 = vector.extract_strided_slice %488 {offsets = [0, 0], sizes = [1, 32], strides = [1, 1]} : vector<1x96xf32> to vector<1x32xf32>
    %492 = arith.addf %490, %491 : vector<1x32xf32>
    %493 = arith.negf %492 : vector<1x32xf32>
    %494 = math.exp %493 : vector<1x32xf32>
    %cst_163 = arith.constant 1.000000e+00 : f32
    %495 = vector.broadcast %cst_163 : f32 to vector<1x32xf32>
    %496 = arith.addf %495, %494 : vector<1x32xf32>
    %497 = arith.divf %495, %496 : vector<1x32xf32>
    %498 = vector.extract_strided_slice %487 {offsets = [0, 32], sizes = [1, 32], strides = [1, 1]} : vector<1x96xf32> to vector<1x32xf32>
    %499 = vector.extract_strided_slice %488 {offsets = [0, 32], sizes = [1, 32], strides = [1, 1]} : vector<1x96xf32> to vector<1x32xf32>
    %500 = arith.addf %498, %499 : vector<1x32xf32>
    %501 = arith.negf %500 : vector<1x32xf32>
    %502 = math.exp %501 : vector<1x32xf32>
    %cst_164 = arith.constant 1.000000e+00 : f32
    %503 = vector.broadcast %cst_164 : f32 to vector<1x32xf32>
    %504 = arith.addf %503, %502 : vector<1x32xf32>
    %505 = arith.divf %503, %504 : vector<1x32xf32>
    %506 = vector.extract_strided_slice %487 {offsets = [0, 64], sizes = [1, 32], strides = [1, 1]} : vector<1x96xf32> to vector<1x32xf32>
    %507 = vector.extract_strided_slice %488 {offsets = [0, 64], sizes = [1, 32], strides = [1, 1]} : vector<1x96xf32> to vector<1x32xf32>
    %508 = arith.mulf %497, %507 : vector<1x32xf32>
    %509 = arith.addf %506, %508 : vector<1x32xf32>
    %510 = math.tanh %509 : vector<1x32xf32>
    %cst_165 = arith.constant 1.000000e+00 : f32
    %511 = vector.broadcast %cst_165 : f32 to vector<1x32xf32>
    %512 = arith.subf %511, %505 : vector<1x32xf32>
    %513 = arith.mulf %512, %510 : vector<1x32xf32>
    %514 = arith.mulf %505, %489 : vector<1x32xf32>
    %515 = arith.addf %513, %514 : vector<1x32xf32>
    %c4 = arith.constant 4 : index
    %c0_166 = arith.constant 0 : index
    %516 = vector.load %arg22[%c4, %c0_166] : memref<16x64xf32, #tpu.memory_space<vmem>>, vector<1x32xf32>
    tpu.vector_store %arg22[%c4, %c0_166], %486 {strides = array<i32>} : memref<16x64xf32, #tpu.memory_space<vmem>>, vector<1x32xf32>,
    %c11 = arith.constant 11 : index
    %c32_167 = arith.constant 32 : index
    %517 = vector.load %arg22[%c11, %c32_167] : memref<16x64xf32, #tpu.memory_space<vmem>>, vector<1x32xf32>
    tpu.vector_store %arg22[%c11, %c32_167], %515 {strides = array<i32>} : memref<16x64xf32, #tpu.memory_space<vmem>>, vector<1x32xf32>,
    %518 = tpu.concatenate %486, %515 in 1 : vector<1x32xf32>, vector<1x32xf32> -> vector<1x64xf32>
    %c0_168 = arith.constant 0 : index
    %c0_169 = arith.constant 0 : index
    %519 = vector.load %arg19[%c0_168, %c0_169] : memref<64x192xf32, #tpu.memory_space<vmem>>, vector<64x192xf32>
    %cst_170 = arith.constant dense<0.000000e+00> : vector<1x192xf32>
    %520 = tpu.matmul %518, %519, %cst_170 {dimension_numbers = #tpu.dot_dimension_numbers<[1], [0], [0], [1], [0, 0, 1, 1], [], []>} : vector<1x64xf32>, vector<64x192xf32>, vector<1x192xf32> -> vector<1x192xf32>
    %c0_171 = arith.constant 0 : index
    %c0_172 = arith.constant 0 : index
    %521 = vector.load %arg20[%c0_171, %c0_172] : memref<1x192xf32, #tpu.memory_space<vmem>>, vector<1x192xf32>
    %522 = arith.addf %520, %521 : vector<1x192xf32>
    %523 = vector.extract_strided_slice %191 {offsets = [5, 0], sizes = [1, 96], strides = [1, 1]} : vector<16x96xf32> to vector<1x96xf32>
    %524 = vector.extract_strided_slice %522 {offsets = [0, 0], sizes = [1, 96], strides = [1, 1]} : vector<1x192xf32> to vector<1x96xf32>
    %525 = vector.extract_strided_slice %518 {offsets = [0, 0], sizes = [1, 32], strides = [1, 1]} : vector<1x64xf32> to vector<1x32xf32>
    %526 = vector.extract_strided_slice %523 {offsets = [0, 0], sizes = [1, 32], strides = [1, 1]} : vector<1x96xf32> to vector<1x32xf32>
    %527 = vector.extract_strided_slice %524 {offsets = [0, 0], sizes = [1, 32], strides = [1, 1]} : vector<1x96xf32> to vector<1x32xf32>
    %528 = arith.addf %526, %527 : vector<1x32xf32>
    %529 = arith.negf %528 : vector<1x32xf32>
    %530 = math.exp %529 : vector<1x32xf32>
    %cst_173 = arith.constant 1.000000e+00 : f32
    %531 = vector.broadcast %cst_173 : f32 to vector<1x32xf32>
    %532 = arith.addf %531, %530 : vector<1x32xf32>
    %533 = arith.divf %531, %532 : vector<1x32xf32>
    %534 = vector.extract_strided_slice %523 {offsets = [0, 32], sizes = [1, 32], strides = [1, 1]} : vector<1x96xf32> to vector<1x32xf32>
    %535 = vector.extract_strided_slice %524 {offsets = [0, 32], sizes = [1, 32], strides = [1, 1]} : vector<1x96xf32> to vector<1x32xf32>
    %536 = arith.addf %534, %535 : vector<1x32xf32>
    %537 = arith.negf %536 : vector<1x32xf32>
    %538 = math.exp %537 : vector<1x32xf32>
    %cst_174 = arith.constant 1.000000e+00 : f32
    %539 = vector.broadcast %cst_174 : f32 to vector<1x32xf32>
    %540 = arith.addf %539, %538 : vector<1x32xf32>
    %541 = arith.divf %539, %540 : vector<1x32xf32>
    %542 = vector.extract_strided_slice %523 {offsets = [0, 64], sizes = [1, 32], strides = [1, 1]} : vector<1x96xf32> to vector<1x32xf32>
    %543 = vector.extract_strided_slice %524 {offsets = [0, 64], sizes = [1, 32], strides = [1, 1]} : vector<1x96xf32> to vector<1x32xf32>
    %544 = arith.mulf %533, %543 : vector<1x32xf32>
    %545 = arith.addf %542, %544 : vector<1x32xf32>
    %546 = math.tanh %545 : vector<1x32xf32>
    %cst_175 = arith.constant 1.000000e+00 : f32
    %547 = vector.broadcast %cst_175 : f32 to vector<1x32xf32>
    %548 = arith.subf %547, %541 : vector<1x32xf32>
    %549 = arith.mulf %548, %546 : vector<1x32xf32>
    %550 = arith.mulf %541, %525 : vector<1x32xf32>
    %551 = arith.addf %549, %550 : vector<1x32xf32>
    %552 = vector.extract_strided_slice %192 {offsets = [10, 0], sizes = [1, 96], strides = [1, 1]} : vector<16x96xf32> to vector<1x96xf32>
    %553 = vector.extract_strided_slice %522 {offsets = [0, 96], sizes = [1, 96], strides = [1, 1]} : vector<1x192xf32> to vector<1x96xf32>
    %554 = vector.extract_strided_slice %518 {offsets = [0, 32], sizes = [1, 32], strides = [1, 1]} : vector<1x64xf32> to vector<1x32xf32>
    %555 = vector.extract_strided_slice %552 {offsets = [0, 0], sizes = [1, 32], strides = [1, 1]} : vector<1x96xf32> to vector<1x32xf32>
    %556 = vector.extract_strided_slice %553 {offsets = [0, 0], sizes = [1, 32], strides = [1, 1]} : vector<1x96xf32> to vector<1x32xf32>
    %557 = arith.addf %555, %556 : vector<1x32xf32>
    %558 = arith.negf %557 : vector<1x32xf32>
    %559 = math.exp %558 : vector<1x32xf32>
    %cst_176 = arith.constant 1.000000e+00 : f32
    %560 = vector.broadcast %cst_176 : f32 to vector<1x32xf32>
    %561 = arith.addf %560, %559 : vector<1x32xf32>
    %562 = arith.divf %560, %561 : vector<1x32xf32>
    %563 = vector.extract_strided_slice %552 {offsets = [0, 32], sizes = [1, 32], strides = [1, 1]} : vector<1x96xf32> to vector<1x32xf32>
    %564 = vector.extract_strided_slice %553 {offsets = [0, 32], sizes = [1, 32], strides = [1, 1]} : vector<1x96xf32> to vector<1x32xf32>
    %565 = arith.addf %563, %564 : vector<1x32xf32>
    %566 = arith.negf %565 : vector<1x32xf32>
    %567 = math.exp %566 : vector<1x32xf32>
    %cst_177 = arith.constant 1.000000e+00 : f32
    %568 = vector.broadcast %cst_177 : f32 to vector<1x32xf32>
    %569 = arith.addf %568, %567 : vector<1x32xf32>
    %570 = arith.divf %568, %569 : vector<1x32xf32>
    %571 = vector.extract_strided_slice %552 {offsets = [0, 64], sizes = [1, 32], strides = [1, 1]} : vector<1x96xf32> to vector<1x32xf32>
    %572 = vector.extract_strided_slice %553 {offsets = [0, 64], sizes = [1, 32], strides = [1, 1]} : vector<1x96xf32> to vector<1x32xf32>
    %573 = arith.mulf %562, %572 : vector<1x32xf32>
    %574 = arith.addf %571, %573 : vector<1x32xf32>
    %575 = math.tanh %574 : vector<1x32xf32>
    %cst_178 = arith.constant 1.000000e+00 : f32
    %576 = vector.broadcast %cst_178 : f32 to vector<1x32xf32>
    %577 = arith.subf %576, %570 : vector<1x32xf32>
    %578 = arith.mulf %577, %575 : vector<1x32xf32>
    %579 = arith.mulf %570, %554 : vector<1x32xf32>
    %580 = arith.addf %578, %579 : vector<1x32xf32>
    %c5 = arith.constant 5 : index
    %c0_179 = arith.constant 0 : index
    %581 = vector.load %arg22[%c5, %c0_179] : memref<16x64xf32, #tpu.memory_space<vmem>>, vector<1x32xf32>
    tpu.vector_store %arg22[%c5, %c0_179], %551 {strides = array<i32>} : memref<16x64xf32, #tpu.memory_space<vmem>>, vector<1x32xf32>,
    %c10 = arith.constant 10 : index
    %c32_180 = arith.constant 32 : index
    %582 = vector.load %arg22[%c10, %c32_180] : memref<16x64xf32, #tpu.memory_space<vmem>>, vector<1x32xf32>
    tpu.vector_store %arg22[%c10, %c32_180], %580 {strides = array<i32>} : memref<16x64xf32, #tpu.memory_space<vmem>>, vector<1x32xf32>,
    %583 = tpu.concatenate %551, %580 in 1 : vector<1x32xf32>, vector<1x32xf32> -> vector<1x64xf32>
    %c0_181 = arith.constant 0 : index
    %c0_182 = arith.constant 0 : index
    %584 = vector.load %arg19[%c0_181, %c0_182] : memref<64x192xf32, #tpu.memory_space<vmem>>, vector<64x192xf32>
    %cst_183 = arith.constant dense<0.000000e+00> : vector<1x192xf32>
    %585 = tpu.matmul %583, %584, %cst_183 {dimension_numbers = #tpu.dot_dimension_numbers<[1], [0], [0], [1], [0, 0, 1, 1], [], []>} : vector<1x64xf32>, vector<64x192xf32>, vector<1x192xf32> -> vector<1x192xf32>
    %c0_184 = arith.constant 0 : index
    %c0_185 = arith.constant 0 : index
    %586 = vector.load %arg20[%c0_184, %c0_185] : memref<1x192xf32, #tpu.memory_space<vmem>>, vector<1x192xf32>
    %587 = arith.addf %585, %586 : vector<1x192xf32>
    %588 = vector.extract_strided_slice %191 {offsets = [6, 0], sizes = [1, 96], strides = [1, 1]} : vector<16x96xf32> to vector<1x96xf32>
    %589 = vector.extract_strided_slice %587 {offsets = [0, 0], sizes = [1, 96], strides = [1, 1]} : vector<1x192xf32> to vector<1x96xf32>
    %590 = vector.extract_strided_slice %583 {offsets = [0, 0], sizes = [1, 32], strides = [1, 1]} : vector<1x64xf32> to vector<1x32xf32>
    %591 = vector.extract_strided_slice %588 {offsets = [0, 0], sizes = [1, 32], strides = [1, 1]} : vector<1x96xf32> to vector<1x32xf32>
    %592 = vector.extract_strided_slice %589 {offsets = [0, 0], sizes = [1, 32], strides = [1, 1]} : vector<1x96xf32> to vector<1x32xf32>
    %593 = arith.addf %591, %592 : vector<1x32xf32>
    %594 = arith.negf %593 : vector<1x32xf32>
    %595 = math.exp %594 : vector<1x32xf32>
    %cst_186 = arith.constant 1.000000e+00 : f32
    %596 = vector.broadcast %cst_186 : f32 to vector<1x32xf32>
    %597 = arith.addf %596, %595 : vector<1x32xf32>
    %598 = arith.divf %596, %597 : vector<1x32xf32>
    %599 = vector.extract_strided_slice %588 {offsets = [0, 32], sizes = [1, 32], strides = [1, 1]} : vector<1x96xf32> to vector<1x32xf32>
    %600 = vector.extract_strided_slice %589 {offsets = [0, 32], sizes = [1, 32], strides = [1, 1]} : vector<1x96xf32> to vector<1x32xf32>
    %601 = arith.addf %599, %600 : vector<1x32xf32>
    %602 = arith.negf %601 : vector<1x32xf32>
    %603 = math.exp %602 : vector<1x32xf32>
    %cst_187 = arith.constant 1.000000e+00 : f32
    %604 = vector.broadcast %cst_187 : f32 to vector<1x32xf32>
    %605 = arith.addf %604, %603 : vector<1x32xf32>
    %606 = arith.divf %604, %605 : vector<1x32xf32>
    %607 = vector.extract_strided_slice %588 {offsets = [0, 64], sizes = [1, 32], strides = [1, 1]} : vector<1x96xf32> to vector<1x32xf32>
    %608 = vector.extract_strided_slice %589 {offsets = [0, 64], sizes = [1, 32], strides = [1, 1]} : vector<1x96xf32> to vector<1x32xf32>
    %609 = arith.mulf %598, %608 : vector<1x32xf32>
    %610 = arith.addf %607, %609 : vector<1x32xf32>
    %611 = math.tanh %610 : vector<1x32xf32>
    %cst_188 = arith.constant 1.000000e+00 : f32
    %612 = vector.broadcast %cst_188 : f32 to vector<1x32xf32>
    %613 = arith.subf %612, %606 : vector<1x32xf32>
    %614 = arith.mulf %613, %611 : vector<1x32xf32>
    %615 = arith.mulf %606, %590 : vector<1x32xf32>
    %616 = arith.addf %614, %615 : vector<1x32xf32>
    %617 = vector.extract_strided_slice %192 {offsets = [9, 0], sizes = [1, 96], strides = [1, 1]} : vector<16x96xf32> to vector<1x96xf32>
    %618 = vector.extract_strided_slice %587 {offsets = [0, 96], sizes = [1, 96], strides = [1, 1]} : vector<1x192xf32> to vector<1x96xf32>
    %619 = vector.extract_strided_slice %583 {offsets = [0, 32], sizes = [1, 32], strides = [1, 1]} : vector<1x64xf32> to vector<1x32xf32>
    %620 = vector.extract_strided_slice %617 {offsets = [0, 0], sizes = [1, 32], strides = [1, 1]} : vector<1x96xf32> to vector<1x32xf32>
    %621 = vector.extract_strided_slice %618 {offsets = [0, 0], sizes = [1, 32], strides = [1, 1]} : vector<1x96xf32> to vector<1x32xf32>
    %622 = arith.addf %620, %621 : vector<1x32xf32>
    %623 = arith.negf %622 : vector<1x32xf32>
    %624 = math.exp %623 : vector<1x32xf32>
    %cst_189 = arith.constant 1.000000e+00 : f32
    %625 = vector.broadcast %cst_189 : f32 to vector<1x32xf32>
    %626 = arith.addf %625, %624 : vector<1x32xf32>
    %627 = arith.divf %625, %626 : vector<1x32xf32>
    %628 = vector.extract_strided_slice %617 {offsets = [0, 32], sizes = [1, 32], strides = [1, 1]} : vector<1x96xf32> to vector<1x32xf32>
    %629 = vector.extract_strided_slice %618 {offsets = [0, 32], sizes = [1, 32], strides = [1, 1]} : vector<1x96xf32> to vector<1x32xf32>
    %630 = arith.addf %628, %629 : vector<1x32xf32>
    %631 = arith.negf %630 : vector<1x32xf32>
    %632 = math.exp %631 : vector<1x32xf32>
    %cst_190 = arith.constant 1.000000e+00 : f32
    %633 = vector.broadcast %cst_190 : f32 to vector<1x32xf32>
    %634 = arith.addf %633, %632 : vector<1x32xf32>
    %635 = arith.divf %633, %634 : vector<1x32xf32>
    %636 = vector.extract_strided_slice %617 {offsets = [0, 64], sizes = [1, 32], strides = [1, 1]} : vector<1x96xf32> to vector<1x32xf32>
    %637 = vector.extract_strided_slice %618 {offsets = [0, 64], sizes = [1, 32], strides = [1, 1]} : vector<1x96xf32> to vector<1x32xf32>
    %638 = arith.mulf %627, %637 : vector<1x32xf32>
    %639 = arith.addf %636, %638 : vector<1x32xf32>
    %640 = math.tanh %639 : vector<1x32xf32>
    %cst_191 = arith.constant 1.000000e+00 : f32
    %641 = vector.broadcast %cst_191 : f32 to vector<1x32xf32>
    %642 = arith.subf %641, %635 : vector<1x32xf32>
    %643 = arith.mulf %642, %640 : vector<1x32xf32>
    %644 = arith.mulf %635, %619 : vector<1x32xf32>
    %645 = arith.addf %643, %644 : vector<1x32xf32>
    %c6 = arith.constant 6 : index
    %c0_192 = arith.constant 0 : index
    %646 = vector.load %arg22[%c6, %c0_192] : memref<16x64xf32, #tpu.memory_space<vmem>>, vector<1x32xf32>
    tpu.vector_store %arg22[%c6, %c0_192], %616 {strides = array<i32>} : memref<16x64xf32, #tpu.memory_space<vmem>>, vector<1x32xf32>,
    %c9 = arith.constant 9 : index
    %c32_193 = arith.constant 32 : index
    %647 = vector.load %arg22[%c9, %c32_193] : memref<16x64xf32, #tpu.memory_space<vmem>>, vector<1x32xf32>
    tpu.vector_store %arg22[%c9, %c32_193], %645 {strides = array<i32>} : memref<16x64xf32, #tpu.memory_space<vmem>>, vector<1x32xf32>,
    %648 = tpu.concatenate %616, %645 in 1 : vector<1x32xf32>, vector<1x32xf32> -> vector<1x64xf32>
    %c0_194 = arith.constant 0 : index
    %c0_195 = arith.constant 0 : index
    %649 = vector.load %arg19[%c0_194, %c0_195] : memref<64x192xf32, #tpu.memory_space<vmem>>, vector<64x192xf32>
    %cst_196 = arith.constant dense<0.000000e+00> : vector<1x192xf32>
    %650 = tpu.matmul %648, %649, %cst_196 {dimension_numbers = #tpu.dot_dimension_numbers<[1], [0], [0], [1], [0, 0, 1, 1], [], []>} : vector<1x64xf32>, vector<64x192xf32>, vector<1x192xf32> -> vector<1x192xf32>
    %c0_197 = arith.constant 0 : index
    %c0_198 = arith.constant 0 : index
    %651 = vector.load %arg20[%c0_197, %c0_198] : memref<1x192xf32, #tpu.memory_space<vmem>>, vector<1x192xf32>
    %652 = arith.addf %650, %651 : vector<1x192xf32>
    %653 = vector.extract_strided_slice %191 {offsets = [7, 0], sizes = [1, 96], strides = [1, 1]} : vector<16x96xf32> to vector<1x96xf32>
    %654 = vector.extract_strided_slice %652 {offsets = [0, 0], sizes = [1, 96], strides = [1, 1]} : vector<1x192xf32> to vector<1x96xf32>
    %655 = vector.extract_strided_slice %648 {offsets = [0, 0], sizes = [1, 32], strides = [1, 1]} : vector<1x64xf32> to vector<1x32xf32>
    %656 = vector.extract_strided_slice %653 {offsets = [0, 0], sizes = [1, 32], strides = [1, 1]} : vector<1x96xf32> to vector<1x32xf32>
    %657 = vector.extract_strided_slice %654 {offsets = [0, 0], sizes = [1, 32], strides = [1, 1]} : vector<1x96xf32> to vector<1x32xf32>
    %658 = arith.addf %656, %657 : vector<1x32xf32>
    %659 = arith.negf %658 : vector<1x32xf32>
    %660 = math.exp %659 : vector<1x32xf32>
    %cst_199 = arith.constant 1.000000e+00 : f32
    %661 = vector.broadcast %cst_199 : f32 to vector<1x32xf32>
    %662 = arith.addf %661, %660 : vector<1x32xf32>
    %663 = arith.divf %661, %662 : vector<1x32xf32>
    %664 = vector.extract_strided_slice %653 {offsets = [0, 32], sizes = [1, 32], strides = [1, 1]} : vector<1x96xf32> to vector<1x32xf32>
    %665 = vector.extract_strided_slice %654 {offsets = [0, 32], sizes = [1, 32], strides = [1, 1]} : vector<1x96xf32> to vector<1x32xf32>
    %666 = arith.addf %664, %665 : vector<1x32xf32>
    %667 = arith.negf %666 : vector<1x32xf32>
    %668 = math.exp %667 : vector<1x32xf32>
    %cst_200 = arith.constant 1.000000e+00 : f32
    %669 = vector.broadcast %cst_200 : f32 to vector<1x32xf32>
    %670 = arith.addf %669, %668 : vector<1x32xf32>
    %671 = arith.divf %669, %670 : vector<1x32xf32>
    %672 = vector.extract_strided_slice %653 {offsets = [0, 64], sizes = [1, 32], strides = [1, 1]} : vector<1x96xf32> to vector<1x32xf32>
    %673 = vector.extract_strided_slice %654 {offsets = [0, 64], sizes = [1, 32], strides = [1, 1]} : vector<1x96xf32> to vector<1x32xf32>
    %674 = arith.mulf %663, %673 : vector<1x32xf32>
    %675 = arith.addf %672, %674 : vector<1x32xf32>
    %676 = math.tanh %675 : vector<1x32xf32>
    %cst_201 = arith.constant 1.000000e+00 : f32
    %677 = vector.broadcast %cst_201 : f32 to vector<1x32xf32>
    %678 = arith.subf %677, %671 : vector<1x32xf32>
    %679 = arith.mulf %678, %676 : vector<1x32xf32>
    %680 = arith.mulf %671, %655 : vector<1x32xf32>
    %681 = arith.addf %679, %680 : vector<1x32xf32>
    %682 = vector.extract_strided_slice %192 {offsets = [8, 0], sizes = [1, 96], strides = [1, 1]} : vector<16x96xf32> to vector<1x96xf32>
    %683 = vector.extract_strided_slice %652 {offsets = [0, 96], sizes = [1, 96], strides = [1, 1]} : vector<1x192xf32> to vector<1x96xf32>
    %684 = vector.extract_strided_slice %648 {offsets = [0, 32], sizes = [1, 32], strides = [1, 1]} : vector<1x64xf32> to vector<1x32xf32>
    %685 = vector.extract_strided_slice %682 {offsets = [0, 0], sizes = [1, 32], strides = [1, 1]} : vector<1x96xf32> to vector<1x32xf32>
    %686 = vector.extract_strided_slice %683 {offsets = [0, 0], sizes = [1, 32], strides = [1, 1]} : vector<1x96xf32> to vector<1x32xf32>
    %687 = arith.addf %685, %686 : vector<1x32xf32>
    %688 = arith.negf %687 : vector<1x32xf32>
    %689 = math.exp %688 : vector<1x32xf32>
    %cst_202 = arith.constant 1.000000e+00 : f32
    %690 = vector.broadcast %cst_202 : f32 to vector<1x32xf32>
    %691 = arith.addf %690, %689 : vector<1x32xf32>
    %692 = arith.divf %690, %691 : vector<1x32xf32>
    %693 = vector.extract_strided_slice %682 {offsets = [0, 32], sizes = [1, 32], strides = [1, 1]} : vector<1x96xf32> to vector<1x32xf32>
    %694 = vector.extract_strided_slice %683 {offsets = [0, 32], sizes = [1, 32], strides = [1, 1]} : vector<1x96xf32> to vector<1x32xf32>
    %695 = arith.addf %693, %694 : vector<1x32xf32>
    %696 = arith.negf %695 : vector<1x32xf32>
    %697 = math.exp %696 : vector<1x32xf32>
    %cst_203 = arith.constant 1.000000e+00 : f32
    %698 = vector.broadcast %cst_203 : f32 to vector<1x32xf32>
    %699 = arith.addf %698, %697 : vector<1x32xf32>
    %700 = arith.divf %698, %699 : vector<1x32xf32>
    %701 = vector.extract_strided_slice %682 {offsets = [0, 64], sizes = [1, 32], strides = [1, 1]} : vector<1x96xf32> to vector<1x32xf32>
    %702 = vector.extract_strided_slice %683 {offsets = [0, 64], sizes = [1, 32], strides = [1, 1]} : vector<1x96xf32> to vector<1x32xf32>
    %703 = arith.mulf %692, %702 : vector<1x32xf32>
    %704 = arith.addf %701, %703 : vector<1x32xf32>
    %705 = math.tanh %704 : vector<1x32xf32>
    %cst_204 = arith.constant 1.000000e+00 : f32
    %706 = vector.broadcast %cst_204 : f32 to vector<1x32xf32>
    %707 = arith.subf %706, %700 : vector<1x32xf32>
    %708 = arith.mulf %707, %705 : vector<1x32xf32>
    %709 = arith.mulf %700, %684 : vector<1x32xf32>
    %710 = arith.addf %708, %709 : vector<1x32xf32>
    %c7 = arith.constant 7 : index
    %c0_205 = arith.constant 0 : index
    %711 = vector.load %arg22[%c7, %c0_205] : memref<16x64xf32, #tpu.memory_space<vmem>>, vector<1x32xf32>
    tpu.vector_store %arg22[%c7, %c0_205], %681 {strides = array<i32>} : memref<16x64xf32, #tpu.memory_space<vmem>>, vector<1x32xf32>,
    %c8 = arith.constant 8 : index
    %c32_206 = arith.constant 32 : index
    %712 = vector.load %arg22[%c8, %c32_206] : memref<16x64xf32, #tpu.memory_space<vmem>>, vector<1x32xf32>
    tpu.vector_store %arg22[%c8, %c32_206], %710 {strides = array<i32>} : memref<16x64xf32, #tpu.memory_space<vmem>>, vector<1x32xf32>,
    %713 = tpu.concatenate %681, %710 in 1 : vector<1x32xf32>, vector<1x32xf32> -> vector<1x64xf32>
    %c0_207 = arith.constant 0 : index
    %c0_208 = arith.constant 0 : index
    %714 = vector.load %arg19[%c0_207, %c0_208] : memref<64x192xf32, #tpu.memory_space<vmem>>, vector<64x192xf32>
    %cst_209 = arith.constant dense<0.000000e+00> : vector<1x192xf32>
    %715 = tpu.matmul %713, %714, %cst_209 {dimension_numbers = #tpu.dot_dimension_numbers<[1], [0], [0], [1], [0, 0, 1, 1], [], []>} : vector<1x64xf32>, vector<64x192xf32>, vector<1x192xf32> -> vector<1x192xf32>
    %c0_210 = arith.constant 0 : index
    %c0_211 = arith.constant 0 : index
    %716 = vector.load %arg20[%c0_210, %c0_211] : memref<1x192xf32, #tpu.memory_space<vmem>>, vector<1x192xf32>
    %717 = arith.addf %715, %716 : vector<1x192xf32>
    %718 = vector.extract_strided_slice %191 {offsets = [8, 0], sizes = [1, 96], strides = [1, 1]} : vector<16x96xf32> to vector<1x96xf32>
    %719 = vector.extract_strided_slice %717 {offsets = [0, 0], sizes = [1, 96], strides = [1, 1]} : vector<1x192xf32> to vector<1x96xf32>
    %720 = vector.extract_strided_slice %713 {offsets = [0, 0], sizes = [1, 32], strides = [1, 1]} : vector<1x64xf32> to vector<1x32xf32>
    %721 = vector.extract_strided_slice %718 {offsets = [0, 0], sizes = [1, 32], strides = [1, 1]} : vector<1x96xf32> to vector<1x32xf32>
    %722 = vector.extract_strided_slice %719 {offsets = [0, 0], sizes = [1, 32], strides = [1, 1]} : vector<1x96xf32> to vector<1x32xf32>
    %723 = arith.addf %721, %722 : vector<1x32xf32>
    %724 = arith.negf %723 : vector<1x32xf32>
    %725 = math.exp %724 : vector<1x32xf32>
    %cst_212 = arith.constant 1.000000e+00 : f32
    %726 = vector.broadcast %cst_212 : f32 to vector<1x32xf32>
    %727 = arith.addf %726, %725 : vector<1x32xf32>
    %728 = arith.divf %726, %727 : vector<1x32xf32>
    %729 = vector.extract_strided_slice %718 {offsets = [0, 32], sizes = [1, 32], strides = [1, 1]} : vector<1x96xf32> to vector<1x32xf32>
    %730 = vector.extract_strided_slice %719 {offsets = [0, 32], sizes = [1, 32], strides = [1, 1]} : vector<1x96xf32> to vector<1x32xf32>
    %731 = arith.addf %729, %730 : vector<1x32xf32>
    %732 = arith.negf %731 : vector<1x32xf32>
    %733 = math.exp %732 : vector<1x32xf32>
    %cst_213 = arith.constant 1.000000e+00 : f32
    %734 = vector.broadcast %cst_213 : f32 to vector<1x32xf32>
    %735 = arith.addf %734, %733 : vector<1x32xf32>
    %736 = arith.divf %734, %735 : vector<1x32xf32>
    %737 = vector.extract_strided_slice %718 {offsets = [0, 64], sizes = [1, 32], strides = [1, 1]} : vector<1x96xf32> to vector<1x32xf32>
    %738 = vector.extract_strided_slice %719 {offsets = [0, 64], sizes = [1, 32], strides = [1, 1]} : vector<1x96xf32> to vector<1x32xf32>
    %739 = arith.mulf %728, %738 : vector<1x32xf32>
    %740 = arith.addf %737, %739 : vector<1x32xf32>
    %741 = math.tanh %740 : vector<1x32xf32>
    %cst_214 = arith.constant 1.000000e+00 : f32
    %742 = vector.broadcast %cst_214 : f32 to vector<1x32xf32>
    %743 = arith.subf %742, %736 : vector<1x32xf32>
    %744 = arith.mulf %743, %741 : vector<1x32xf32>
    %745 = arith.mulf %736, %720 : vector<1x32xf32>
    %746 = arith.addf %744, %745 : vector<1x32xf32>
    %747 = vector.extract_strided_slice %192 {offsets = [7, 0], sizes = [1, 96], strides = [1, 1]} : vector<16x96xf32> to vector<1x96xf32>
    %748 = vector.extract_strided_slice %717 {offsets = [0, 96], sizes = [1, 96], strides = [1, 1]} : vector<1x192xf32> to vector<1x96xf32>
    %749 = vector.extract_strided_slice %713 {offsets = [0, 32], sizes = [1, 32], strides = [1, 1]} : vector<1x64xf32> to vector<1x32xf32>
    %750 = vector.extract_strided_slice %747 {offsets = [0, 0], sizes = [1, 32], strides = [1, 1]} : vector<1x96xf32> to vector<1x32xf32>
    %751 = vector.extract_strided_slice %748 {offsets = [0, 0], sizes = [1, 32], strides = [1, 1]} : vector<1x96xf32> to vector<1x32xf32>
    %752 = arith.addf %750, %751 : vector<1x32xf32>
    %753 = arith.negf %752 : vector<1x32xf32>
    %754 = math.exp %753 : vector<1x32xf32>
    %cst_215 = arith.constant 1.000000e+00 : f32
    %755 = vector.broadcast %cst_215 : f32 to vector<1x32xf32>
    %756 = arith.addf %755, %754 : vector<1x32xf32>
    %757 = arith.divf %755, %756 : vector<1x32xf32>
    %758 = vector.extract_strided_slice %747 {offsets = [0, 32], sizes = [1, 32], strides = [1, 1]} : vector<1x96xf32> to vector<1x32xf32>
    %759 = vector.extract_strided_slice %748 {offsets = [0, 32], sizes = [1, 32], strides = [1, 1]} : vector<1x96xf32> to vector<1x32xf32>
    %760 = arith.addf %758, %759 : vector<1x32xf32>
    %761 = arith.negf %760 : vector<1x32xf32>
    %762 = math.exp %761 : vector<1x32xf32>
    %cst_216 = arith.constant 1.000000e+00 : f32
    %763 = vector.broadcast %cst_216 : f32 to vector<1x32xf32>
    %764 = arith.addf %763, %762 : vector<1x32xf32>
    %765 = arith.divf %763, %764 : vector<1x32xf32>
    %766 = vector.extract_strided_slice %747 {offsets = [0, 64], sizes = [1, 32], strides = [1, 1]} : vector<1x96xf32> to vector<1x32xf32>
    %767 = vector.extract_strided_slice %748 {offsets = [0, 64], sizes = [1, 32], strides = [1, 1]} : vector<1x96xf32> to vector<1x32xf32>
    %768 = arith.mulf %757, %767 : vector<1x32xf32>
    %769 = arith.addf %766, %768 : vector<1x32xf32>
    %770 = math.tanh %769 : vector<1x32xf32>
    %cst_217 = arith.constant 1.000000e+00 : f32
    %771 = vector.broadcast %cst_217 : f32 to vector<1x32xf32>
    %772 = arith.subf %771, %765 : vector<1x32xf32>
    %773 = arith.mulf %772, %770 : vector<1x32xf32>
    %774 = arith.mulf %765, %749 : vector<1x32xf32>
    %775 = arith.addf %773, %774 : vector<1x32xf32>
    %c8_218 = arith.constant 8 : index
    %c0_219 = arith.constant 0 : index
    %776 = vector.load %arg22[%c8_218, %c0_219] : memref<16x64xf32, #tpu.memory_space<vmem>>, vector<1x32xf32>
    tpu.vector_store %arg22[%c8_218, %c0_219], %746 {strides = array<i32>} : memref<16x64xf32, #tpu.memory_space<vmem>>, vector<1x32xf32>,
    %c7_220 = arith.constant 7 : index
    %c32_221 = arith.constant 32 : index
    %777 = vector.load %arg22[%c7_220, %c32_221] : memref<16x64xf32, #tpu.memory_space<vmem>>, vector<1x32xf32>
    tpu.vector_store %arg22[%c7_220, %c32_221], %775 {strides = array<i32>} : memref<16x64xf32, #tpu.memory_space<vmem>>, vector<1x32xf32>,
    %778 = tpu.concatenate %746, %775 in 1 : vector<1x32xf32>, vector<1x32xf32> -> vector<1x64xf32>
    %c0_222 = arith.constant 0 : index
    %c0_223 = arith.constant 0 : index
    %779 = vector.load %arg19[%c0_222, %c0_223] : memref<64x192xf32, #tpu.memory_space<vmem>>, vector<64x192xf32>
    %cst_224 = arith.constant dense<0.000000e+00> : vector<1x192xf32>
    %780 = tpu.matmul %778, %779, %cst_224 {dimension_numbers = #tpu.dot_dimension_numbers<[1], [0], [0], [1], [0, 0, 1, 1], [], []>} : vector<1x64xf32>, vector<64x192xf32>, vector<1x192xf32> -> vector<1x192xf32>
    %c0_225 = arith.constant 0 : index
    %c0_226 = arith.constant 0 : index
    %781 = vector.load %arg20[%c0_225, %c0_226] : memref<1x192xf32, #tpu.memory_space<vmem>>, vector<1x192xf32>
    %782 = arith.addf %780, %781 : vector<1x192xf32>
    %783 = vector.extract_strided_slice %191 {offsets = [9, 0], sizes = [1, 96], strides = [1, 1]} : vector<16x96xf32> to vector<1x96xf32>
    %784 = vector.extract_strided_slice %782 {offsets = [0, 0], sizes = [1, 96], strides = [1, 1]} : vector<1x192xf32> to vector<1x96xf32>
    %785 = vector.extract_strided_slice %778 {offsets = [0, 0], sizes = [1, 32], strides = [1, 1]} : vector<1x64xf32> to vector<1x32xf32>
    %786 = vector.extract_strided_slice %783 {offsets = [0, 0], sizes = [1, 32], strides = [1, 1]} : vector<1x96xf32> to vector<1x32xf32>
    %787 = vector.extract_strided_slice %784 {offsets = [0, 0], sizes = [1, 32], strides = [1, 1]} : vector<1x96xf32> to vector<1x32xf32>
    %788 = arith.addf %786, %787 : vector<1x32xf32>
    %789 = arith.negf %788 : vector<1x32xf32>
    %790 = math.exp %789 : vector<1x32xf32>
    %cst_227 = arith.constant 1.000000e+00 : f32
    %791 = vector.broadcast %cst_227 : f32 to vector<1x32xf32>
    %792 = arith.addf %791, %790 : vector<1x32xf32>
    %793 = arith.divf %791, %792 : vector<1x32xf32>
    %794 = vector.extract_strided_slice %783 {offsets = [0, 32], sizes = [1, 32], strides = [1, 1]} : vector<1x96xf32> to vector<1x32xf32>
    %795 = vector.extract_strided_slice %784 {offsets = [0, 32], sizes = [1, 32], strides = [1, 1]} : vector<1x96xf32> to vector<1x32xf32>
    %796 = arith.addf %794, %795 : vector<1x32xf32>
    %797 = arith.negf %796 : vector<1x32xf32>
    %798 = math.exp %797 : vector<1x32xf32>
    %cst_228 = arith.constant 1.000000e+00 : f32
    %799 = vector.broadcast %cst_228 : f32 to vector<1x32xf32>
    %800 = arith.addf %799, %798 : vector<1x32xf32>
    %801 = arith.divf %799, %800 : vector<1x32xf32>
    %802 = vector.extract_strided_slice %783 {offsets = [0, 64], sizes = [1, 32], strides = [1, 1]} : vector<1x96xf32> to vector<1x32xf32>
    %803 = vector.extract_strided_slice %784 {offsets = [0, 64], sizes = [1, 32], strides = [1, 1]} : vector<1x96xf32> to vector<1x32xf32>
    %804 = arith.mulf %793, %803 : vector<1x32xf32>
    %805 = arith.addf %802, %804 : vector<1x32xf32>
    %806 = math.tanh %805 : vector<1x32xf32>
    %cst_229 = arith.constant 1.000000e+00 : f32
    %807 = vector.broadcast %cst_229 : f32 to vector<1x32xf32>
    %808 = arith.subf %807, %801 : vector<1x32xf32>
    %809 = arith.mulf %808, %806 : vector<1x32xf32>
    %810 = arith.mulf %801, %785 : vector<1x32xf32>
    %811 = arith.addf %809, %810 : vector<1x32xf32>
    %812 = vector.extract_strided_slice %192 {offsets = [6, 0], sizes = [1, 96], strides = [1, 1]} : vector<16x96xf32> to vector<1x96xf32>
    %813 = vector.extract_strided_slice %782 {offsets = [0, 96], sizes = [1, 96], strides = [1, 1]} : vector<1x192xf32> to vector<1x96xf32>
    %814 = vector.extract_strided_slice %778 {offsets = [0, 32], sizes = [1, 32], strides = [1, 1]} : vector<1x64xf32> to vector<1x32xf32>
    %815 = vector.extract_strided_slice %812 {offsets = [0, 0], sizes = [1, 32], strides = [1, 1]} : vector<1x96xf32> to vector<1x32xf32>
    %816 = vector.extract_strided_slice %813 {offsets = [0, 0], sizes = [1, 32], strides = [1, 1]} : vector<1x96xf32> to vector<1x32xf32>
    %817 = arith.addf %815, %816 : vector<1x32xf32>
    %818 = arith.negf %817 : vector<1x32xf32>
    %819 = math.exp %818 : vector<1x32xf32>
    %cst_230 = arith.constant 1.000000e+00 : f32
    %820 = vector.broadcast %cst_230 : f32 to vector<1x32xf32>
    %821 = arith.addf %820, %819 : vector<1x32xf32>
    %822 = arith.divf %820, %821 : vector<1x32xf32>
    %823 = vector.extract_strided_slice %812 {offsets = [0, 32], sizes = [1, 32], strides = [1, 1]} : vector<1x96xf32> to vector<1x32xf32>
    %824 = vector.extract_strided_slice %813 {offsets = [0, 32], sizes = [1, 32], strides = [1, 1]} : vector<1x96xf32> to vector<1x32xf32>
    %825 = arith.addf %823, %824 : vector<1x32xf32>
    %826 = arith.negf %825 : vector<1x32xf32>
    %827 = math.exp %826 : vector<1x32xf32>
    %cst_231 = arith.constant 1.000000e+00 : f32
    %828 = vector.broadcast %cst_231 : f32 to vector<1x32xf32>
    %829 = arith.addf %828, %827 : vector<1x32xf32>
    %830 = arith.divf %828, %829 : vector<1x32xf32>
    %831 = vector.extract_strided_slice %812 {offsets = [0, 64], sizes = [1, 32], strides = [1, 1]} : vector<1x96xf32> to vector<1x32xf32>
    %832 = vector.extract_strided_slice %813 {offsets = [0, 64], sizes = [1, 32], strides = [1, 1]} : vector<1x96xf32> to vector<1x32xf32>
    %833 = arith.mulf %822, %832 : vector<1x32xf32>
    %834 = arith.addf %831, %833 : vector<1x32xf32>
    %835 = math.tanh %834 : vector<1x32xf32>
    %cst_232 = arith.constant 1.000000e+00 : f32
    %836 = vector.broadcast %cst_232 : f32 to vector<1x32xf32>
    %837 = arith.subf %836, %830 : vector<1x32xf32>
    %838 = arith.mulf %837, %835 : vector<1x32xf32>
    %839 = arith.mulf %830, %814 : vector<1x32xf32>
    %840 = arith.addf %838, %839 : vector<1x32xf32>
    %c9_233 = arith.constant 9 : index
    %c0_234 = arith.constant 0 : index
    %841 = vector.load %arg22[%c9_233, %c0_234] : memref<16x64xf32, #tpu.memory_space<vmem>>, vector<1x32xf32>
    tpu.vector_store %arg22[%c9_233, %c0_234], %811 {strides = array<i32>} : memref<16x64xf32, #tpu.memory_space<vmem>>, vector<1x32xf32>,
    %c6_235 = arith.constant 6 : index
    %c32_236 = arith.constant 32 : index
    %842 = vector.load %arg22[%c6_235, %c32_236] : memref<16x64xf32, #tpu.memory_space<vmem>>, vector<1x32xf32>
    tpu.vector_store %arg22[%c6_235, %c32_236], %840 {strides = array<i32>} : memref<16x64xf32, #tpu.memory_space<vmem>>, vector<1x32xf32>,
    %843 = tpu.concatenate %811, %840 in 1 : vector<1x32xf32>, vector<1x32xf32> -> vector<1x64xf32>
    %c0_237 = arith.constant 0 : index
    %c0_238 = arith.constant 0 : index
    %844 = vector.load %arg19[%c0_237, %c0_238] : memref<64x192xf32, #tpu.memory_space<vmem>>, vector<64x192xf32>
    %cst_239 = arith.constant dense<0.000000e+00> : vector<1x192xf32>
    %845 = tpu.matmul %843, %844, %cst_239 {dimension_numbers = #tpu.dot_dimension_numbers<[1], [0], [0], [1], [0, 0, 1, 1], [], []>} : vector<1x64xf32>, vector<64x192xf32>, vector<1x192xf32> -> vector<1x192xf32>
    %c0_240 = arith.constant 0 : index
    %c0_241 = arith.constant 0 : index
    %846 = vector.load %arg20[%c0_240, %c0_241] : memref<1x192xf32, #tpu.memory_space<vmem>>, vector<1x192xf32>
    %847 = arith.addf %845, %846 : vector<1x192xf32>
    %848 = vector.extract_strided_slice %191 {offsets = [10, 0], sizes = [1, 96], strides = [1, 1]} : vector<16x96xf32> to vector<1x96xf32>
    %849 = vector.extract_strided_slice %847 {offsets = [0, 0], sizes = [1, 96], strides = [1, 1]} : vector<1x192xf32> to vector<1x96xf32>
    %850 = vector.extract_strided_slice %843 {offsets = [0, 0], sizes = [1, 32], strides = [1, 1]} : vector<1x64xf32> to vector<1x32xf32>
    %851 = vector.extract_strided_slice %848 {offsets = [0, 0], sizes = [1, 32], strides = [1, 1]} : vector<1x96xf32> to vector<1x32xf32>
    %852 = vector.extract_strided_slice %849 {offsets = [0, 0], sizes = [1, 32], strides = [1, 1]} : vector<1x96xf32> to vector<1x32xf32>
    %853 = arith.addf %851, %852 : vector<1x32xf32>
    %854 = arith.negf %853 : vector<1x32xf32>
    %855 = math.exp %854 : vector<1x32xf32>
    %cst_242 = arith.constant 1.000000e+00 : f32
    %856 = vector.broadcast %cst_242 : f32 to vector<1x32xf32>
    %857 = arith.addf %856, %855 : vector<1x32xf32>
    %858 = arith.divf %856, %857 : vector<1x32xf32>
    %859 = vector.extract_strided_slice %848 {offsets = [0, 32], sizes = [1, 32], strides = [1, 1]} : vector<1x96xf32> to vector<1x32xf32>
    %860 = vector.extract_strided_slice %849 {offsets = [0, 32], sizes = [1, 32], strides = [1, 1]} : vector<1x96xf32> to vector<1x32xf32>
    %861 = arith.addf %859, %860 : vector<1x32xf32>
    %862 = arith.negf %861 : vector<1x32xf32>
    %863 = math.exp %862 : vector<1x32xf32>
    %cst_243 = arith.constant 1.000000e+00 : f32
    %864 = vector.broadcast %cst_243 : f32 to vector<1x32xf32>
    %865 = arith.addf %864, %863 : vector<1x32xf32>
    %866 = arith.divf %864, %865 : vector<1x32xf32>
    %867 = vector.extract_strided_slice %848 {offsets = [0, 64], sizes = [1, 32], strides = [1, 1]} : vector<1x96xf32> to vector<1x32xf32>
    %868 = vector.extract_strided_slice %849 {offsets = [0, 64], sizes = [1, 32], strides = [1, 1]} : vector<1x96xf32> to vector<1x32xf32>
    %869 = arith.mulf %858, %868 : vector<1x32xf32>
    %870 = arith.addf %867, %869 : vector<1x32xf32>
    %871 = math.tanh %870 : vector<1x32xf32>
    %cst_244 = arith.constant 1.000000e+00 : f32
    %872 = vector.broadcast %cst_244 : f32 to vector<1x32xf32>
    %873 = arith.subf %872, %866 : vector<1x32xf32>
    %874 = arith.mulf %873, %871 : vector<1x32xf32>
    %875 = arith.mulf %866, %850 : vector<1x32xf32>
    %876 = arith.addf %874, %875 : vector<1x32xf32>
    %877 = vector.extract_strided_slice %192 {offsets = [5, 0], sizes = [1, 96], strides = [1, 1]} : vector<16x96xf32> to vector<1x96xf32>
    %878 = vector.extract_strided_slice %847 {offsets = [0, 96], sizes = [1, 96], strides = [1, 1]} : vector<1x192xf32> to vector<1x96xf32>
    %879 = vector.extract_strided_slice %843 {offsets = [0, 32], sizes = [1, 32], strides = [1, 1]} : vector<1x64xf32> to vector<1x32xf32>
    %880 = vector.extract_strided_slice %877 {offsets = [0, 0], sizes = [1, 32], strides = [1, 1]} : vector<1x96xf32> to vector<1x32xf32>
    %881 = vector.extract_strided_slice %878 {offsets = [0, 0], sizes = [1, 32], strides = [1, 1]} : vector<1x96xf32> to vector<1x32xf32>
    %882 = arith.addf %880, %881 : vector<1x32xf32>
    %883 = arith.negf %882 : vector<1x32xf32>
    %884 = math.exp %883 : vector<1x32xf32>
    %cst_245 = arith.constant 1.000000e+00 : f32
    %885 = vector.broadcast %cst_245 : f32 to vector<1x32xf32>
    %886 = arith.addf %885, %884 : vector<1x32xf32>
    %887 = arith.divf %885, %886 : vector<1x32xf32>
    %888 = vector.extract_strided_slice %877 {offsets = [0, 32], sizes = [1, 32], strides = [1, 1]} : vector<1x96xf32> to vector<1x32xf32>
    %889 = vector.extract_strided_slice %878 {offsets = [0, 32], sizes = [1, 32], strides = [1, 1]} : vector<1x96xf32> to vector<1x32xf32>
    %890 = arith.addf %888, %889 : vector<1x32xf32>
    %891 = arith.negf %890 : vector<1x32xf32>
    %892 = math.exp %891 : vector<1x32xf32>
    %cst_246 = arith.constant 1.000000e+00 : f32
    %893 = vector.broadcast %cst_246 : f32 to vector<1x32xf32>
    %894 = arith.addf %893, %892 : vector<1x32xf32>
    %895 = arith.divf %893, %894 : vector<1x32xf32>
    %896 = vector.extract_strided_slice %877 {offsets = [0, 64], sizes = [1, 32], strides = [1, 1]} : vector<1x96xf32> to vector<1x32xf32>
    %897 = vector.extract_strided_slice %878 {offsets = [0, 64], sizes = [1, 32], strides = [1, 1]} : vector<1x96xf32> to vector<1x32xf32>
    %898 = arith.mulf %887, %897 : vector<1x32xf32>
    %899 = arith.addf %896, %898 : vector<1x32xf32>
    %900 = math.tanh %899 : vector<1x32xf32>
    %cst_247 = arith.constant 1.000000e+00 : f32
    %901 = vector.broadcast %cst_247 : f32 to vector<1x32xf32>
    %902 = arith.subf %901, %895 : vector<1x32xf32>
    %903 = arith.mulf %902, %900 : vector<1x32xf32>
    %904 = arith.mulf %895, %879 : vector<1x32xf32>
    %905 = arith.addf %903, %904 : vector<1x32xf32>
    %c10_248 = arith.constant 10 : index
    %c0_249 = arith.constant 0 : index
    %906 = vector.load %arg22[%c10_248, %c0_249] : memref<16x64xf32, #tpu.memory_space<vmem>>, vector<1x32xf32>
    tpu.vector_store %arg22[%c10_248, %c0_249], %876 {strides = array<i32>} : memref<16x64xf32, #tpu.memory_space<vmem>>, vector<1x32xf32>,
    %c5_250 = arith.constant 5 : index
    %c32_251 = arith.constant 32 : index
    %907 = vector.load %arg22[%c5_250, %c32_251] : memref<16x64xf32, #tpu.memory_space<vmem>>, vector<1x32xf32>
    tpu.vector_store %arg22[%c5_250, %c32_251], %905 {strides = array<i32>} : memref<16x64xf32, #tpu.memory_space<vmem>>, vector<1x32xf32>,
    %908 = tpu.concatenate %876, %905 in 1 : vector<1x32xf32>, vector<1x32xf32> -> vector<1x64xf32>
    %c0_252 = arith.constant 0 : index
    %c0_253 = arith.constant 0 : index
    %909 = vector.load %arg19[%c0_252, %c0_253] : memref<64x192xf32, #tpu.memory_space<vmem>>, vector<64x192xf32>
    %cst_254 = arith.constant dense<0.000000e+00> : vector<1x192xf32>
    %910 = tpu.matmul %908, %909, %cst_254 {dimension_numbers = #tpu.dot_dimension_numbers<[1], [0], [0], [1], [0, 0, 1, 1], [], []>} : vector<1x64xf32>, vector<64x192xf32>, vector<1x192xf32> -> vector<1x192xf32>
    %c0_255 = arith.constant 0 : index
    %c0_256 = arith.constant 0 : index
    %911 = vector.load %arg20[%c0_255, %c0_256] : memref<1x192xf32, #tpu.memory_space<vmem>>, vector<1x192xf32>
    %912 = arith.addf %910, %911 : vector<1x192xf32>
    %913 = vector.extract_strided_slice %191 {offsets = [11, 0], sizes = [1, 96], strides = [1, 1]} : vector<16x96xf32> to vector<1x96xf32>
    %914 = vector.extract_strided_slice %912 {offsets = [0, 0], sizes = [1, 96], strides = [1, 1]} : vector<1x192xf32> to vector<1x96xf32>
    %915 = vector.extract_strided_slice %908 {offsets = [0, 0], sizes = [1, 32], strides = [1, 1]} : vector<1x64xf32> to vector<1x32xf32>
    %916 = vector.extract_strided_slice %913 {offsets = [0, 0], sizes = [1, 32], strides = [1, 1]} : vector<1x96xf32> to vector<1x32xf32>
    %917 = vector.extract_strided_slice %914 {offsets = [0, 0], sizes = [1, 32], strides = [1, 1]} : vector<1x96xf32> to vector<1x32xf32>
    %918 = arith.addf %916, %917 : vector<1x32xf32>
    %919 = arith.negf %918 : vector<1x32xf32>
    %920 = math.exp %919 : vector<1x32xf32>
    %cst_257 = arith.constant 1.000000e+00 : f32
    %921 = vector.broadcast %cst_257 : f32 to vector<1x32xf32>
    %922 = arith.addf %921, %920 : vector<1x32xf32>
    %923 = arith.divf %921, %922 : vector<1x32xf32>
    %924 = vector.extract_strided_slice %913 {offsets = [0, 32], sizes = [1, 32], strides = [1, 1]} : vector<1x96xf32> to vector<1x32xf32>
    %925 = vector.extract_strided_slice %914 {offsets = [0, 32], sizes = [1, 32], strides = [1, 1]} : vector<1x96xf32> to vector<1x32xf32>
    %926 = arith.addf %924, %925 : vector<1x32xf32>
    %927 = arith.negf %926 : vector<1x32xf32>
    %928 = math.exp %927 : vector<1x32xf32>
    %cst_258 = arith.constant 1.000000e+00 : f32
    %929 = vector.broadcast %cst_258 : f32 to vector<1x32xf32>
    %930 = arith.addf %929, %928 : vector<1x32xf32>
    %931 = arith.divf %929, %930 : vector<1x32xf32>
    %932 = vector.extract_strided_slice %913 {offsets = [0, 64], sizes = [1, 32], strides = [1, 1]} : vector<1x96xf32> to vector<1x32xf32>
    %933 = vector.extract_strided_slice %914 {offsets = [0, 64], sizes = [1, 32], strides = [1, 1]} : vector<1x96xf32> to vector<1x32xf32>
    %934 = arith.mulf %923, %933 : vector<1x32xf32>
    %935 = arith.addf %932, %934 : vector<1x32xf32>
    %936 = math.tanh %935 : vector<1x32xf32>
    %cst_259 = arith.constant 1.000000e+00 : f32
    %937 = vector.broadcast %cst_259 : f32 to vector<1x32xf32>
    %938 = arith.subf %937, %931 : vector<1x32xf32>
    %939 = arith.mulf %938, %936 : vector<1x32xf32>
    %940 = arith.mulf %931, %915 : vector<1x32xf32>
    %941 = arith.addf %939, %940 : vector<1x32xf32>
    %942 = vector.extract_strided_slice %192 {offsets = [4, 0], sizes = [1, 96], strides = [1, 1]} : vector<16x96xf32> to vector<1x96xf32>
    %943 = vector.extract_strided_slice %912 {offsets = [0, 96], sizes = [1, 96], strides = [1, 1]} : vector<1x192xf32> to vector<1x96xf32>
    %944 = vector.extract_strided_slice %908 {offsets = [0, 32], sizes = [1, 32], strides = [1, 1]} : vector<1x64xf32> to vector<1x32xf32>
    %945 = vector.extract_strided_slice %942 {offsets = [0, 0], sizes = [1, 32], strides = [1, 1]} : vector<1x96xf32> to vector<1x32xf32>
    %946 = vector.extract_strided_slice %943 {offsets = [0, 0], sizes = [1, 32], strides = [1, 1]} : vector<1x96xf32> to vector<1x32xf32>
    %947 = arith.addf %945, %946 : vector<1x32xf32>
    %948 = arith.negf %947 : vector<1x32xf32>
    %949 = math.exp %948 : vector<1x32xf32>
    %cst_260 = arith.constant 1.000000e+00 : f32
    %950 = vector.broadcast %cst_260 : f32 to vector<1x32xf32>
    %951 = arith.addf %950, %949 : vector<1x32xf32>
    %952 = arith.divf %950, %951 : vector<1x32xf32>
    %953 = vector.extract_strided_slice %942 {offsets = [0, 32], sizes = [1, 32], strides = [1, 1]} : vector<1x96xf32> to vector<1x32xf32>
    %954 = vector.extract_strided_slice %943 {offsets = [0, 32], sizes = [1, 32], strides = [1, 1]} : vector<1x96xf32> to vector<1x32xf32>
    %955 = arith.addf %953, %954 : vector<1x32xf32>
    %956 = arith.negf %955 : vector<1x32xf32>
    %957 = math.exp %956 : vector<1x32xf32>
    %cst_261 = arith.constant 1.000000e+00 : f32
    %958 = vector.broadcast %cst_261 : f32 to vector<1x32xf32>
    %959 = arith.addf %958, %957 : vector<1x32xf32>
    %960 = arith.divf %958, %959 : vector<1x32xf32>
    %961 = vector.extract_strided_slice %942 {offsets = [0, 64], sizes = [1, 32], strides = [1, 1]} : vector<1x96xf32> to vector<1x32xf32>
    %962 = vector.extract_strided_slice %943 {offsets = [0, 64], sizes = [1, 32], strides = [1, 1]} : vector<1x96xf32> to vector<1x32xf32>
    %963 = arith.mulf %952, %962 : vector<1x32xf32>
    %964 = arith.addf %961, %963 : vector<1x32xf32>
    %965 = math.tanh %964 : vector<1x32xf32>
    %cst_262 = arith.constant 1.000000e+00 : f32
    %966 = vector.broadcast %cst_262 : f32 to vector<1x32xf32>
    %967 = arith.subf %966, %960 : vector<1x32xf32>
    %968 = arith.mulf %967, %965 : vector<1x32xf32>
    %969 = arith.mulf %960, %944 : vector<1x32xf32>
    %970 = arith.addf %968, %969 : vector<1x32xf32>
    %c11_263 = arith.constant 11 : index
    %c0_264 = arith.constant 0 : index
    %971 = vector.load %arg22[%c11_263, %c0_264] : memref<16x64xf32, #tpu.memory_space<vmem>>, vector<1x32xf32>
    tpu.vector_store %arg22[%c11_263, %c0_264], %941 {strides = array<i32>} : memref<16x64xf32, #tpu.memory_space<vmem>>, vector<1x32xf32>,
    %c4_265 = arith.constant 4 : index
    %c32_266 = arith.constant 32 : index
    %972 = vector.load %arg22[%c4_265, %c32_266] : memref<16x64xf32, #tpu.memory_space<vmem>>, vector<1x32xf32>
    tpu.vector_store %arg22[%c4_265, %c32_266], %970 {strides = array<i32>} : memref<16x64xf32, #tpu.memory_space<vmem>>, vector<1x32xf32>,
    %973 = tpu.concatenate %941, %970 in 1 : vector<1x32xf32>, vector<1x32xf32> -> vector<1x64xf32>
    %c0_267 = arith.constant 0 : index
    %c0_268 = arith.constant 0 : index
    %974 = vector.load %arg19[%c0_267, %c0_268] : memref<64x192xf32, #tpu.memory_space<vmem>>, vector<64x192xf32>
    %cst_269 = arith.constant dense<0.000000e+00> : vector<1x192xf32>
    %975 = tpu.matmul %973, %974, %cst_269 {dimension_numbers = #tpu.dot_dimension_numbers<[1], [0], [0], [1], [0, 0, 1, 1], [], []>} : vector<1x64xf32>, vector<64x192xf32>, vector<1x192xf32> -> vector<1x192xf32>
    %c0_270 = arith.constant 0 : index
    %c0_271 = arith.constant 0 : index
    %976 = vector.load %arg20[%c0_270, %c0_271] : memref<1x192xf32, #tpu.memory_space<vmem>>, vector<1x192xf32>
    %977 = arith.addf %975, %976 : vector<1x192xf32>
    %978 = vector.extract_strided_slice %191 {offsets = [12, 0], sizes = [1, 96], strides = [1, 1]} : vector<16x96xf32> to vector<1x96xf32>
    %979 = vector.extract_strided_slice %977 {offsets = [0, 0], sizes = [1, 96], strides = [1, 1]} : vector<1x192xf32> to vector<1x96xf32>
    %980 = vector.extract_strided_slice %973 {offsets = [0, 0], sizes = [1, 32], strides = [1, 1]} : vector<1x64xf32> to vector<1x32xf32>
    %981 = vector.extract_strided_slice %978 {offsets = [0, 0], sizes = [1, 32], strides = [1, 1]} : vector<1x96xf32> to vector<1x32xf32>
    %982 = vector.extract_strided_slice %979 {offsets = [0, 0], sizes = [1, 32], strides = [1, 1]} : vector<1x96xf32> to vector<1x32xf32>
    %983 = arith.addf %981, %982 : vector<1x32xf32>
    %984 = arith.negf %983 : vector<1x32xf32>
    %985 = math.exp %984 : vector<1x32xf32>
    %cst_272 = arith.constant 1.000000e+00 : f32
    %986 = vector.broadcast %cst_272 : f32 to vector<1x32xf32>
    %987 = arith.addf %986, %985 : vector<1x32xf32>
    %988 = arith.divf %986, %987 : vector<1x32xf32>
    %989 = vector.extract_strided_slice %978 {offsets = [0, 32], sizes = [1, 32], strides = [1, 1]} : vector<1x96xf32> to vector<1x32xf32>
    %990 = vector.extract_strided_slice %979 {offsets = [0, 32], sizes = [1, 32], strides = [1, 1]} : vector<1x96xf32> to vector<1x32xf32>
    %991 = arith.addf %989, %990 : vector<1x32xf32>
    %992 = arith.negf %991 : vector<1x32xf32>
    %993 = math.exp %992 : vector<1x32xf32>
    %cst_273 = arith.constant 1.000000e+00 : f32
    %994 = vector.broadcast %cst_273 : f32 to vector<1x32xf32>
    %995 = arith.addf %994, %993 : vector<1x32xf32>
    %996 = arith.divf %994, %995 : vector<1x32xf32>
    %997 = vector.extract_strided_slice %978 {offsets = [0, 64], sizes = [1, 32], strides = [1, 1]} : vector<1x96xf32> to vector<1x32xf32>
    %998 = vector.extract_strided_slice %979 {offsets = [0, 64], sizes = [1, 32], strides = [1, 1]} : vector<1x96xf32> to vector<1x32xf32>
    %999 = arith.mulf %988, %998 : vector<1x32xf32>
    %1000 = arith.addf %997, %999 : vector<1x32xf32>
    %1001 = math.tanh %1000 : vector<1x32xf32>
    %cst_274 = arith.constant 1.000000e+00 : f32
    %1002 = vector.broadcast %cst_274 : f32 to vector<1x32xf32>
    %1003 = arith.subf %1002, %996 : vector<1x32xf32>
    %1004 = arith.mulf %1003, %1001 : vector<1x32xf32>
    %1005 = arith.mulf %996, %980 : vector<1x32xf32>
    %1006 = arith.addf %1004, %1005 : vector<1x32xf32>
    %1007 = vector.extract_strided_slice %192 {offsets = [3, 0], sizes = [1, 96], strides = [1, 1]} : vector<16x96xf32> to vector<1x96xf32>
    %1008 = vector.extract_strided_slice %977 {offsets = [0, 96], sizes = [1, 96], strides = [1, 1]} : vector<1x192xf32> to vector<1x96xf32>
    %1009 = vector.extract_strided_slice %973 {offsets = [0, 32], sizes = [1, 32], strides = [1, 1]} : vector<1x64xf32> to vector<1x32xf32>
    %1010 = vector.extract_strided_slice %1007 {offsets = [0, 0], sizes = [1, 32], strides = [1, 1]} : vector<1x96xf32> to vector<1x32xf32>
    %1011 = vector.extract_strided_slice %1008 {offsets = [0, 0], sizes = [1, 32], strides = [1, 1]} : vector<1x96xf32> to vector<1x32xf32>
    %1012 = arith.addf %1010, %1011 : vector<1x32xf32>
    %1013 = arith.negf %1012 : vector<1x32xf32>
    %1014 = math.exp %1013 : vector<1x32xf32>
    %cst_275 = arith.constant 1.000000e+00 : f32
    %1015 = vector.broadcast %cst_275 : f32 to vector<1x32xf32>
    %1016 = arith.addf %1015, %1014 : vector<1x32xf32>
    %1017 = arith.divf %1015, %1016 : vector<1x32xf32>
    %1018 = vector.extract_strided_slice %1007 {offsets = [0, 32], sizes = [1, 32], strides = [1, 1]} : vector<1x96xf32> to vector<1x32xf32>
    %1019 = vector.extract_strided_slice %1008 {offsets = [0, 32], sizes = [1, 32], strides = [1, 1]} : vector<1x96xf32> to vector<1x32xf32>
    %1020 = arith.addf %1018, %1019 : vector<1x32xf32>
    %1021 = arith.negf %1020 : vector<1x32xf32>
    %1022 = math.exp %1021 : vector<1x32xf32>
    %cst_276 = arith.constant 1.000000e+00 : f32
    %1023 = vector.broadcast %cst_276 : f32 to vector<1x32xf32>
    %1024 = arith.addf %1023, %1022 : vector<1x32xf32>
    %1025 = arith.divf %1023, %1024 : vector<1x32xf32>
    %1026 = vector.extract_strided_slice %1007 {offsets = [0, 64], sizes = [1, 32], strides = [1, 1]} : vector<1x96xf32> to vector<1x32xf32>
    %1027 = vector.extract_strided_slice %1008 {offsets = [0, 64], sizes = [1, 32], strides = [1, 1]} : vector<1x96xf32> to vector<1x32xf32>
    %1028 = arith.mulf %1017, %1027 : vector<1x32xf32>
    %1029 = arith.addf %1026, %1028 : vector<1x32xf32>
    %1030 = math.tanh %1029 : vector<1x32xf32>
    %cst_277 = arith.constant 1.000000e+00 : f32
    %1031 = vector.broadcast %cst_277 : f32 to vector<1x32xf32>
    %1032 = arith.subf %1031, %1025 : vector<1x32xf32>
    %1033 = arith.mulf %1032, %1030 : vector<1x32xf32>
    %1034 = arith.mulf %1025, %1009 : vector<1x32xf32>
    %1035 = arith.addf %1033, %1034 : vector<1x32xf32>
    %c12_278 = arith.constant 12 : index
    %c0_279 = arith.constant 0 : index
    %1036 = vector.load %arg22[%c12_278, %c0_279] : memref<16x64xf32, #tpu.memory_space<vmem>>, vector<1x32xf32>
    tpu.vector_store %arg22[%c12_278, %c0_279], %1006 {strides = array<i32>} : memref<16x64xf32, #tpu.memory_space<vmem>>, vector<1x32xf32>,
    %c3_280 = arith.constant 3 : index
    %c32_281 = arith.constant 32 : index
    %1037 = vector.load %arg22[%c3_280, %c32_281] : memref<16x64xf32, #tpu.memory_space<vmem>>, vector<1x32xf32>
    tpu.vector_store %arg22[%c3_280, %c32_281], %1035 {strides = array<i32>} : memref<16x64xf32, #tpu.memory_space<vmem>>, vector<1x32xf32>,
    %1038 = tpu.concatenate %1006, %1035 in 1 : vector<1x32xf32>, vector<1x32xf32> -> vector<1x64xf32>
    %c0_282 = arith.constant 0 : index
    %c0_283 = arith.constant 0 : index
    %1039 = vector.load %arg19[%c0_282, %c0_283] : memref<64x192xf32, #tpu.memory_space<vmem>>, vector<64x192xf32>
    %cst_284 = arith.constant dense<0.000000e+00> : vector<1x192xf32>
    %1040 = tpu.matmul %1038, %1039, %cst_284 {dimension_numbers = #tpu.dot_dimension_numbers<[1], [0], [0], [1], [0, 0, 1, 1], [], []>} : vector<1x64xf32>, vector<64x192xf32>, vector<1x192xf32> -> vector<1x192xf32>
    %c0_285 = arith.constant 0 : index
    %c0_286 = arith.constant 0 : index
    %1041 = vector.load %arg20[%c0_285, %c0_286] : memref<1x192xf32, #tpu.memory_space<vmem>>, vector<1x192xf32>
    %1042 = arith.addf %1040, %1041 : vector<1x192xf32>
    %1043 = vector.extract_strided_slice %191 {offsets = [13, 0], sizes = [1, 96], strides = [1, 1]} : vector<16x96xf32> to vector<1x96xf32>
    %1044 = vector.extract_strided_slice %1042 {offsets = [0, 0], sizes = [1, 96], strides = [1, 1]} : vector<1x192xf32> to vector<1x96xf32>
    %1045 = vector.extract_strided_slice %1038 {offsets = [0, 0], sizes = [1, 32], strides = [1, 1]} : vector<1x64xf32> to vector<1x32xf32>
    %1046 = vector.extract_strided_slice %1043 {offsets = [0, 0], sizes = [1, 32], strides = [1, 1]} : vector<1x96xf32> to vector<1x32xf32>
    %1047 = vector.extract_strided_slice %1044 {offsets = [0, 0], sizes = [1, 32], strides = [1, 1]} : vector<1x96xf32> to vector<1x32xf32>
    %1048 = arith.addf %1046, %1047 : vector<1x32xf32>
    %1049 = arith.negf %1048 : vector<1x32xf32>
    %1050 = math.exp %1049 : vector<1x32xf32>
    %cst_287 = arith.constant 1.000000e+00 : f32
    %1051 = vector.broadcast %cst_287 : f32 to vector<1x32xf32>
    %1052 = arith.addf %1051, %1050 : vector<1x32xf32>
    %1053 = arith.divf %1051, %1052 : vector<1x32xf32>
    %1054 = vector.extract_strided_slice %1043 {offsets = [0, 32], sizes = [1, 32], strides = [1, 1]} : vector<1x96xf32> to vector<1x32xf32>
    %1055 = vector.extract_strided_slice %1044 {offsets = [0, 32], sizes = [1, 32], strides = [1, 1]} : vector<1x96xf32> to vector<1x32xf32>
    %1056 = arith.addf %1054, %1055 : vector<1x32xf32>
    %1057 = arith.negf %1056 : vector<1x32xf32>
    %1058 = math.exp %1057 : vector<1x32xf32>
    %cst_288 = arith.constant 1.000000e+00 : f32
    %1059 = vector.broadcast %cst_288 : f32 to vector<1x32xf32>
    %1060 = arith.addf %1059, %1058 : vector<1x32xf32>
    %1061 = arith.divf %1059, %1060 : vector<1x32xf32>
    %1062 = vector.extract_strided_slice %1043 {offsets = [0, 64], sizes = [1, 32], strides = [1, 1]} : vector<1x96xf32> to vector<1x32xf32>
    %1063 = vector.extract_strided_slice %1044 {offsets = [0, 64], sizes = [1, 32], strides = [1, 1]} : vector<1x96xf32> to vector<1x32xf32>
    %1064 = arith.mulf %1053, %1063 : vector<1x32xf32>
    %1065 = arith.addf %1062, %1064 : vector<1x32xf32>
    %1066 = math.tanh %1065 : vector<1x32xf32>
    %cst_289 = arith.constant 1.000000e+00 : f32
    %1067 = vector.broadcast %cst_289 : f32 to vector<1x32xf32>
    %1068 = arith.subf %1067, %1061 : vector<1x32xf32>
    %1069 = arith.mulf %1068, %1066 : vector<1x32xf32>
    %1070 = arith.mulf %1061, %1045 : vector<1x32xf32>
    %1071 = arith.addf %1069, %1070 : vector<1x32xf32>
    %1072 = vector.extract_strided_slice %192 {offsets = [2, 0], sizes = [1, 96], strides = [1, 1]} : vector<16x96xf32> to vector<1x96xf32>
    %1073 = vector.extract_strided_slice %1042 {offsets = [0, 96], sizes = [1, 96], strides = [1, 1]} : vector<1x192xf32> to vector<1x96xf32>
    %1074 = vector.extract_strided_slice %1038 {offsets = [0, 32], sizes = [1, 32], strides = [1, 1]} : vector<1x64xf32> to vector<1x32xf32>
    %1075 = vector.extract_strided_slice %1072 {offsets = [0, 0], sizes = [1, 32], strides = [1, 1]} : vector<1x96xf32> to vector<1x32xf32>
    %1076 = vector.extract_strided_slice %1073 {offsets = [0, 0], sizes = [1, 32], strides = [1, 1]} : vector<1x96xf32> to vector<1x32xf32>
    %1077 = arith.addf %1075, %1076 : vector<1x32xf32>
    %1078 = arith.negf %1077 : vector<1x32xf32>
    %1079 = math.exp %1078 : vector<1x32xf32>
    %cst_290 = arith.constant 1.000000e+00 : f32
    %1080 = vector.broadcast %cst_290 : f32 to vector<1x32xf32>
    %1081 = arith.addf %1080, %1079 : vector<1x32xf32>
    %1082 = arith.divf %1080, %1081 : vector<1x32xf32>
    %1083 = vector.extract_strided_slice %1072 {offsets = [0, 32], sizes = [1, 32], strides = [1, 1]} : vector<1x96xf32> to vector<1x32xf32>
    %1084 = vector.extract_strided_slice %1073 {offsets = [0, 32], sizes = [1, 32], strides = [1, 1]} : vector<1x96xf32> to vector<1x32xf32>
    %1085 = arith.addf %1083, %1084 : vector<1x32xf32>
    %1086 = arith.negf %1085 : vector<1x32xf32>
    %1087 = math.exp %1086 : vector<1x32xf32>
    %cst_291 = arith.constant 1.000000e+00 : f32
    %1088 = vector.broadcast %cst_291 : f32 to vector<1x32xf32>
    %1089 = arith.addf %1088, %1087 : vector<1x32xf32>
    %1090 = arith.divf %1088, %1089 : vector<1x32xf32>
    %1091 = vector.extract_strided_slice %1072 {offsets = [0, 64], sizes = [1, 32], strides = [1, 1]} : vector<1x96xf32> to vector<1x32xf32>
    %1092 = vector.extract_strided_slice %1073 {offsets = [0, 64], sizes = [1, 32], strides = [1, 1]} : vector<1x96xf32> to vector<1x32xf32>
    %1093 = arith.mulf %1082, %1092 : vector<1x32xf32>
    %1094 = arith.addf %1091, %1093 : vector<1x32xf32>
    %1095 = math.tanh %1094 : vector<1x32xf32>
    %cst_292 = arith.constant 1.000000e+00 : f32
    %1096 = vector.broadcast %cst_292 : f32 to vector<1x32xf32>
    %1097 = arith.subf %1096, %1090 : vector<1x32xf32>
    %1098 = arith.mulf %1097, %1095 : vector<1x32xf32>
    %1099 = arith.mulf %1090, %1074 : vector<1x32xf32>
    %1100 = arith.addf %1098, %1099 : vector<1x32xf32>
    %c13_293 = arith.constant 13 : index
    %c0_294 = arith.constant 0 : index
    %1101 = vector.load %arg22[%c13_293, %c0_294] : memref<16x64xf32, #tpu.memory_space<vmem>>, vector<1x32xf32>
    tpu.vector_store %arg22[%c13_293, %c0_294], %1071 {strides = array<i32>} : memref<16x64xf32, #tpu.memory_space<vmem>>, vector<1x32xf32>,
    %c2_295 = arith.constant 2 : index
    %c32_296 = arith.constant 32 : index
    %1102 = vector.load %arg22[%c2_295, %c32_296] : memref<16x64xf32, #tpu.memory_space<vmem>>, vector<1x32xf32>
    tpu.vector_store %arg22[%c2_295, %c32_296], %1100 {strides = array<i32>} : memref<16x64xf32, #tpu.memory_space<vmem>>, vector<1x32xf32>,
    %1103 = tpu.concatenate %1071, %1100 in 1 : vector<1x32xf32>, vector<1x32xf32> -> vector<1x64xf32>
    %c0_297 = arith.constant 0 : index
    %c0_298 = arith.constant 0 : index
    %1104 = vector.load %arg19[%c0_297, %c0_298] : memref<64x192xf32, #tpu.memory_space<vmem>>, vector<64x192xf32>
    %cst_299 = arith.constant dense<0.000000e+00> : vector<1x192xf32>
    %1105 = tpu.matmul %1103, %1104, %cst_299 {dimension_numbers = #tpu.dot_dimension_numbers<[1], [0], [0], [1], [0, 0, 1, 1], [], []>} : vector<1x64xf32>, vector<64x192xf32>, vector<1x192xf32> -> vector<1x192xf32>
    %c0_300 = arith.constant 0 : index
    %c0_301 = arith.constant 0 : index
    %1106 = vector.load %arg20[%c0_300, %c0_301] : memref<1x192xf32, #tpu.memory_space<vmem>>, vector<1x192xf32>
    %1107 = arith.addf %1105, %1106 : vector<1x192xf32>
    %1108 = vector.extract_strided_slice %191 {offsets = [14, 0], sizes = [1, 96], strides = [1, 1]} : vector<16x96xf32> to vector<1x96xf32>
    %1109 = vector.extract_strided_slice %1107 {offsets = [0, 0], sizes = [1, 96], strides = [1, 1]} : vector<1x192xf32> to vector<1x96xf32>
    %1110 = vector.extract_strided_slice %1103 {offsets = [0, 0], sizes = [1, 32], strides = [1, 1]} : vector<1x64xf32> to vector<1x32xf32>
    %1111 = vector.extract_strided_slice %1108 {offsets = [0, 0], sizes = [1, 32], strides = [1, 1]} : vector<1x96xf32> to vector<1x32xf32>
    %1112 = vector.extract_strided_slice %1109 {offsets = [0, 0], sizes = [1, 32], strides = [1, 1]} : vector<1x96xf32> to vector<1x32xf32>
    %1113 = arith.addf %1111, %1112 : vector<1x32xf32>
    %1114 = arith.negf %1113 : vector<1x32xf32>
    %1115 = math.exp %1114 : vector<1x32xf32>
    %cst_302 = arith.constant 1.000000e+00 : f32
    %1116 = vector.broadcast %cst_302 : f32 to vector<1x32xf32>
    %1117 = arith.addf %1116, %1115 : vector<1x32xf32>
    %1118 = arith.divf %1116, %1117 : vector<1x32xf32>
    %1119 = vector.extract_strided_slice %1108 {offsets = [0, 32], sizes = [1, 32], strides = [1, 1]} : vector<1x96xf32> to vector<1x32xf32>
    %1120 = vector.extract_strided_slice %1109 {offsets = [0, 32], sizes = [1, 32], strides = [1, 1]} : vector<1x96xf32> to vector<1x32xf32>
    %1121 = arith.addf %1119, %1120 : vector<1x32xf32>
    %1122 = arith.negf %1121 : vector<1x32xf32>
    %1123 = math.exp %1122 : vector<1x32xf32>
    %cst_303 = arith.constant 1.000000e+00 : f32
    %1124 = vector.broadcast %cst_303 : f32 to vector<1x32xf32>
    %1125 = arith.addf %1124, %1123 : vector<1x32xf32>
    %1126 = arith.divf %1124, %1125 : vector<1x32xf32>
    %1127 = vector.extract_strided_slice %1108 {offsets = [0, 64], sizes = [1, 32], strides = [1, 1]} : vector<1x96xf32> to vector<1x32xf32>
    %1128 = vector.extract_strided_slice %1109 {offsets = [0, 64], sizes = [1, 32], strides = [1, 1]} : vector<1x96xf32> to vector<1x32xf32>
    %1129 = arith.mulf %1118, %1128 : vector<1x32xf32>
    %1130 = arith.addf %1127, %1129 : vector<1x32xf32>
    %1131 = math.tanh %1130 : vector<1x32xf32>
    %cst_304 = arith.constant 1.000000e+00 : f32
    %1132 = vector.broadcast %cst_304 : f32 to vector<1x32xf32>
    %1133 = arith.subf %1132, %1126 : vector<1x32xf32>
    %1134 = arith.mulf %1133, %1131 : vector<1x32xf32>
    %1135 = arith.mulf %1126, %1110 : vector<1x32xf32>
    %1136 = arith.addf %1134, %1135 : vector<1x32xf32>
    %1137 = vector.extract_strided_slice %192 {offsets = [1, 0], sizes = [1, 96], strides = [1, 1]} : vector<16x96xf32> to vector<1x96xf32>
    %1138 = vector.extract_strided_slice %1107 {offsets = [0, 96], sizes = [1, 96], strides = [1, 1]} : vector<1x192xf32> to vector<1x96xf32>
    %1139 = vector.extract_strided_slice %1103 {offsets = [0, 32], sizes = [1, 32], strides = [1, 1]} : vector<1x64xf32> to vector<1x32xf32>
    %1140 = vector.extract_strided_slice %1137 {offsets = [0, 0], sizes = [1, 32], strides = [1, 1]} : vector<1x96xf32> to vector<1x32xf32>
    %1141 = vector.extract_strided_slice %1138 {offsets = [0, 0], sizes = [1, 32], strides = [1, 1]} : vector<1x96xf32> to vector<1x32xf32>
    %1142 = arith.addf %1140, %1141 : vector<1x32xf32>
    %1143 = arith.negf %1142 : vector<1x32xf32>
    %1144 = math.exp %1143 : vector<1x32xf32>
    %cst_305 = arith.constant 1.000000e+00 : f32
    %1145 = vector.broadcast %cst_305 : f32 to vector<1x32xf32>
    %1146 = arith.addf %1145, %1144 : vector<1x32xf32>
    %1147 = arith.divf %1145, %1146 : vector<1x32xf32>
    %1148 = vector.extract_strided_slice %1137 {offsets = [0, 32], sizes = [1, 32], strides = [1, 1]} : vector<1x96xf32> to vector<1x32xf32>
    %1149 = vector.extract_strided_slice %1138 {offsets = [0, 32], sizes = [1, 32], strides = [1, 1]} : vector<1x96xf32> to vector<1x32xf32>
    %1150 = arith.addf %1148, %1149 : vector<1x32xf32>
    %1151 = arith.negf %1150 : vector<1x32xf32>
    %1152 = math.exp %1151 : vector<1x32xf32>
    %cst_306 = arith.constant 1.000000e+00 : f32
    %1153 = vector.broadcast %cst_306 : f32 to vector<1x32xf32>
    %1154 = arith.addf %1153, %1152 : vector<1x32xf32>
    %1155 = arith.divf %1153, %1154 : vector<1x32xf32>
    %1156 = vector.extract_strided_slice %1137 {offsets = [0, 64], sizes = [1, 32], strides = [1, 1]} : vector<1x96xf32> to vector<1x32xf32>
    %1157 = vector.extract_strided_slice %1138 {offsets = [0, 64], sizes = [1, 32], strides = [1, 1]} : vector<1x96xf32> to vector<1x32xf32>
    %1158 = arith.mulf %1147, %1157 : vector<1x32xf32>
    %1159 = arith.addf %1156, %1158 : vector<1x32xf32>
    %1160 = math.tanh %1159 : vector<1x32xf32>
    %cst_307 = arith.constant 1.000000e+00 : f32
    %1161 = vector.broadcast %cst_307 : f32 to vector<1x32xf32>
    %1162 = arith.subf %1161, %1155 : vector<1x32xf32>
    %1163 = arith.mulf %1162, %1160 : vector<1x32xf32>
    %1164 = arith.mulf %1155, %1139 : vector<1x32xf32>
    %1165 = arith.addf %1163, %1164 : vector<1x32xf32>
    %c14_308 = arith.constant 14 : index
    %c0_309 = arith.constant 0 : index
    %1166 = vector.load %arg22[%c14_308, %c0_309] : memref<16x64xf32, #tpu.memory_space<vmem>>, vector<1x32xf32>
    tpu.vector_store %arg22[%c14_308, %c0_309], %1136 {strides = array<i32>} : memref<16x64xf32, #tpu.memory_space<vmem>>, vector<1x32xf32>,
    %c1_310 = arith.constant 1 : index
    %c32_311 = arith.constant 32 : index
    %1167 = vector.load %arg22[%c1_310, %c32_311] : memref<16x64xf32, #tpu.memory_space<vmem>>, vector<1x32xf32>
    tpu.vector_store %arg22[%c1_310, %c32_311], %1165 {strides = array<i32>} : memref<16x64xf32, #tpu.memory_space<vmem>>, vector<1x32xf32>,
    %1168 = tpu.concatenate %1136, %1165 in 1 : vector<1x32xf32>, vector<1x32xf32> -> vector<1x64xf32>
    %c0_312 = arith.constant 0 : index
    %c0_313 = arith.constant 0 : index
    %1169 = vector.load %arg19[%c0_312, %c0_313] : memref<64x192xf32, #tpu.memory_space<vmem>>, vector<64x192xf32>
    %cst_314 = arith.constant dense<0.000000e+00> : vector<1x192xf32>
    %1170 = tpu.matmul %1168, %1169, %cst_314 {dimension_numbers = #tpu.dot_dimension_numbers<[1], [0], [0], [1], [0, 0, 1, 1], [], []>} : vector<1x64xf32>, vector<64x192xf32>, vector<1x192xf32> -> vector<1x192xf32>
    %c0_315 = arith.constant 0 : index
    %c0_316 = arith.constant 0 : index
    %1171 = vector.load %arg20[%c0_315, %c0_316] : memref<1x192xf32, #tpu.memory_space<vmem>>, vector<1x192xf32>
    %1172 = arith.addf %1170, %1171 : vector<1x192xf32>
    %1173 = vector.extract_strided_slice %191 {offsets = [15, 0], sizes = [1, 96], strides = [1, 1]} : vector<16x96xf32> to vector<1x96xf32>
    %1174 = vector.extract_strided_slice %1172 {offsets = [0, 0], sizes = [1, 96], strides = [1, 1]} : vector<1x192xf32> to vector<1x96xf32>
    %1175 = vector.extract_strided_slice %1168 {offsets = [0, 0], sizes = [1, 32], strides = [1, 1]} : vector<1x64xf32> to vector<1x32xf32>
    %1176 = vector.extract_strided_slice %1173 {offsets = [0, 0], sizes = [1, 32], strides = [1, 1]} : vector<1x96xf32> to vector<1x32xf32>
    %1177 = vector.extract_strided_slice %1174 {offsets = [0, 0], sizes = [1, 32], strides = [1, 1]} : vector<1x96xf32> to vector<1x32xf32>
    %1178 = arith.addf %1176, %1177 : vector<1x32xf32>
    %1179 = arith.negf %1178 : vector<1x32xf32>
    %1180 = math.exp %1179 : vector<1x32xf32>
    %cst_317 = arith.constant 1.000000e+00 : f32
    %1181 = vector.broadcast %cst_317 : f32 to vector<1x32xf32>
    %1182 = arith.addf %1181, %1180 : vector<1x32xf32>
    %1183 = arith.divf %1181, %1182 : vector<1x32xf32>
    %1184 = vector.extract_strided_slice %1173 {offsets = [0, 32], sizes = [1, 32], strides = [1, 1]} : vector<1x96xf32> to vector<1x32xf32>
    %1185 = vector.extract_strided_slice %1174 {offsets = [0, 32], sizes = [1, 32], strides = [1, 1]} : vector<1x96xf32> to vector<1x32xf32>
    %1186 = arith.addf %1184, %1185 : vector<1x32xf32>
    %1187 = arith.negf %1186 : vector<1x32xf32>
    %1188 = math.exp %1187 : vector<1x32xf32>
    %cst_318 = arith.constant 1.000000e+00 : f32
    %1189 = vector.broadcast %cst_318 : f32 to vector<1x32xf32>
    %1190 = arith.addf %1189, %1188 : vector<1x32xf32>
    %1191 = arith.divf %1189, %1190 : vector<1x32xf32>
    %1192 = vector.extract_strided_slice %1173 {offsets = [0, 64], sizes = [1, 32], strides = [1, 1]} : vector<1x96xf32> to vector<1x32xf32>
    %1193 = vector.extract_strided_slice %1174 {offsets = [0, 64], sizes = [1, 32], strides = [1, 1]} : vector<1x96xf32> to vector<1x32xf32>
    %1194 = arith.mulf %1183, %1193 : vector<1x32xf32>
    %1195 = arith.addf %1192, %1194 : vector<1x32xf32>
    %1196 = math.tanh %1195 : vector<1x32xf32>
    %cst_319 = arith.constant 1.000000e+00 : f32
    %1197 = vector.broadcast %cst_319 : f32 to vector<1x32xf32>
    %1198 = arith.subf %1197, %1191 : vector<1x32xf32>
    %1199 = arith.mulf %1198, %1196 : vector<1x32xf32>
    %1200 = arith.mulf %1191, %1175 : vector<1x32xf32>
    %1201 = arith.addf %1199, %1200 : vector<1x32xf32>
    %1202 = vector.extract_strided_slice %192 {offsets = [0, 0], sizes = [1, 96], strides = [1, 1]} : vector<16x96xf32> to vector<1x96xf32>
    %1203 = vector.extract_strided_slice %1172 {offsets = [0, 96], sizes = [1, 96], strides = [1, 1]} : vector<1x192xf32> to vector<1x96xf32>
    %1204 = vector.extract_strided_slice %1168 {offsets = [0, 32], sizes = [1, 32], strides = [1, 1]} : vector<1x64xf32> to vector<1x32xf32>
    %1205 = vector.extract_strided_slice %1202 {offsets = [0, 0], sizes = [1, 32], strides = [1, 1]} : vector<1x96xf32> to vector<1x32xf32>
    %1206 = vector.extract_strided_slice %1203 {offsets = [0, 0], sizes = [1, 32], strides = [1, 1]} : vector<1x96xf32> to vector<1x32xf32>
    %1207 = arith.addf %1205, %1206 : vector<1x32xf32>
    %1208 = arith.negf %1207 : vector<1x32xf32>
    %1209 = math.exp %1208 : vector<1x32xf32>
    %cst_320 = arith.constant 1.000000e+00 : f32
    %1210 = vector.broadcast %cst_320 : f32 to vector<1x32xf32>
    %1211 = arith.addf %1210, %1209 : vector<1x32xf32>
    %1212 = arith.divf %1210, %1211 : vector<1x32xf32>
    %1213 = vector.extract_strided_slice %1202 {offsets = [0, 32], sizes = [1, 32], strides = [1, 1]} : vector<1x96xf32> to vector<1x32xf32>
    %1214 = vector.extract_strided_slice %1203 {offsets = [0, 32], sizes = [1, 32], strides = [1, 1]} : vector<1x96xf32> to vector<1x32xf32>
    %1215 = arith.addf %1213, %1214 : vector<1x32xf32>
    %1216 = arith.negf %1215 : vector<1x32xf32>
    %1217 = math.exp %1216 : vector<1x32xf32>
    %cst_321 = arith.constant 1.000000e+00 : f32
    %1218 = vector.broadcast %cst_321 : f32 to vector<1x32xf32>
    %1219 = arith.addf %1218, %1217 : vector<1x32xf32>
    %1220 = arith.divf %1218, %1219 : vector<1x32xf32>
    %1221 = vector.extract_strided_slice %1202 {offsets = [0, 64], sizes = [1, 32], strides = [1, 1]} : vector<1x96xf32> to vector<1x32xf32>
    %1222 = vector.extract_strided_slice %1203 {offsets = [0, 64], sizes = [1, 32], strides = [1, 1]} : vector<1x96xf32> to vector<1x32xf32>
    %1223 = arith.mulf %1212, %1222 : vector<1x32xf32>
    %1224 = arith.addf %1221, %1223 : vector<1x32xf32>
    %1225 = math.tanh %1224 : vector<1x32xf32>
    %cst_322 = arith.constant 1.000000e+00 : f32
    %1226 = vector.broadcast %cst_322 : f32 to vector<1x32xf32>
    %1227 = arith.subf %1226, %1220 : vector<1x32xf32>
    %1228 = arith.mulf %1227, %1225 : vector<1x32xf32>
    %1229 = arith.mulf %1220, %1204 : vector<1x32xf32>
    %1230 = arith.addf %1228, %1229 : vector<1x32xf32>
    %c15_323 = arith.constant 15 : index
    %c0_324 = arith.constant 0 : index
    %1231 = vector.load %arg22[%c15_323, %c0_324] : memref<16x64xf32, #tpu.memory_space<vmem>>, vector<1x32xf32>
    tpu.vector_store %arg22[%c15_323, %c0_324], %1201 {strides = array<i32>} : memref<16x64xf32, #tpu.memory_space<vmem>>, vector<1x32xf32>,
    %c0_325 = arith.constant 0 : index
    %c32_326 = arith.constant 32 : index
    %1232 = vector.load %arg22[%c0_325, %c32_326] : memref<16x64xf32, #tpu.memory_space<vmem>>, vector<1x32xf32>
    tpu.vector_store %arg22[%c0_325, %c32_326], %1230 {strides = array<i32>} : memref<16x64xf32, #tpu.memory_space<vmem>>, vector<1x32xf32>,
    %c0_327 = arith.constant 0 : index
    %c0_328 = arith.constant 0 : index
    %1233 = vector.load %arg22[%c0_327, %c0_328] : memref<16x64xf32, #tpu.memory_space<vmem>>, vector<16x64xf32>
    %c0_329 = arith.constant 0 : index
    %c0_330 = arith.constant 0 : index
    %c0_331 = arith.constant 0 : index
    %1234 = vector.load %arg21[%c0_329, %c0_330, %c0_331] : memref<1x16x64xf32, #tpu.memory_space<vmem>>, vector<1x16x64xf32>
    %1235 = vector.shape_cast %1234 : vector<1x16x64xf32> to vector<16x64xf32>
    %1236 = vector.shape_cast %1233 : vector<16x64xf32> to vector<1x16x64xf32>
    tpu.vector_store %arg21[%c0_329, %c0_330, %c0_331], %1236 {strides = array<i32>} : memref<1x16x64xf32, #tpu.memory_space<vmem>>, vector<1x16x64xf32>,
    return
  }
  func.func @transform_0(%arg0: i32) -> (i32, i32, i32) {
    %c0_i32 = arith.constant 0 : i32
    %c0_i32_0 = arith.constant 0 : i32
    %c0_i32_1 = arith.constant 0 : i32
    return %arg0, %c0_i32, %c0_i32_0 : i32, i32, i32
  }
  func.func @transform_1(%arg0: i32) -> (i32, i32) {
    %c0_i32 = arith.constant 0 : i32
    %c0_i32_0 = arith.constant 0 : i32
    %c0_i32_1 = arith.constant 0 : i32
    return %c0_i32, %c0_i32_0 : i32, i32
  }
  func.func @transform_2(%arg0: i32) -> (i32, i32) {
    %c0_i32 = arith.constant 0 : i32
    %c0_i32_0 = arith.constant 0 : i32
    %c0_i32_1 = arith.constant 0 : i32
    return %c0_i32, %c0_i32_0 : i32, i32
  }
  func.func @transform_3(%arg0: i32) -> (i32, i32) {
    %c0_i32 = arith.constant 0 : i32
    %c0_i32_0 = arith.constant 0 : i32
    %c0_i32_1 = arith.constant 0 : i32
    return %c0_i32, %c0_i32_0 : i32, i32
  }
  func.func @transform_4(%arg0: i32) -> (i32, i32) {
    %c0_i32 = arith.constant 0 : i32
    %c0_i32_0 = arith.constant 0 : i32
    %c0_i32_1 = arith.constant 0 : i32
    return %c0_i32, %c0_i32_0 : i32, i32
  }
  func.func @transform_5(%arg0: i32) -> (i32, i32) {
    %c0_i32 = arith.constant 0 : i32
    %c0_i32_0 = arith.constant 0 : i32
    %c0_i32_1 = arith.constant 0 : i32
    return %c0_i32, %c0_i32_0 : i32, i32
  }
  func.func @transform_6(%arg0: i32) -> (i32, i32) {
    %c0_i32 = arith.constant 0 : i32
    %c0_i32_0 = arith.constant 0 : i32
    %c0_i32_1 = arith.constant 0 : i32
    return %c0_i32, %c0_i32_0 : i32, i32
  }
  func.func @transform_7(%arg0: i32) -> (i32, i32) {
    %c0_i32 = arith.constant 0 : i32
    %c0_i32_0 = arith.constant 0 : i32
    %c0_i32_1 = arith.constant 0 : i32
    return %c0_i32, %c0_i32_0 : i32, i32
  }
  func.func @transform_8(%arg0: i32) -> (i32, i32) {
    %c0_i32 = arith.constant 0 : i32
    %c0_i32_0 = arith.constant 0 : i32
    %c0_i32_1 = arith.constant 0 : i32
    return %c0_i32, %c0_i32_0 : i32, i32
  }
  func.func @transform_9(%arg0: i32) -> (i32, i32) {
    %c0_i32 = arith.constant 0 : i32
    %c0_i32_0 = arith.constant 0 : i32
    %c0_i32_1 = arith.constant 0 : i32
    return %c0_i32, %c0_i32_0 : i32, i32
  }
  func.func @transform_10(%arg0: i32) -> (i32, i32) {
    %c0_i32 = arith.constant 0 : i32
    %c0_i32_0 = arith.constant 0 : i32
    %c0_i32_1 = arith.constant 0 : i32
    return %c0_i32, %c0_i32_0 : i32, i32
  }
  func.func @transform_11(%arg0: i32) -> (i32, i32) {
    %c0_i32 = arith.constant 0 : i32
    %c0_i32_0 = arith.constant 0 : i32
    %c0_i32_1 = arith.constant 0 : i32
    return %c0_i32, %c0_i32_0 : i32, i32
  }
  func.func @transform_12(%arg0: i32) -> (i32, i32) {
    %c0_i32 = arith.constant 0 : i32
    %c0_i32_0 = arith.constant 0 : i32
    %c0_i32_1 = arith.constant 0 : i32
    return %c0_i32, %c0_i32_0 : i32, i32
  }
  func.func @transform_13(%arg0: i32) -> (i32, i32) {
    %c0_i32 = arith.constant 0 : i32
    %c0_i32_0 = arith.constant 0 : i32
    %c0_i32_1 = arith.constant 0 : i32
    return %c0_i32, %c0_i32_0 : i32, i32
  }
  func.func @transform_14(%arg0: i32) -> (i32, i32, i32) {
    %c0_i32 = arith.constant 0 : i32
    %c0_i32_0 = arith.constant 0 : i32
    %c0_i32_1 = arith.constant 0 : i32
    %c0_i32_2 = arith.constant 0 : i32
    return %c0_i32, %c0_i32_0, %c0_i32_1 : i32, i32, i32
  }
  func.func @transform_15(%arg0: i32) -> (i32, i32, i32) {
    %c0_i32 = arith.constant 0 : i32
    %c0_i32_0 = arith.constant 0 : i32
    %c0_i32_1 = arith.constant 0 : i32
    %c0_i32_2 = arith.constant 0 : i32
    return %c0_i32, %c0_i32_0, %c0_i32_1 : i32, i32, i32
  }
  func.func @transform_16(%arg0: i32) -> (i32, i32) {
    %c0_i32 = arith.constant 0 : i32
    %c0_i32_0 = arith.constant 0 : i32
    %c0_i32_1 = arith.constant 0 : i32
    return %c0_i32, %c0_i32_0 : i32, i32
  }
  func.func @transform_17(%arg0: i32) -> (i32, i32) {
    %c0_i32 = arith.constant 0 : i32
    %c0_i32_0 = arith.constant 0 : i32
    %c0_i32_1 = arith.constant 0 : i32
    return %c0_i32, %c0_i32_0 : i32, i32
  }
  func.func @transform_18(%arg0: i32) -> (i32, i32) {
    %c0_i32 = arith.constant 0 : i32
    %c0_i32_0 = arith.constant 0 : i32
    %c0_i32_1 = arith.constant 0 : i32
    return %c0_i32, %c0_i32_0 : i32, i32
  }
  func.func @transform_19(%arg0: i32) -> (i32, i32) {
    %c0_i32 = arith.constant 0 : i32
    %c0_i32_0 = arith.constant 0 : i32
    %c0_i32_1 = arith.constant 0 : i32
    return %c0_i32, %c0_i32_0 : i32, i32
  }
  func.func @transform_20(%arg0: i32) -> (i32, i32, i32) {
    %c0_i32 = arith.constant 0 : i32
    %c0_i32_0 = arith.constant 0 : i32
    %c0_i32_1 = arith.constant 0 : i32
    return %arg0, %c0_i32, %c0_i32_0 : i32, i32, i32
  }
}

</mosaic_0001>

<llo_original>
// kernel: encoder_forward.1
$region0: #{encoder_forward.1}
  #allocation0 [shape = 'u32[]', space=smem, size = 0x4, offset = 0x4, fixed_abs, tag = 'smem constant byte address 0x4 - core index']
  #allocation1 [shape = 'u32[144,128]{1,0:T(1,128)}', space=vmem, size = 0x12000, scoped, tag = 'internal scratch']
  #allocation2 [shape = 'f32[16,64]{1,0:T(8,128)}', space=vmem, size = 0x2000, scoped, tag = 'scratch operand']
  %s0 = inlined_call_operand.vmem [shape: s32[2,16,1], index: 0, kind: input, shape index: {}]
  %s1 = inlined_call_operand.vmem [shape: f32[16,64], index: 1, kind: input, shape index: {}]
  %s2 = inlined_call_operand.vmem [shape: f32[1,64], index: 2, kind: input, shape index: {}]
  %s3 = inlined_call_operand.vmem [shape: f32[64,32], index: 3, kind: input, shape index: {}]
  %s4 = inlined_call_operand.vmem [shape: f32[1,32], index: 4, kind: input, shape index: {}]
  %s5 = inlined_call_operand.vmem [shape: f32[128,128], index: 5, kind: input, shape index: {}]
  %s6 = inlined_call_operand.vmem [shape: f32[1,128], index: 6, kind: input, shape index: {}]
  %s7 = inlined_call_operand.vmem [shape: f32[1,128], index: 7, kind: input, shape index: {}]
  %s8 = inlined_call_operand.vmem [shape: f32[384,32], index: 8, kind: input, shape index: {}]
  %s9 = inlined_call_operand.vmem [shape: f32[1,32], index: 9, kind: input, shape index: {}]
  %s10 = inlined_call_operand.vmem [shape: f32[1,32], index: 10, kind: input, shape index: {}]
  %s11 = inlined_call_operand.vmem [shape: f32[96,32], index: 11, kind: input, shape index: {}]
  %s12 = inlined_call_operand.vmem [shape: f32[1,32], index: 12, kind: input, shape index: {}]
  %s13 = inlined_call_operand.vmem [shape: f32[1,32], index: 13, kind: input, shape index: {}]
  %s14 = inlined_call_operand.vmem [shape: f32[4,32,64], index: 14, kind: input, shape index: {}]
  %s15 = inlined_call_operand.vmem [shape: f32[4,1,64], index: 15, kind: input, shape index: {}]
  %s16 = inlined_call_operand.vmem [shape: f32[32,192], index: 16, kind: input, shape index: {}]
  %s17 = inlined_call_operand.vmem [shape: f32[1,192], index: 17, kind: input, shape index: {}]
  %s18 = inlined_call_operand.vmem [shape: f32[64,192], index: 18, kind: input, shape index: {}]
  %s19 = inlined_call_operand.vmem [shape: f32[1,192], index: 19, kind: input, shape index: {}]
  %s20 = inlined_call_operand.hbm [shape: f32[2,16,64], index: 20, kind: output, shape index: {}]
  %s21 = sld [smem:[#allocation0]]
  $region113: #{encoder_forward.1} parent=0
    _
  %s23 = ssub.s32 1, %s21
  %s24 = scalar_select 0, %s23, %s21
  $region1: #{encoder_forward.1} parent=0
    #allocation3 [shape = 'u8[16384]{0}', space=vmem, size = 0x4000, scoped, tag = 'output window, operand 0']
    #allocation4 [shape = 's32[2]{0}', space=sflag, size = 0x8, scoped, tag = 'scoped memory for encoder_forward.1']
    %25 = vsyncpa [#allocation4], 0
    %s26 = scalar_lea.sflag [#allocation4], 1
    %27 = vsyncpa %s26, 0
    loop: start=0, step=1, limit=4
    $region2: #{encoder_forward.1} parent=1 // loop_pre_header
      _
    $region3: #{encoder_forward.1} parent=1 // loop_header
      %s29 = sphi 0, %s33
      %p30 = scmp.ge.s32.totalorder %s29, 4
      %s39 = sphi 0, %s41
      %s42 = sphi 0, %s39
      %s43 = sphi 0, %s42
      %s59 = sphi 0, %s43
      %s63 = sphi 0, %s63
      %s65 = sphi 0, %s63
      %s66 = sphi 0, %s65
      %s80 = sphi 0, %s66
      %s84 = sphi 0, %s84
      %s86 = sphi 0, %s84
      %s87 = sphi 0, %s86
      %s101 = sphi 0, %s87
      %s105 = sphi 0, %s105
      %s107 = sphi 0, %s105
      %s108 = sphi 0, %s107
      %s122 = sphi 0, %s108
      %s126 = sphi 0, %s126
      %s128 = sphi 0, %s126
      %s129 = sphi 0, %s128
      %s143 = sphi 0, %s129
      %s147 = sphi 0, %s147
      %s149 = sphi 0, %s147
      %s150 = sphi 0, %s149
      %s164 = sphi 0, %s150
      %s168 = sphi 0, %s168
      %s170 = sphi 0, %s168
      %s171 = sphi 0, %s170
      %s185 = sphi 0, %s171
      %s189 = sphi 0, %s189
      %s191 = sphi 0, %s189
      %s192 = sphi 0, %s191
      %s206 = sphi 0, %s192
      %s210 = sphi 0, %s210
      %s212 = sphi 0, %s210
      %s213 = sphi 0, %s212
      %s227 = sphi 0, %s213
      %s231 = sphi 0, %s231
      %s233 = sphi 0, %s231
      %s234 = sphi 0, %s233
      %s248 = sphi 0, %s234
      %s252 = sphi 0, %s252
      %s254 = sphi 0, %s252
      %s255 = sphi 0, %s254
      %s269 = sphi 0, %s255
      %s273 = sphi 0, %s273
      %s275 = sphi 0, %s273
      %s276 = sphi 0, %s275
      %s290 = sphi 0, %s276
      %s294 = sphi 0, %s294
      %s296 = sphi 0, %s294
      %s297 = sphi 0, %s296
      %s311 = sphi 0, %s297
      %s315 = sphi 0, %s315
      %s317 = sphi 0, %s315
      %s318 = sphi 0, %s317
      %s332 = sphi 0, %s318
      %s336 = sphi 0, %s336
      %s338 = sphi 0, %s336
      %s339 = sphi 0, %s338
      %s353 = sphi 0, %s339
      %s357 = sphi 0, %s357
      %s359 = sphi 0, %s357
      %s360 = sphi 0, %s359
      %s374 = sphi 0, %s360
      %s378 = sphi 0, %s378
      %s380 = sphi 0, %s378
      %s381 = sphi 0, %s380
      %s395 = sphi 0, %s381
      %s399 = sphi 0, %s399
      %s401 = sphi 0, %s399
      %s402 = sphi 0, %s401
      %s416 = sphi 0, %s402
      %s420 = sphi 0, %s420
      %s422 = sphi 0, %s420
      %s423 = sphi 0, %s422
      %s437 = sphi 0, %s423
      %s441 = sphi 0, %s441
      %s443 = sphi 0, %s441
      %s444 = sphi 0, %s443
      %s458 = sphi 0, %s444
      %s464 = sphi 0, %s466
      %s467 = sphi 0, %s464
      %s468 = sphi 0, %s467
      %s484 = sphi 0, %s468
    $region4: #{encoder_forward.1} parent=1 // loop_header_branch
      %32 = sbr.rel (%p30) target = $region8
    $region5: #{encoder_forward.1} parent=1 // loop_body
      %s34 = ssub.s32 %s29, 1
      %s35 = ssub.s32 %s29, 2
      %s36 = sadd.s32 %s29, 1
      %s37 = ssub.s32 %s29, %s36
      %p38 = scmp.eq.s32.totalorder %s37, 0
      %s40 = sadd.s32 %s39, 1
      %s41 = scalar_select %p38, %s39, %s40
      %p44 = pneg %p38
      %p45 = scmp.eq.s32.totalorder %s29, 1
      %p46 = por %p44, %p45
      %p47 = scmp.ne.s32.totalorder %s39, %s42
      %p48 = scmp.eq.s32.totalorder %s29, 0
      %p49 = por %p47, %p48
      %p50 = scmp.ne.s32.totalorder %s39, %s42
      %p51 = scmp.eq.s32.totalorder %s34, 1
      %p52 = por %p50, %p51
      %p53 = scmp.ne.s32.totalorder %s42, %s43
      %p54 = scmp.eq.s32.totalorder %s34, 0
      %p55 = por %p53, %p54
      %p56 = scmp.ne.s32.totalorder %s42, %s43
      %p57 = scmp.eq.s32.totalorder %s35, 1
      %p58 = por %p56, %p57
      %p60 = scmp.ne.s32.totalorder %s43, %s59
      %p61 = scmp.eq.s32.totalorder %s35, 0
      %p62 = por %p60, %p61
      %s64 = sadd.s32 %s63, 1
      %p67 = scmp.eq.s32.totalorder %s29, 1
      %p68 = scmp.ne.s32.totalorder %s63, %s65
      %p69 = scmp.eq.s32.totalorder %s29, 0
      %p70 = por %p68, %p69
      %p71 = scmp.ne.s32.totalorder %s63, %s65
      %p72 = scmp.eq.s32.totalorder %s34, 1
      %p73 = por %p71, %p72
      %p74 = scmp.ne.s32.totalorder %s65, %s66
      %p75 = scmp.eq.s32.totalorder %s34, 0
      %p76 = por %p74, %p75
      %p77 = scmp.ne.s32.totalorder %s65, %s66
      %p78 = scmp.eq.s32.totalorder %s35, 1
      %p79 = por %p77, %p78
      %p81 = scmp.ne.s32.totalorder %s66, %s80
      %p82 = scmp.eq.s32.totalorder %s35, 0
      %p83 = por %p81, %p82
      %s85 = sadd.s32 %s84, 1
      %p88 = scmp.eq.s32.totalorder %s29, 1
      %p89 = scmp.ne.s32.totalorder %s84, %s86
      %p90 = scmp.eq.s32.totalorder %s29, 0
      %p91 = por %p89, %p90
      %p92 = scmp.ne.s32.totalorder %s84, %s86
      %p93 = scmp.eq.s32.totalorder %s34, 1
      %p94 = por %p92, %p93
      %p95 = scmp.ne.s32.totalorder %s86, %s87
      %p96 = scmp.eq.s32.totalorder %s34, 0
      %p97 = por %p95, %p96
      %p98 = scmp.ne.s32.totalorder %s86, %s87
      %p99 = scmp.eq.s32.totalorder %s35, 1
      %p100 = por %p98, %p99
      %p102 = scmp.ne.s32.totalorder %s87, %s101
      %p103 = scmp.eq.s32.totalorder %s35, 0
      %p104 = por %p102, %p103
      %s106 = sadd.s32 %s105, 1
      %p109 = scmp.eq.s32.totalorder %s29, 1
      %p110 = scmp.ne.s32.totalorder %s105, %s107
      %p111 = scmp.eq.s32.totalorder %s29, 0
      %p112 = por %p110, %p111
      %p113 = scmp.ne.s32.totalorder %s105, %s107
      %p114 = scmp.eq.s32.totalorder %s34, 1
      %p115 = por %p113, %p114
      %p116 = scmp.ne.s32.totalorder %s107, %s108
      %p117 = scmp.eq.s32.totalorder %s34, 0
      %p118 = por %p116, %p117
      %p119 = scmp.ne.s32.totalorder %s107, %s108
      %p120 = scmp.eq.s32.totalorder %s35, 1
      %p121 = por %p119, %p120
      %p123 = scmp.ne.s32.totalorder %s108, %s122
      %p124 = scmp.eq.s32.totalorder %s35, 0
      %p125 = por %p123, %p124
      %s127 = sadd.s32 %s126, 1
      %p130 = scmp.eq.s32.totalorder %s29, 1
      %p131 = scmp.ne.s32.totalorder %s126, %s128
      %p132 = scmp.eq.s32.totalorder %s29, 0
      %p133 = por %p131, %p132
      %p134 = scmp.ne.s32.totalorder %s126, %s128
      %p135 = scmp.eq.s32.totalorder %s34, 1
      %p136 = por %p134, %p135
      %p137 = scmp.ne.s32.totalorder %s128, %s129
      %p138 = scmp.eq.s32.totalorder %s34, 0
      %p139 = por %p137, %p138
      %p140 = scmp.ne.s32.totalorder %s128, %s129
      %p141 = scmp.eq.s32.totalorder %s35, 1
      %p142 = por %p140, %p141
      %p144 = scmp.ne.s32.totalorder %s129, %s143
      %p145 = scmp.eq.s32.totalorder %s35, 0
      %p146 = por %p144, %p145
      %s148 = sadd.s32 %s147, 1
      %p151 = scmp.eq.s32.totalorder %s29, 1
      %p152 = scmp.ne.s32.totalorder %s147, %s149
      %p153 = scmp.eq.s32.totalorder %s29, 0
      %p154 = por %p152, %p153
      %p155 = scmp.ne.s32.totalorder %s147, %s149
      %p156 = scmp.eq.s32.totalorder %s34, 1
      %p157 = por %p155, %p156
      %p158 = scmp.ne.s32.totalorder %s149, %s150
      %p159 = scmp.eq.s32.totalorder %s34, 0
      %p160 = por %p158, %p159
      %p161 = scmp.ne.s32.totalorder %s149, %s150
      %p162 = scmp.eq.s32.totalorder %s35, 1
      %p163 = por %p161, %p162
      %p165 = scmp.ne.s32.totalorder %s150, %s164
      %p166 = scmp.eq.s32.totalorder %s35, 0
      %p167 = por %p165, %p166
      %s169 = sadd.s32 %s168, 1
      %p172 = scmp.eq.s32.totalorder %s29, 1
      %p173 = scmp.ne.s32.totalorder %s168, %s170
      %p174 = scmp.eq.s32.totalorder %s29, 0
      %p175 = por %p173, %p174
      %p176 = scmp.ne.s32.totalorder %s168, %s170
      %p177 = scmp.eq.s32.totalorder %s34, 1
      %p178 = por %p176, %p177
      %p179 = scmp.ne.s32.totalorder %s170, %s171
      %p180 = scmp.eq.s32.totalorder %s34, 0
      %p181 = por %p179, %p180
      %p182 = scmp.ne.s32.totalorder %s170, %s171
      %p183 = scmp.eq.s32.totalorder %s35, 1
      %p184 = por %p182, %p183
      %p186 = scmp.ne.s32.totalorder %s171, %s185
      %p187 = scmp.eq.s32.totalorder %s35, 0
      %p188 = por %p186, %p187
      %s190 = sadd.s32 %s189, 1
      %p193 = scmp.eq.s32.totalorder %s29, 1
      %p194 = scmp.ne.s32.totalorder %s189, %s191
      %p195 = scmp.eq.s32.totalorder %s29, 0
      %p196 = por %p194, %p195
      %p197 = scmp.ne.s32.totalorder %s189, %s191
      %p198 = scmp.eq.s32.totalorder %s34, 1
      %p199 = por %p197, %p198
      %p200 = scmp.ne.s32.totalorder %s191, %s192
      %p201 = scmp.eq.s32.totalorder %s34, 0
      %p202 = por %p200, %p201
      %p203 = scmp.ne.s32.totalorder %s191, %s192
      %p204 = scmp.eq.s32.totalorder %s35, 1
      %p205 = por %p203, %p204
      %p207 = scmp.ne.s32.totalorder %s192, %s206
      %p208 = scmp.eq.s32.totalorder %s35, 0
      %p209 = por %p207, %p208
      %s211 = sadd.s32 %s210, 1
      %p214 = scmp.eq.s32.totalorder %s29, 1
      %p215 = scmp.ne.s32.totalorder %s210, %s212
      %p216 = scmp.eq.s32.totalorder %s29, 0
      %p217 = por %p215, %p216
      %p218 = scmp.ne.s32.totalorder %s210, %s212
      %p219 = scmp.eq.s32.totalorder %s34, 1
      %p220 = por %p218, %p219
      %p221 = scmp.ne.s32.totalorder %s212, %s213
      %p222 = scmp.eq.s32.totalorder %s34, 0
      %p223 = por %p221, %p222
      %p224 = scmp.ne.s32.totalorder %s212, %s213
      %p225 = scmp.eq.s32.totalorder %s35, 1
      %p226 = por %p224, %p225
      %p228 = scmp.ne.s32.totalorder %s213, %s227
      %p229 = scmp.eq.s32.totalorder %s35, 0
      %p230 = por %p228, %p229
      %s232 = sadd.s32 %s231, 1
      %p235 = scmp.eq.s32.totalorder %s29, 1
      %p236 = scmp.ne.s32.totalorder %s231, %s233
      %p237 = scmp.eq.s32.totalorder %s29, 0
      %p238 = por %p236, %p237
      %p239 = scmp.ne.s32.totalorder %s231, %s233
      %p240 = scmp.eq.s32.totalorder %s34, 1
      %p241 = por %p239, %p240
      %p242 = scmp.ne.s32.totalorder %s233, %s234
      %p243 = scmp.eq.s32.totalorder %s34, 0
      %p244 = por %p242, %p243
      %p245 = scmp.ne.s32.totalorder %s233, %s234
      %p246 = scmp.eq.s32.totalorder %s35, 1
      %p247 = por %p245, %p246
      %p249 = scmp.ne.s32.totalorder %s234, %s248
      %p250 = scmp.eq.s32.totalorder %s35, 0
      %p251 = por %p249, %p250
      %s253 = sadd.s32 %s252, 1
      %p256 = scmp.eq.s32.totalorder %s29, 1
      %p257 = scmp.ne.s32.totalorder %s252, %s254
      %p258 = scmp.eq.s32.totalorder %s29, 0
      %p259 = por %p257, %p258
      %p260 = scmp.ne.s32.totalorder %s252, %s254
      %p261 = scmp.eq.s32.totalorder %s34, 1
      %p262 = por %p260, %p261
      %p263 = scmp.ne.s32.totalorder %s254, %s255
      %p264 = scmp.eq.s32.totalorder %s34, 0
      %p265 = por %p263, %p264
      %p266 = scmp.ne.s32.totalorder %s254, %s255
      %p267 = scmp.eq.s32.totalorder %s35, 1
      %p268 = por %p266, %p267
      %p270 = scmp.ne.s32.totalorder %s255, %s269
      %p271 = scmp.eq.s32.totalorder %s35, 0
      %p272 = por %p270, %p271
      %s274 = sadd.s32 %s273, 1
      %p277 = scmp.eq.s32.totalorder %s29, 1
      %p278 = scmp.ne.s32.totalorder %s273, %s275
      %p279 = scmp.eq.s32.totalorder %s29, 0
      %p280 = por %p278, %p279
      %p281 = scmp.ne.s32.totalorder %s273, %s275
      %p282 = scmp.eq.s32.totalorder %s34, 1
      %p283 = por %p281, %p282
      %p284 = scmp.ne.s32.totalorder %s275, %s276
      %p285 = scmp.eq.s32.totalorder %s34, 0
      %p286 = por %p284, %p285
      %p287 = scmp.ne.s32.totalorder %s275, %s276
      %p288 = scmp.eq.s32.totalorder %s35, 1
      %p289 = por %p287, %p288
      %p291 = scmp.ne.s32.totalorder %s276, %s290
      %p292 = scmp.eq.s32.totalorder %s35, 0
      %p293 = por %p291, %p292
      %s295 = sadd.s32 %s294, 1
      %p298 = scmp.eq.s32.totalorder %s29, 1
      %p299 = scmp.ne.s32.totalorder %s294, %s296
      %p300 = scmp.eq.s32.totalorder %s29, 0
      %p301 = por %p299, %p300
      %p302 = scmp.ne.s32.totalorder %s294, %s296
      %p303 = scmp.eq.s32.totalorder %s34, 1
      %p304 = por %p302, %p303
      %p305 = scmp.ne.s32.totalorder %s296, %s297
      %p306 = scmp.eq.s32.totalorder %s34, 0
      %p307 = por %p305, %p306
      %p308 = scmp.ne.s32.totalorder %s296, %s297
      %p309 = scmp.eq.s32.totalorder %s35, 1
      %p310 = por %p308, %p309
      %p312 = scmp.ne.s32.totalorder %s297, %s311
      %p313 = scmp.eq.s32.totalorder %s35, 0
      %p314 = por %p312, %p313
      %s316 = sadd.s32 %s315, 1
      %p319 = scmp.eq.s32.totalorder %s29, 1
      %p320 = scmp.ne.s32.totalorder %s315, %s317
      %p321 = scmp.eq.s32.totalorder %s29, 0
      %p322 = por %p320, %p321
      %p323 = scmp.ne.s32.totalorder %s315, %s317
      %p324 = scmp.eq.s32.totalorder %s34, 1
      %p325 = por %p323, %p324
      %p326 = scmp.ne.s32.totalorder %s317, %s318
      %p327 = scmp.eq.s32.totalorder %s34, 0
      %p328 = por %p326, %p327
      %p329 = scmp.ne.s32.totalorder %s317, %s318
      %p330 = scmp.eq.s32.totalorder %s35, 1
      %p331 = por %p329, %p330
      %p333 = scmp.ne.s32.totalorder %s318, %s332
      %p334 = scmp.eq.s32.totalorder %s35, 0
      %p335 = por %p333, %p334
      %s337 = sadd.s32 %s336, 1
      %p340 = scmp.eq.s32.totalorder %s29, 1
      %p341 = scmp.ne.s32.totalorder %s336, %s338
      %p342 = scmp.eq.s32.totalorder %s29, 0
      %p343 = por %p341, %p342
      %p344 = scmp.ne.s32.totalorder %s336, %s338
      %p345 = scmp.eq.s32.totalorder %s34, 1
      %p346 = por %p344, %p345
      %p347 = scmp.ne.s32.totalorder %s338, %s339
      %p348 = scmp.eq.s32.totalorder %s34, 0
      %p349 = por %p347, %p348
      %p350 = scmp.ne.s32.totalorder %s338, %s339
      %p351 = scmp.eq.s32.totalorder %s35, 1
      %p352 = por %p350, %p351
      %p354 = scmp.ne.s32.totalorder %s339, %s353
      %p355 = scmp.eq.s32.totalorder %s35, 0
      %p356 = por %p354, %p355
      %s358 = sadd.s32 %s357, 1
      %p361 = scmp.eq.s32.totalorder %s29, 1
      %p362 = scmp.ne.s32.totalorder %s357, %s359
      %p363 = scmp.eq.s32.totalorder %s29, 0
      %p364 = por %p362, %p363
      %p365 = scmp.ne.s32.totalorder %s357, %s359
      %p366 = scmp.eq.s32.totalorder %s34, 1
      %p367 = por %p365, %p366
      %p368 = scmp.ne.s32.totalorder %s359, %s360
      %p369 = scmp.eq.s32.totalorder %s34, 0
      %p370 = por %p368, %p369
      %p371 = scmp.ne.s32.totalorder %s359, %s360
      %p372 = scmp.eq.s32.totalorder %s35, 1
      %p373 = por %p371, %p372
      %p375 = scmp.ne.s32.totalorder %s360, %s374
      %p376 = scmp.eq.s32.totalorder %s35, 0
      %p377 = por %p375, %p376
      %s379 = sadd.s32 %s378, 1
      %p382 = scmp.eq.s32.totalorder %s29, 1
      %p383 = scmp.ne.s32.totalorder %s378, %s380
      %p384 = scmp.eq.s32.totalorder %s29, 0
      %p385 = por %p383, %p384
      %p386 = scmp.ne.s32.totalorder %s378, %s380
      %p387 = scmp.eq.s32.totalorder %s34, 1
      %p388 = por %p386, %p387
      %p389 = scmp.ne.s32.totalorder %s380, %s381
      %p390 = scmp.eq.s32.totalorder %s34, 0
      %p391 = por %p389, %p390
      %p392 = scmp.ne.s32.totalorder %s380, %s381
      %p393 = scmp.eq.s32.totalorder %s35, 1
      %p394 = por %p392, %p393
      %p396 = scmp.ne.s32.totalorder %s381, %s395
      %p397 = scmp.eq.s32.totalorder %s35, 0
      %p398 = por %p396, %p397
      %s400 = sadd.s32 %s399, 1
      %p403 = scmp.eq.s32.totalorder %s29, 1
      %p404 = scmp.ne.s32.totalorder %s399, %s401
      %p405 = scmp.eq.s32.totalorder %s29, 0
      %p406 = por %p404, %p405
      %p407 = scmp.ne.s32.totalorder %s399, %s401
      %p408 = scmp.eq.s32.totalorder %s34, 1
      %p409 = por %p407, %p408
      %p410 = scmp.ne.s32.totalorder %s401, %s402
      %p411 = scmp.eq.s32.totalorder %s34, 0
      %p412 = por %p410, %p411
      %p413 = scmp.ne.s32.totalorder %s401, %s402
      %p414 = scmp.eq.s32.totalorder %s35, 1
      %p415 = por %p413, %p414
      %p417 = scmp.ne.s32.totalorder %s402, %s416
      %p418 = scmp.eq.s32.totalorder %s35, 0
      %p419 = por %p417, %p418
      %s421 = sadd.s32 %s420, 1
      %p424 = scmp.eq.s32.totalorder %s29, 1
      %p425 = scmp.ne.s32.totalorder %s420, %s422
      %p426 = scmp.eq.s32.totalorder %s29, 0
      %p427 = por %p425, %p426
      %p428 = scmp.ne.s32.totalorder %s420, %s422
      %p429 = scmp.eq.s32.totalorder %s34, 1
      %p430 = por %p428, %p429
      %p431 = scmp.ne.s32.totalorder %s422, %s423
      %p432 = scmp.eq.s32.totalorder %s34, 0
      %p433 = por %p431, %p432
      %p434 = scmp.ne.s32.totalorder %s422, %s423
      %p435 = scmp.eq.s32.totalorder %s35, 1
      %p436 = por %p434, %p435
      %p438 = scmp.ne.s32.totalorder %s423, %s437
      %p439 = scmp.eq.s32.totalorder %s35, 0
      %p440 = por %p438, %p439
      %s442 = sadd.s32 %s441, 1
      %p445 = scmp.eq.s32.totalorder %s29, 1
      %p446 = scmp.ne.s32.totalorder %s441, %s443
      %p447 = scmp.eq.s32.totalorder %s29, 0
      %p448 = por %p446, %p447
      %p449 = scmp.ne.s32.totalorder %s441, %s443
      %p450 = scmp.eq.s32.totalorder %s34, 1
      %p451 = por %p449, %p450
      %p452 = scmp.ne.s32.totalorder %s443, %s444
      %p453 = scmp.eq.s32.totalorder %s34, 0
      %p454 = por %p452, %p453
      %p455 = scmp.ne.s32.totalorder %s443, %s444
      %p456 = scmp.eq.s32.totalorder %s35, 1
      %p457 = por %p455, %p456
      %p459 = scmp.ne.s32.totalorder %s444, %s458
      %p460 = scmp.eq.s32.totalorder %s35, 0
      %p461 = por %p459, %p460
      %s462 = ssub.s32 %s29, %s36
      %p463 = scmp.eq.s32.totalorder %s462, 0
      %s465 = sadd.s32 %s464, 1
      %s466 = scalar_select %p463, %s464, %s465
      %p469 = pneg %p463
      %p470 = scmp.eq.s32.totalorder %s29, 1
      %p471 = por %p469, %p470
      %p472 = scmp.ne.s32.totalorder %s464, %s467
      %p473 = scmp.eq.s32.totalorder %s29, 0
      %p474 = por %p472, %p473
      %p475 = scmp.ne.s32.totalorder %s464, %s467
      %p476 = scmp.eq.s32.totalorder %s34, 1
      %p477 = por %p475, %p476
      %p478 = scmp.ne.s32.totalorder %s467, %s468
      %p479 = scmp.eq.s32.totalorder %s34, 0
      %p480 = por %p478, %p479
      %p481 = scmp.ne.s32.totalorder %s467, %s468
      %p482 = scmp.eq.s32.totalorder %s35, 1
      %p483 = por %p481, %p482
      %p485 = scmp.ne.s32.totalorder %s468, %s484
      %p486 = scmp.eq.s32.totalorder %s35, 0
      %p487 = por %p485, %p486
      %p488 = scmp.le.s32.totalorder 1, %s29
      %p489 = scmp.lt.s32.totalorder %s29, 3
      %p490 = pnand %p488, %p489
      %p491 = pneg %p490
      // Predicated region
      $region9: #{encoder_forward.1} parent=5 // pred_check
        _
      $region10: #{encoder_forward.1} parent=5 // pred_check_branch
        %493 = sbr.rel (%p490) target = $region12
      $region11: #{encoder_forward.1} parent=5 // pred_region
        %s494 = ssub.s32 %s29, 1
        // Predicated region
        $region13: #{encoder_forward.1} parent=11 // pred_check
          %p495 = pneg %p76
        $region14: #{encoder_forward.1} parent=11 // pred_check_branch
          %497 = sbr.rel (%p495) target = $region16
        $region15: #{encoder_forward.1} parent=11 // pred_region
          _
        $region16: #{encoder_forward.1} parent=11 // pred_fallthru
          _
        // Predicated region
        $region17: #{encoder_forward.1} parent=11 // pred_check
          %p498 = pneg %p97
        $region18: #{encoder_forward.1} parent=11 // pred_check_branch
          %500 = sbr.rel (%p498) target = $region20
        $region19: #{encoder_forward.1} parent=11 // pred_region
          _
        $region20: #{encoder_forward.1} parent=11 // pred_fallthru
          _
        // Predicated region
        $region21: #{encoder_forward.1} parent=11 // pred_check
          %p501 = pneg %p118
        $region22: #{encoder_forward.1} parent=11 // pred_check_branch
          %503 = sbr.rel (%p501) target = $region24
        $region23: #{encoder_forward.1} parent=11 // pred_region
          _
        $region24: #{encoder_forward.1} parent=11 // pred_fallthru
          _
        // Predicated region
        $region25: #{encoder_forward.1} parent=11 // pred_check
          %p504 = pneg %p139
        $region26: #{encoder_forward.1} parent=11 // pred_check_branch
          %506 = sbr.rel (%p504) target = $region28
        $region27: #{encoder_forward.1} parent=11 // pred_region
          _
        $region28: #{encoder_forward.1} parent=11 // pred_fallthru
          _
        // Predicated region
        $region29: #{encoder_forward.1} parent=11 // pred_check
          %p507 = pneg %p160
        $region30: #{encoder_forward.1} parent=11 // pred_check_branch
          %509 = sbr.rel (%p507) target = $region32
        $region31: #{encoder_forward.1} parent=11 // pred_region
          _
        $region32: #{encoder_forward.1} parent=11 // pred_fallthru
          _
        // Predicated region
        $region33: #{encoder_forward.1} parent=11 // pred_check
          %p510 = pneg %p181
        $region34: #{encoder_forward.1} parent=11 // pred_check_branch
          %512 = sbr.rel (%p510) target = $region36
        $region35: #{encoder_forward.1} parent=11 // pred_region
          _
        $region36: #{encoder_forward.1} parent=11 // pred_fallthru
          _
        // Predicated region
        $region37: #{encoder_forward.1} parent=11 // pred_check
          %p513 = pneg %p202
        $region38: #{encoder_forward.1} parent=11 // pred_check_branch
          %515 = sbr.rel (%p513) target = $region40
        $region39: #{encoder_forward.1} parent=11 // pred_region
          _
        $region40: #{encoder_forward.1} parent=11 // pred_fallthru
          _
        // Predicated region
        $region41: #{encoder_forward.1} parent=11 // pred_check
          %p516 = pneg %p223
        $region42: #{encoder_forward.1} parent=11 // pred_check_branch
          %518 = sbr.rel (%p516) target = $region44
        $region43: #{encoder_forward.1} parent=11 // pred_region
          _
        $region44: #{encoder_forward.1} parent=11 // pred_fallthru
          _
        // Predicated region
        $region45: #{encoder_forward.1} parent=11 // pred_check
          %p519 = pneg %p244
        $region46: #{encoder_forward.1} parent=11 // pred_check_branch
          %521 = sbr.rel (%p519) target = $region48
        $region47: #{encoder_forward.1} parent=11 // pred_region
          _
        $region48: #{encoder_forward.1} parent=11 // pred_fallthru
          _
        // Predicated region
        $region49: #{encoder_forward.1} parent=11 // pred_check
          %p522 = pneg %p265
        $region50: #{encoder_forward.1} parent=11 // pred_check_branch
          %524 = sbr.rel (%p522) target = $region52
        $region51: #{encoder_forward.1} parent=11 // pred_region
          _
        $region52: #{encoder_forward.1} parent=11 // pred_fallthru
          _
        // Predicated region
        $region53: #{encoder_forward.1} parent=11 // pred_check
          %p525 = pneg %p286
        $region54: #{encoder_forward.1} parent=11 // pred_check_branch
          %527 = sbr.rel (%p525) target = $region56
        $region55: #{encoder_forward.1} parent=11 // pred_region
          _
        $region56: #{encoder_forward.1} parent=11 // pred_fallthru
          _
        // Predicated region
        $region57: #{encoder_forward.1} parent=11 // pred_check
          %p528 = pneg %p307
        $region58: #{encoder_forward.1} parent=11 // pred_check_branch
          %530 = sbr.rel (%p528) target = $region60
        $region59: #{encoder_forward.1} parent=11 // pred_region
          _
        $region60: #{encoder_forward.1} parent=11 // pred_fallthru
          _
        // Predicated region
        $region61: #{encoder_forward.1} parent=11 // pred_check
          %p531 = pneg %p328
        $region62: #{encoder_forward.1} parent=11 // pred_check_branch
          %533 = sbr.rel (%p531) target = $region64
        $region63: #{encoder_forward.1} parent=11 // pred_region
          _
        $region64: #{encoder_forward.1} parent=11 // pred_fallthru
          _
        // Predicated region
        $region65: #{encoder_forward.1} parent=11 // pred_check
          %p534 = pneg %p349
        $region66: #{encoder_forward.1} parent=11 // pred_check_branch
          %536 = sbr.rel (%p534) target = $region68
        $region67: #{encoder_forward.1} parent=11 // pred_region
          _
        $region68: #{encoder_forward.1} parent=11 // pred_fallthru
          _
        // Predicated region
        $region69: #{encoder_forward.1} parent=11 // pred_check
          %p537 = pneg %p370
        $region70: #{encoder_forward.1} parent=11 // pred_check_branch
          %539 = sbr.rel (%p537) target = $region72
        $region71: #{encoder_forward.1} parent=11 // pred_region
          _
        $region72: #{encoder_forward.1} parent=11 // pred_fallthru
          _
        // Predicated region
        $region73: #{encoder_forward.1} parent=11 // pred_check
          %p540 = pneg %p391
        $region74: #{encoder_forward.1} parent=11 // pred_check_branch
          %542 = sbr.rel (%p540) target = $region76
        $region75: #{encoder_forward.1} parent=11 // pred_region
          _
        $region76: #{encoder_forward.1} parent=11 // pred_fallthru
          _
        // Predicated region
        $region77: #{encoder_forward.1} parent=11 // pred_check
          %p543 = pneg %p412
        $region78: #{encoder_forward.1} parent=11 // pred_check_branch
          %545 = sbr.rel (%p543) target = $region80
        $region79: #{encoder_forward.1} parent=11 // pred_region
          _
        $region80: #{encoder_forward.1} parent=11 // pred_fallthru
          _
        // Predicated region
        $region81: #{encoder_forward.1} parent=11 // pred_check
          %p546 = pneg %p433
        $region82: #{encoder_forward.1} parent=11 // pred_check_branch
          %548 = sbr.rel (%p546) target = $region84
        $region83: #{encoder_forward.1} parent=11 // pred_region
          _
        $region84: #{encoder_forward.1} parent=11 // pred_fallthru
          _
        // Predicated region
        $region85: #{encoder_forward.1} parent=11 // pred_check
          %p549 = pneg %p454
        $region86: #{encoder_forward.1} parent=11 // pred_check_branch
          %551 = sbr.rel (%p549) target = $region88
        $region87: #{encoder_forward.1} parent=11 // pred_region
          _
        $region88: #{encoder_forward.1} parent=11 // pred_fallthru
          _
      $region12: #{encoder_forward.1} parent=5 // pred_fallthru
        _
      %p552 = scmp.lt.s32.totalorder %s29, 2
      // Predicated region
      $region89: #{encoder_forward.1} parent=5 // pred_check
        %p553 = pneg %p552
      $region90: #{encoder_forward.1} parent=5 // pred_check_branch
        %555 = sbr.rel (%p553) target = $region92
      $region91: #{encoder_forward.1} parent=5 // pred_region
        // Predicated region
        $region93: #{encoder_forward.1} parent=91 // pred_check
          %p556 = pneg %p49
        $region94: #{encoder_forward.1} parent=91 // pred_check_branch
          %558 = sbr.rel (%p556) target = $region96
        $region95: #{encoder_forward.1} parent=91 // pred_region
          %p559 = scmp.lt.s32.totalorder %s29, 1
          %s560 = scalar_select %p559, %s29, 1
          %s561 = smul.addr %s560, 2
          %s562 = smul.addr %s561, 8
          %s563 = scalar_lea.vmem %s0, %s562
        $region96: #{encoder_forward.1} parent=91 // pred_fallthru
          _
      $region92: #{encoder_forward.1} parent=5 // pred_fallthru
        _
      %p564 = scmp.le.s32.totalorder 1, %s29
      %p565 = scmp.lt.s32.totalorder %s29, 3
      %p566 = pnand %p564, %p565
      %p567 = pneg %p566
      // Predicated region
      $region97: #{encoder_forward.1} parent=5 // pred_check
        _
      $region98: #{encoder_forward.1} parent=5 // pred_check_branch
        %569 = sbr.rel (%p566) target = $region100
      $region99: #{encoder_forward.1} parent=5 // pred_region
        %s570 = ssub.s32 %s29, 1
        %p571 = scmp.lt.s32.totalorder %s34, 1
        %s572 = scalar_select %p571, %s34, 1
        %s573 = smul.addr %s572, 2
        %s574 = smul.addr %s573, 8
        %s575 = scalar_lea.vmem %s0, %s574
        %p576 = pneg %p55
        %p577 = pneg %p52
        %p578 = pneg %p76
        %p579 = pneg %p73
        %p580 = pneg %p97
        %p581 = pneg %p94
        %p582 = pneg %p118
        %p583 = pneg %p115
        %p584 = pneg %p139
        %p585 = pneg %p136
        %p586 = pneg %p160
        %p587 = pneg %p157
        %p588 = pneg %p181
        %p589 = pneg %p178
        %p590 = pneg %p202
        %p591 = pneg %p199
        %p592 = pneg %p223
        %p593 = pneg %p220
        %p594 = pneg %p244
        %p595 = pneg %p241
        %p596 = pneg %p265
        %p597 = pneg %p262
        %p598 = pneg %p286
        %p599 = pneg %p283
        %p600 = pneg %p307
        %p601 = pneg %p304
        %p602 = pneg %p328
        %p603 = pneg %p325
        %p604 = pneg %p349
        %p605 = pneg %p346
        %p606 = pneg %p370
        %p607 = pneg %p367
        %p608 = pneg %p391
        %p609 = pneg %p388
        %p610 = pneg %p412
        %p611 = pneg %p409
        %p612 = pneg %p433
        %p613 = pneg %p430
        %p614 = pneg %p454
        %p615 = pneg %p451
        %p616 = pneg %p480
        %p617 = pneg %p477
        %s618 = sand.u32 %s467, 1
        %s619 = scalar_lea.sflag [#allocation4], %s618
        %s620 = sand.u32 %s467, 1
        %s621 = smul.addr %s620, 16
        %s622 = scalar_lea.vmem [#allocation3], %s621
        %p623 = scmp.lt.s32.totalorder %s34, 1
        %s624 = scalar_select %p623, %s34, 1
        %s625 = smul.addr %s624, 2
        %s626 = smul.addr %s625, 8
        %s627 = scalar_lea.vmem %s0, %s626
        %v628 = vld [vmem:[%s627] sm:$0xff]
        %v629 = vld [vmem:[%s627 + $0x8] sm:$0xff]
        %v630 = vlaneseq
        %v631 = vand.u32 %v630, 127
        %632 = vset.pattern.permute.xlu0 0
        %633 = vperm.xlu0 %632, %v628
        %v634 = vpop.permute.xlu0 %633
        %635 = vset.pattern.permute.xlu0 0
        %636 = vperm.xlu0 %635, %v629
        %v637 = vpop.permute.xlu0 %636
        %vm638 = vcmp.eq.s32.totalorder %v631, %v634
        %vm639 = vcmp.eq.s32.totalorder %v631, %v637
        %v640 = vsel %vm638, 1, 0
        %v641 = vsel %vm639, 1, 0
        %v642 = vcvt.s32.f32 %v640
        %v643 = vcvt.s32.f32 %v641
        %v644 = vld [vmem:[%s1] sm:$0xff]
        %v645 = vld [vmem:[%s1 + $0x8] sm:$0xff]
        %v646 = vld [vmem:[%s2] sm:$0x1]
        %v648 = vlaneseq
        %v649 = vshrl.u32 %v648, 7
        %v650 = vsub.s32 0, %v649
        %v651 = vrot.slane %v646, %v650
        %vm653 = vcmask 130048
        %v655 = vsel %vm653, %v642, 0
        %v658 = vsel %vm653, %v643, 0
        %660 = vmatprep.subr.mxu0 0.0
        %661 = vmatpush1.msra.mxu0 %v644
        %662 = vmatprep.subr.mxu0 0.0
        %663 = vmatpush1.msra.mxu0 %v645
        %664 = vmatprep.subr.mxu0 0.0
        %665 = vmatpush1.msra.mxu0 0.0
        %666 = vmatprep.subr.mxu0 0.0
        %667 = vmatpush1.msra.mxu0 0.0
        %668 = vmatprep.subr.mxu0 0.0
        %669 = vmatpush1.msra.mxu0 0.0
        %670 = vmatprep.subr.mxu0 0.0
        %671 = vmatpush1.msra.mxu0 0.0
        %672 = vmatprep.subr.mxu0 0.0
        %673 = vmatpush1.msra.mxu0 0.0
        %674 = vmatprep.subr.mxu0 0.0
        %675 = vmatpush1.msra.mxu0 0.0
        %676 = vmatprep.subr.mxu0 0.0
        %677 = vmatpush1.msra.mxu0 0.0
        %678 = vmatprep.subr.mxu0 0.0
        %679 = vmatpush1.msra.mxu0 0.0
        %680 = vmatprep.subr.mxu0 0.0
        %681 = vmatpush1.msra.mxu0 0.0
        %682 = vmatprep.subr.mxu0 0.0
        %683 = vmatpush1.msra.mxu0 0.0
        %684 = vmatprep.subr.mxu0 0.0
        %685 = vmatpush1.msra.mxu0 0.0
        %686 = vmatprep.subr.mxu0 0.0
        %687 = vmatpush1.msra.mxu0 0.0
        %688 = vmatprep.subr.mxu0 0.0
        %689 = vmatpush1.msra.mxu0 0.0
        %690 = vmatprep.subr.mxu0 0.0
        %691 = vmatpush1.msra.mxu0 0.0
        %692 = vmatprep.subr.mxu0 0.0
        %693 = vmatpush1.msra.mxu0 0.0
        %694 = vmatprep.subr.mxu0 0.0
        %695 = vmatpush1.msra.mxu0 0.0
        %696 = vmatprep.subr.mxu0 0.0
        %697 = vmatpush1.msra.mxu0 0.0
        %698 = vmatprep.subr.mxu0 0.0
        %699 = vmatpush1.msra.mxu0 0.0
        %700 = vmatprep.subr.mxu0 0.0
        %701 = vmatpush1.msra.mxu0 0.0
        %702 = vmatprep.subr.mxu0 0.0
        %703 = vmatpush1.msra.mxu0 0.0
        %704 = vmatprep.subr.mxu0 0.0
        %705 = vmatpush1.msra.mxu0 0.0
        %706 = vmatprep.subr.mxu0 0.0
        %707 = vmatpush1.msra.mxu0 0.0
        %708 = vmatprep.subr.mxu0 0.0
        %709 = vmatpush1.msra.mxu0 0.0
        %710 = vmatprep.subr.mxu0 0.0
        %711 = vmatpush1.msra.mxu0 0.0
        %712 = vmatprep.subr.mxu0 0.0
        %713 = vmatpush1.msra.mxu0 0.0
        %714 = vmatprep.subr.mxu0 0.0
        %715 = vmatpush1.msra.mxu0 0.0
        %716 = vmatprep.subr.mxu0 0.0
        %717 = vmatpush1.msra.mxu0 0.0
        %718 = vmatprep.subr.mxu0 0.0
        %719 = vmatpush1.msra.mxu0 0.0
        %720 = vmatprep.subr.mxu0 0.0
        %721 = vmatpush1.msra.mxu0 0.0
        %722 = vmatprep.subr.mxu0 0.0
        %723 = vmatpush1.msra.mxu0 0.0
        %724 = vmatprep.mubr.f32.mxu0 0.0
        %725 = vmatmul.mubr.f32.gmra.mrb[0].mxu0 %v655
        %v726 = vpop.f32.mrb[0].mxu0
        %v727 = vadd.f32 %v651, %v726
        %v728 = vpop.f32.mrb[0].mxu0
        %729 = vmatprep.mubr.f32.mxu0 0.0
        %730 = vmatmul.mubr.f32.gmra.mrb[0].mxu0 %v658
        %v731 = vpop.f32.mrb[0].mxu0
        %v732 = vadd.f32 %v651, %v731
        %v733 = vpop.f32.mrb[0].mxu0
        %734 = vdwg.mxu0
        %v735 = vmax.f32 %v727, 0.0
        %v736 = vmax.f32 %v732, 0.0
        %v737 = vld [vmem:[%s3] sm:$0xff]
        %v738 = vld [vmem:[%s3 + $0x8] sm:$0xff]
        %v739 = vld [vmem:[%s3 + $0x10] sm:$0xff]
        %v740 = vld [vmem:[%s3 + $0x18] sm:$0xff]
        %v741 = vld [vmem:[%s3 + $0x20] sm:$0xff]
        %v742 = vld [vmem:[%s3 + $0x28] sm:$0xff]
        %v743 = vld [vmem:[%s3 + $0x30] sm:$0xff]
        %v744 = vld [vmem:[%s3 + $0x38] sm:$0xff]
        %v745 = vld [vmem:[%s4] sm:$0x1]
        %v747 = vlaneseq
        %v748 = vshrl.u32 %v747, 7
        %v749 = vsub.s32 0, %v748
        %v750 = vrot.slane %v745, %v749
        %vm752 = vcmask 523264
        %v754 = vsel %vm752, %v735, 0
        %v757 = vsel %vm752, %v736, 0
        %759 = vmatprep.subr.mxu0 0.0
        %760 = vmatpush1.msra.mxu0 %v737
        %761 = vmatprep.subr.mxu0 0.0
        %762 = vmatpush1.msra.mxu0 %v738
        %763 = vmatprep.subr.mxu0 0.0
        %764 = vmatpush1.msra.mxu0 %v739
        %765 = vmatprep.subr.mxu0 0.0
        %766 = vmatpush1.msra.mxu0 %v740
        %767 = vmatprep.subr.mxu0 0.0
        %768 = vmatpush1.msra.mxu0 %v741
        %769 = vmatprep.subr.mxu0 0.0
        %770 = vmatpush1.msra.mxu0 %v742
        %771 = vmatprep.subr.mxu0 0.0
        %772 = vmatpush1.msra.mxu0 %v743
        %773 = vmatprep.subr.mxu0 0.0
        %774 = vmatpush1.msra.mxu0 %v744
        %775 = vmatprep.subr.mxu0 0.0
        %776 = vmatpush1.msra.mxu0 0.0
        %777 = vmatprep.subr.mxu0 0.0
        %778 = vmatpush1.msra.mxu0 0.0
        %779 = vmatprep.subr.mxu0 0.0
        %780 = vmatpush1.msra.mxu0 0.0
        %781 = vmatprep.subr.mxu0 0.0
        %782 = vmatpush1.msra.mxu0 0.0
        %783 = vmatprep.subr.mxu0 0.0
        %784 = vmatpush1.msra.mxu0 0.0
        %785 = vmatprep.subr.mxu0 0.0
        %786 = vmatpush1.msra.mxu0 0.0
        %787 = vmatprep.subr.mxu0 0.0
        %788 = vmatpush1.msra.mxu0 0.0
        %789 = vmatprep.subr.mxu0 0.0
        %790 = vmatpush1.msra.mxu0 0.0
        %791 = vmatprep.subr.mxu0 0.0
        %792 = vmatpush1.msra.mxu0 0.0
        %793 = vmatprep.subr.mxu0 0.0
        %794 = vmatpush1.msra.mxu0 0.0
        %795 = vmatprep.subr.mxu0 0.0
        %796 = vmatpush1.msra.mxu0 0.0
        %797 = vmatprep.subr.mxu0 0.0
        %798 = vmatpush1.msra.mxu0 0.0
        %799 = vmatprep.subr.mxu0 0.0
        %800 = vmatpush1.msra.mxu0 0.0
        %801 = vmatprep.subr.mxu0 0.0
        %802 = vmatpush1.msra.mxu0 0.0
        %803 = vmatprep.subr.mxu0 0.0
        %804 = vmatpush1.msra.mxu0 0.0
        %805 = vmatprep.subr.mxu0 0.0
        %806 = vmatpush1.msra.mxu0 0.0
        %807 = vmatprep.subr.mxu0 0.0
        %808 = vmatpush1.msra.mxu0 0.0
        %809 = vmatprep.subr.mxu0 0.0
        %810 = vmatpush1.msra.mxu0 0.0
        %811 = vmatprep.subr.mxu0 0.0
        %812 = vmatpush1.msra.mxu0 0.0
        %813 = vmatprep.subr.mxu0 0.0
        %814 = vmatpush1.msra.mxu0 0.0
        %815 = vmatprep.subr.mxu0 0.0
        %816 = vmatpush1.msra.mxu0 0.0
        %817 = vmatprep.subr.mxu0 0.0
        %818 = vmatpush1.msra.mxu0 0.0
        %819 = vmatprep.subr.mxu0 0.0
        %820 = vmatpush1.msra.mxu0 0.0
        %821 = vmatprep.subr.mxu0 0.0
        %822 = vmatpush1.msra.mxu0 0.0
        %823 = vmatprep.mubr.f32.mxu0 0.0
        %824 = vmatmul.mubr.f32.gmra.mrb[0].mxu0 %v754
        %v825 = vpop.f32.mrb[0].mxu0
        %v826 = vadd.f32 %v750, %v825
        %v827 = vpop.f32.mrb[0].mxu0
        %828 = vmatprep.mubr.f32.mxu0 0.0
        %829 = vmatmul.mubr.f32.gmra.mrb[0].mxu0 %v757
        %v830 = vpop.f32.mrb[0].mxu0
        %v831 = vadd.f32 %v750, %v830
        %v832 = vpop.f32.mrb[0].mxu0
        %833 = vdwg.mxu0
        %v834 = vmax.f32 %v826, 0.0
        %v835 = vmax.f32 %v831, 0.0
        %v836 = vrot.slane %v834, 6
        %v837 = vrot.slane %v835, 6
        %v838 = vlaneseq
        %v839 = vshrl.u32 %v838, 7
        %vm840 = vcmp.lt.s32.totalorder %v839, 2
        %v841 = vsel %vm840, %v836, %v837
        %v842 = vsel %vm840, %v837, %v836
        %v843 = vadd.s32 %v839, 8
        %vm844 = vcmp.ge.s32.totalorder %v839, 2
        %vm845 = vcmp.ge.s32.totalorder %v843, 2
        %v846 = vsel %vm844, %v842, 0.0
        %v847 = vsel %vm845, %v841, 0.0
        %v848 = vrot.slane %v834, 7
        %v849 = vrot.slane %v835, 7
        %vm850 = vcmp.lt.s32.totalorder %v839, 1
        %v851 = vsel %vm850, %v848, %v849
        %v852 = vsel %vm850, %v849, %v848
        %vm853 = vcmp.ge.s32.totalorder %v839, 1
        %vm854 = vcmp.ge.s32.totalorder %v843, 1
        %v855 = vsel %vm853, %v852, 0.0
        %v856 = vsel %vm854, %v851, 0.0
        %v857 = vrot.slane %v834, 1
        %v858 = vrot.slane %v835, 1
        %vm859 = vcmp.lt.s32.totalorder %v839, 7
        %v860 = vsel %vm859, %v857, %v858
        %v861 = vsel %vm859, %v858, %v857
        %vm862 = vcmp.lt.s32.totalorder %v839, 15
        %vm863 = vcmp.lt.s32.totalorder %v843, 15
        %v864 = vsel %vm862, %v860, 0.0
        %v865 = vsel %vm863, %v861, 0.0
        %868 = vrot.lane.b32.xlu0 %v855, 32
        %v869 = vpop.permute.xlu0 %868
        %870 = vrot.lane.b32.xlu0 %v856, 32
        %v871 = vpop.permute.xlu0 %870
        %876 = vrot.lane.b32.xlu0 %v834, 64
        %v877 = vpop.permute.xlu0 %876
        %878 = vrot.lane.b32.xlu0 %v835, 64
        %v879 = vpop.permute.xlu0 %878
        %884 = vrot.lane.b32.xlu0 %v864, 96
        %v885 = vpop.permute.xlu0 %884
        %886 = vrot.lane.b32.xlu0 %v865, 96
        %v887 = vpop.permute.xlu0 %886
        %vm890 = vcmask 261120
        %v891 = vsel %vm890, %v846, %v869
        %v892 = vsel %vm890, %v847, %v871
        %v893 = vsel %vm752, %v891, %v877
        %v894 = vsel %vm752, %v892, %v879
        %vm895 = vcmask 785408
        %v896 = vsel %vm895, %v893, %v885
        %v897 = vsel %vm895, %v894, %v887
        %v898 = vld [vmem:[%s5] sm:$0xff]
        %v899 = vld [vmem:[%s5 + $0x8] sm:$0xff]
        %v900 = vld [vmem:[%s5 + $0x10] sm:$0xff]
        %v901 = vld [vmem:[%s5 + $0x18] sm:$0xff]
        %v902 = vld [vmem:[%s5 + $0x20] sm:$0xff]
        %v903 = vld [vmem:[%s5 + $0x28] sm:$0xff]
        %v904 = vld [vmem:[%s5 + $0x30] sm:$0xff]
        %v905 = vld [vmem:[%s5 + $0x38] sm:$0xff]
        %v906 = vld [vmem:[%s5 + $0x40] sm:$0xff]
        %v907 = vld [vmem:[%s5 + $0x48] sm:$0xff]
        %v908 = vld [vmem:[%s5 + $0x50] sm:$0xff]
        %v909 = vld [vmem:[%s5 + $0x58] sm:$0xff]
        %v910 = vld [vmem:[%s5 + $0x60] sm:$0xff]
        %v911 = vld [vmem:[%s5 + $0x68] sm:$0xff]
        %v912 = vld [vmem:[%s5 + $0x70] sm:$0xff]
        %v913 = vld [vmem:[%s5 + $0x78] sm:$0xff]
        %914 = vmatprep.subr.mxu0 0.0
        %915 = vmatpush1.msra.mxu0 %v898
        %916 = vmatprep.subr.mxu0 0.0
        %917 = vmatpush1.msra.mxu0 %v899
        %918 = vmatprep.subr.mxu0 0.0
        %919 = vmatpush1.msra.mxu0 %v900
        %920 = vmatprep.subr.mxu0 0.0
        %921 = vmatpush1.msra.mxu0 %v901
        %922 = vmatprep.subr.mxu0 0.0
        %923 = vmatpush1.msra.mxu0 %v902
        %924 = vmatprep.subr.mxu0 0.0
        %925 = vmatpush1.msra.mxu0 %v903
        %926 = vmatprep.subr.mxu0 0.0
        %927 = vmatpush1.msra.mxu0 %v904
        %928 = vmatprep.subr.mxu0 0.0
        %929 = vmatpush1.msra.mxu0 %v905
        %930 = vmatprep.subr.mxu0 0.0
        %931 = vmatpush1.msra.mxu0 %v906
        %932 = vmatprep.subr.mxu0 0.0
        %933 = vmatpush1.msra.mxu0 %v907
        %934 = vmatprep.subr.mxu0 0.0
        %935 = vmatpush1.msra.mxu0 %v908
        %936 = vmatprep.subr.mxu0 0.0
        %937 = vmatpush1.msra.mxu0 %v909
        %938 = vmatprep.subr.mxu0 0.0
        %939 = vmatpush1.msra.mxu0 %v910
        %940 = vmatprep.subr.mxu0 0.0
        %941 = vmatpush1.msra.mxu0 %v911
        %942 = vmatprep.subr.mxu0 0.0
        %943 = vmatpush1.msra.mxu0 %v912
        %944 = vmatprep.subr.mxu0 0.0
        %945 = vmatpush1.msra.mxu0 %v913
        %946 = vmatprep.subr.mxu0 0.0
        %947 = vmatpush1.msra.mxu0 0.0
        %948 = vmatprep.subr.mxu0 0.0
        %949 = vmatpush1.msra.mxu0 0.0
        %950 = vmatprep.subr.mxu0 0.0
        %951 = vmatpush1.msra.mxu0 0.0
        %952 = vmatprep.subr.mxu0 0.0
        %953 = vmatpush1.msra.mxu0 0.0
        %954 = vmatprep.subr.mxu0 0.0
        %955 = vmatpush1.msra.mxu0 0.0
        %956 = vmatprep.subr.mxu0 0.0
        %957 = vmatpush1.msra.mxu0 0.0
        %958 = vmatprep.subr.mxu0 0.0
        %959 = vmatpush1.msra.mxu0 0.0
        %960 = vmatprep.subr.mxu0 0.0
        %961 = vmatpush1.msra.mxu0 0.0
        %962 = vmatprep.subr.mxu0 0.0
        %963 = vmatpush1.msra.mxu0 0.0
        %964 = vmatprep.subr.mxu0 0.0
        %965 = vmatpush1.msra.mxu0 0.0
        %966 = vmatprep.subr.mxu0 0.0
        %967 = vmatpush1.msra.mxu0 0.0
        %968 = vmatprep.subr.mxu0 0.0
        %969 = vmatpush1.msra.mxu0 0.0
        %970 = vmatprep.subr.mxu0 0.0
        %971 = vmatpush1.msra.mxu0 0.0
        %972 = vmatprep.subr.mxu0 0.0
        %973 = vmatpush1.msra.mxu0 0.0
        %974 = vmatprep.subr.mxu0 0.0
        %975 = vmatpush1.msra.mxu0 0.0
        %976 = vmatprep.subr.mxu0 0.0
        %977 = vmatpush1.msra.mxu0 0.0
        %978 = vmatprep.mubr.f32.mxu0 0.0
        %979 = vmatmul.mubr.f32.gmra.mrb[0].mxu0 %v896
        %v980 = vpop.f32.mrb[0].mxu0
        %v981 = vadd.f32 0.0, %v980
        %v982 = vpop.f32.mrb[0].mxu0
        %983 = vmatprep.mubr.f32.mxu0 0.0
        %984 = vmatmul.mubr.f32.gmra.mrb[0].mxu0 %v897
        %v985 = vpop.f32.mrb[0].mxu0
        %v986 = vadd.f32 0.0, %v985
        %v987 = vpop.f32.mrb[0].mxu0
        %988 = vdwg.mxu0
        %v989 = vld [vmem:[%s6] sm:$0x1]
        %v991 = vlaneseq
        %v992 = vshrl.u32 %v991, 7
        %v993 = vsub.s32 0, %v992
        %v994 = vrot.slane %v989, %v993
        %v996 = vmul.f32 %v981, %v994
        %v997 = vmul.f32 %v986, %v994
        %v998 = vld [vmem:[%s7] sm:$0x1]
        %v1000 = vlaneseq
        %v1001 = vshrl.u32 %v1000, 7
        %v1002 = vsub.s32 0, %v1001
        %v1003 = vrot.slane %v998, %v1002
        %v1005 = vadd.f32 %v996, %v1003
        %v1006 = vadd.f32 %v997, %v1003
        %v1007 = vmax.f32 %v1005, 0.0
        %v1008 = vmax.f32 %v1006, 0.0
        %v1009 = vrot.slane %v1007, 7
        %v1010 = vrot.slane %v1008, 7
        %v1011 = vsel %vm850, %v1009, %v1010
        %v1012 = vsel %vm850, %v1010, %v1009
        %v1013 = vsel %vm853, %v1012, -inf
        %v1014 = vsel %vm854, %v1011, -inf
        %v1015 = vmax.f32 %v1007, %v1013
        %v1016 = vmax.f32 %v1008, %v1014
        %v1017 = vrot.slane %v1015, 7
        %v1018 = vrot.slane %v1016, 7
        %v1019 = vsel %vm850, %v1017, %v1018
        %v1020 = vsel %vm850, %v1018, %v1017
        %v1021 = vsel %vm853, %v1020, 0.0
        %v1022 = vsel %vm854, %v1019, 0.0
        %v1023 = vrot.slane %v1015, 1
        %v1024 = vrot.slane %v1016, 1
        %v1025 = vsel %vm859, %v1023, %v1024
        %v1026 = vsel %vm859, %v1024, %v1023
        %v1027 = vsel %vm862, %v1025, 0.0
        %v1028 = vsel %vm863, %v1026, 0.0
        %v1029 = vld [vmem:[%s8] sm:$0xff]
        %v1030 = vld [vmem:[%s8 + $0x8] sm:$0xff]
        %v1031 = vld [vmem:[%s8 + $0x10] sm:$0xff]
        %v1032 = vld [vmem:[%s8 + $0x18] sm:$0xff]
        %v1033 = vld [vmem:[%s8 + $0x20] sm:$0xff]
        %v1034 = vld [vmem:[%s8 + $0x28] sm:$0xff]
        %v1035 = vld [vmem:[%s8 + $0x30] sm:$0xff]
        %v1036 = vld [vmem:[%s8 + $0x38] sm:$0xff]
        %v1037 = vld [vmem:[%s8 + $0x40] sm:$0xff]
        %v1038 = vld [vmem:[%s8 + $0x48] sm:$0xff]
        %v1039 = vld [vmem:[%s8 + $0x50] sm:$0xff]
        %v1040 = vld [vmem:[%s8 + $0x58] sm:$0xff]
        %v1041 = vld [vmem:[%s8 + $0x60] sm:$0xff]
        %v1042 = vld [vmem:[%s8 + $0x68] sm:$0xff]
        %v1043 = vld [vmem:[%s8 + $0x70] sm:$0xff]
        %v1044 = vld [vmem:[%s8 + $0x78] sm:$0xff]
        %v1045 = vld [vmem:[%s8 + $0x80] sm:$0xff]
        %v1046 = vld [vmem:[%s8 + $0x88] sm:$0xff]
        %v1047 = vld [vmem:[%s8 + $0x90] sm:$0xff]
        %v1048 = vld [vmem:[%s8 + $0x98] sm:$0xff]
        %v1049 = vld [vmem:[%s8 + $0xa0] sm:$0xff]
        %v1050 = vld [vmem:[%s8 + $0xa8] sm:$0xff]
        %v1051 = vld [vmem:[%s8 + $0xb0] sm:$0xff]
        %v1052 = vld [vmem:[%s8 + $0xb8] sm:$0xff]
        %v1053 = vld [vmem:[%s8 + $0xc0] sm:$0xff]
        %v1054 = vld [vmem:[%s8 + $0xc8] sm:$0xff]
        %v1055 = vld [vmem:[%s8 + $0xd0] sm:$0xff]
        %v1056 = vld [vmem:[%s8 + $0xd8] sm:$0xff]
        %v1057 = vld [vmem:[%s8 + $0xe0] sm:$0xff]
        %v1058 = vld [vmem:[%s8 + $0xe8] sm:$0xff]
        %v1059 = vld [vmem:[%s8 + $0xf0] sm:$0xff]
        %v1060 = vld [vmem:[%s8 + $0xf8] sm:$0xff]
        %v1061 = vld [vmem:[%s8 + $0x100] sm:$0xff]
        %v1062 = vld [vmem:[%s8 + $0x108] sm:$0xff]
        %v1063 = vld [vmem:[%s8 + $0x110] sm:$0xff]
        %v1064 = vld [vmem:[%s8 + $0x118] sm:$0xff]
        %v1065 = vld [vmem:[%s8 + $0x120] sm:$0xff]
        %v1066 = vld [vmem:[%s8 + $0x128] sm:$0xff]
        %v1067 = vld [vmem:[%s8 + $0x130] sm:$0xff]
        %v1068 = vld [vmem:[%s8 + $0x138] sm:$0xff]
        %v1069 = vld [vmem:[%s8 + $0x140] sm:$0xff]
        %v1070 = vld [vmem:[%s8 + $0x148] sm:$0xff]
        %v1071 = vld [vmem:[%s8 + $0x150] sm:$0xff]
        %v1072 = vld [vmem:[%s8 + $0x158] sm:$0xff]
        %v1073 = vld [vmem:[%s8 + $0x160] sm:$0xff]
        %v1074 = vld [vmem:[%s8 + $0x168] sm:$0xff]
        %v1075 = vld [vmem:[%s8 + $0x170] sm:$0xff]
        %v1076 = vld [vmem:[%s8 + $0x178] sm:$0xff]
        %1077 = vmatprep.subr.mxu0 0.0
        %1078 = vmatpush1.msra.mxu0 %v1029
        %1079 = vmatprep.subr.mxu0 0.0
        %1080 = vmatpush1.msra.mxu0 %v1030
        %1081 = vmatprep.subr.mxu0 0.0
        %1082 = vmatpush1.msra.mxu0 %v1031
        %1083 = vmatprep.subr.mxu0 0.0
        %1084 = vmatpush1.msra.mxu0 %v1032
        %1085 = vmatprep.subr.mxu0 0.0
        %1086 = vmatpush1.msra.mxu0 %v1033
        %1087 = vmatprep.subr.mxu0 0.0
        %1088 = vmatpush1.msra.mxu0 %v1034
        %1089 = vmatprep.subr.mxu0 0.0
        %1090 = vmatpush1.msra.mxu0 %v1035
        %1091 = vmatprep.subr.mxu0 0.0
        %1092 = vmatpush1.msra.mxu0 %v1036
        %1093 = vmatprep.subr.mxu0 0.0
        %1094 = vmatpush1.msra.mxu0 %v1037
        %1095 = vmatprep.subr.mxu0 0.0
        %1096 = vmatpush1.msra.mxu0 %v1038
        %1097 = vmatprep.subr.mxu0 0.0
        %1098 = vmatpush1.msra.mxu0 %v1039
        %1099 = vmatprep.subr.mxu0 0.0
        %1100 = vmatpush1.msra.mxu0 %v1040
        %1101 = vmatprep.subr.mxu0 0.0
        %1102 = vmatpush1.msra.mxu0 %v1041
        %1103 = vmatprep.subr.mxu0 0.0
        %1104 = vmatpush1.msra.mxu0 %v1042
        %1105 = vmatprep.subr.mxu0 0.0
        %1106 = vmatpush1.msra.mxu0 %v1043
        %1107 = vmatprep.subr.mxu0 0.0
        %1108 = vmatpush1.msra.mxu0 %v1044
        %1109 = vmatprep.subr.mxu0 0.0
        %1110 = vmatpush1.msra.mxu0 %v1045
        %1111 = vmatprep.subr.mxu0 0.0
        %1112 = vmatpush1.msra.mxu0 %v1046
        %1113 = vmatprep.subr.mxu0 0.0
        %1114 = vmatpush1.msra.mxu0 %v1047
        %1115 = vmatprep.subr.mxu0 0.0
        %1116 = vmatpush1.msra.mxu0 %v1048
        %1117 = vmatprep.subr.mxu0 0.0
        %1118 = vmatpush1.msra.mxu0 %v1049
        %1119 = vmatprep.subr.mxu0 0.0
        %1120 = vmatpush1.msra.mxu0 %v1050
        %1121 = vmatprep.subr.mxu0 0.0
        %1122 = vmatpush1.msra.mxu0 %v1051
        %1123 = vmatprep.subr.mxu0 0.0
        %1124 = vmatpush1.msra.mxu0 %v1052
        %1125 = vmatprep.subr.mxu0 0.0
        %1126 = vmatpush1.msra.mxu0 %v1053
        %1127 = vmatprep.subr.mxu0 0.0
        %1128 = vmatpush1.msra.mxu0 %v1054
        %1129 = vmatprep.subr.mxu0 0.0
        %1130 = vmatpush1.msra.mxu0 %v1055
        %1131 = vmatprep.subr.mxu0 0.0
        %1132 = vmatpush1.msra.mxu0 %v1056
        %1133 = vmatprep.subr.mxu0 0.0
        %1134 = vmatpush1.msra.mxu0 %v1057
        %1135 = vmatprep.subr.mxu0 0.0
        %1136 = vmatpush1.msra.mxu0 %v1058
        %1137 = vmatprep.subr.mxu0 0.0
        %1138 = vmatpush1.msra.mxu0 %v1059
        %1139 = vmatprep.subr.mxu0 0.0
        %1140 = vmatpush1.msra.mxu0 %v1060
        %1141 = vmatprep.mubr.f32.mxu0 %v1015
        %1142 = vmatmul.mubr.f32.gmra.mrb[0].mxu0 %v1021
        %v1143 = vpop.f32.mrb[0].mxu0
        %v1144 = vadd.f32 0.0, %v1143
        %v1145 = vpop.f32.mrb[0].mxu0
        %1146 = vmatprep.mubr.f32.mxu0 %v1016
        %1147 = vmatmul.mubr.f32.gmra.mrb[0].mxu0 %v1022
        %v1148 = vpop.f32.mrb[0].mxu0
        %v1149 = vadd.f32 0.0, %v1148
        %v1150 = vpop.f32.mrb[0].mxu0
        %1151 = vdwg.mxu0
        %1152 = vmatprep.subr.mxu0 0.0
        %1153 = vmatpush1.msra.mxu0 %v1061
        %1154 = vmatprep.subr.mxu0 0.0
        %1155 = vmatpush1.msra.mxu0 %v1062
        %1156 = vmatprep.subr.mxu0 0.0
        %1157 = vmatpush1.msra.mxu0 %v1063
        %1158 = vmatprep.subr.mxu0 0.0
        %1159 = vmatpush1.msra.mxu0 %v1064
        %1160 = vmatprep.subr.mxu0 0.0
        %1161 = vmatpush1.msra.mxu0 %v1065
        %1162 = vmatprep.subr.mxu0 0.0
        %1163 = vmatpush1.msra.mxu0 %v1066
        %1164 = vmatprep.subr.mxu0 0.0
        %1165 = vmatpush1.msra.mxu0 %v1067
        %1166 = vmatprep.subr.mxu0 0.0
        %1167 = vmatpush1.msra.mxu0 %v1068
        %1168 = vmatprep.subr.mxu0 0.0
        %1169 = vmatpush1.msra.mxu0 %v1069
        %1170 = vmatprep.subr.mxu0 0.0
        %1171 = vmatpush1.msra.mxu0 %v1070
        %1172 = vmatprep.subr.mxu0 0.0
        %1173 = vmatpush1.msra.mxu0 %v1071
        %1174 = vmatprep.subr.mxu0 0.0
        %1175 = vmatpush1.msra.mxu0 %v1072
        %1176 = vmatprep.subr.mxu0 0.0
        %1177 = vmatpush1.msra.mxu0 %v1073
        %1178 = vmatprep.subr.mxu0 0.0
        %1179 = vmatpush1.msra.mxu0 %v1074
        %1180 = vmatprep.subr.mxu0 0.0
        %1181 = vmatpush1.msra.mxu0 %v1075
        %1182 = vmatprep.subr.mxu0 0.0
        %1183 = vmatpush1.msra.mxu0 %v1076
        %1184 = vmatprep.subr.mxu0 0.0
        %1185 = vmatpush1.msra.mxu0 0.0
        %1186 = vmatprep.subr.mxu0 0.0
        %1187 = vmatpush1.msra.mxu0 0.0
        %1188 = vmatprep.subr.mxu0 0.0
        %1189 = vmatpush1.msra.mxu0 0.0
        %1190 = vmatprep.subr.mxu0 0.0
        %1191 = vmatpush1.msra.mxu0 0.0
        %1192 = vmatprep.subr.mxu0 0.0
        %1193 = vmatpush1.msra.mxu0 0.0
        %1194 = vmatprep.subr.mxu0 0.0
        %1195 = vmatpush1.msra.mxu0 0.0
        %1196 = vmatprep.subr.mxu0 0.0
        %1197 = vmatpush1.msra.mxu0 0.0
        %1198 = vmatprep.subr.mxu0 0.0
        %1199 = vmatpush1.msra.mxu0 0.0
        %1200 = vmatprep.subr.mxu0 0.0
        %1201 = vmatpush1.msra.mxu0 0.0
        %1202 = vmatprep.subr.mxu0 0.0
        %1203 = vmatpush1.msra.mxu0 0.0
        %1204 = vmatprep.subr.mxu0 0.0
        %1205 = vmatpush1.msra.mxu0 0.0
        %1206 = vmatprep.subr.mxu0 0.0
        %1207 = vmatpush1.msra.mxu0 0.0
        %1208 = vmatprep.subr.mxu0 0.0
        %1209 = vmatpush1.msra.mxu0 0.0
        %1210 = vmatprep.subr.mxu0 0.0
        %1211 = vmatpush1.msra.mxu0 0.0
        %1212 = vmatprep.subr.mxu0 0.0
        %1213 = vmatpush1.msra.mxu0 0.0
        %1214 = vmatprep.subr.mxu0 0.0
        %1215 = vmatpush1.msra.mxu0 0.0
        %1216 = vmatprep.mubr.f32.mxu0 0.0
        %1217 = vmatmul.mubr.f32.gmra.mrb[0].mxu0 %v1027
        %v1218 = vpop.f32.mrb[0].mxu0
        %v1219 = vadd.f32 %v1144, %v1218
        %v1220 = vpop.f32.mrb[0].mxu0
        %1221 = vmatprep.mubr.f32.mxu0 0.0
        %1222 = vmatmul.mubr.f32.gmra.mrb[0].mxu0 %v1028
        %v1223 = vpop.f32.mrb[0].mxu0
        %v1224 = vadd.f32 %v1149, %v1223
        %v1225 = vpop.f32.mrb[0].mxu0
        %1226 = vdwg.mxu0
        %v1227 = vld [vmem:[%s9] sm:$0x1]
        %v1229 = vlaneseq
        %v1230 = vshrl.u32 %v1229, 7
        %v1231 = vsub.s32 0, %v1230
        %v1232 = vrot.slane %v1227, %v1231
        %v1234 = vmul.f32 %v1219, %v1232
        %v1235 = vmul.f32 %v1224, %v1232
        %v1236 = vld [vmem:[%s10] sm:$0x1]
        %v1238 = vlaneseq
        %v1239 = vshrl.u32 %v1238, 7
        %v1240 = vsub.s32 0, %v1239
        %v1241 = vrot.slane %v1236, %v1240
        %v1243 = vadd.f32 %v1234, %v1241
        %v1244 = vadd.f32 %v1235, %v1241
        %v1245 = vmax.f32 %v1243, 0.0
        %v1246 = vmax.f32 %v1244, 0.0
        %v1247 = vrot.slane %v1245, 7
        %v1248 = vrot.slane %v1246, 7
        %v1249 = vsel %vm850, %v1247, %v1248
        %v1250 = vsel %vm850, %v1248, %v1247
        %v1251 = vsel %vm853, %v1250, 0.0
        %v1252 = vsel %vm854, %v1249, 0.0
        %v1253 = vrot.slane %v1245, 1
        %v1254 = vrot.slane %v1246, 1
        %v1255 = vsel %vm859, %v1253, %v1254
        %v1256 = vsel %vm859, %v1254, %v1253
        %v1257 = vsel %vm862, %v1255, 0.0
        %v1258 = vsel %vm863, %v1256, 0.0
        %1261 = vrot.lane.b32.xlu0 %v1245, 32
        %v1262 = vpop.permute.xlu0 %1261
        %1263 = vrot.lane.b32.xlu0 %v1246, 32
        %v1264 = vpop.permute.xlu0 %1263
        %1269 = vrot.lane.b32.xlu0 %v1257, 64
        %v1270 = vpop.permute.xlu0 %1269
        %1271 = vrot.lane.b32.xlu0 %v1258, 64
        %v1272 = vpop.permute.xlu0 %1271
        %v1275 = vsel %vm890, %v1251, %v1262
        %v1276 = vsel %vm890, %v1252, %v1264
        %v1277 = vsel %vm752, %v1275, %v1270
        %v1278 = vsel %vm752, %v1276, %v1272
        %v1279 = vld [vmem:[%s11] sm:$0xff]
        %v1280 = vld [vmem:[%s11 + $0x8] sm:$0xff]
        %v1281 = vld [vmem:[%s11 + $0x10] sm:$0xff]
        %v1282 = vld [vmem:[%s11 + $0x18] sm:$0xff]
        %v1283 = vld [vmem:[%s11 + $0x20] sm:$0xff]
        %v1284 = vld [vmem:[%s11 + $0x28] sm:$0xff]
        %v1285 = vld [vmem:[%s11 + $0x30] sm:$0xff]
        %v1286 = vld [vmem:[%s11 + $0x38] sm:$0xff]
        %v1287 = vld [vmem:[%s11 + $0x40] sm:$0xff]
        %v1288 = vld [vmem:[%s11 + $0x48] sm:$0xff]
        %v1289 = vld [vmem:[%s11 + $0x50] sm:$0xff]
        %v1290 = vld [vmem:[%s11 + $0x58] sm:$0xff]
        %v1292 = vsel %vm895, %v1277, 0
        %v1295 = vsel %vm895, %v1278, 0
        %1297 = vmatprep.subr.mxu0 0.0
        %1298 = vmatpush1.msra.mxu0 %v1279
        %1299 = vmatprep.subr.mxu0 0.0
        %1300 = vmatpush1.msra.mxu0 %v1280
        %1301 = vmatprep.subr.mxu0 0.0
        %1302 = vmatpush1.msra.mxu0 %v1281
        %1303 = vmatprep.subr.mxu0 0.0
        %1304 = vmatpush1.msra.mxu0 %v1282
        %1305 = vmatprep.subr.mxu0 0.0
        %1306 = vmatpush1.msra.mxu0 %v1283
        %1307 = vmatprep.subr.mxu0 0.0
        %1308 = vmatpush1.msra.mxu0 %v1284
        %1309 = vmatprep.subr.mxu0 0.0
        %1310 = vmatpush1.msra.mxu0 %v1285
        %1311 = vmatprep.subr.mxu0 0.0
        %1312 = vmatpush1.msra.mxu0 %v1286
        %1313 = vmatprep.subr.mxu0 0.0
        %1314 = vmatpush1.msra.mxu0 %v1287
        %1315 = vmatprep.subr.mxu0 0.0
        %1316 = vmatpush1.msra.mxu0 %v1288
        %1317 = vmatprep.subr.mxu0 0.0
        %1318 = vmatpush1.msra.mxu0 %v1289
        %1319 = vmatprep.subr.mxu0 0.0
        %1320 = vmatpush1.msra.mxu0 %v1290
        %1321 = vmatprep.subr.mxu0 0.0
        %1322 = vmatpush1.msra.mxu0 0.0
        %1323 = vmatprep.subr.mxu0 0.0
        %1324 = vmatpush1.msra.mxu0 0.0
        %1325 = vmatprep.subr.mxu0 0.0
        %1326 = vmatpush1.msra.mxu0 0.0
        %1327 = vmatprep.subr.mxu0 0.0
        %1328 = vmatpush1.msra.mxu0 0.0
        %1329 = vmatprep.subr.mxu0 0.0
        %1330 = vmatpush1.msra.mxu0 0.0
        %1331 = vmatprep.subr.mxu0 0.0
        %1332 = vmatpush1.msra.mxu0 0.0
        %1333 = vmatprep.subr.mxu0 0.0
        %1334 = vmatpush1.msra.mxu0 0.0
        %1335 = vmatprep.subr.mxu0 0.0
        %1336 = vmatpush1.msra.mxu0 0.0
        %1337 = vmatprep.subr.mxu0 0.0
        %1338 = vmatpush1.msra.mxu0 0.0
        %1339 = vmatprep.subr.mxu0 0.0
        %1340 = vmatpush1.msra.mxu0 0.0
        %1341 = vmatprep.subr.mxu0 0.0
        %1342 = vmatpush1.msra.mxu0 0.0
        %1343 = vmatprep.subr.mxu0 0.0
        %1344 = vmatpush1.msra.mxu0 0.0
        %1345 = vmatprep.subr.mxu0 0.0
        %1346 = vmatpush1.msra.mxu0 0.0
        %1347 = vmatprep.subr.mxu0 0.0
        %1348 = vmatpush1.msra.mxu0 0.0
        %1349 = vmatprep.subr.mxu0 0.0
        %1350 = vmatpush1.msra.mxu0 0.0
        %1351 = vmatprep.subr.mxu0 0.0
        %1352 = vmatpush1.msra.mxu0 0.0
        %1353 = vmatprep.subr.mxu0 0.0
        %1354 = vmatpush1.msra.mxu0 0.0
        %1355 = vmatprep.subr.mxu0 0.0
        %1356 = vmatpush1.msra.mxu0 0.0
        %1357 = vmatprep.subr.mxu0 0.0
        %1358 = vmatpush1.msra.mxu0 0.0
        %1359 = vmatprep.subr.mxu0 0.0
        %1360 = vmatpush1.msra.mxu0 0.0
        %1361 = vmatprep.mubr.f32.mxu0 0.0
        %1362 = vmatmul.mubr.f32.gmra.mrb[0].mxu0 %v1292
        %v1363 = vpop.f32.mrb[0].mxu0
        %v1364 = vadd.f32 0.0, %v1363
        %v1365 = vpop.f32.mrb[0].mxu0
        %1366 = vmatprep.mubr.f32.mxu0 0.0
        %1367 = vmatmul.mubr.f32.gmra.mrb[0].mxu0 %v1295
        %v1368 = vpop.f32.mrb[0].mxu0
        %v1369 = vadd.f32 0.0, %v1368
        %v1370 = vpop.f32.mrb[0].mxu0
        %1371 = vdwg.mxu0
        %v1372 = vld [vmem:[%s12] sm:$0x1]
        %v1374 = vlaneseq
        %v1375 = vshrl.u32 %v1374, 7
        %v1376 = vsub.s32 0, %v1375
        %v1377 = vrot.slane %v1372, %v1376
        %v1379 = vmul.f32 %v1364, %v1377
        %v1380 = vmul.f32 %v1369, %v1377
        %v1381 = vld [vmem:[%s13] sm:$0x1]
        %v1383 = vlaneseq
        %v1384 = vshrl.u32 %v1383, 7
        %v1385 = vsub.s32 0, %v1384
        %v1386 = vrot.slane %v1381, %v1385
        %v1388 = vadd.f32 %v1379, %v1386
        %v1389 = vadd.f32 %v1380, %v1386
        %v1390 = vadd.f32 %v1388, %v834
        %v1391 = vadd.f32 %v1389, %v835
        %v1392 = vld [vmem:[%s14] sm:$0xff]
        %v1393 = vld [vmem:[%s14 + $0x8] sm:$0xff]
        %v1394 = vld [vmem:[%s14 + $0x10] sm:$0xff]
        %v1395 = vld [vmem:[%s14 + $0x18] sm:$0xff]
        %v1396 = vld [vmem:[%s15] sm:$0x1]
        %v1398 = vlaneseq
        %v1399 = vshrl.u32 %v1398, 7
        %v1400 = vsub.s32 0, %v1399
        %v1401 = vrot.slane %v1396, %v1400
        %v1404 = vsel %vm890, %v1390, 0
        %v1407 = vsel %vm890, %v1391, 0
        %1409 = vmatprep.subr.mxu0 0.0
        %1410 = vmatpush1.msra.mxu0 %v1392
        %1411 = vmatprep.subr.mxu0 0.0
        %1412 = vmatpush1.msra.mxu0 %v1393
        %1413 = vmatprep.subr.mxu0 0.0
        %1414 = vmatpush1.msra.mxu0 %v1394
        %1415 = vmatprep.subr.mxu0 0.0
        %1416 = vmatpush1.msra.mxu0 %v1395
        %1417 = vmatprep.subr.mxu0 0.0
        %1418 = vmatpush1.msra.mxu0 0.0
        %1419 = vmatprep.subr.mxu0 0.0
        %1420 = vmatpush1.msra.mxu0 0.0
        %1421 = vmatprep.subr.mxu0 0.0
        %1422 = vmatpush1.msra.mxu0 0.0
        %1423 = vmatprep.subr.mxu0 0.0
        %1424 = vmatpush1.msra.mxu0 0.0
        %1425 = vmatprep.subr.mxu0 0.0
        %1426 = vmatpush1.msra.mxu0 0.0
        %1427 = vmatprep.subr.mxu0 0.0
        %1428 = vmatpush1.msra.mxu0 0.0
        %1429 = vmatprep.subr.mxu0 0.0
        %1430 = vmatpush1.msra.mxu0 0.0
        %1431 = vmatprep.subr.mxu0 0.0
        %1432 = vmatpush1.msra.mxu0 0.0
        %1433 = vmatprep.subr.mxu0 0.0
        %1434 = vmatpush1.msra.mxu0 0.0
        %1435 = vmatprep.subr.mxu0 0.0
        %1436 = vmatpush1.msra.mxu0 0.0
        %1437 = vmatprep.subr.mxu0 0.0
        %1438 = vmatpush1.msra.mxu0 0.0
        %1439 = vmatprep.subr.mxu0 0.0
        %1440 = vmatpush1.msra.mxu0 0.0
        %1441 = vmatprep.subr.mxu0 0.0
        %1442 = vmatpush1.msra.mxu0 0.0
        %1443 = vmatprep.subr.mxu0 0.0
        %1444 = vmatpush1.msra.mxu0 0.0
        %1445 = vmatprep.subr.mxu0 0.0
        %1446 = vmatpush1.msra.mxu0 0.0
        %1447 = vmatprep.subr.mxu0 0.0
        %1448 = vmatpush1.msra.mxu0 0.0
        %1449 = vmatprep.subr.mxu0 0.0
        %1450 = vmatpush1.msra.mxu0 0.0
        %1451 = vmatprep.subr.mxu0 0.0
        %1452 = vmatpush1.msra.mxu0 0.0
        %1453 = vmatprep.subr.mxu0 0.0
        %1454 = vmatpush1.msra.mxu0 0.0
        %1455 = vmatprep.subr.mxu0 0.0
        %1456 = vmatpush1.msra.mxu0 0.0
        %1457 = vmatprep.subr.mxu0 0.0
        %1458 = vmatpush1.msra.mxu0 0.0
        %1459 = vmatprep.subr.mxu0 0.0
        %1460 = vmatpush1.msra.mxu0 0.0
        %1461 = vmatprep.subr.mxu0 0.0
        %1462 = vmatpush1.msra.mxu0 0.0
        %1463 = vmatprep.subr.mxu0 0.0
        %1464 = vmatpush1.msra.mxu0 0.0
        %1465 = vmatprep.subr.mxu0 0.0
        %1466 = vmatpush1.msra.mxu0 0.0
        %1467 = vmatprep.subr.mxu0 0.0
        %1468 = vmatpush1.msra.mxu0 0.0
        %1469 = vmatprep.subr.mxu0 0.0
        %1470 = vmatpush1.msra.mxu0 0.0
        %1471 = vmatprep.subr.mxu0 0.0
        %1472 = vmatpush1.msra.mxu0 0.0
        %1473 = vmatprep.mubr.f32.mxu0 0.0
        %1474 = vmatmul.mubr.f32.gmra.mrb[0].mxu0 %v1404
        %v1475 = vpop.f32.mrb[0].mxu0
        %v1476 = vadd.f32 %v1401, %v1475
        %v1477 = vpop.f32.mrb[0].mxu0
        %1478 = vmatprep.mubr.f32.mxu0 0.0
        %1479 = vmatmul.mubr.f32.gmra.mrb[0].mxu0 %v1407
        %v1480 = vpop.f32.mrb[0].mxu0
        %v1481 = vadd.f32 %v1401, %v1480
        %v1482 = vpop.f32.mrb[0].mxu0
        %1483 = vdwg.mxu0
        %v1484 = vxor.u32 %v1476, 2147483648
        %v1485 = vxor.u32 %v1481, 2147483648
        %v1486 = vmul.f32 %v1484, 1.442695
        %v1487 = vpow.pop %v1486
        %v1488 = vmul.f32 %v1485, 1.442695
        %v1489 = vpow.pop %v1488
        %v1490 = vadd.f32 %v1487, 1.0
        %v1491 = vadd.f32 %v1489, 1.0
        %v1492 = vrcp.pop %v1490
        %v1493 = vmul.f32 1.0, %v1492
        %v1494 = vrcp.pop %v1491
        %v1495 = vmul.f32 1.0, %v1494
        %v1496 = vmax.f32 %v1476, 0.0
        %v1497 = vmax.f32 %v1481, 0.0
        %1500 = vrot.lane.b32.xlu0 %v1493, 96
        %v1501 = vpop.permute.xlu0 %1500
        %1502 = vrot.lane.b32.xlu0 %v1495, 96
        %v1503 = vpop.permute.xlu0 %1502
        %v1506 = vmul.f32 %v1496, %v1501
        %v1507 = vmul.f32 %v1497, %v1503
        %v1508 = vsub.f32 1.0, %v1493
        %v1509 = vsub.f32 1.0, %v1495
        %1512 = vrot.lane.b32.xlu0 %v1508, 96
        %v1513 = vpop.permute.xlu0 %1512
        %1514 = vrot.lane.b32.xlu0 %v1509, 96
        %v1515 = vpop.permute.xlu0 %1514
        %v1518 = vmul.f32 %v1390, %v1513
        %v1519 = vmul.f32 %v1391, %v1515
        %v1520 = vadd.f32 %v1506, %v1518
        %v1521 = vadd.f32 %v1507, %v1519
        %s1522 = scalar_lea.vmem %s14, 32
        %v1523 = vld [vmem:[%s1522] sm:$0xff]
        %v1524 = vld [vmem:[%s1522 + $0x8] sm:$0xff]
        %v1525 = vld [vmem:[%s1522 + $0x10] sm:$0xff]
        %v1526 = vld [vmem:[%s1522 + $0x18] sm:$0xff]
        %s1527 = scalar_lea.vmem %s15, 1
        %v1528 = vld [vmem:[%s1527] sm:$0x1]
        %v1530 = vlaneseq
        %v1531 = vshrl.u32 %v1530, 7
        %v1532 = vsub.s32 0, %v1531
        %v1533 = vrot.slane %v1528, %v1532
        %v1536 = vsel %vm890, %v1520, 0
        %v1539 = vsel %vm890, %v1521, 0
        %1541 = vmatprep.subr.mxu0 0.0
        %1542 = vmatpush1.msra.mxu0 %v1523
        %1543 = vmatprep.subr.mxu0 0.0
        %1544 = vmatpush1.msra.mxu0 %v1524
        %1545 = vmatprep.subr.mxu0 0.0
        %1546 = vmatpush1.msra.mxu0 %v1525
        %1547 = vmatprep.subr.mxu0 0.0
        %1548 = vmatpush1.msra.mxu0 %v1526
        %1549 = vmatprep.subr.mxu0 0.0
        %1550 = vmatpush1.msra.mxu0 0.0
        %1551 = vmatprep.subr.mxu0 0.0
        %1552 = vmatpush1.msra.mxu0 0.0
        %1553 = vmatprep.subr.mxu0 0.0
        %1554 = vmatpush1.msra.mxu0 0.0
        %1555 = vmatprep.subr.mxu0 0.0
        %1556 = vmatpush1.msra.mxu0 0.0
        %1557 = vmatprep.subr.mxu0 0.0
        %1558 = vmatpush1.msra.mxu0 0.0
        %1559 = vmatprep.subr.mxu0 0.0
        %1560 = vmatpush1.msra.mxu0 0.0
        %1561 = vmatprep.subr.mxu0 0.0
        %1562 = vmatpush1.msra.mxu0 0.0
        %1563 = vmatprep.subr.mxu0 0.0
        %1564 = vmatpush1.msra.mxu0 0.0
        %1565 = vmatprep.subr.mxu0 0.0
        %1566 = vmatpush1.msra.mxu0 0.0
        %1567 = vmatprep.subr.mxu0 0.0
        %1568 = vmatpush1.msra.mxu0 0.0
        %1569 = vmatprep.subr.mxu0 0.0
        %1570 = vmatpush1.msra.mxu0 0.0
        %1571 = vmatprep.subr.mxu0 0.0
        %1572 = vmatpush1.msra.mxu0 0.0
        %1573 = vmatprep.subr.mxu0 0.0
        %1574 = vmatpush1.msra.mxu0 0.0
        %1575 = vmatprep.subr.mxu0 0.0
        %1576 = vmatpush1.msra.mxu0 0.0
        %1577 = vmatprep.subr.mxu0 0.0
        %1578 = vmatpush1.msra.mxu0 0.0
        %1579 = vmatprep.subr.mxu0 0.0
        %1580 = vmatpush1.msra.mxu0 0.0
        %1581 = vmatprep.subr.mxu0 0.0
        %1582 = vmatpush1.msra.mxu0 0.0
        %1583 = vmatprep.subr.mxu0 0.0
        %1584 = vmatpush1.msra.mxu0 0.0
        %1585 = vmatprep.subr.mxu0 0.0
        %1586 = vmatpush1.msra.mxu0 0.0
        %1587 = vmatprep.subr.mxu0 0.0
        %1588 = vmatpush1.msra.mxu0 0.0
        %1589 = vmatprep.subr.mxu0 0.0
        %1590 = vmatpush1.msra.mxu0 0.0
        %1591 = vmatprep.subr.mxu0 0.0
        %1592 = vmatpush1.msra.mxu0 0.0
        %1593 = vmatprep.subr.mxu0 0.0
        %1594 = vmatpush1.msra.mxu0 0.0
        %1595 = vmatprep.subr.mxu0 0.0
        %1596 = vmatpush1.msra.mxu0 0.0
        %1597 = vmatprep.subr.mxu0 0.0
        %1598 = vmatpush1.msra.mxu0 0.0
        %1599 = vmatprep.subr.mxu0 0.0
        %1600 = vmatpush1.msra.mxu0 0.0
        %1601 = vmatprep.subr.mxu0 0.0
        %1602 = vmatpush1.msra.mxu0 0.0
        %1603 = vmatprep.subr.mxu0 0.0
        %1604 = vmatpush1.msra.mxu0 0.0
        %1605 = vmatprep.mubr.f32.mxu0 0.0
        %1606 = vmatmul.mubr.f32.gmra.mrb[0].mxu0 %v1536
        %v1607 = vpop.f32.mrb[0].mxu0
        %v1608 = vadd.f32 %v1533, %v1607
        %v1609 = vpop.f32.mrb[0].mxu0
        %1610 = vmatprep.mubr.f32.mxu0 0.0
        %1611 = vmatmul.mubr.f32.gmra.mrb[0].mxu0 %v1539
        %v1612 = vpop.f32.mrb[0].mxu0
        %v1613 = vadd.f32 %v1533, %v1612
        %v1614 = vpop.f32.mrb[0].mxu0
        %1615 = vdwg.mxu0
        %v1616 = vxor.u32 %v1608, 2147483648
        %v1617 = vxor.u32 %v1613, 2147483648
        %v1618 = vmul.f32 %v1616, 1.442695
        %v1619 = vpow.pop %v1618
        %v1620 = vmul.f32 %v1617, 1.442695
        %v1621 = vpow.pop %v1620
        %v1622 = vadd.f32 %v1619, 1.0
        %v1623 = vadd.f32 %v1621, 1.0
        %v1624 = vrcp.pop %v1622
        %v1625 = vmul.f32 1.0, %v1624
        %v1626 = vrcp.pop %v1623
        %v1627 = vmul.f32 1.0, %v1626
        %v1628 = vmax.f32 %v1608, 0.0
        %v1629 = vmax.f32 %v1613, 0.0
        %1632 = vrot.lane.b32.xlu0 %v1625, 96
        %v1633 = vpop.permute.xlu0 %1632
        %1634 = vrot.lane.b32.xlu0 %v1627, 96
        %v1635 = vpop.permute.xlu0 %1634
        %v1638 = vmul.f32 %v1628, %v1633
        %v1639 = vmul.f32 %v1629, %v1635
        %v1640 = vsub.f32 1.0, %v1625
        %v1641 = vsub.f32 1.0, %v1627
        %1644 = vrot.lane.b32.xlu0 %v1640, 96
        %v1645 = vpop.permute.xlu0 %1644
        %1646 = vrot.lane.b32.xlu0 %v1641, 96
        %v1647 = vpop.permute.xlu0 %1646
        %v1650 = vmul.f32 %v1520, %v1645
        %v1651 = vmul.f32 %v1521, %v1647
        %v1652 = vadd.f32 %v1638, %v1650
        %v1653 = vadd.f32 %v1639, %v1651
        %s1654 = scalar_lea.vmem %s14, 64
        %v1655 = vld [vmem:[%s1654] sm:$0xff]
        %v1656 = vld [vmem:[%s1654 + $0x8] sm:$0xff]
        %v1657 = vld [vmem:[%s1654 + $0x10] sm:$0xff]
        %v1658 = vld [vmem:[%s1654 + $0x18] sm:$0xff]
        %s1659 = scalar_lea.vmem %s15, 2
        %v1660 = vld [vmem:[%s1659] sm:$0x1]
        %v1662 = vlaneseq
        %v1663 = vshrl.u32 %v1662, 7
        %v1664 = vsub.s32 0, %v1663
        %v1665 = vrot.slane %v1660, %v1664
        %v1668 = vsel %vm890, %v1652, 0
        %v1671 = vsel %vm890, %v1653, 0
        %1673 = vmatprep.subr.mxu0 0.0
        %1674 = vmatpush1.msra.mxu0 %v1655
        %1675 = vmatprep.subr.mxu0 0.0
        %1676 = vmatpush1.msra.mxu0 %v1656
        %1677 = vmatprep.subr.mxu0 0.0
        %1678 = vmatpush1.msra.mxu0 %v1657
        %1679 = vmatprep.subr.mxu0 0.0
        %1680 = vmatpush1.msra.mxu0 %v1658
        %1681 = vmatprep.subr.mxu0 0.0
        %1682 = vmatpush1.msra.mxu0 0.0
        %1683 = vmatprep.subr.mxu0 0.0
        %1684 = vmatpush1.msra.mxu0 0.0
        %1685 = vmatprep.subr.mxu0 0.0
        %1686 = vmatpush1.msra.mxu0 0.0
        %1687 = vmatprep.subr.mxu0 0.0
        %1688 = vmatpush1.msra.mxu0 0.0
        %1689 = vmatprep.subr.mxu0 0.0
        %1690 = vmatpush1.msra.mxu0 0.0
        %1691 = vmatprep.subr.mxu0 0.0
        %1692 = vmatpush1.msra.mxu0 0.0
        %1693 = vmatprep.subr.mxu0 0.0
        %1694 = vmatpush1.msra.mxu0 0.0
        %1695 = vmatprep.subr.mxu0 0.0
        %1696 = vmatpush1.msra.mxu0 0.0
        %1697 = vmatprep.subr.mxu0 0.0
        %1698 = vmatpush1.msra.mxu0 0.0
        %1699 = vmatprep.subr.mxu0 0.0
        %1700 = vmatpush1.msra.mxu0 0.0
        %1701 = vmatprep.subr.mxu0 0.0
        %1702 = vmatpush1.msra.mxu0 0.0
        %1703 = vmatprep.subr.mxu0 0.0
        %1704 = vmatpush1.msra.mxu0 0.0
        %1705 = vmatprep.subr.mxu0 0.0
        %1706 = vmatpush1.msra.mxu0 0.0
        %1707 = vmatprep.subr.mxu0 0.0
        %1708 = vmatpush1.msra.mxu0 0.0
        %1709 = vmatprep.subr.mxu0 0.0
        %1710 = vmatpush1.msra.mxu0 0.0
        %1711 = vmatprep.subr.mxu0 0.0
        %1712 = vmatpush1.msra.mxu0 0.0
        %1713 = vmatprep.subr.mxu0 0.0
        %1714 = vmatpush1.msra.mxu0 0.0
        %1715 = vmatprep.subr.mxu0 0.0
        %1716 = vmatpush1.msra.mxu0 0.0
        %1717 = vmatprep.subr.mxu0 0.0
        %1718 = vmatpush1.msra.mxu0 0.0
        %1719 = vmatprep.subr.mxu0 0.0
        %1720 = vmatpush1.msra.mxu0 0.0
        %1721 = vmatprep.subr.mxu0 0.0
        %1722 = vmatpush1.msra.mxu0 0.0
        %1723 = vmatprep.subr.mxu0 0.0
        %1724 = vmatpush1.msra.mxu0 0.0
        %1725 = vmatprep.subr.mxu0 0.0
        %1726 = vmatpush1.msra.mxu0 0.0
        %1727 = vmatprep.subr.mxu0 0.0
        %1728 = vmatpush1.msra.mxu0 0.0
        %1729 = vmatprep.subr.mxu0 0.0
        %1730 = vmatpush1.msra.mxu0 0.0
        %1731 = vmatprep.subr.mxu0 0.0
        %1732 = vmatpush1.msra.mxu0 0.0
        %1733 = vmatprep.subr.mxu0 0.0
        %1734 = vmatpush1.msra.mxu0 0.0
        %1735 = vmatprep.subr.mxu0 0.0
        %1736 = vmatpush1.msra.mxu0 0.0
        %1737 = vmatprep.mubr.f32.mxu0 0.0
        %1738 = vmatmul.mubr.f32.gmra.mrb[0].mxu0 %v1668
        %v1739 = vpop.f32.mrb[0].mxu0
        %v1740 = vadd.f32 %v1665, %v1739
        %v1741 = vpop.f32.mrb[0].mxu0
        %1742 = vmatprep.mubr.f32.mxu0 0.0
        %1743 = vmatmul.mubr.f32.gmra.mrb[0].mxu0 %v1671
        %v1744 = vpop.f32.mrb[0].mxu0
        %v1745 = vadd.f32 %v1665, %v1744
        %v1746 = vpop.f32.mrb[0].mxu0
        %1747 = vdwg.mxu0
        %v1748 = vxor.u32 %v1740, 2147483648
        %v1749 = vxor.u32 %v1745, 2147483648
        %v1750 = vmul.f32 %v1748, 1.442695
        %v1751 = vpow.pop %v1750
        %v1752 = vmul.f32 %v1749, 1.442695
        %v1753 = vpow.pop %v1752
        %v1754 = vadd.f32 %v1751, 1.0
        %v1755 = vadd.f32 %v1753, 1.0
        %v1756 = vrcp.pop %v1754
        %v1757 = vmul.f32 1.0, %v1756
        %v1758 = vrcp.pop %v1755
        %v1759 = vmul.f32 1.0, %v1758
        %v1760 = vmax.f32 %v1740, 0.0
        %v1761 = vmax.f32 %v1745, 0.0
        %1764 = vrot.lane.b32.xlu0 %v1757, 96
        %v1765 = vpop.permute.xlu0 %1764
        %1766 = vrot.lane.b32.xlu0 %v1759, 96
        %v1767 = vpop.permute.xlu0 %1766
        %v1770 = vmul.f32 %v1760, %v1765
        %v1771 = vmul.f32 %v1761, %v1767
        %v1772 = vsub.f32 1.0, %v1757
        %v1773 = vsub.f32 1.0, %v1759
        %1776 = vrot.lane.b32.xlu0 %v1772, 96
        %v1777 = vpop.permute.xlu0 %1776
        %1778 = vrot.lane.b32.xlu0 %v1773, 96
        %v1779 = vpop.permute.xlu0 %1778
        %v1782 = vmul.f32 %v1652, %v1777
        %v1783 = vmul.f32 %v1653, %v1779
        %v1784 = vadd.f32 %v1770, %v1782
        %v1785 = vadd.f32 %v1771, %v1783
        %s1786 = scalar_lea.vmem %s14, 96
        %v1787 = vld [vmem:[%s1786] sm:$0xff]
        %v1788 = vld [vmem:[%s1786 + $0x8] sm:$0xff]
        %v1789 = vld [vmem:[%s1786 + $0x10] sm:$0xff]
        %v1790 = vld [vmem:[%s1786 + $0x18] sm:$0xff]
        %s1791 = scalar_lea.vmem %s15, 3
        %v1792 = vld [vmem:[%s1791] sm:$0x1]
        %v1794 = vlaneseq
        %v1795 = vshrl.u32 %v1794, 7
        %v1796 = vsub.s32 0, %v1795
        %v1797 = vrot.slane %v1792, %v1796
        %v1800 = vsel %vm890, %v1784, 0
        %v1803 = vsel %vm890, %v1785, 0
        %1805 = vmatprep.subr.mxu0 0.0
        %1806 = vmatpush1.msra.mxu0 %v1787
        %1807 = vmatprep.subr.mxu0 0.0
        %1808 = vmatpush1.msra.mxu0 %v1788
        %1809 = vmatprep.subr.mxu0 0.0
        %1810 = vmatpush1.msra.mxu0 %v1789
        %1811 = vmatprep.subr.mxu0 0.0
        %1812 = vmatpush1.msra.mxu0 %v1790
        %1813 = vmatprep.subr.mxu0 0.0
        %1814 = vmatpush1.msra.mxu0 0.0
        %1815 = vmatprep.subr.mxu0 0.0
        %1816 = vmatpush1.msra.mxu0 0.0
        %1817 = vmatprep.subr.mxu0 0.0
        %1818 = vmatpush1.msra.mxu0 0.0
        %1819 = vmatprep.subr.mxu0 0.0
        %1820 = vmatpush1.msra.mxu0 0.0
        %1821 = vmatprep.subr.mxu0 0.0
        %1822 = vmatpush1.msra.mxu0 0.0
        %1823 = vmatprep.subr.mxu0 0.0
        %1824 = vmatpush1.msra.mxu0 0.0
        %1825 = vmatprep.subr.mxu0 0.0
        %1826 = vmatpush1.msra.mxu0 0.0
        %1827 = vmatprep.subr.mxu0 0.0
        %1828 = vmatpush1.msra.mxu0 0.0
        %1829 = vmatprep.subr.mxu0 0.0
        %1830 = vmatpush1.msra.mxu0 0.0
        %1831 = vmatprep.subr.mxu0 0.0
        %1832 = vmatpush1.msra.mxu0 0.0
        %1833 = vmatprep.subr.mxu0 0.0
        %1834 = vmatpush1.msra.mxu0 0.0
        %1835 = vmatprep.subr.mxu0 0.0
        %1836 = vmatpush1.msra.mxu0 0.0
        %1837 = vmatprep.subr.mxu0 0.0
        %1838 = vmatpush1.msra.mxu0 0.0
        %1839 = vmatprep.subr.mxu0 0.0
        %1840 = vmatpush1.msra.mxu0 0.0
        %1841 = vmatprep.subr.mxu0 0.0
        %1842 = vmatpush1.msra.mxu0 0.0
        %1843 = vmatprep.subr.mxu0 0.0
        %1844 = vmatpush1.msra.mxu0 0.0
        %1845 = vmatprep.subr.mxu0 0.0
        %1846 = vmatpush1.msra.mxu0 0.0
        %1847 = vmatprep.subr.mxu0 0.0
        %1848 = vmatpush1.msra.mxu0 0.0
        %1849 = vmatprep.subr.mxu0 0.0
        %1850 = vmatpush1.msra.mxu0 0.0
        %1851 = vmatprep.subr.mxu0 0.0
        %1852 = vmatpush1.msra.mxu0 0.0
        %1853 = vmatprep.subr.mxu0 0.0
        %1854 = vmatpush1.msra.mxu0 0.0
        %1855 = vmatprep.subr.mxu0 0.0
        %1856 = vmatpush1.msra.mxu0 0.0
        %1857 = vmatprep.subr.mxu0 0.0
        %1858 = vmatpush1.msra.mxu0 0.0
        %1859 = vmatprep.subr.mxu0 0.0
        %1860 = vmatpush1.msra.mxu0 0.0
        %1861 = vmatprep.subr.mxu0 0.0
        %1862 = vmatpush1.msra.mxu0 0.0
        %1863 = vmatprep.subr.mxu0 0.0
        %1864 = vmatpush1.msra.mxu0 0.0
        %1865 = vmatprep.subr.mxu0 0.0
        %1866 = vmatpush1.msra.mxu0 0.0
        %1867 = vmatprep.subr.mxu0 0.0
        %1868 = vmatpush1.msra.mxu0 0.0
        %1869 = vmatprep.mubr.f32.mxu0 0.0
        %1870 = vmatmul.mubr.f32.gmra.mrb[0].mxu0 %v1800
        %v1871 = vpop.f32.mrb[0].mxu0
        %v1872 = vadd.f32 %v1797, %v1871
        %v1873 = vpop.f32.mrb[0].mxu0
        %1874 = vmatprep.mubr.f32.mxu0 0.0
        %1875 = vmatmul.mubr.f32.gmra.mrb[0].mxu0 %v1803
        %v1876 = vpop.f32.mrb[0].mxu0
        %v1877 = vadd.f32 %v1797, %v1876
        %v1878 = vpop.f32.mrb[0].mxu0
        %1879 = vdwg.mxu0
        %v1880 = vxor.u32 %v1872, 2147483648
        %v1881 = vxor.u32 %v1877, 2147483648
        %v1882 = vmul.f32 %v1880, 1.442695
        %v1883 = vpow.pop %v1882
        %v1884 = vmul.f32 %v1881, 1.442695
        %v1885 = vpow.pop %v1884
        %v1886 = vadd.f32 %v1883, 1.0
        %v1887 = vadd.f32 %v1885, 1.0
        %v1888 = vrcp.pop %v1886
        %v1889 = vmul.f32 1.0, %v1888
        %v1890 = vrcp.pop %v1887
        %v1891 = vmul.f32 1.0, %v1890
        %v1892 = vmax.f32 %v1872, 0.0
        %v1893 = vmax.f32 %v1877, 0.0
        %1896 = vrot.lane.b32.xlu0 %v1889, 96
        %v1897 = vpop.permute.xlu0 %1896
        %1898 = vrot.lane.b32.xlu0 %v1891, 96
        %v1899 = vpop.permute.xlu0 %1898
        %v1902 = vmul.f32 %v1892, %v1897
        %v1903 = vmul.f32 %v1893, %v1899
        %v1904 = vsub.f32 1.0, %v1889
        %v1905 = vsub.f32 1.0, %v1891
        %1908 = vrot.lane.b32.xlu0 %v1904, 96
        %v1909 = vpop.permute.xlu0 %1908
        %1910 = vrot.lane.b32.xlu0 %v1905, 96
        %v1911 = vpop.permute.xlu0 %1910
        %v1914 = vmul.f32 %v1784, %v1909
        %v1915 = vmul.f32 %v1785, %v1911
        %v1916 = vadd.f32 %v1902, %v1914
        %v1917 = vadd.f32 %v1903, %v1915
        %v1918 = vld [vmem:[%s16] sm:$0xff]
        %v1919 = vld [vmem:[%s16 + $0x8] sm:$0xff]
        %v1920 = vld [vmem:[%s16 + $0x10] sm:$0xff]
        %v1921 = vld [vmem:[%s16 + $0x18] sm:$0xff]
        %v1922 = vld [vmem:[%s16 + $0x20] sm:$0xff]
        %v1923 = vld [vmem:[%s16 + $0x28] sm:$0xff]
        %v1924 = vld [vmem:[%s16 + $0x30] sm:$0xff]
        %v1925 = vld [vmem:[%s16 + $0x38] sm:$0xff]
        %v1926 = vld [vmem:[%s17] sm:$0x3]
        %v1928 = vlaneseq
        %v1929 = vshrl.u32 %v1928, 7
        %v1930 = vsub.s32 0, %v1929
        %v1931 = vrot.slane %v1926, %v1930
        %v1932 = vlaneseq
        %v1933 = vshrl.u32 %v1932, 7
        %v1934 = vsub.s32 1, %v1933
        %v1935 = vrot.slane %v1926, %v1934
        %v1939 = vsel %vm890, %v1916, 0
        %v1942 = vsel %vm890, %v1917, 0
        %1944 = vmatprep.subr.mxu0 %v1919
        %1945 = vmatpush1.msra.mxu0 %v1918
        %1946 = vmatprep.subr.mxu0 %v1921
        %1947 = vmatpush1.msra.mxu0 %v1920
        %1948 = vmatprep.subr.mxu0 %v1923
        %1949 = vmatpush1.msra.mxu0 %v1922
        %1950 = vmatprep.subr.mxu0 %v1925
        %1951 = vmatpush1.msra.mxu0 %v1924
        %1952 = vmatprep.subr.mxu0 0.0
        %1953 = vmatpush1.msra.mxu0 0.0
        %1954 = vmatprep.subr.mxu0 0.0
        %1955 = vmatpush1.msra.mxu0 0.0
        %1956 = vmatprep.subr.mxu0 0.0
        %1957 = vmatpush1.msra.mxu0 0.0
        %1958 = vmatprep.subr.mxu0 0.0
        %1959 = vmatpush1.msra.mxu0 0.0
        %1960 = vmatprep.subr.mxu0 0.0
        %1961 = vmatpush1.msra.mxu0 0.0
        %1962 = vmatprep.subr.mxu0 0.0
        %1963 = vmatpush1.msra.mxu0 0.0
        %1964 = vmatprep.subr.mxu0 0.0
        %1965 = vmatpush1.msra.mxu0 0.0
        %1966 = vmatprep.subr.mxu0 0.0
        %1967 = vmatpush1.msra.mxu0 0.0
        %1968 = vmatprep.subr.mxu0 0.0
        %1969 = vmatpush1.msra.mxu0 0.0
        %1970 = vmatprep.subr.mxu0 0.0
        %1971 = vmatpush1.msra.mxu0 0.0
        %1972 = vmatprep.subr.mxu0 0.0
        %1973 = vmatpush1.msra.mxu0 0.0
        %1974 = vmatprep.subr.mxu0 0.0
        %1975 = vmatpush1.msra.mxu0 0.0
        %1976 = vmatprep.subr.mxu0 0.0
        %1977 = vmatpush1.msra.mxu0 0.0
        %1978 = vmatprep.subr.mxu0 0.0
        %1979 = vmatpush1.msra.mxu0 0.0
        %1980 = vmatprep.subr.mxu0 0.0
        %1981 = vmatpush1.msra.mxu0 0.0
        %1982 = vmatprep.subr.mxu0 0.0
        %1983 = vmatpush1.msra.mxu0 0.0
        %1984 = vmatprep.subr.mxu0 0.0
        %1985 = vmatpush1.msra.mxu0 0.0
        %1986 = vmatprep.subr.mxu0 0.0
        %1987 = vmatpush1.msra.mxu0 0.0
        %1988 = vmatprep.subr.mxu0 0.0
        %1989 = vmatpush1.msra.mxu0 0.0
        %1990 = vmatprep.subr.mxu0 0.0
        %1991 = vmatpush1.msra.mxu0 0.0
        %1992 = vmatprep.subr.mxu0 0.0
        %1993 = vmatpush1.msra.mxu0 0.0
        %1994 = vmatprep.subr.mxu0 0.0
        %1995 = vmatpush1.msra.mxu0 0.0
        %1996 = vmatprep.subr.mxu0 0.0
        %1997 = vmatpush1.msra.mxu0 0.0
        %1998 = vmatprep.subr.mxu0 0.0
        %1999 = vmatpush1.msra.mxu0 0.0
        %2000 = vmatprep.subr.mxu0 0.0
        %2001 = vmatpush1.msra.mxu0 0.0
        %2002 = vmatprep.subr.mxu0 0.0
        %2003 = vmatpush1.msra.mxu0 0.0
        %2004 = vmatprep.subr.mxu0 0.0
        %2005 = vmatpush1.msra.mxu0 0.0
        %2006 = vmatprep.subr.mxu0 0.0
        %2007 = vmatpush1.msra.mxu0 0.0
        %2008 = vmatprep.mubr.f32.mxu0 0.0
        %2009 = vmatmul.mubr.f32.gmra.mrb[0].mxu0 %v1939
        %v2010 = vpop.f32.mrb[0].mxu0
        %v2011 = vadd.f32 %v1931, %v2010
        %v2012 = vpop.f32.mrb[0].mxu0
        %v2013 = vadd.f32 %v1935, %v2012
        %2014 = vmatprep.mubr.f32.mxu0 0.0
        %2015 = vmatmul.mubr.f32.gmra.mrb[0].mxu0 %v1942
        %v2016 = vpop.f32.mrb[0].mxu0
        %v2017 = vadd.f32 %v1931, %v2016
        %v2018 = vpop.f32.mrb[0].mxu0
        %v2019 = vadd.f32 %v1935, %v2018
        %2020 = vdwg.mxu0
        %v2021 = vld [vmem:[%s18] sm:$0xff]
        %v2022 = vld [vmem:[%s18 + $0x8] sm:$0xff]
        %v2023 = vld [vmem:[%s18 + $0x10] sm:$0xff]
        %v2024 = vld [vmem:[%s18 + $0x18] sm:$0xff]
        %v2025 = vld [vmem:[%s18 + $0x20] sm:$0xff]
        %v2026 = vld [vmem:[%s18 + $0x28] sm:$0xff]
        %v2027 = vld [vmem:[%s18 + $0x30] sm:$0xff]
        %v2028 = vld [vmem:[%s18 + $0x38] sm:$0xff]
        %v2029 = vld [vmem:[%s18 + $0x40] sm:$0xff]
        %v2030 = vld [vmem:[%s18 + $0x48] sm:$0xff]
        %v2031 = vld [vmem:[%s18 + $0x50] sm:$0xff]
        %v2032 = vld [vmem:[%s18 + $0x58] sm:$0xff]
        %v2033 = vld [vmem:[%s18 + $0x60] sm:$0xff]
        %v2034 = vld [vmem:[%s18 + $0x68] sm:$0xff]
        %v2035 = vld [vmem:[%s18 + $0x70] sm:$0xff]
        %v2036 = vld [vmem:[%s18 + $0x78] sm:$0xff]
        %v2037 = vld [vmem:[%s19] sm:$0x3]
        %v2039 = vlaneseq
        %v2040 = vshrl.u32 %v2039, 7
        %v2041 = vsub.s32 0, %v2040
        %v2042 = vrot.slane %v2037, %v2041
        %v2043 = vlaneseq
        %v2044 = vshrl.u32 %v2043, 7
        %v2045 = vsub.s32 1, %v2044
        %v2046 = vrot.slane %v2037, %v2045
        %v2050 = vsel %vm752, 0.0, 0
        %2052 = vmatprep.subr.mxu0 %v2022
        %2053 = vmatpush1.msra.mxu0 %v2021
        %2054 = vmatprep.subr.mxu0 %v2024
        %2055 = vmatpush1.msra.mxu0 %v2023
        %2056 = vmatprep.subr.mxu0 %v2026
        %2057 = vmatpush1.msra.mxu0 %v2025
        %2058 = vmatprep.subr.mxu0 %v2028
        %2059 = vmatpush1.msra.mxu0 %v2027
        %2060 = vmatprep.subr.mxu0 %v2030
        %2061 = vmatpush1.msra.mxu0 %v2029
        %2062 = vmatprep.subr.mxu0 %v2032
        %2063 = vmatpush1.msra.mxu0 %v2031
        %2064 = vmatprep.subr.mxu0 %v2034
        %2065 = vmatpush1.msra.mxu0 %v2033
        %2066 = vmatprep.subr.mxu0 %v2036
        %2067 = vmatpush1.msra.mxu0 %v2035
        %2068 = vmatprep.subr.mxu0 0.0
        %2069 = vmatpush1.msra.mxu0 0.0
        %2070 = vmatprep.subr.mxu0 0.0
        %2071 = vmatpush1.msra.mxu0 0.0
        %2072 = vmatprep.subr.mxu0 0.0
        %2073 = vmatpush1.msra.mxu0 0.0
        %2074 = vmatprep.subr.mxu0 0.0
        %2075 = vmatpush1.msra.mxu0 0.0
        %2076 = vmatprep.subr.mxu0 0.0
        %2077 = vmatpush1.msra.mxu0 0.0
        %2078 = vmatprep.subr.mxu0 0.0
        %2079 = vmatpush1.msra.mxu0 0.0
        %2080 = vmatprep.subr.mxu0 0.0
        %2081 = vmatpush1.msra.mxu0 0.0
        %2082 = vmatprep.subr.mxu0 0.0
        %2083 = vmatpush1.msra.mxu0 0.0
        %2084 = vmatprep.subr.mxu0 0.0
        %2085 = vmatpush1.msra.mxu0 0.0
        %2086 = vmatprep.subr.mxu0 0.0
        %2087 = vmatpush1.msra.mxu0 0.0
        %2088 = vmatprep.subr.mxu0 0.0
        %2089 = vmatpush1.msra.mxu0 0.0
        %2090 = vmatprep.subr.mxu0 0.0
        %2091 = vmatpush1.msra.mxu0 0.0
        %2092 = vmatprep.subr.mxu0 0.0
        %2093 = vmatpush1.msra.mxu0 0.0
        %2094 = vmatprep.subr.mxu0 0.0
        %2095 = vmatpush1.msra.mxu0 0.0
        %2096 = vmatprep.subr.mxu0 0.0
        %2097 = vmatpush1.msra.mxu0 0.0
        %2098 = vmatprep.subr.mxu0 0.0
        %2099 = vmatpush1.msra.mxu0 0.0
        %2100 = vmatprep.subr.mxu0 0.0
        %2101 = vmatpush1.msra.mxu0 0.0
        %2102 = vmatprep.subr.mxu0 0.0
        %2103 = vmatpush1.msra.mxu0 0.0
        %2104 = vmatprep.subr.mxu0 0.0
        %2105 = vmatpush1.msra.mxu0 0.0
        %2106 = vmatprep.subr.mxu0 0.0
        %2107 = vmatpush1.msra.mxu0 0.0
        %2108 = vmatprep.subr.mxu0 0.0
        %2109 = vmatpush1.msra.mxu0 0.0
        %2110 = vmatprep.subr.mxu0 0.0
        %2111 = vmatpush1.msra.mxu0 0.0
        %2112 = vmatprep.subr.mxu0 0.0
        %2113 = vmatpush1.msra.mxu0 0.0
        %2114 = vmatprep.subr.mxu0 0.0
        %2115 = vmatpush1.msra.mxu0 0.0
        %2116 = vmatprep.mubr.f32.mxu0 0.0
        %2117 = vmatmul.mubr.f32.gmra.mrb[0].mxu0 %v2050
        %v2118 = vpop.f32.mrb[0].mxu0
        %v2119 = vadd.f32 %v2042, %v2118
        %v2120 = vpop.f32.mrb[0].mxu0
        %v2121 = vadd.f32 %v2046, %v2120
        %2122 = vdwg.mxu0
        %v2123 = vadd.f32 %v2011, %v2119
        %v2124 = vxor.u32 %v2123, 2147483648
        %v2125 = vmul.f32 %v2124, 1.442695
        %v2126 = vpow.pop %v2125
        %v2127 = vadd.f32 %v2126, 1.0
        %v2128 = vrcp.pop %v2127
        %v2129 = vmul.f32 1.0, %v2128
        %2131 = vrot.lane.b32.xlu0 %v2119, 64
        %v2132 = vpop.permute.xlu0 %2131
        %v2134 = vmul.f32 %v2129, %v2132
        %2136 = vrot.lane.b32.xlu0 %v2134, 64
        %v2137 = vpop.permute.xlu0 %2136
        %v2139 = vadd.f32 %v2011, %v2137
        %v2140 = vtanh.pop %v2139
        %v2141 = vsub.f32 1.0, %v2129
        %2143 = vrot.lane.b32.xlu0 %v2140, 96
        %v2144 = vpop.permute.xlu0 %2143
        %v2146 = vmul.f32 %v2141, %v2144
        %v2147 = vmul.f32 %v2129, 0.0
        %v2148 = vadd.f32 %v2146, %v2147
        %v2149 = vrot.slane %v2119, 1
        %v2151 = vadd.f32 %v2017, %v2149
        %v2152 = vxor.u32 %v2151, 2147483648
        %v2153 = vmul.f32 %v2152, 1.442695
        %v2154 = vpow.pop %v2153
        %v2155 = vadd.f32 %v2154, 1.0
        %v2156 = vrcp.pop %v2155
        %v2157 = vmul.f32 1.0, %v2156
        %v2159 = vrot.slane %v2121, 1
        %v2161 = vadd.f32 %v2019, %v2159
        %v2162 = vxor.u32 %v2161, 2147483648
        %v2163 = vmul.f32 %v2162, 1.442695
        %v2164 = vpow.pop %v2163
        %v2165 = vadd.f32 %v2164, 1.0
        %v2166 = vrcp.pop %v2165
        %v2167 = vmul.f32 1.0, %v2166
        %2168 = vrot.lane.b32.xlu0 %v2159, 64
        %v2169 = vpop.permute.xlu0 %2168
        %v2171 = vmul.f32 %v2157, %v2169
        %2173 = vrot.lane.b32.xlu0 %v2171, 64
        %v2174 = vpop.permute.xlu0 %2173
        %v2176 = vadd.f32 %v2019, %v2174
        %v2177 = vtanh.pop %v2176
        %v2178 = vsub.f32 1.0, %v2167
        %2180 = vrot.lane.b32.xlu0 %v2177, 96
        %v2181 = vpop.permute.xlu0 %2180
        %v2183 = vmul.f32 %v2178, %v2181
        %v2184 = vmul.f32 %v2167, 0.0
        %v2185 = vadd.f32 %v2183, %v2184
        %2187 = vrot.lane.b32.xlu0 %v2148, 96
        %v2188 = vpop.permute.xlu0 %2187
        %vm2190 = vcmask 253952
        %2191 = vst.msk [vmem:[#allocation2] sm:$0x1] %vm2190, %v2188
        %2193 = vrot.lane.b32.xlu0 %v2185, 32
        %v2194 = vpop.permute.xlu0 %2193
        %vm2196 = vcmask 523527
        %2197 = vst.msk [vmem:[#allocation2 + $0x8] sm:$0x80] %vm2196, %v2194
        %v2198 = vrot.slane %v2185, 7
        %2199 = vrot.lane.b32.xlu0 %v2198, 32
        %v2200 = vpop.permute.xlu0 %2199
        %v2202 = vsel %vm890, %v2188, %v2200
        %v2203 = vld [vmem:[%s18] sm:$0xff]
        %v2204 = vld [vmem:[%s18 + $0x8] sm:$0xff]
        %v2205 = vld [vmem:[%s18 + $0x10] sm:$0xff]
        %v2206 = vld [vmem:[%s18 + $0x18] sm:$0xff]
        %v2207 = vld [vmem:[%s18 + $0x20] sm:$0xff]
        %v2208 = vld [vmem:[%s18 + $0x28] sm:$0xff]
        %v2209 = vld [vmem:[%s18 + $0x30] sm:$0xff]
        %v2210 = vld [vmem:[%s18 + $0x38] sm:$0xff]
        %v2211 = vld [vmem:[%s18 + $0x40] sm:$0xff]
        %v2212 = vld [vmem:[%s18 + $0x48] sm:$0xff]
        %v2213 = vld [vmem:[%s18 + $0x50] sm:$0xff]
        %v2214 = vld [vmem:[%s18 + $0x58] sm:$0xff]
        %v2215 = vld [vmem:[%s18 + $0x60] sm:$0xff]
        %v2216 = vld [vmem:[%s18 + $0x68] sm:$0xff]
        %v2217 = vld [vmem:[%s18 + $0x70] sm:$0xff]
        %v2218 = vld [vmem:[%s18 + $0x78] sm:$0xff]
        %v2219 = vld [vmem:[%s19] sm:$0x3]
        %v2221 = vlaneseq
        %v2222 = vshrl.u32 %v2221, 7
        %v2223 = vsub.s32 0, %v2222
        %v2224 = vrot.slane %v2219, %v2223
        %v2225 = vlaneseq
        %v2226 = vshrl.u32 %v2225, 7
        %v2227 = vsub.s32 1, %v2226
        %v2228 = vrot.slane %v2219, %v2227
        %v2232 = vsel %vm752, %v2202, 0
        %2234 = vmatprep.subr.mxu0 %v2204
        %2235 = vmatpush1.msra.mxu0 %v2203
        %2236 = vmatprep.subr.mxu0 %v2206
        %2237 = vmatpush1.msra.mxu0 %v2205
        %2238 = vmatprep.subr.mxu0 %v2208
        %2239 = vmatpush1.msra.mxu0 %v2207
        %2240 = vmatprep.subr.mxu0 %v2210
        %2241 = vmatpush1.msra.mxu0 %v2209
        %2242 = vmatprep.subr.mxu0 %v2212
        %2243 = vmatpush1.msra.mxu0 %v2211
        %2244 = vmatprep.subr.mxu0 %v2214
        %2245 = vmatpush1.msra.mxu0 %v2213
        %2246 = vmatprep.subr.mxu0 %v2216
        %2247 = vmatpush1.msra.mxu0 %v2215
        %2248 = vmatprep.subr.mxu0 %v2218
        %2249 = vmatpush1.msra.mxu0 %v2217
        %2250 = vmatprep.subr.mxu0 0.0
        %2251 = vmatpush1.msra.mxu0 0.0
        %2252 = vmatprep.subr.mxu0 0.0
        %2253 = vmatpush1.msra.mxu0 0.0
        %2254 = vmatprep.subr.mxu0 0.0
        %2255 = vmatpush1.msra.mxu0 0.0
        %2256 = vmatprep.subr.mxu0 0.0
        %2257 = vmatpush1.msra.mxu0 0.0
        %2258 = vmatprep.subr.mxu0 0.0
        %2259 = vmatpush1.msra.mxu0 0.0
        %2260 = vmatprep.subr.mxu0 0.0
        %2261 = vmatpush1.msra.mxu0 0.0
        %2262 = vmatprep.subr.mxu0 0.0
        %2263 = vmatpush1.msra.mxu0 0.0
        %2264 = vmatprep.subr.mxu0 0.0
        %2265 = vmatpush1.msra.mxu0 0.0
        %2266 = vmatprep.subr.mxu0 0.0
        %2267 = vmatpush1.msra.mxu0 0.0
        %2268 = vmatprep.subr.mxu0 0.0
        %2269 = vmatpush1.msra.mxu0 0.0
        %2270 = vmatprep.subr.mxu0 0.0
        %2271 = vmatpush1.msra.mxu0 0.0
        %2272 = vmatprep.subr.mxu0 0.0
        %2273 = vmatpush1.msra.mxu0 0.0
        %2274 = vmatprep.subr.mxu0 0.0
        %2275 = vmatpush1.msra.mxu0 0.0
        %2276 = vmatprep.subr.mxu0 0.0
        %2277 = vmatpush1.msra.mxu0 0.0
        %2278 = vmatprep.subr.mxu0 0.0
        %2279 = vmatpush1.msra.mxu0 0.0
        %2280 = vmatprep.subr.mxu0 0.0
        %2281 = vmatpush1.msra.mxu0 0.0
        %2282 = vmatprep.subr.mxu0 0.0
        %2283 = vmatpush1.msra.mxu0 0.0
        %2284 = vmatprep.subr.mxu0 0.0
        %2285 = vmatpush1.msra.mxu0 0.0
        %2286 = vmatprep.subr.mxu0 0.0
        %2287 = vmatpush1.msra.mxu0 0.0
        %2288 = vmatprep.subr.mxu0 0.0
        %2289 = vmatpush1.msra.mxu0 0.0
        %2290 = vmatprep.subr.mxu0 0.0
        %2291 = vmatpush1.msra.mxu0 0.0
        %2292 = vmatprep.subr.mxu0 0.0
        %2293 = vmatpush1.msra.mxu0 0.0
        %2294 = vmatprep.subr.mxu0 0.0
        %2295 = vmatpush1.msra.mxu0 0.0
        %2296 = vmatprep.subr.mxu0 0.0
        %2297 = vmatpush1.msra.mxu0 0.0
        %2298 = vmatprep.mubr.f32.mxu0 0.0
        %2299 = vmatmul.mubr.f32.gmra.mrb[0].mxu0 %v2232
        %v2300 = vpop.f32.mrb[0].mxu0
        %v2301 = vadd.f32 %v2224, %v2300
        %v2302 = vpop.f32.mrb[0].mxu0
        %v2303 = vadd.f32 %v2228, %v2302
        %2304 = vdwg.mxu0
        %v2306 = vrot.slane %v2301, 7
        %v2308 = vadd.f32 %v2011, %v2306
        %v2309 = vxor.u32 %v2308, 2147483648
        %v2310 = vmul.f32 %v2309, 1.442695
        %v2311 = vpow.pop %v2310
        %v2312 = vadd.f32 %v2311, 1.0
        %v2313 = vrcp.pop %v2312
        %v2314 = vmul.f32 1.0, %v2313
        %2315 = vrot.lane.b32.xlu0 %v2306, 64
        %v2316 = vpop.permute.xlu0 %2315
        %v2318 = vmul.f32 %v2314, %v2316
        %2320 = vrot.lane.b32.xlu0 %v2318, 64
        %v2321 = vpop.permute.xlu0 %2320
        %v2323 = vadd.f32 %v2011, %v2321
        %v2324 = vtanh.pop %v2323
        %v2325 = vsub.f32 1.0, %v2314
        %2327 = vrot.lane.b32.xlu0 %v2324, 96
        %v2328 = vpop.permute.xlu0 %2327
        %v2330 = vmul.f32 %v2325, %v2328
        %v2331 = vrot.slane %v2202, 7
        %2332 = vrot.lane.b32.xlu0 %v2331, 32
        %v2333 = vpop.permute.xlu0 %2332
        %v2335 = vmul.f32 %v2314, %v2333
        %v2336 = vadd.f32 %v2330, %v2335
        %v2337 = vrot.slane %v2301, 2
        %v2339 = vadd.f32 %v2017, %v2337
        %v2340 = vxor.u32 %v2339, 2147483648
        %v2341 = vmul.f32 %v2340, 1.442695
        %v2342 = vpow.pop %v2341
        %v2343 = vadd.f32 %v2342, 1.0
        %v2344 = vrcp.pop %v2343
        %v2345 = vmul.f32 1.0, %v2344
        %v2347 = vrot.slane %v2303, 2
        %v2349 = vadd.f32 %v2019, %v2347
        %v2350 = vxor.u32 %v2349, 2147483648
        %v2351 = vmul.f32 %v2350, 1.442695
        %v2352 = vpow.pop %v2351
        %v2353 = vadd.f32 %v2352, 1.0
        %v2354 = vrcp.pop %v2353
        %v2355 = vmul.f32 1.0, %v2354
        %2356 = vrot.lane.b32.xlu0 %v2347, 64
        %v2357 = vpop.permute.xlu0 %2356
        %v2359 = vmul.f32 %v2345, %v2357
        %2361 = vrot.lane.b32.xlu0 %v2359, 64
        %v2362 = vpop.permute.xlu0 %2361
        %v2364 = vadd.f32 %v2019, %v2362
        %v2365 = vtanh.pop %v2364
        %v2366 = vsub.f32 1.0, %v2355
        %2368 = vrot.lane.b32.xlu0 %v2365, 96
        %v2369 = vpop.permute.xlu0 %2368
        %v2371 = vmul.f32 %v2366, %v2369
        %v2372 = vrot.slane %v2202, 2
        %2373 = vrot.lane.b32.xlu0 %v2372, 96
        %v2374 = vpop.permute.xlu0 %2373
        %v2376 = vmul.f32 %v2355, %v2374
        %v2377 = vadd.f32 %v2371, %v2376
        %2379 = vrot.lane.b32.xlu0 %v2336, 96
        %v2380 = vpop.permute.xlu0 %2379
        %vm2382 = vcmask 254977
        %2383 = vst.msk [vmem:[#allocation2] sm:$0x2] %vm2382, %v2380
        %2385 = vrot.lane.b32.xlu0 %v2377, 32
        %v2386 = vpop.permute.xlu0 %2385
        %vm2388 = vcmask 522502
        %2389 = vst.msk [vmem:[#allocation2 + $0x8] sm:$0x40] %vm2388, %v2386
        %v2390 = vrot.slane %v2377, 5
        %2391 = vrot.lane.b32.xlu0 %v2390, 32
        %v2392 = vpop.permute.xlu0 %2391
        %v2394 = vsel %vm890, %v2380, %v2392
        %v2395 = vld [vmem:[%s18] sm:$0xff]
        %v2396 = vld [vmem:[%s18 + $0x8] sm:$0xff]
        %v2397 = vld [vmem:[%s18 + $0x10] sm:$0xff]
        %v2398 = vld [vmem:[%s18 + $0x18] sm:$0xff]
        %v2399 = vld [vmem:[%s18 + $0x20] sm:$0xff]
        %v2400 = vld [vmem:[%s18 + $0x28] sm:$0xff]
        %v2401 = vld [vmem:[%s18 + $0x30] sm:$0xff]
        %v2402 = vld [vmem:[%s18 + $0x38] sm:$0xff]
        %v2403 = vld [vmem:[%s18 + $0x40] sm:$0xff]
        %v2404 = vld [vmem:[%s18 + $0x48] sm:$0xff]
        %v2405 = vld [vmem:[%s18 + $0x50] sm:$0xff]
        %v2406 = vld [vmem:[%s18 + $0x58] sm:$0xff]
        %v2407 = vld [vmem:[%s18 + $0x60] sm:$0xff]
        %v2408 = vld [vmem:[%s18 + $0x68] sm:$0xff]
        %v2409 = vld [vmem:[%s18 + $0x70] sm:$0xff]
        %v2410 = vld [vmem:[%s18 + $0x78] sm:$0xff]
        %v2411 = vld [vmem:[%s19] sm:$0x3]
        %v2413 = vrot.slane %v2394, 1
        %v2415 = vlaneseq
        %v2416 = vshrl.u32 %v2415, 7
        %v2417 = vsub.s32 0, %v2416
        %v2418 = vrot.slane %v2411, %v2417
        %v2419 = vlaneseq
        %v2420 = vshrl.u32 %v2419, 7
        %v2421 = vsub.s32 1, %v2420
        %v2422 = vrot.slane %v2411, %v2421
        %v2425 = vsel %vm752, %v2413, 0
        %2427 = vmatprep.subr.mxu0 %v2396
        %2428 = vmatpush1.msra.mxu0 %v2395
        %2429 = vmatprep.subr.mxu0 %v2398
        %2430 = vmatpush1.msra.mxu0 %v2397
        %2431 = vmatprep.subr.mxu0 %v2400
        %2432 = vmatpush1.msra.mxu0 %v2399
        %2433 = vmatprep.subr.mxu0 %v2402
        %2434 = vmatpush1.msra.mxu0 %v2401
        %2435 = vmatprep.subr.mxu0 %v2404
        %2436 = vmatpush1.msra.mxu0 %v2403
        %2437 = vmatprep.subr.mxu0 %v2406
        %2438 = vmatpush1.msra.mxu0 %v2405
        %2439 = vmatprep.subr.mxu0 %v2408
        %2440 = vmatpush1.msra.mxu0 %v2407
        %2441 = vmatprep.subr.mxu0 %v2410
        %2442 = vmatpush1.msra.mxu0 %v2409
        %2443 = vmatprep.subr.mxu0 0.0
        %2444 = vmatpush1.msra.mxu0 0.0
        %2445 = vmatprep.subr.mxu0 0.0
        %2446 = vmatpush1.msra.mxu0 0.0
        %2447 = vmatprep.subr.mxu0 0.0
        %2448 = vmatpush1.msra.mxu0 0.0
        %2449 = vmatprep.subr.mxu0 0.0
        %2450 = vmatpush1.msra.mxu0 0.0
        %2451 = vmatprep.subr.mxu0 0.0
        %2452 = vmatpush1.msra.mxu0 0.0
        %2453 = vmatprep.subr.mxu0 0.0
        %2454 = vmatpush1.msra.mxu0 0.0
        %2455 = vmatprep.subr.mxu0 0.0
        %2456 = vmatpush1.msra.mxu0 0.0
        %2457 = vmatprep.subr.mxu0 0.0
        %2458 = vmatpush1.msra.mxu0 0.0
        %2459 = vmatprep.subr.mxu0 0.0
        %2460 = vmatpush1.msra.mxu0 0.0
        %2461 = vmatprep.subr.mxu0 0.0
        %2462 = vmatpush1.msra.mxu0 0.0
        %2463 = vmatprep.subr.mxu0 0.0
        %2464 = vmatpush1.msra.mxu0 0.0
        %2465 = vmatprep.subr.mxu0 0.0
        %2466 = vmatpush1.msra.mxu0 0.0
        %2467 = vmatprep.subr.mxu0 0.0
        %2468 = vmatpush1.msra.mxu0 0.0
        %2469 = vmatprep.subr.mxu0 0.0
        %2470 = vmatpush1.msra.mxu0 0.0
        %2471 = vmatprep.subr.mxu0 0.0
        %2472 = vmatpush1.msra.mxu0 0.0
        %2473 = vmatprep.subr.mxu0 0.0
        %2474 = vmatpush1.msra.mxu0 0.0
        %2475 = vmatprep.subr.mxu0 0.0
        %2476 = vmatpush1.msra.mxu0 0.0
        %2477 = vmatprep.subr.mxu0 0.0
        %2478 = vmatpush1.msra.mxu0 0.0
        %2479 = vmatprep.subr.mxu0 0.0
        %2480 = vmatpush1.msra.mxu0 0.0
        %2481 = vmatprep.subr.mxu0 0.0
        %2482 = vmatpush1.msra.mxu0 0.0
        %2483 = vmatprep.subr.mxu0 0.0
        %2484 = vmatpush1.msra.mxu0 0.0
        %2485 = vmatprep.subr.mxu0 0.0
        %2486 = vmatpush1.msra.mxu0 0.0
        %2487 = vmatprep.subr.mxu0 0.0
        %2488 = vmatpush1.msra.mxu0 0.0
        %2489 = vmatprep.subr.mxu0 0.0
        %2490 = vmatpush1.msra.mxu0 0.0
        %2491 = vmatprep.mubr.f32.mxu0 0.0
        %2492 = vmatmul.mubr.f32.gmra.mrb[0].mxu0 %v2425
        %v2493 = vpop.f32.mrb[0].mxu0
        %v2494 = vadd.f32 %v2418, %v2493
        %v2495 = vpop.f32.mrb[0].mxu0
        %v2496 = vadd.f32 %v2422, %v2495
        %2497 = vdwg.mxu0
        %v2499 = vrot.slane %v2494, 6
        %v2501 = vadd.f32 %v2011, %v2499
        %v2502 = vxor.u32 %v2501, 2147483648
        %v2503 = vmul.f32 %v2502, 1.442695
        %v2504 = vpow.pop %v2503
        %v2505 = vadd.f32 %v2504, 1.0
        %v2506 = vrcp.pop %v2505
        %v2507 = vmul.f32 1.0, %v2506
        %2508 = vrot.lane.b32.xlu0 %v2499, 64
        %v2509 = vpop.permute.xlu0 %2508
        %v2511 = vmul.f32 %v2507, %v2509
        %2513 = vrot.lane.b32.xlu0 %v2511, 64
        %v2514 = vpop.permute.xlu0 %2513
        %v2516 = vadd.f32 %v2011, %v2514
        %v2517 = vtanh.pop %v2516
        %v2518 = vsub.f32 1.0, %v2507
        %2520 = vrot.lane.b32.xlu0 %v2517, 96
        %v2521 = vpop.permute.xlu0 %2520
        %v2523 = vmul.f32 %v2518, %v2521
        %v2524 = vrot.slane %v2394, 7
        %2525 = vrot.lane.b32.xlu0 %v2524, 32
        %v2526 = vpop.permute.xlu0 %2525
        %v2528 = vmul.f32 %v2507, %v2526
        %v2529 = vadd.f32 %v2523, %v2528
        %v2530 = vrot.slane %v2494, 3
        %v2532 = vadd.f32 %v2017, %v2530
        %v2533 = vxor.u32 %v2532, 2147483648
        %v2534 = vmul.f32 %v2533, 1.442695
        %v2535 = vpow.pop %v2534
        %v2536 = vadd.f32 %v2535, 1.0
        %v2537 = vrcp.pop %v2536
        %v2538 = vmul.f32 1.0, %v2537
        %v2540 = vrot.slane %v2496, 3
        %v2542 = vadd.f32 %v2019, %v2540
        %v2543 = vxor.u32 %v2542, 2147483648
        %v2544 = vmul.f32 %v2543, 1.442695
        %v2545 = vpow.pop %v2544
        %v2546 = vadd.f32 %v2545, 1.0
        %v2547 = vrcp.pop %v2546
        %v2548 = vmul.f32 1.0, %v2547
        %2549 = vrot.lane.b32.xlu0 %v2540, 64
        %v2550 = vpop.permute.xlu0 %2549
        %v2552 = vmul.f32 %v2538, %v2550
        %2554 = vrot.lane.b32.xlu0 %v2552, 64
        %v2555 = vpop.permute.xlu0 %2554
        %v2557 = vadd.f32 %v2019, %v2555
        %v2558 = vtanh.pop %v2557
        %v2559 = vsub.f32 1.0, %v2548
        %2561 = vrot.lane.b32.xlu0 %v2558, 96
        %v2562 = vpop.permute.xlu0 %2561
        %v2564 = vmul.f32 %v2559, %v2562
        %v2565 = vrot.slane %v2394, 4
        %2566 = vrot.lane.b32.xlu0 %v2565, 96
        %v2567 = vpop.permute.xlu0 %2566
        %v2569 = vmul.f32 %v2548, %v2567
        %v2570 = vadd.f32 %v2564, %v2569
        %2572 = vrot.lane.b32.xlu0 %v2529, 96
        %v2573 = vpop.permute.xlu0 %2572
        %vm2575 = vcmask 256002
        %2576 = vst.msk [vmem:[#allocation2] sm:$0x4] %vm2575, %v2573
        %2578 = vrot.lane.b32.xlu0 %v2570, 32
        %v2579 = vpop.permute.xlu0 %2578
        %vm2581 = vcmask 521477
        %2582 = vst.msk [vmem:[#allocation2 + $0x8] sm:$0x20] %vm2581, %v2579
        %v2583 = vrot.slane %v2570, 3
        %2584 = vrot.lane.b32.xlu0 %v2583, 32
        %v2585 = vpop.permute.xlu0 %2584
        %v2587 = vsel %vm890, %v2573, %v2585
        %v2588 = vld [vmem:[%s18] sm:$0xff]
        %v2589 = vld [vmem:[%s18 + $0x8] sm:$0xff]
        %v2590 = vld [vmem:[%s18 + $0x10] sm:$0xff]
        %v2591 = vld [vmem:[%s18 + $0x18] sm:$0xff]
        %v2592 = vld [vmem:[%s18 + $0x20] sm:$0xff]
        %v2593 = vld [vmem:[%s18 + $0x28] sm:$0xff]
        %v2594 = vld [vmem:[%s18 + $0x30] sm:$0xff]
        %v2595 = vld [vmem:[%s18 + $0x38] sm:$0xff]
        %v2596 = vld [vmem:[%s18 + $0x40] sm:$0xff]
        %v2597 = vld [vmem:[%s18 + $0x48] sm:$0xff]
        %v2598 = vld [vmem:[%s18 + $0x50] sm:$0xff]
        %v2599 = vld [vmem:[%s18 + $0x58] sm:$0xff]
        %v2600 = vld [vmem:[%s18 + $0x60] sm:$0xff]
        %v2601 = vld [vmem:[%s18 + $0x68] sm:$0xff]
        %v2602 = vld [vmem:[%s18 + $0x70] sm:$0xff]
        %v2603 = vld [vmem:[%s18 + $0x78] sm:$0xff]
        %v2604 = vld [vmem:[%s19] sm:$0x3]
        %v2606 = vrot.slane %v2587, 2
        %v2608 = vlaneseq
        %v2609 = vshrl.u32 %v2608, 7
        %v2610 = vsub.s32 0, %v2609
        %v2611 = vrot.slane %v2604, %v2610
        %v2612 = vlaneseq
        %v2613 = vshrl.u32 %v2612, 7
        %v2614 = vsub.s32 1, %v2613
        %v2615 = vrot.slane %v2604, %v2614
        %v2618 = vsel %vm752, %v2606, 0
        %2620 = vmatprep.subr.mxu0 %v2589
        %2621 = vmatpush1.msra.mxu0 %v2588
        %2622 = vmatprep.subr.mxu0 %v2591
        %2623 = vmatpush1.msra.mxu0 %v2590
        %2624 = vmatprep.subr.mxu0 %v2593
        %2625 = vmatpush1.msra.mxu0 %v2592
        %2626 = vmatprep.subr.mxu0 %v2595
        %2627 = vmatpush1.msra.mxu0 %v2594
        %2628 = vmatprep.subr.mxu0 %v2597
        %2629 = vmatpush1.msra.mxu0 %v2596
        %2630 = vmatprep.subr.mxu0 %v2599
        %2631 = vmatpush1.msra.mxu0 %v2598
        %2632 = vmatprep.subr.mxu0 %v2601
        %2633 = vmatpush1.msra.mxu0 %v2600
        %2634 = vmatprep.subr.mxu0 %v2603
        %2635 = vmatpush1.msra.mxu0 %v2602
        %2636 = vmatprep.subr.mxu0 0.0
        %2637 = vmatpush1.msra.mxu0 0.0
        %2638 = vmatprep.subr.mxu0 0.0
        %2639 = vmatpush1.msra.mxu0 0.0
        %2640 = vmatprep.subr.mxu0 0.0
        %2641 = vmatpush1.msra.mxu0 0.0
        %2642 = vmatprep.subr.mxu0 0.0
        %2643 = vmatpush1.msra.mxu0 0.0
        %2644 = vmatprep.subr.mxu0 0.0
        %2645 = vmatpush1.msra.mxu0 0.0
        %2646 = vmatprep.subr.mxu0 0.0
        %2647 = vmatpush1.msra.mxu0 0.0
        %2648 = vmatprep.subr.mxu0 0.0
        %2649 = vmatpush1.msra.mxu0 0.0
        %2650 = vmatprep.subr.mxu0 0.0
        %2651 = vmatpush1.msra.mxu0 0.0
        %2652 = vmatprep.subr.mxu0 0.0
        %2653 = vmatpush1.msra.mxu0 0.0
        %2654 = vmatprep.subr.mxu0 0.0
        %2655 = vmatpush1.msra.mxu0 0.0
        %2656 = vmatprep.subr.mxu0 0.0
        %2657 = vmatpush1.msra.mxu0 0.0
        %2658 = vmatprep.subr.mxu0 0.0
        %2659 = vmatpush1.msra.mxu0 0.0
        %2660 = vmatprep.subr.mxu0 0.0
        %2661 = vmatpush1.msra.mxu0 0.0
        %2662 = vmatprep.subr.mxu0 0.0
        %2663 = vmatpush1.msra.mxu0 0.0
        %2664 = vmatprep.subr.mxu0 0.0
        %2665 = vmatpush1.msra.mxu0 0.0
        %2666 = vmatprep.subr.mxu0 0.0
        %2667 = vmatpush1.msra.mxu0 0.0
        %2668 = vmatprep.subr.mxu0 0.0
        %2669 = vmatpush1.msra.mxu0 0.0
        %2670 = vmatprep.subr.mxu0 0.0
        %2671 = vmatpush1.msra.mxu0 0.0
        %2672 = vmatprep.subr.mxu0 0.0
        %2673 = vmatpush1.msra.mxu0 0.0
        %2674 = vmatprep.subr.mxu0 0.0
        %2675 = vmatpush1.msra.mxu0 0.0
        %2676 = vmatprep.subr.mxu0 0.0
        %2677 = vmatpush1.msra.mxu0 0.0
        %2678 = vmatprep.subr.mxu0 0.0
        %2679 = vmatpush1.msra.mxu0 0.0
        %2680 = vmatprep.subr.mxu0 0.0
        %2681 = vmatpush1.msra.mxu0 0.0
        %2682 = vmatprep.subr.mxu0 0.0
        %2683 = vmatpush1.msra.mxu0 0.0
        %2684 = vmatprep.mubr.f32.mxu0 0.0
        %2685 = vmatmul.mubr.f32.gmra.mrb[0].mxu0 %v2618
        %v2686 = vpop.f32.mrb[0].mxu0
        %v2687 = vadd.f32 %v2611, %v2686
        %v2688 = vpop.f32.mrb[0].mxu0
        %v2689 = vadd.f32 %v2615, %v2688
        %2690 = vdwg.mxu0
        %v2692 = vrot.slane %v2687, 5
        %v2694 = vadd.f32 %v2011, %v2692
        %v2695 = vxor.u32 %v2694, 2147483648
        %v2696 = vmul.f32 %v2695, 1.442695
        %v2697 = vpow.pop %v2696
        %v2698 = vadd.f32 %v2697, 1.0
        %v2699 = vrcp.pop %v2698
        %v2700 = vmul.f32 1.0, %v2699
        %2701 = vrot.lane.b32.xlu0 %v2692, 64
        %v2702 = vpop.permute.xlu0 %2701
        %v2704 = vmul.f32 %v2700, %v2702
        %2706 = vrot.lane.b32.xlu0 %v2704, 64
        %v2707 = vpop.permute.xlu0 %2706
        %v2709 = vadd.f32 %v2011, %v2707
        %v2710 = vtanh.pop %v2709
        %v2711 = vsub.f32 1.0, %v2700
        %2713 = vrot.lane.b32.xlu0 %v2710, 96
        %v2714 = vpop.permute.xlu0 %2713
        %v2716 = vmul.f32 %v2711, %v2714
        %v2717 = vrot.slane %v2587, 7
        %2718 = vrot.lane.b32.xlu0 %v2717, 32
        %v2719 = vpop.permute.xlu0 %2718
        %v2721 = vmul.f32 %v2700, %v2719
        %v2722 = vadd.f32 %v2716, %v2721
        %v2723 = vrot.slane %v2687, 4
        %v2725 = vadd.f32 %v2017, %v2723
        %v2726 = vxor.u32 %v2725, 2147483648
        %v2727 = vmul.f32 %v2726, 1.442695
        %v2728 = vpow.pop %v2727
        %v2729 = vadd.f32 %v2728, 1.0
        %v2730 = vrcp.pop %v2729
        %v2731 = vmul.f32 1.0, %v2730
        %v2733 = vrot.slane %v2689, 4
        %v2735 = vadd.f32 %v2019, %v2733
        %v2736 = vxor.u32 %v2735, 2147483648
        %v2737 = vmul.f32 %v2736, 1.442695
        %v2738 = vpow.pop %v2737
        %v2739 = vadd.f32 %v2738, 1.0
        %v2740 = vrcp.pop %v2739
        %v2741 = vmul.f32 1.0, %v2740
        %2742 = vrot.lane.b32.xlu0 %v2733, 64
        %v2743 = vpop.permute.xlu0 %2742
        %v2745 = vmul.f32 %v2731, %v2743
        %2747 = vrot.lane.b32.xlu0 %v2745, 64
        %v2748 = vpop.permute.xlu0 %2747
        %v2750 = vadd.f32 %v2019, %v2748
        %v2751 = vtanh.pop %v2750
        %v2752 = vsub.f32 1.0, %v2741
        %2754 = vrot.lane.b32.xlu0 %v2751, 96
        %v2755 = vpop.permute.xlu0 %2754
        %v2757 = vmul.f32 %v2752, %v2755
        %v2758 = vrot.slane %v2587, 6
        %2759 = vrot.lane.b32.xlu0 %v2758, 96
        %v2760 = vpop.permute.xlu0 %2759
        %v2762 = vmul.f32 %v2741, %v2760
        %v2763 = vadd.f32 %v2757, %v2762
        %2765 = vrot.lane.b32.xlu0 %v2722, 96
        %v2766 = vpop.permute.xlu0 %2765
        %vm2768 = vcmask 257027
        %2769 = vst.msk [vmem:[#allocation2] sm:$0x8] %vm2768, %v2766
        %2771 = vrot.lane.b32.xlu0 %v2763, 32
        %v2772 = vpop.permute.xlu0 %2771
        %vm2774 = vcmask 520452
        %2775 = vst.msk [vmem:[#allocation2 + $0x8] sm:$0x10] %vm2774, %v2772
        %v2776 = vrot.slane %v2763, 1
        %2777 = vrot.lane.b32.xlu0 %v2776, 32
        %v2778 = vpop.permute.xlu0 %2777
        %v2780 = vsel %vm890, %v2766, %v2778
        %v2781 = vld [vmem:[%s18] sm:$0xff]
        %v2782 = vld [vmem:[%s18 + $0x8] sm:$0xff]
        %v2783 = vld [vmem:[%s18 + $0x10] sm:$0xff]
        %v2784 = vld [vmem:[%s18 + $0x18] sm:$0xff]
        %v2785 = vld [vmem:[%s18 + $0x20] sm:$0xff]
        %v2786 = vld [vmem:[%s18 + $0x28] sm:$0xff]
        %v2787 = vld [vmem:[%s18 + $0x30] sm:$0xff]
        %v2788 = vld [vmem:[%s18 + $0x38] sm:$0xff]
        %v2789 = vld [vmem:[%s18 + $0x40] sm:$0xff]
        %v2790 = vld [vmem:[%s18 + $0x48] sm:$0xff]
        %v2791 = vld [vmem:[%s18 + $0x50] sm:$0xff]
        %v2792 = vld [vmem:[%s18 + $0x58] sm:$0xff]
        %v2793 = vld [vmem:[%s18 + $0x60] sm:$0xff]
        %v2794 = vld [vmem:[%s18 + $0x68] sm:$0xff]
        %v2795 = vld [vmem:[%s18 + $0x70] sm:$0xff]
        %v2796 = vld [vmem:[%s18 + $0x78] sm:$0xff]
        %v2797 = vld [vmem:[%s19] sm:$0x3]
        %v2799 = vrot.slane %v2780, 3
        %v2801 = vlaneseq
        %v2802 = vshrl.u32 %v2801, 7
        %v2803 = vsub.s32 0, %v2802
        %v2804 = vrot.slane %v2797, %v2803
        %v2805 = vlaneseq
        %v2806 = vshrl.u32 %v2805, 7
        %v2807 = vsub.s32 1, %v2806
        %v2808 = vrot.slane %v2797, %v2807
        %v2811 = vsel %vm752, %v2799, 0
        %2813 = vmatprep.subr.mxu0 %v2782
        %2814 = vmatpush1.msra.mxu0 %v2781
        %2815 = vmatprep.subr.mxu0 %v2784
        %2816 = vmatpush1.msra.mxu0 %v2783
        %2817 = vmatprep.subr.mxu0 %v2786
        %2818 = vmatpush1.msra.mxu0 %v2785
        %2819 = vmatprep.subr.mxu0 %v2788
        %2820 = vmatpush1.msra.mxu0 %v2787
        %2821 = vmatprep.subr.mxu0 %v2790
        %2822 = vmatpush1.msra.mxu0 %v2789
        %2823 = vmatprep.subr.mxu0 %v2792
        %2824 = vmatpush1.msra.mxu0 %v2791
        %2825 = vmatprep.subr.mxu0 %v2794
        %2826 = vmatpush1.msra.mxu0 %v2793
        %2827 = vmatprep.subr.mxu0 %v2796
        %2828 = vmatpush1.msra.mxu0 %v2795
        %2829 = vmatprep.subr.mxu0 0.0
        %2830 = vmatpush1.msra.mxu0 0.0
        %2831 = vmatprep.subr.mxu0 0.0
        %2832 = vmatpush1.msra.mxu0 0.0
        %2833 = vmatprep.subr.mxu0 0.0
        %2834 = vmatpush1.msra.mxu0 0.0
        %2835 = vmatprep.subr.mxu0 0.0
        %2836 = vmatpush1.msra.mxu0 0.0
        %2837 = vmatprep.subr.mxu0 0.0
        %2838 = vmatpush1.msra.mxu0 0.0
        %2839 = vmatprep.subr.mxu0 0.0
        %2840 = vmatpush1.msra.mxu0 0.0
        %2841 = vmatprep.subr.mxu0 0.0
        %2842 = vmatpush1.msra.mxu0 0.0
        %2843 = vmatprep.subr.mxu0 0.0
        %2844 = vmatpush1.msra.mxu0 0.0
        %2845 = vmatprep.subr.mxu0 0.0
        %2846 = vmatpush1.msra.mxu0 0.0
        %2847 = vmatprep.subr.mxu0 0.0
        %2848 = vmatpush1.msra.mxu0 0.0
        %2849 = vmatprep.subr.mxu0 0.0
        %2850 = vmatpush1.msra.mxu0 0.0
        %2851 = vmatprep.subr.mxu0 0.0
        %2852 = vmatpush1.msra.mxu0 0.0
        %2853 = vmatprep.subr.mxu0 0.0
        %2854 = vmatpush1.msra.mxu0 0.0
        %2855 = vmatprep.subr.mxu0 0.0
        %2856 = vmatpush1.msra.mxu0 0.0
        %2857 = vmatprep.subr.mxu0 0.0
        %2858 = vmatpush1.msra.mxu0 0.0
        %2859 = vmatprep.subr.mxu0 0.0
        %2860 = vmatpush1.msra.mxu0 0.0
        %2861 = vmatprep.subr.mxu0 0.0
        %2862 = vmatpush1.msra.mxu0 0.0
        %2863 = vmatprep.subr.mxu0 0.0
        %2864 = vmatpush1.msra.mxu0 0.0
        %2865 = vmatprep.subr.mxu0 0.0
        %2866 = vmatpush1.msra.mxu0 0.0
        %2867 = vmatprep.subr.mxu0 0.0
        %2868 = vmatpush1.msra.mxu0 0.0
        %2869 = vmatprep.subr.mxu0 0.0
        %2870 = vmatpush1.msra.mxu0 0.0
        %2871 = vmatprep.subr.mxu0 0.0
        %2872 = vmatpush1.msra.mxu0 0.0
        %2873 = vmatprep.subr.mxu0 0.0
        %2874 = vmatpush1.msra.mxu0 0.0
        %2875 = vmatprep.subr.mxu0 0.0
        %2876 = vmatpush1.msra.mxu0 0.0
        %2877 = vmatprep.mubr.f32.mxu0 0.0
        %2878 = vmatmul.mubr.f32.gmra.mrb[0].mxu0 %v2811
        %v2879 = vpop.f32.mrb[0].mxu0
        %v2880 = vadd.f32 %v2804, %v2879
        %v2881 = vpop.f32.mrb[0].mxu0
        %v2882 = vadd.f32 %v2808, %v2881
        %2883 = vdwg.mxu0
        %v2885 = vrot.slane %v2880, 4
        %v2887 = vadd.f32 %v2011, %v2885
        %v2888 = vxor.u32 %v2887, 2147483648
        %v2889 = vmul.f32 %v2888, 1.442695
        %v2890 = vpow.pop %v2889
        %v2891 = vadd.f32 %v2890, 1.0
        %v2892 = vrcp.pop %v2891
        %v2893 = vmul.f32 1.0, %v2892
        %2894 = vrot.lane.b32.xlu0 %v2885, 64
        %v2895 = vpop.permute.xlu0 %2894
        %v2897 = vmul.f32 %v2893, %v2895
        %2899 = vrot.lane.b32.xlu0 %v2897, 64
        %v2900 = vpop.permute.xlu0 %2899
        %v2902 = vadd.f32 %v2011, %v2900
        %v2903 = vtanh.pop %v2902
        %v2904 = vsub.f32 1.0, %v2893
        %2906 = vrot.lane.b32.xlu0 %v2903, 96
        %v2907 = vpop.permute.xlu0 %2906
        %v2909 = vmul.f32 %v2904, %v2907
        %v2910 = vrot.slane %v2780, 7
        %2911 = vrot.lane.b32.xlu0 %v2910, 32
        %v2912 = vpop.permute.xlu0 %2911
        %v2914 = vmul.f32 %v2893, %v2912
        %v2915 = vadd.f32 %v2909, %v2914
        %v2916 = vrot.slane %v2880, 5
        %v2918 = vadd.f32 %v2017, %v2916
        %v2919 = vxor.u32 %v2918, 2147483648
        %v2920 = vmul.f32 %v2919, 1.442695
        %v2921 = vpow.pop %v2920
        %v2922 = vadd.f32 %v2921, 1.0
        %v2923 = vrcp.pop %v2922
        %v2924 = vmul.f32 1.0, %v2923
        %v2926 = vrot.slane %v2882, 5
        %v2928 = vadd.f32 %v2019, %v2926
        %v2929 = vxor.u32 %v2928, 2147483648
        %v2930 = vmul.f32 %v2929, 1.442695
        %v2931 = vpow.pop %v2930
        %v2932 = vadd.f32 %v2931, 1.0
        %v2933 = vrcp.pop %v2932
        %v2934 = vmul.f32 1.0, %v2933
        %2935 = vrot.lane.b32.xlu0 %v2926, 64
        %v2936 = vpop.permute.xlu0 %2935
        %v2938 = vmul.f32 %v2924, %v2936
        %2940 = vrot.lane.b32.xlu0 %v2938, 64
        %v2941 = vpop.permute.xlu0 %2940
        %v2943 = vadd.f32 %v2019, %v2941
        %v2944 = vtanh.pop %v2943
        %v2945 = vsub.f32 1.0, %v2934
        %2947 = vrot.lane.b32.xlu0 %v2944, 96
        %v2948 = vpop.permute.xlu0 %2947
        %v2950 = vmul.f32 %v2945, %v2948
        %2951 = vrot.lane.b32.xlu0 %v2780, 96
        %v2952 = vpop.permute.xlu0 %2951
        %v2954 = vmul.f32 %v2934, %v2952
        %v2955 = vadd.f32 %v2950, %v2954
        %2957 = vrot.lane.b32.xlu0 %v2915, 96
        %v2958 = vpop.permute.xlu0 %2957
        %vm2960 = vcmask 258052
        %2961 = vst.msk [vmem:[#allocation2] sm:$0x10] %vm2960, %v2958
        %2963 = vrot.lane.b32.xlu0 %v2955, 32
        %v2964 = vpop.permute.xlu0 %2963
        %vm2966 = vcmask 519427
        %2967 = vst.msk [vmem:[#allocation2 + $0x8] sm:$0x8] %vm2966, %v2964
        %v2968 = vrot.slane %v2955, 7
        %2969 = vrot.lane.b32.xlu0 %v2968, 32
        %v2970 = vpop.permute.xlu0 %2969
        %v2972 = vsel %vm890, %v2958, %v2970
        %v2973 = vld [vmem:[%s18] sm:$0xff]
        %v2974 = vld [vmem:[%s18 + $0x8] sm:$0xff]
        %v2975 = vld [vmem:[%s18 + $0x10] sm:$0xff]
        %v2976 = vld [vmem:[%s18 + $0x18] sm:$0xff]
        %v2977 = vld [vmem:[%s18 + $0x20] sm:$0xff]
        %v2978 = vld [vmem:[%s18 + $0x28] sm:$0xff]
        %v2979 = vld [vmem:[%s18 + $0x30] sm:$0xff]
        %v2980 = vld [vmem:[%s18 + $0x38] sm:$0xff]
        %v2981 = vld [vmem:[%s18 + $0x40] sm:$0xff]
        %v2982 = vld [vmem:[%s18 + $0x48] sm:$0xff]
        %v2983 = vld [vmem:[%s18 + $0x50] sm:$0xff]
        %v2984 = vld [vmem:[%s18 + $0x58] sm:$0xff]
        %v2985 = vld [vmem:[%s18 + $0x60] sm:$0xff]
        %v2986 = vld [vmem:[%s18 + $0x68] sm:$0xff]
        %v2987 = vld [vmem:[%s18 + $0x70] sm:$0xff]
        %v2988 = vld [vmem:[%s18 + $0x78] sm:$0xff]
        %v2989 = vld [vmem:[%s19] sm:$0x3]
        %v2991 = vrot.slane %v2972, 4
        %v2993 = vlaneseq
        %v2994 = vshrl.u32 %v2993, 7
        %v2995 = vsub.s32 0, %v2994
        %v2996 = vrot.slane %v2989, %v2995
        %v2997 = vlaneseq
        %v2998 = vshrl.u32 %v2997, 7
        %v2999 = vsub.s32 1, %v2998
        %v3000 = vrot.slane %v2989, %v2999
        %v3003 = vsel %vm752, %v2991, 0
        %3005 = vmatprep.subr.mxu0 %v2974
        %3006 = vmatpush1.msra.mxu0 %v2973
        %3007 = vmatprep.subr.mxu0 %v2976
        %3008 = vmatpush1.msra.mxu0 %v2975
        %3009 = vmatprep.subr.mxu0 %v2978
        %3010 = vmatpush1.msra.mxu0 %v2977
        %3011 = vmatprep.subr.mxu0 %v2980
        %3012 = vmatpush1.msra.mxu0 %v2979
        %3013 = vmatprep.subr.mxu0 %v2982
        %3014 = vmatpush1.msra.mxu0 %v2981
        %3015 = vmatprep.subr.mxu0 %v2984
        %3016 = vmatpush1.msra.mxu0 %v2983
        %3017 = vmatprep.subr.mxu0 %v2986
        %3018 = vmatpush1.msra.mxu0 %v2985
        %3019 = vmatprep.subr.mxu0 %v2988
        %3020 = vmatpush1.msra.mxu0 %v2987
        %3021 = vmatprep.subr.mxu0 0.0
        %3022 = vmatpush1.msra.mxu0 0.0
        %3023 = vmatprep.subr.mxu0 0.0
        %3024 = vmatpush1.msra.mxu0 0.0
        %3025 = vmatprep.subr.mxu0 0.0
        %3026 = vmatpush1.msra.mxu0 0.0
        %3027 = vmatprep.subr.mxu0 0.0
        %3028 = vmatpush1.msra.mxu0 0.0
        %3029 = vmatprep.subr.mxu0 0.0
        %3030 = vmatpush1.msra.mxu0 0.0
        %3031 = vmatprep.subr.mxu0 0.0
        %3032 = vmatpush1.msra.mxu0 0.0
        %3033 = vmatprep.subr.mxu0 0.0
        %3034 = vmatpush1.msra.mxu0 0.0
        %3035 = vmatprep.subr.mxu0 0.0
        %3036 = vmatpush1.msra.mxu0 0.0
        %3037 = vmatprep.subr.mxu0 0.0
        %3038 = vmatpush1.msra.mxu0 0.0
        %3039 = vmatprep.subr.mxu0 0.0
        %3040 = vmatpush1.msra.mxu0 0.0
        %3041 = vmatprep.subr.mxu0 0.0
        %3042 = vmatpush1.msra.mxu0 0.0
        %3043 = vmatprep.subr.mxu0 0.0
        %3044 = vmatpush1.msra.mxu0 0.0
        %3045 = vmatprep.subr.mxu0 0.0
        %3046 = vmatpush1.msra.mxu0 0.0
        %3047 = vmatprep.subr.mxu0 0.0
        %3048 = vmatpush1.msra.mxu0 0.0
        %3049 = vmatprep.subr.mxu0 0.0
        %3050 = vmatpush1.msra.mxu0 0.0
        %3051 = vmatprep.subr.mxu0 0.0
        %3052 = vmatpush1.msra.mxu0 0.0
        %3053 = vmatprep.subr.mxu0 0.0
        %3054 = vmatpush1.msra.mxu0 0.0
        %3055 = vmatprep.subr.mxu0 0.0
        %3056 = vmatpush1.msra.mxu0 0.0
        %3057 = vmatprep.subr.mxu0 0.0
        %3058 = vmatpush1.msra.mxu0 0.0
        %3059 = vmatprep.subr.mxu0 0.0
        %3060 = vmatpush1.msra.mxu0 0.0
        %3061 = vmatprep.subr.mxu0 0.0
        %3062 = vmatpush1.msra.mxu0 0.0
        %3063 = vmatprep.subr.mxu0 0.0
        %3064 = vmatpush1.msra.mxu0 0.0
        %3065 = vmatprep.subr.mxu0 0.0
        %3066 = vmatpush1.msra.mxu0 0.0
        %3067 = vmatprep.subr.mxu0 0.0
        %3068 = vmatpush1.msra.mxu0 0.0
        %3069 = vmatprep.mubr.f32.mxu0 0.0
        %3070 = vmatmul.mubr.f32.gmra.mrb[0].mxu0 %v3003
        %v3071 = vpop.f32.mrb[0].mxu0
        %v3072 = vadd.f32 %v2996, %v3071
        %v3073 = vpop.f32.mrb[0].mxu0
        %v3074 = vadd.f32 %v3000, %v3073
        %3075 = vdwg.mxu0
        %v3077 = vrot.slane %v3072, 3
        %v3079 = vadd.f32 %v2011, %v3077
        %v3080 = vxor.u32 %v3079, 2147483648
        %v3081 = vmul.f32 %v3080, 1.442695
        %v3082 = vpow.pop %v3081
        %v3083 = vadd.f32 %v3082, 1.0
        %v3084 = vrcp.pop %v3083
        %v3085 = vmul.f32 1.0, %v3084
        %3086 = vrot.lane.b32.xlu0 %v3077, 64
        %v3087 = vpop.permute.xlu0 %3086
        %v3089 = vmul.f32 %v3085, %v3087
        %3091 = vrot.lane.b32.xlu0 %v3089, 64
        %v3092 = vpop.permute.xlu0 %3091
        %v3094 = vadd.f32 %v2011, %v3092
        %v3095 = vtanh.pop %v3094
        %v3096 = vsub.f32 1.0, %v3085
        %3098 = vrot.lane.b32.xlu0 %v3095, 96
        %v3099 = vpop.permute.xlu0 %3098
        %v3101 = vmul.f32 %v3096, %v3099
        %v3102 = vrot.slane %v2972, 7
        %3103 = vrot.lane.b32.xlu0 %v3102, 32
        %v3104 = vpop.permute.xlu0 %3103
        %v3106 = vmul.f32 %v3085, %v3104
        %v3107 = vadd.f32 %v3101, %v3106
        %v3108 = vrot.slane %v3072, 6
        %v3110 = vadd.f32 %v2017, %v3108
        %v3111 = vxor.u32 %v3110, 2147483648
        %v3112 = vmul.f32 %v3111, 1.442695
        %v3113 = vpow.pop %v3112
        %v3114 = vadd.f32 %v3113, 1.0
        %v3115 = vrcp.pop %v3114
        %v3116 = vmul.f32 1.0, %v3115
        %v3118 = vrot.slane %v3074, 6
        %v3120 = vadd.f32 %v2019, %v3118
        %v3121 = vxor.u32 %v3120, 2147483648
        %v3122 = vmul.f32 %v3121, 1.442695
        %v3123 = vpow.pop %v3122
        %v3124 = vadd.f32 %v3123, 1.0
        %v3125 = vrcp.pop %v3124
        %v3126 = vmul.f32 1.0, %v3125
        %3127 = vrot.lane.b32.xlu0 %v3118, 64
        %v3128 = vpop.permute.xlu0 %3127
        %v3130 = vmul.f32 %v3116, %v3128
        %3132 = vrot.lane.b32.xlu0 %v3130, 64
        %v3133 = vpop.permute.xlu0 %3132
        %v3135 = vadd.f32 %v2019, %v3133
        %v3136 = vtanh.pop %v3135
        %v3137 = vsub.f32 1.0, %v3126
        %3139 = vrot.lane.b32.xlu0 %v3136, 96
        %v3140 = vpop.permute.xlu0 %3139
        %v3142 = vmul.f32 %v3137, %v3140
        %v3143 = vrot.slane %v2972, 2
        %3144 = vrot.lane.b32.xlu0 %v3143, 96
        %v3145 = vpop.permute.xlu0 %3144
        %v3147 = vmul.f32 %v3126, %v3145
        %v3148 = vadd.f32 %v3142, %v3147
        %3150 = vrot.lane.b32.xlu0 %v3107, 96
        %v3151 = vpop.permute.xlu0 %3150
        %vm3153 = vcmask 259077
        %3154 = vst.msk [vmem:[#allocation2] sm:$0x20] %vm3153, %v3151
        %3156 = vrot.lane.b32.xlu0 %v3148, 32
        %v3157 = vpop.permute.xlu0 %3156
        %vm3159 = vcmask 518402
        %3160 = vst.msk [vmem:[#allocation2 + $0x8] sm:$0x4] %vm3159, %v3157
        %v3161 = vrot.slane %v3148, 5
        %3162 = vrot.lane.b32.xlu0 %v3161, 32
        %v3163 = vpop.permute.xlu0 %3162
        %v3165 = vsel %vm890, %v3151, %v3163
        %v3166 = vld [vmem:[%s18] sm:$0xff]
        %v3167 = vld [vmem:[%s18 + $0x8] sm:$0xff]
        %v3168 = vld [vmem:[%s18 + $0x10] sm:$0xff]
        %v3169 = vld [vmem:[%s18 + $0x18] sm:$0xff]
        %v3170 = vld [vmem:[%s18 + $0x20] sm:$0xff]
        %v3171 = vld [vmem:[%s18 + $0x28] sm:$0xff]
        %v3172 = vld [vmem:[%s18 + $0x30] sm:$0xff]
        %v3173 = vld [vmem:[%s18 + $0x38] sm:$0xff]
        %v3174 = vld [vmem:[%s18 + $0x40] sm:$0xff]
        %v3175 = vld [vmem:[%s18 + $0x48] sm:$0xff]
        %v3176 = vld [vmem:[%s18 + $0x50] sm:$0xff]
        %v3177 = vld [vmem:[%s18 + $0x58] sm:$0xff]
        %v3178 = vld [vmem:[%s18 + $0x60] sm:$0xff]
        %v3179 = vld [vmem:[%s18 + $0x68] sm:$0xff]
        %v3180 = vld [vmem:[%s18 + $0x70] sm:$0xff]
        %v3181 = vld [vmem:[%s18 + $0x78] sm:$0xff]
        %v3182 = vld [vmem:[%s19] sm:$0x3]
        %v3184 = vrot.slane %v3165, 5
        %v3186 = vlaneseq
        %v3187 = vshrl.u32 %v3186, 7
        %v3188 = vsub.s32 0, %v3187
        %v3189 = vrot.slane %v3182, %v3188
        %v3190 = vlaneseq
        %v3191 = vshrl.u32 %v3190, 7
        %v3192 = vsub.s32 1, %v3191
        %v3193 = vrot.slane %v3182, %v3192
        %v3196 = vsel %vm752, %v3184, 0
        %3198 = vmatprep.subr.mxu0 %v3167
        %3199 = vmatpush1.msra.mxu0 %v3166
        %3200 = vmatprep.subr.mxu0 %v3169
        %3201 = vmatpush1.msra.mxu0 %v3168
        %3202 = vmatprep.subr.mxu0 %v3171
        %3203 = vmatpush1.msra.mxu0 %v3170
        %3204 = vmatprep.subr.mxu0 %v3173
        %3205 = vmatpush1.msra.mxu0 %v3172
        %3206 = vmatprep.subr.mxu0 %v3175
        %3207 = vmatpush1.msra.mxu0 %v3174
        %3208 = vmatprep.subr.mxu0 %v3177
        %3209 = vmatpush1.msra.mxu0 %v3176
        %3210 = vmatprep.subr.mxu0 %v3179
        %3211 = vmatpush1.msra.mxu0 %v3178
        %3212 = vmatprep.subr.mxu0 %v3181
        %3213 = vmatpush1.msra.mxu0 %v3180
        %3214 = vmatprep.subr.mxu0 0.0
        %3215 = vmatpush1.msra.mxu0 0.0
        %3216 = vmatprep.subr.mxu0 0.0
        %3217 = vmatpush1.msra.mxu0 0.0
        %3218 = vmatprep.subr.mxu0 0.0
        %3219 = vmatpush1.msra.mxu0 0.0
        %3220 = vmatprep.subr.mxu0 0.0
        %3221 = vmatpush1.msra.mxu0 0.0
        %3222 = vmatprep.subr.mxu0 0.0
        %3223 = vmatpush1.msra.mxu0 0.0
        %3224 = vmatprep.subr.mxu0 0.0
        %3225 = vmatpush1.msra.mxu0 0.0
        %3226 = vmatprep.subr.mxu0 0.0
        %3227 = vmatpush1.msra.mxu0 0.0
        %3228 = vmatprep.subr.mxu0 0.0
        %3229 = vmatpush1.msra.mxu0 0.0
        %3230 = vmatprep.subr.mxu0 0.0
        %3231 = vmatpush1.msra.mxu0 0.0
        %3232 = vmatprep.subr.mxu0 0.0
        %3233 = vmatpush1.msra.mxu0 0.0
        %3234 = vmatprep.subr.mxu0 0.0
        %3235 = vmatpush1.msra.mxu0 0.0
        %3236 = vmatprep.subr.mxu0 0.0
        %3237 = vmatpush1.msra.mxu0 0.0
        %3238 = vmatprep.subr.mxu0 0.0
        %3239 = vmatpush1.msra.mxu0 0.0
        %3240 = vmatprep.subr.mxu0 0.0
        %3241 = vmatpush1.msra.mxu0 0.0
        %3242 = vmatprep.subr.mxu0 0.0
        %3243 = vmatpush1.msra.mxu0 0.0
        %3244 = vmatprep.subr.mxu0 0.0
        %3245 = vmatpush1.msra.mxu0 0.0
        %3246 = vmatprep.subr.mxu0 0.0
        %3247 = vmatpush1.msra.mxu0 0.0
        %3248 = vmatprep.subr.mxu0 0.0
        %3249 = vmatpush1.msra.mxu0 0.0
        %3250 = vmatprep.subr.mxu0 0.0
        %3251 = vmatpush1.msra.mxu0 0.0
        %3252 = vmatprep.subr.mxu0 0.0
        %3253 = vmatpush1.msra.mxu0 0.0
        %3254 = vmatprep.subr.mxu0 0.0
        %3255 = vmatpush1.msra.mxu0 0.0
        %3256 = vmatprep.subr.mxu0 0.0
        %3257 = vmatpush1.msra.mxu0 0.0
        %3258 = vmatprep.subr.mxu0 0.0
        %3259 = vmatpush1.msra.mxu0 0.0
        %3260 = vmatprep.subr.mxu0 0.0
        %3261 = vmatpush1.msra.mxu0 0.0
        %3262 = vmatprep.mubr.f32.mxu0 0.0
        %3263 = vmatmul.mubr.f32.gmra.mrb[0].mxu0 %v3196
        %v3264 = vpop.f32.mrb[0].mxu0
        %v3265 = vadd.f32 %v3189, %v3264
        %v3266 = vpop.f32.mrb[0].mxu0
        %v3267 = vadd.f32 %v3193, %v3266
        %3268 = vdwg.mxu0
        %v3270 = vrot.slane %v3265, 2
        %v3272 = vadd.f32 %v2011, %v3270
        %v3273 = vxor.u32 %v3272, 2147483648
        %v3274 = vmul.f32 %v3273, 1.442695
        %v3275 = vpow.pop %v3274
        %v3276 = vadd.f32 %v3275, 1.0
        %v3277 = vrcp.pop %v3276
        %v3278 = vmul.f32 1.0, %v3277
        %3279 = vrot.lane.b32.xlu0 %v3270, 64
        %v3280 = vpop.permute.xlu0 %3279
        %v3282 = vmul.f32 %v3278, %v3280
        %3284 = vrot.lane.b32.xlu0 %v3282, 64
        %v3285 = vpop.permute.xlu0 %3284
        %v3287 = vadd.f32 %v2011, %v3285
        %v3288 = vtanh.pop %v3287
        %v3289 = vsub.f32 1.0, %v3278
        %3291 = vrot.lane.b32.xlu0 %v3288, 96
        %v3292 = vpop.permute.xlu0 %3291
        %v3294 = vmul.f32 %v3289, %v3292
        %v3295 = vrot.slane %v3165, 7
        %3296 = vrot.lane.b32.xlu0 %v3295, 32
        %v3297 = vpop.permute.xlu0 %3296
        %v3299 = vmul.f32 %v3278, %v3297
        %v3300 = vadd.f32 %v3294, %v3299
        %v3301 = vrot.slane %v3265, 7
        %v3303 = vadd.f32 %v2017, %v3301
        %v3304 = vxor.u32 %v3303, 2147483648
        %v3305 = vmul.f32 %v3304, 1.442695
        %v3306 = vpow.pop %v3305
        %v3307 = vadd.f32 %v3306, 1.0
        %v3308 = vrcp.pop %v3307
        %v3309 = vmul.f32 1.0, %v3308
        %v3311 = vrot.slane %v3267, 7
        %v3313 = vadd.f32 %v2019, %v3311
        %v3314 = vxor.u32 %v3313, 2147483648
        %v3315 = vmul.f32 %v3314, 1.442695
        %v3316 = vpow.pop %v3315
        %v3317 = vadd.f32 %v3316, 1.0
        %v3318 = vrcp.pop %v3317
        %v3319 = vmul.f32 1.0, %v3318
        %3320 = vrot.lane.b32.xlu0 %v3311, 64
        %v3321 = vpop.permute.xlu0 %3320
        %v3323 = vmul.f32 %v3309, %v3321
        %3325 = vrot.lane.b32.xlu0 %v3323, 64
        %v3326 = vpop.permute.xlu0 %3325
        %v3328 = vadd.f32 %v2019, %v3326
        %v3329 = vtanh.pop %v3328
        %v3330 = vsub.f32 1.0, %v3319
        %3332 = vrot.lane.b32.xlu0 %v3329, 96
        %v3333 = vpop.permute.xlu0 %3332
        %v3335 = vmul.f32 %v3330, %v3333
        %v3336 = vrot.slane %v3165, 4
        %3337 = vrot.lane.b32.xlu0 %v3336, 96
        %v3338 = vpop.permute.xlu0 %3337
        %v3340 = vmul.f32 %v3319, %v3338
        %v3341 = vadd.f32 %v3335, %v3340
        %3343 = vrot.lane.b32.xlu0 %v3300, 96
        %v3344 = vpop.permute.xlu0 %3343
        %vm3346 = vcmask 260102
        %3347 = vst.msk [vmem:[#allocation2] sm:$0x40] %vm3346, %v3344
        %3349 = vrot.lane.b32.xlu0 %v3341, 32
        %v3350 = vpop.permute.xlu0 %3349
        %vm3352 = vcmask 517377
        %3353 = vst.msk [vmem:[#allocation2 + $0x8] sm:$0x2] %vm3352, %v3350
        %v3354 = vrot.slane %v3341, 3
        %3355 = vrot.lane.b32.xlu0 %v3354, 32
        %v3356 = vpop.permute.xlu0 %3355
        %v3358 = vsel %vm890, %v3344, %v3356
        %v3359 = vld [vmem:[%s18] sm:$0xff]
        %v3360 = vld [vmem:[%s18 + $0x8] sm:$0xff]
        %v3361 = vld [vmem:[%s18 + $0x10] sm:$0xff]
        %v3362 = vld [vmem:[%s18 + $0x18] sm:$0xff]
        %v3363 = vld [vmem:[%s18 + $0x20] sm:$0xff]
        %v3364 = vld [vmem:[%s18 + $0x28] sm:$0xff]
        %v3365 = vld [vmem:[%s18 + $0x30] sm:$0xff]
        %v3366 = vld [vmem:[%s18 + $0x38] sm:$0xff]
        %v3367 = vld [vmem:[%s18 + $0x40] sm:$0xff]
        %v3368 = vld [vmem:[%s18 + $0x48] sm:$0xff]
        %v3369 = vld [vmem:[%s18 + $0x50] sm:$0xff]
        %v3370 = vld [vmem:[%s18 + $0x58] sm:$0xff]
        %v3371 = vld [vmem:[%s18 + $0x60] sm:$0xff]
        %v3372 = vld [vmem:[%s18 + $0x68] sm:$0xff]
        %v3373 = vld [vmem:[%s18 + $0x70] sm:$0xff]
        %v3374 = vld [vmem:[%s18 + $0x78] sm:$0xff]
        %v3375 = vld [vmem:[%s19] sm:$0x3]
        %v3377 = vrot.slane %v3358, 6
        %v3379 = vlaneseq
        %v3380 = vshrl.u32 %v3379, 7
        %v3381 = vsub.s32 0, %v3380
        %v3382 = vrot.slane %v3375, %v3381
        %v3383 = vlaneseq
        %v3384 = vshrl.u32 %v3383, 7
        %v3385 = vsub.s32 1, %v3384
        %v3386 = vrot.slane %v3375, %v3385
        %v3389 = vsel %vm752, %v3377, 0
        %3391 = vmatprep.subr.mxu0 %v3360
        %3392 = vmatpush1.msra.mxu0 %v3359
        %3393 = vmatprep.subr.mxu0 %v3362
        %3394 = vmatpush1.msra.mxu0 %v3361
        %3395 = vmatprep.subr.mxu0 %v3364
        %3396 = vmatpush1.msra.mxu0 %v3363
        %3397 = vmatprep.subr.mxu0 %v3366
        %3398 = vmatpush1.msra.mxu0 %v3365
        %3399 = vmatprep.subr.mxu0 %v3368
        %3400 = vmatpush1.msra.mxu0 %v3367
        %3401 = vmatprep.subr.mxu0 %v3370
        %3402 = vmatpush1.msra.mxu0 %v3369
        %3403 = vmatprep.subr.mxu0 %v3372
        %3404 = vmatpush1.msra.mxu0 %v3371
        %3405 = vmatprep.subr.mxu0 %v3374
        %3406 = vmatpush1.msra.mxu0 %v3373
        %3407 = vmatprep.subr.mxu0 0.0
        %3408 = vmatpush1.msra.mxu0 0.0
        %3409 = vmatprep.subr.mxu0 0.0
        %3410 = vmatpush1.msra.mxu0 0.0
        %3411 = vmatprep.subr.mxu0 0.0
        %3412 = vmatpush1.msra.mxu0 0.0
        %3413 = vmatprep.subr.mxu0 0.0
        %3414 = vmatpush1.msra.mxu0 0.0
        %3415 = vmatprep.subr.mxu0 0.0
        %3416 = vmatpush1.msra.mxu0 0.0
        %3417 = vmatprep.subr.mxu0 0.0
        %3418 = vmatpush1.msra.mxu0 0.0
        %3419 = vmatprep.subr.mxu0 0.0
        %3420 = vmatpush1.msra.mxu0 0.0
        %3421 = vmatprep.subr.mxu0 0.0
        %3422 = vmatpush1.msra.mxu0 0.0
        %3423 = vmatprep.subr.mxu0 0.0
        %3424 = vmatpush1.msra.mxu0 0.0
        %3425 = vmatprep.subr.mxu0 0.0
        %3426 = vmatpush1.msra.mxu0 0.0
        %3427 = vmatprep.subr.mxu0 0.0
        %3428 = vmatpush1.msra.mxu0 0.0
        %3429 = vmatprep.subr.mxu0 0.0
        %3430 = vmatpush1.msra.mxu0 0.0
        %3431 = vmatprep.subr.mxu0 0.0
        %3432 = vmatpush1.msra.mxu0 0.0
        %3433 = vmatprep.subr.mxu0 0.0
        %3434 = vmatpush1.msra.mxu0 0.0
        %3435 = vmatprep.subr.mxu0 0.0
        %3436 = vmatpush1.msra.mxu0 0.0
        %3437 = vmatprep.subr.mxu0 0.0
        %3438 = vmatpush1.msra.mxu0 0.0
        %3439 = vmatprep.subr.mxu0 0.0
        %3440 = vmatpush1.msra.mxu0 0.0
        %3441 = vmatprep.subr.mxu0 0.0
        %3442 = vmatpush1.msra.mxu0 0.0
        %3443 = vmatprep.subr.mxu0 0.0
        %3444 = vmatpush1.msra.mxu0 0.0
        %3445 = vmatprep.subr.mxu0 0.0
        %3446 = vmatpush1.msra.mxu0 0.0
        %3447 = vmatprep.subr.mxu0 0.0
        %3448 = vmatpush1.msra.mxu0 0.0
        %3449 = vmatprep.subr.mxu0 0.0
        %3450 = vmatpush1.msra.mxu0 0.0
        %3451 = vmatprep.subr.mxu0 0.0
        %3452 = vmatpush1.msra.mxu0 0.0
        %3453 = vmatprep.subr.mxu0 0.0
        %3454 = vmatpush1.msra.mxu0 0.0
        %3455 = vmatprep.mubr.f32.mxu0 0.0
        %3456 = vmatmul.mubr.f32.gmra.mrb[0].mxu0 %v3389
        %v3457 = vpop.f32.mrb[0].mxu0
        %v3458 = vadd.f32 %v3382, %v3457
        %v3459 = vpop.f32.mrb[0].mxu0
        %v3460 = vadd.f32 %v3386, %v3459
        %3461 = vdwg.mxu0
        %v3463 = vrot.slane %v3458, 1
        %v3465 = vadd.f32 %v2011, %v3463
        %v3466 = vxor.u32 %v3465, 2147483648
        %v3467 = vmul.f32 %v3466, 1.442695
        %v3468 = vpow.pop %v3467
        %v3469 = vadd.f32 %v3468, 1.0
        %v3470 = vrcp.pop %v3469
        %v3471 = vmul.f32 1.0, %v3470
        %3472 = vrot.lane.b32.xlu0 %v3463, 64
        %v3473 = vpop.permute.xlu0 %3472
        %v3475 = vmul.f32 %v3471, %v3473
        %3477 = vrot.lane.b32.xlu0 %v3475, 64
        %v3478 = vpop.permute.xlu0 %3477
        %v3480 = vadd.f32 %v2011, %v3478
        %v3481 = vtanh.pop %v3480
        %v3482 = vsub.f32 1.0, %v3471
        %3484 = vrot.lane.b32.xlu0 %v3481, 96
        %v3485 = vpop.permute.xlu0 %3484
        %v3487 = vmul.f32 %v3482, %v3485
        %v3488 = vrot.slane %v3358, 7
        %3489 = vrot.lane.b32.xlu0 %v3488, 32
        %v3490 = vpop.permute.xlu0 %3489
        %v3492 = vmul.f32 %v3471, %v3490
        %v3493 = vadd.f32 %v3487, %v3492
        %v3494 = vadd.f32 %v2017, %v3458
        %v3495 = vxor.u32 %v3494, 2147483648
        %v3496 = vmul.f32 %v3495, 1.442695
        %v3497 = vpow.pop %v3496
        %v3498 = vadd.f32 %v3497, 1.0
        %v3499 = vrcp.pop %v3498
        %v3500 = vmul.f32 1.0, %v3499
        %v3501 = vadd.f32 %v2019, %v3460
        %v3502 = vxor.u32 %v3501, 2147483648
        %v3503 = vmul.f32 %v3502, 1.442695
        %v3504 = vpow.pop %v3503
        %v3505 = vadd.f32 %v3504, 1.0
        %v3506 = vrcp.pop %v3505
        %v3507 = vmul.f32 1.0, %v3506
        %3509 = vrot.lane.b32.xlu0 %v3460, 64
        %v3510 = vpop.permute.xlu0 %3509
        %v3512 = vmul.f32 %v3500, %v3510
        %3514 = vrot.lane.b32.xlu0 %v3512, 64
        %v3515 = vpop.permute.xlu0 %3514
        %v3517 = vadd.f32 %v2019, %v3515
        %v3518 = vtanh.pop %v3517
        %v3519 = vsub.f32 1.0, %v3507
        %3521 = vrot.lane.b32.xlu0 %v3518, 96
        %v3522 = vpop.permute.xlu0 %3521
        %v3524 = vmul.f32 %v3519, %v3522
        %3525 = vrot.lane.b32.xlu0 %v3377, 96
        %v3526 = vpop.permute.xlu0 %3525
        %v3528 = vmul.f32 %v3507, %v3526
        %v3529 = vadd.f32 %v3524, %v3528
        %3531 = vrot.lane.b32.xlu0 %v3493, 96
        %v3532 = vpop.permute.xlu0 %3531
        %vm3534 = vcmask 261127
        %3535 = vst.msk [vmem:[#allocation2] sm:$0x80] %vm3534, %v3532
        %3537 = vrot.lane.b32.xlu0 %v3529, 32
        %v3538 = vpop.permute.xlu0 %3537
        %vm3540 = vcmask 516352
        %3541 = vst.msk [vmem:[#allocation2 + $0x8] sm:$0x1] %vm3540, %v3538
        %v3542 = vrot.slane %v3529, 1
        %3543 = vrot.lane.b32.xlu0 %v3542, 32
        %v3544 = vpop.permute.xlu0 %3543
        %v3546 = vsel %vm890, %v3532, %v3544
        %v3547 = vld [vmem:[%s18] sm:$0xff]
        %v3548 = vld [vmem:[%s18 + $0x8] sm:$0xff]
        %v3549 = vld [vmem:[%s18 + $0x10] sm:$0xff]
        %v3550 = vld [vmem:[%s18 + $0x18] sm:$0xff]
        %v3551 = vld [vmem:[%s18 + $0x20] sm:$0xff]
        %v3552 = vld [vmem:[%s18 + $0x28] sm:$0xff]
        %v3553 = vld [vmem:[%s18 + $0x30] sm:$0xff]
        %v3554 = vld [vmem:[%s18 + $0x38] sm:$0xff]
        %v3555 = vld [vmem:[%s18 + $0x40] sm:$0xff]
        %v3556 = vld [vmem:[%s18 + $0x48] sm:$0xff]
        %v3557 = vld [vmem:[%s18 + $0x50] sm:$0xff]
        %v3558 = vld [vmem:[%s18 + $0x58] sm:$0xff]
        %v3559 = vld [vmem:[%s18 + $0x60] sm:$0xff]
        %v3560 = vld [vmem:[%s18 + $0x68] sm:$0xff]
        %v3561 = vld [vmem:[%s18 + $0x70] sm:$0xff]
        %v3562 = vld [vmem:[%s18 + $0x78] sm:$0xff]
        %v3563 = vld [vmem:[%s19] sm:$0x3]
        %v3565 = vrot.slane %v3546, 7
        %v3567 = vlaneseq
        %v3568 = vshrl.u32 %v3567, 7
        %v3569 = vsub.s32 0, %v3568
        %v3570 = vrot.slane %v3563, %v3569
        %v3571 = vlaneseq
        %v3572 = vshrl.u32 %v3571, 7
        %v3573 = vsub.s32 1, %v3572
        %v3574 = vrot.slane %v3563, %v3573
        %v3577 = vsel %vm752, %v3565, 0
        %3579 = vmatprep.subr.mxu0 %v3548
        %3580 = vmatpush1.msra.mxu0 %v3547
        %3581 = vmatprep.subr.mxu0 %v3550
        %3582 = vmatpush1.msra.mxu0 %v3549
        %3583 = vmatprep.subr.mxu0 %v3552
        %3584 = vmatpush1.msra.mxu0 %v3551
        %3585 = vmatprep.subr.mxu0 %v3554
        %3586 = vmatpush1.msra.mxu0 %v3553
        %3587 = vmatprep.subr.mxu0 %v3556
        %3588 = vmatpush1.msra.mxu0 %v3555
        %3589 = vmatprep.subr.mxu0 %v3558
        %3590 = vmatpush1.msra.mxu0 %v3557
        %3591 = vmatprep.subr.mxu0 %v3560
        %3592 = vmatpush1.msra.mxu0 %v3559
        %3593 = vmatprep.subr.mxu0 %v3562
        %3594 = vmatpush1.msra.mxu0 %v3561
        %3595 = vmatprep.subr.mxu0 0.0
        %3596 = vmatpush1.msra.mxu0 0.0
        %3597 = vmatprep.subr.mxu0 0.0
        %3598 = vmatpush1.msra.mxu0 0.0
        %3599 = vmatprep.subr.mxu0 0.0
        %3600 = vmatpush1.msra.mxu0 0.0
        %3601 = vmatprep.subr.mxu0 0.0
        %3602 = vmatpush1.msra.mxu0 0.0
        %3603 = vmatprep.subr.mxu0 0.0
        %3604 = vmatpush1.msra.mxu0 0.0
        %3605 = vmatprep.subr.mxu0 0.0
        %3606 = vmatpush1.msra.mxu0 0.0
        %3607 = vmatprep.subr.mxu0 0.0
        %3608 = vmatpush1.msra.mxu0 0.0
        %3609 = vmatprep.subr.mxu0 0.0
        %3610 = vmatpush1.msra.mxu0 0.0
        %3611 = vmatprep.subr.mxu0 0.0
        %3612 = vmatpush1.msra.mxu0 0.0
        %3613 = vmatprep.subr.mxu0 0.0
        %3614 = vmatpush1.msra.mxu0 0.0
        %3615 = vmatprep.subr.mxu0 0.0
        %3616 = vmatpush1.msra.mxu0 0.0
        %3617 = vmatprep.subr.mxu0 0.0
        %3618 = vmatpush1.msra.mxu0 0.0
        %3619 = vmatprep.subr.mxu0 0.0
        %3620 = vmatpush1.msra.mxu0 0.0
        %3621 = vmatprep.subr.mxu0 0.0
        %3622 = vmatpush1.msra.mxu0 0.0
        %3623 = vmatprep.subr.mxu0 0.0
        %3624 = vmatpush1.msra.mxu0 0.0
        %3625 = vmatprep.subr.mxu0 0.0
        %3626 = vmatpush1.msra.mxu0 0.0
        %3627 = vmatprep.subr.mxu0 0.0
        %3628 = vmatpush1.msra.mxu0 0.0
        %3629 = vmatprep.subr.mxu0 0.0
        %3630 = vmatpush1.msra.mxu0 0.0
        %3631 = vmatprep.subr.mxu0 0.0
        %3632 = vmatpush1.msra.mxu0 0.0
        %3633 = vmatprep.subr.mxu0 0.0
        %3634 = vmatpush1.msra.mxu0 0.0
        %3635 = vmatprep.subr.mxu0 0.0
        %3636 = vmatpush1.msra.mxu0 0.0
        %3637 = vmatprep.subr.mxu0 0.0
        %3638 = vmatpush1.msra.mxu0 0.0
        %3639 = vmatprep.subr.mxu0 0.0
        %3640 = vmatpush1.msra.mxu0 0.0
        %3641 = vmatprep.subr.mxu0 0.0
        %3642 = vmatpush1.msra.mxu0 0.0
        %3643 = vmatprep.mubr.f32.mxu0 0.0
        %3644 = vmatmul.mubr.f32.gmra.mrb[0].mxu0 %v3577
        %v3645 = vpop.f32.mrb[0].mxu0
        %v3646 = vadd.f32 %v3570, %v3645
        %v3647 = vpop.f32.mrb[0].mxu0
        %v3648 = vadd.f32 %v3574, %v3647
        %3649 = vdwg.mxu0
        %v3650 = vadd.f32 %v2017, %v3646
        %v3651 = vxor.u32 %v3650, 2147483648
        %v3652 = vmul.f32 %v3651, 1.442695
        %v3653 = vpow.pop %v3652
        %v3654 = vadd.f32 %v3653, 1.0
        %v3655 = vrcp.pop %v3654
        %v3656 = vmul.f32 1.0, %v3655
        %3658 = vrot.lane.b32.xlu0 %v3646, 64
        %v3659 = vpop.permute.xlu0 %3658
        %v3661 = vmul.f32 %v3656, %v3659
        %3663 = vrot.lane.b32.xlu0 %v3661, 64
        %v3664 = vpop.permute.xlu0 %3663
        %v3666 = vadd.f32 %v2017, %v3664
        %v3667 = vtanh.pop %v3666
        %v3668 = vsub.f32 1.0, %v3656
        %3670 = vrot.lane.b32.xlu0 %v3667, 96
        %v3671 = vpop.permute.xlu0 %3670
        %v3673 = vmul.f32 %v3668, %v3671
        %3674 = vrot.lane.b32.xlu0 %v3565, 32
        %v3675 = vpop.permute.xlu0 %3674
        %v3677 = vmul.f32 %v3656, %v3675
        %v3678 = vadd.f32 %v3673, %v3677
        %v3679 = vrot.slane %v3646, 1
        %v3681 = vadd.f32 %v2011, %v3679
        %v3682 = vxor.u32 %v3681, 2147483648
        %v3683 = vmul.f32 %v3682, 1.442695
        %v3684 = vpow.pop %v3683
        %v3685 = vadd.f32 %v3684, 1.0
        %v3686 = vrcp.pop %v3685
        %v3687 = vmul.f32 1.0, %v3686
        %v3689 = vrot.slane %v3648, 1
        %v3691 = vadd.f32 %v2013, %v3689
        %v3692 = vxor.u32 %v3691, 2147483648
        %v3693 = vmul.f32 %v3692, 1.442695
        %v3694 = vpow.pop %v3693
        %v3695 = vadd.f32 %v3694, 1.0
        %v3696 = vrcp.pop %v3695
        %v3697 = vmul.f32 1.0, %v3696
        %3698 = vrot.lane.b32.xlu0 %v3689, 64
        %v3699 = vpop.permute.xlu0 %3698
        %v3701 = vmul.f32 %v3687, %v3699
        %3703 = vrot.lane.b32.xlu0 %v3701, 64
        %v3704 = vpop.permute.xlu0 %3703
        %v3706 = vadd.f32 %v2013, %v3704
        %v3707 = vtanh.pop %v3706
        %v3708 = vsub.f32 1.0, %v3697
        %3710 = vrot.lane.b32.xlu0 %v3707, 96
        %v3711 = vpop.permute.xlu0 %3710
        %v3713 = vmul.f32 %v3708, %v3711
        %3714 = vrot.lane.b32.xlu0 %v3546, 96
        %v3715 = vpop.permute.xlu0 %3714
        %v3717 = vmul.f32 %v3697, %v3715
        %v3718 = vadd.f32 %v3713, %v3717
        %3720 = vrot.lane.b32.xlu0 %v3678, 96
        %v3721 = vpop.permute.xlu0 %3720
        %3723 = vst.msk [vmem:[#allocation2 + $0x8] sm:$0x1] %vm2190, %v3721
        %3725 = vrot.lane.b32.xlu0 %v3718, 32
        %v3726 = vpop.permute.xlu0 %3725
        %3728 = vst.msk [vmem:[#allocation2] sm:$0x80] %vm2196, %v3726
        %v3729 = vrot.slane %v3718, 7
        %3730 = vrot.lane.b32.xlu0 %v3729, 32
        %v3731 = vpop.permute.xlu0 %3730
        %v3733 = vsel %vm890, %v3721, %v3731
        %v3734 = vld [vmem:[%s18] sm:$0xff]
        %v3735 = vld [vmem:[%s18 + $0x8] sm:$0xff]
        %v3736 = vld [vmem:[%s18 + $0x10] sm:$0xff]
        %v3737 = vld [vmem:[%s18 + $0x18] sm:$0xff]
        %v3738 = vld [vmem:[%s18 + $0x20] sm:$0xff]
        %v3739 = vld [vmem:[%s18 + $0x28] sm:$0xff]
        %v3740 = vld [vmem:[%s18 + $0x30] sm:$0xff]
        %v3741 = vld [vmem:[%s18 + $0x38] sm:$0xff]
        %v3742 = vld [vmem:[%s18 + $0x40] sm:$0xff]
        %v3743 = vld [vmem:[%s18 + $0x48] sm:$0xff]
        %v3744 = vld [vmem:[%s18 + $0x50] sm:$0xff]
        %v3745 = vld [vmem:[%s18 + $0x58] sm:$0xff]
        %v3746 = vld [vmem:[%s18 + $0x60] sm:$0xff]
        %v3747 = vld [vmem:[%s18 + $0x68] sm:$0xff]
        %v3748 = vld [vmem:[%s18 + $0x70] sm:$0xff]
        %v3749 = vld [vmem:[%s18 + $0x78] sm:$0xff]
        %v3750 = vld [vmem:[%s19] sm:$0x3]
        %v3752 = vlaneseq
        %v3753 = vshrl.u32 %v3752, 7
        %v3754 = vsub.s32 0, %v3753
        %v3755 = vrot.slane %v3750, %v3754
        %v3756 = vlaneseq
        %v3757 = vshrl.u32 %v3756, 7
        %v3758 = vsub.s32 1, %v3757
        %v3759 = vrot.slane %v3750, %v3758
        %v3763 = vsel %vm752, %v3733, 0
        %3765 = vmatprep.subr.mxu0 %v3735
        %3766 = vmatpush1.msra.mxu0 %v3734
        %3767 = vmatprep.subr.mxu0 %v3737
        %3768 = vmatpush1.msra.mxu0 %v3736
        %3769 = vmatprep.subr.mxu0 %v3739
        %3770 = vmatpush1.msra.mxu0 %v3738
        %3771 = vmatprep.subr.mxu0 %v3741
        %3772 = vmatpush1.msra.mxu0 %v3740
        %3773 = vmatprep.subr.mxu0 %v3743
        %3774 = vmatpush1.msra.mxu0 %v3742
        %3775 = vmatprep.subr.mxu0 %v3745
        %3776 = vmatpush1.msra.mxu0 %v3744
        %3777 = vmatprep.subr.mxu0 %v3747
        %3778 = vmatpush1.msra.mxu0 %v3746
        %3779 = vmatprep.subr.mxu0 %v3749
        %3780 = vmatpush1.msra.mxu0 %v3748
        %3781 = vmatprep.subr.mxu0 0.0
        %3782 = vmatpush1.msra.mxu0 0.0
        %3783 = vmatprep.subr.mxu0 0.0
        %3784 = vmatpush1.msra.mxu0 0.0
        %3785 = vmatprep.subr.mxu0 0.0
        %3786 = vmatpush1.msra.mxu0 0.0
        %3787 = vmatprep.subr.mxu0 0.0
        %3788 = vmatpush1.msra.mxu0 0.0
        %3789 = vmatprep.subr.mxu0 0.0
        %3790 = vmatpush1.msra.mxu0 0.0
        %3791 = vmatprep.subr.mxu0 0.0
        %3792 = vmatpush1.msra.mxu0 0.0
        %3793 = vmatprep.subr.mxu0 0.0
        %3794 = vmatpush1.msra.mxu0 0.0
        %3795 = vmatprep.subr.mxu0 0.0
        %3796 = vmatpush1.msra.mxu0 0.0
        %3797 = vmatprep.subr.mxu0 0.0
        %3798 = vmatpush1.msra.mxu0 0.0
        %3799 = vmatprep.subr.mxu0 0.0
        %3800 = vmatpush1.msra.mxu0 0.0
        %3801 = vmatprep.subr.mxu0 0.0
        %3802 = vmatpush1.msra.mxu0 0.0
        %3803 = vmatprep.subr.mxu0 0.0
        %3804 = vmatpush1.msra.mxu0 0.0
        %3805 = vmatprep.subr.mxu0 0.0
        %3806 = vmatpush1.msra.mxu0 0.0
        %3807 = vmatprep.subr.mxu0 0.0
        %3808 = vmatpush1.msra.mxu0 0.0
        %3809 = vmatprep.subr.mxu0 0.0
        %3810 = vmatpush1.msra.mxu0 0.0
        %3811 = vmatprep.subr.mxu0 0.0
        %3812 = vmatpush1.msra.mxu0 0.0
        %3813 = vmatprep.subr.mxu0 0.0
        %3814 = vmatpush1.msra.mxu0 0.0
        %3815 = vmatprep.subr.mxu0 0.0
        %3816 = vmatpush1.msra.mxu0 0.0
        %3817 = vmatprep.subr.mxu0 0.0
        %3818 = vmatpush1.msra.mxu0 0.0
        %3819 = vmatprep.subr.mxu0 0.0
        %3820 = vmatpush1.msra.mxu0 0.0
        %3821 = vmatprep.subr.mxu0 0.0
        %3822 = vmatpush1.msra.mxu0 0.0
        %3823 = vmatprep.subr.mxu0 0.0
        %3824 = vmatpush1.msra.mxu0 0.0
        %3825 = vmatprep.subr.mxu0 0.0
        %3826 = vmatpush1.msra.mxu0 0.0
        %3827 = vmatprep.subr.mxu0 0.0
        %3828 = vmatpush1.msra.mxu0 0.0
        %3829 = vmatprep.mubr.f32.mxu0 0.0
        %3830 = vmatmul.mubr.f32.gmra.mrb[0].mxu0 %v3763
        %v3831 = vpop.f32.mrb[0].mxu0
        %v3832 = vadd.f32 %v3755, %v3831
        %v3833 = vpop.f32.mrb[0].mxu0
        %v3834 = vadd.f32 %v3759, %v3833
        %3835 = vdwg.mxu0
        %v3837 = vrot.slane %v3832, 7
        %v3839 = vadd.f32 %v2017, %v3837
        %v3840 = vxor.u32 %v3839, 2147483648
        %v3841 = vmul.f32 %v3840, 1.442695
        %v3842 = vpow.pop %v3841
        %v3843 = vadd.f32 %v3842, 1.0
        %v3844 = vrcp.pop %v3843
        %v3845 = vmul.f32 1.0, %v3844
        %3846 = vrot.lane.b32.xlu0 %v3837, 64
        %v3847 = vpop.permute.xlu0 %3846
        %v3849 = vmul.f32 %v3845, %v3847
        %3851 = vrot.lane.b32.xlu0 %v3849, 64
        %v3852 = vpop.permute.xlu0 %3851
        %v3854 = vadd.f32 %v2017, %v3852
        %v3855 = vtanh.pop %v3854
        %v3856 = vsub.f32 1.0, %v3845
        %3858 = vrot.lane.b32.xlu0 %v3855, 96
        %v3859 = vpop.permute.xlu0 %3858
        %v3861 = vmul.f32 %v3856, %v3859
        %v3862 = vrot.slane %v3733, 7
        %3863 = vrot.lane.b32.xlu0 %v3862, 32
        %v3864 = vpop.permute.xlu0 %3863
        %v3866 = vmul.f32 %v3845, %v3864
        %v3867 = vadd.f32 %v3861, %v3866
        %v3868 = vrot.slane %v3832, 2
        %v3870 = vadd.f32 %v2011, %v3868
        %v3871 = vxor.u32 %v3870, 2147483648
        %v3872 = vmul.f32 %v3871, 1.442695
        %v3873 = vpow.pop %v3872
        %v3874 = vadd.f32 %v3873, 1.0
        %v3875 = vrcp.pop %v3874
        %v3876 = vmul.f32 1.0, %v3875
        %v3878 = vrot.slane %v3834, 2
        %v3880 = vadd.f32 %v2013, %v3878
        %v3881 = vxor.u32 %v3880, 2147483648
        %v3882 = vmul.f32 %v3881, 1.442695
        %v3883 = vpow.pop %v3882
        %v3884 = vadd.f32 %v3883, 1.0
        %v3885 = vrcp.pop %v3884
        %v3886 = vmul.f32 1.0, %v3885
        %3887 = vrot.lane.b32.xlu0 %v3878, 64
        %v3888 = vpop.permute.xlu0 %3887
        %v3890 = vmul.f32 %v3876, %v3888
        %3892 = vrot.lane.b32.xlu0 %v3890, 64
        %v3893 = vpop.permute.xlu0 %3892
        %v3895 = vadd.f32 %v2013, %v3893
        %v3896 = vtanh.pop %v3895
        %v3897 = vsub.f32 1.0, %v3886
        %3899 = vrot.lane.b32.xlu0 %v3896, 96
        %v3900 = vpop.permute.xlu0 %3899
        %v3902 = vmul.f32 %v3897, %v3900
        %v3903 = vrot.slane %v3733, 2
        %3904 = vrot.lane.b32.xlu0 %v3903, 96
        %v3905 = vpop.permute.xlu0 %3904
        %v3907 = vmul.f32 %v3886, %v3905
        %v3908 = vadd.f32 %v3902, %v3907
        %3910 = vrot.lane.b32.xlu0 %v3867, 96
        %v3911 = vpop.permute.xlu0 %3910
        %3913 = vst.msk [vmem:[#allocation2 + $0x8] sm:$0x2] %vm2382, %v3911
        %3915 = vrot.lane.b32.xlu0 %v3908, 32
        %v3916 = vpop.permute.xlu0 %3915
        %3918 = vst.msk [vmem:[#allocation2] sm:$0x40] %vm2388, %v3916
        %v3919 = vrot.slane %v3908, 5
        %3920 = vrot.lane.b32.xlu0 %v3919, 32
        %v3921 = vpop.permute.xlu0 %3920
        %v3923 = vsel %vm890, %v3911, %v3921
        %v3924 = vld [vmem:[%s18] sm:$0xff]
        %v3925 = vld [vmem:[%s18 + $0x8] sm:$0xff]
        %v3926 = vld [vmem:[%s18 + $0x10] sm:$0xff]
        %v3927 = vld [vmem:[%s18 + $0x18] sm:$0xff]
        %v3928 = vld [vmem:[%s18 + $0x20] sm:$0xff]
        %v3929 = vld [vmem:[%s18 + $0x28] sm:$0xff]
        %v3930 = vld [vmem:[%s18 + $0x30] sm:$0xff]
        %v3931 = vld [vmem:[%s18 + $0x38] sm:$0xff]
        %v3932 = vld [vmem:[%s18 + $0x40] sm:$0xff]
        %v3933 = vld [vmem:[%s18 + $0x48] sm:$0xff]
        %v3934 = vld [vmem:[%s18 + $0x50] sm:$0xff]
        %v3935 = vld [vmem:[%s18 + $0x58] sm:$0xff]
        %v3936 = vld [vmem:[%s18 + $0x60] sm:$0xff]
        %v3937 = vld [vmem:[%s18 + $0x68] sm:$0xff]
        %v3938 = vld [vmem:[%s18 + $0x70] sm:$0xff]
        %v3939 = vld [vmem:[%s18 + $0x78] sm:$0xff]
        %v3940 = vld [vmem:[%s19] sm:$0x3]
        %v3942 = vrot.slane %v3923, 1
        %v3944 = vlaneseq
        %v3945 = vshrl.u32 %v3944, 7
        %v3946 = vsub.s32 0, %v3945
        %v3947 = vrot.slane %v3940, %v3946
        %v3948 = vlaneseq
        %v3949 = vshrl.u32 %v3948, 7
        %v3950 = vsub.s32 1, %v3949
        %v3951 = vrot.slane %v3940, %v3950
        %v3954 = vsel %vm752, %v3942, 0
        %3956 = vmatprep.subr.mxu0 %v3925
        %3957 = vmatpush1.msra.mxu0 %v3924
        %3958 = vmatprep.subr.mxu0 %v3927
        %3959 = vmatpush1.msra.mxu0 %v3926
        %3960 = vmatprep.subr.mxu0 %v3929
        %3961 = vmatpush1.msra.mxu0 %v3928
        %3962 = vmatprep.subr.mxu0 %v3931
        %3963 = vmatpush1.msra.mxu0 %v3930
        %3964 = vmatprep.subr.mxu0 %v3933
        %3965 = vmatpush1.msra.mxu0 %v3932
        %3966 = vmatprep.subr.mxu0 %v3935
        %3967 = vmatpush1.msra.mxu0 %v3934
        %3968 = vmatprep.subr.mxu0 %v3937
        %3969 = vmatpush1.msra.mxu0 %v3936
        %3970 = vmatprep.subr.mxu0 %v3939
        %3971 = vmatpush1.msra.mxu0 %v3938
        %3972 = vmatprep.subr.mxu0 0.0
        %3973 = vmatpush1.msra.mxu0 0.0
        %3974 = vmatprep.subr.mxu0 0.0
        %3975 = vmatpush1.msra.mxu0 0.0
        %3976 = vmatprep.subr.mxu0 0.0
        %3977 = vmatpush1.msra.mxu0 0.0
        %3978 = vmatprep.subr.mxu0 0.0
        %3979 = vmatpush1.msra.mxu0 0.0
        %3980 = vmatprep.subr.mxu0 0.0
        %3981 = vmatpush1.msra.mxu0 0.0
        %3982 = vmatprep.subr.mxu0 0.0
        %3983 = vmatpush1.msra.mxu0 0.0
        %3984 = vmatprep.subr.mxu0 0.0
        %3985 = vmatpush1.msra.mxu0 0.0
        %3986 = vmatprep.subr.mxu0 0.0
        %3987 = vmatpush1.msra.mxu0 0.0
        %3988 = vmatprep.subr.mxu0 0.0
        %3989 = vmatpush1.msra.mxu0 0.0
        %3990 = vmatprep.subr.mxu0 0.0
        %3991 = vmatpush1.msra.mxu0 0.0
        %3992 = vmatprep.subr.mxu0 0.0
        %3993 = vmatpush1.msra.mxu0 0.0
        %3994 = vmatprep.subr.mxu0 0.0
        %3995 = vmatpush1.msra.mxu0 0.0
        %3996 = vmatprep.subr.mxu0 0.0
        %3997 = vmatpush1.msra.mxu0 0.0
        %3998 = vmatprep.subr.mxu0 0.0
        %3999 = vmatpush1.msra.mxu0 0.0
        %4000 = vmatprep.subr.mxu0 0.0
        %4001 = vmatpush1.msra.mxu0 0.0
        %4002 = vmatprep.subr.mxu0 0.0
        %4003 = vmatpush1.msra.mxu0 0.0
        %4004 = vmatprep.subr.mxu0 0.0
        %4005 = vmatpush1.msra.mxu0 0.0
        %4006 = vmatprep.subr.mxu0 0.0
        %4007 = vmatpush1.msra.mxu0 0.0
        %4008 = vmatprep.subr.mxu0 0.0
        %4009 = vmatpush1.msra.mxu0 0.0
        %4010 = vmatprep.subr.mxu0 0.0
        %4011 = vmatpush1.msra.mxu0 0.0
        %4012 = vmatprep.subr.mxu0 0.0
        %4013 = vmatpush1.msra.mxu0 0.0
        %4014 = vmatprep.subr.mxu0 0.0
        %4015 = vmatpush1.msra.mxu0 0.0
        %4016 = vmatprep.subr.mxu0 0.0
        %4017 = vmatpush1.msra.mxu0 0.0
        %4018 = vmatprep.subr.mxu0 0.0
        %4019 = vmatpush1.msra.mxu0 0.0
        %4020 = vmatprep.mubr.f32.mxu0 0.0
        %4021 = vmatmul.mubr.f32.gmra.mrb[0].mxu0 %v3954
        %v4022 = vpop.f32.mrb[0].mxu0
        %v4023 = vadd.f32 %v3947, %v4022
        %v4024 = vpop.f32.mrb[0].mxu0
        %v4025 = vadd.f32 %v3951, %v4024
        %4026 = vdwg.mxu0
        %v4028 = vrot.slane %v4023, 6
        %v4030 = vadd.f32 %v2017, %v4028
        %v4031 = vxor.u32 %v4030, 2147483648
        %v4032 = vmul.f32 %v4031, 1.442695
        %v4033 = vpow.pop %v4032
        %v4034 = vadd.f32 %v4033, 1.0
        %v4035 = vrcp.pop %v4034
        %v4036 = vmul.f32 1.0, %v4035
        %4037 = vrot.lane.b32.xlu0 %v4028, 64
        %v4038 = vpop.permute.xlu0 %4037
        %v4040 = vmul.f32 %v4036, %v4038
        %4042 = vrot.lane.b32.xlu0 %v4040, 64
        %v4043 = vpop.permute.xlu0 %4042
        %v4045 = vadd.f32 %v2017, %v4043
        %v4046 = vtanh.pop %v4045
        %v4047 = vsub.f32 1.0, %v4036
        %4049 = vrot.lane.b32.xlu0 %v4046, 96
        %v4050 = vpop.permute.xlu0 %4049
        %v4052 = vmul.f32 %v4047, %v4050
        %v4053 = vrot.slane %v3923, 7
        %4054 = vrot.lane.b32.xlu0 %v4053, 32
        %v4055 = vpop.permute.xlu0 %4054
        %v4057 = vmul.f32 %v4036, %v4055
        %v4058 = vadd.f32 %v4052, %v4057
        %v4059 = vrot.slane %v4023, 3
        %v4061 = vadd.f32 %v2011, %v4059
        %v4062 = vxor.u32 %v4061, 2147483648
        %v4063 = vmul.f32 %v4062, 1.442695
        %v4064 = vpow.pop %v4063
        %v4065 = vadd.f32 %v4064, 1.0
        %v4066 = vrcp.pop %v4065
        %v4067 = vmul.f32 1.0, %v4066
        %v4069 = vrot.slane %v4025, 3
        %v4071 = vadd.f32 %v2013, %v4069
        %v4072 = vxor.u32 %v4071, 2147483648
        %v4073 = vmul.f32 %v4072, 1.442695
        %v4074 = vpow.pop %v4073
        %v4075 = vadd.f32 %v4074, 1.0
        %v4076 = vrcp.pop %v4075
        %v4077 = vmul.f32 1.0, %v4076
        %4078 = vrot.lane.b32.xlu0 %v4069, 64
        %v4079 = vpop.permute.xlu0 %4078
        %v4081 = vmul.f32 %v4067, %v4079
        %4083 = vrot.lane.b32.xlu0 %v4081, 64
        %v4084 = vpop.permute.xlu0 %4083
        %v4086 = vadd.f32 %v2013, %v4084
        %v4087 = vtanh.pop %v4086
        %v4088 = vsub.f32 1.0, %v4077
        %4090 = vrot.lane.b32.xlu0 %v4087, 96
        %v4091 = vpop.permute.xlu0 %4090
        %v4093 = vmul.f32 %v4088, %v4091
        %v4094 = vrot.slane %v3923, 4
        %4095 = vrot.lane.b32.xlu0 %v4094, 96
        %v4096 = vpop.permute.xlu0 %4095
        %v4098 = vmul.f32 %v4077, %v4096
        %v4099 = vadd.f32 %v4093, %v4098
        %4101 = vrot.lane.b32.xlu0 %v4058, 96
        %v4102 = vpop.permute.xlu0 %4101
        %4104 = vst.msk [vmem:[#allocation2 + $0x8] sm:$0x4] %vm2575, %v4102
        %4106 = vrot.lane.b32.xlu0 %v4099, 32
        %v4107 = vpop.permute.xlu0 %4106
        %4109 = vst.msk [vmem:[#allocation2] sm:$0x20] %vm2581, %v4107
        %v4110 = vrot.slane %v4099, 3
        %4111 = vrot.lane.b32.xlu0 %v4110, 32
        %v4112 = vpop.permute.xlu0 %4111
        %v4114 = vsel %vm890, %v4102, %v4112
        %v4115 = vld [vmem:[%s18] sm:$0xff]
        %v4116 = vld [vmem:[%s18 + $0x8] sm:$0xff]
        %v4117 = vld [vmem:[%s18 + $0x10] sm:$0xff]
        %v4118 = vld [vmem:[%s18 + $0x18] sm:$0xff]
        %v4119 = vld [vmem:[%s18 + $0x20] sm:$0xff]
        %v4120 = vld [vmem:[%s18 + $0x28] sm:$0xff]
        %v4121 = vld [vmem:[%s18 + $0x30] sm:$0xff]
        %v4122 = vld [vmem:[%s18 + $0x38] sm:$0xff]
        %v4123 = vld [vmem:[%s18 + $0x40] sm:$0xff]
        %v4124 = vld [vmem:[%s18 + $0x48] sm:$0xff]
        %v4125 = vld [vmem:[%s18 + $0x50] sm:$0xff]
        %v4126 = vld [vmem:[%s18 + $0x58] sm:$0xff]
        %v4127 = vld [vmem:[%s18 + $0x60] sm:$0xff]
        %v4128 = vld [vmem:[%s18 + $0x68] sm:$0xff]
        %v4129 = vld [vmem:[%s18 + $0x70] sm:$0xff]
        %v4130 = vld [vmem:[%s18 + $0x78] sm:$0xff]
        %v4131 = vld [vmem:[%s19] sm:$0x3]
        %v4133 = vrot.slane %v4114, 2
        %v4135 = vlaneseq
        %v4136 = vshrl.u32 %v4135, 7
        %v4137 = vsub.s32 0, %v4136
        %v4138 = vrot.slane %v4131, %v4137
        %v4139 = vlaneseq
        %v4140 = vshrl.u32 %v4139, 7
        %v4141 = vsub.s32 1, %v4140
        %v4142 = vrot.slane %v4131, %v4141
        %v4145 = vsel %vm752, %v4133, 0
        %4147 = vmatprep.subr.mxu0 %v4116
        %4148 = vmatpush1.msra.mxu0 %v4115
        %4149 = vmatprep.subr.mxu0 %v4118
        %4150 = vmatpush1.msra.mxu0 %v4117
        %4151 = vmatprep.subr.mxu0 %v4120
        %4152 = vmatpush1.msra.mxu0 %v4119
        %4153 = vmatprep.subr.mxu0 %v4122
        %4154 = vmatpush1.msra.mxu0 %v4121
        %4155 = vmatprep.subr.mxu0 %v4124
        %4156 = vmatpush1.msra.mxu0 %v4123
        %4157 = vmatprep.subr.mxu0 %v4126
        %4158 = vmatpush1.msra.mxu0 %v4125
        %4159 = vmatprep.subr.mxu0 %v4128
        %4160 = vmatpush1.msra.mxu0 %v4127
        %4161 = vmatprep.subr.mxu0 %v4130
        %4162 = vmatpush1.msra.mxu0 %v4129
        %4163 = vmatprep.subr.mxu0 0.0
        %4164 = vmatpush1.msra.mxu0 0.0
        %4165 = vmatprep.subr.mxu0 0.0
        %4166 = vmatpush1.msra.mxu0 0.0
        %4167 = vmatprep.subr.mxu0 0.0
        %4168 = vmatpush1.msra.mxu0 0.0
        %4169 = vmatprep.subr.mxu0 0.0
        %4170 = vmatpush1.msra.mxu0 0.0
        %4171 = vmatprep.subr.mxu0 0.0
        %4172 = vmatpush1.msra.mxu0 0.0
        %4173 = vmatprep.subr.mxu0 0.0
        %4174 = vmatpush1.msra.mxu0 0.0
        %4175 = vmatprep.subr.mxu0 0.0
        %4176 = vmatpush1.msra.mxu0 0.0
        %4177 = vmatprep.subr.mxu0 0.0
        %4178 = vmatpush1.msra.mxu0 0.0
        %4179 = vmatprep.subr.mxu0 0.0
        %4180 = vmatpush1.msra.mxu0 0.0
        %4181 = vmatprep.subr.mxu0 0.0
        %4182 = vmatpush1.msra.mxu0 0.0
        %4183 = vmatprep.subr.mxu0 0.0
        %4184 = vmatpush1.msra.mxu0 0.0
        %4185 = vmatprep.subr.mxu0 0.0
        %4186 = vmatpush1.msra.mxu0 0.0
        %4187 = vmatprep.subr.mxu0 0.0
        %4188 = vmatpush1.msra.mxu0 0.0
        %4189 = vmatprep.subr.mxu0 0.0
        %4190 = vmatpush1.msra.mxu0 0.0
        %4191 = vmatprep.subr.mxu0 0.0
        %4192 = vmatpush1.msra.mxu0 0.0
        %4193 = vmatprep.subr.mxu0 0.0
        %4194 = vmatpush1.msra.mxu0 0.0
        %4195 = vmatprep.subr.mxu0 0.0
        %4196 = vmatpush1.msra.mxu0 0.0
        %4197 = vmatprep.subr.mxu0 0.0
        %4198 = vmatpush1.msra.mxu0 0.0
        %4199 = vmatprep.subr.mxu0 0.0
        %4200 = vmatpush1.msra.mxu0 0.0
        %4201 = vmatprep.subr.mxu0 0.0
        %4202 = vmatpush1.msra.mxu0 0.0
        %4203 = vmatprep.subr.mxu0 0.0
        %4204 = vmatpush1.msra.mxu0 0.0
        %4205 = vmatprep.subr.mxu0 0.0
        %4206 = vmatpush1.msra.mxu0 0.0
        %4207 = vmatprep.subr.mxu0 0.0
        %4208 = vmatpush1.msra.mxu0 0.0
        %4209 = vmatprep.subr.mxu0 0.0
        %4210 = vmatpush1.msra.mxu0 0.0
        %4211 = vmatprep.mubr.f32.mxu0 0.0
        %4212 = vmatmul.mubr.f32.gmra.mrb[0].mxu0 %v4145
        %v4213 = vpop.f32.mrb[0].mxu0
        %v4214 = vadd.f32 %v4138, %v4213
        %v4215 = vpop.f32.mrb[0].mxu0
        %v4216 = vadd.f32 %v4142, %v4215
        %4217 = vdwg.mxu0
        %v4219 = vrot.slane %v4214, 5
        %v4221 = vadd.f32 %v2017, %v4219
        %v4222 = vxor.u32 %v4221, 2147483648
        %v4223 = vmul.f32 %v4222, 1.442695
        %v4224 = vpow.pop %v4223
        %v4225 = vadd.f32 %v4224, 1.0
        %v4226 = vrcp.pop %v4225
        %v4227 = vmul.f32 1.0, %v4226
        %4228 = vrot.lane.b32.xlu0 %v4219, 64
        %v4229 = vpop.permute.xlu0 %4228
        %v4231 = vmul.f32 %v4227, %v4229
        %4233 = vrot.lane.b32.xlu0 %v4231, 64
        %v4234 = vpop.permute.xlu0 %4233
        %v4236 = vadd.f32 %v2017, %v4234
        %v4237 = vtanh.pop %v4236
        %v4238 = vsub.f32 1.0, %v4227
        %4240 = vrot.lane.b32.xlu0 %v4237, 96
        %v4241 = vpop.permute.xlu0 %4240
        %v4243 = vmul.f32 %v4238, %v4241
        %v4244 = vrot.slane %v4114, 7
        %4245 = vrot.lane.b32.xlu0 %v4244, 32
        %v4246 = vpop.permute.xlu0 %4245
        %v4248 = vmul.f32 %v4227, %v4246
        %v4249 = vadd.f32 %v4243, %v4248
        %v4250 = vrot.slane %v4214, 4
        %v4252 = vadd.f32 %v2011, %v4250
        %v4253 = vxor.u32 %v4252, 2147483648
        %v4254 = vmul.f32 %v4253, 1.442695
        %v4255 = vpow.pop %v4254
        %v4256 = vadd.f32 %v4255, 1.0
        %v4257 = vrcp.pop %v4256
        %v4258 = vmul.f32 1.0, %v4257
        %v4260 = vrot.slane %v4216, 4
        %v4262 = vadd.f32 %v2013, %v4260
        %v4263 = vxor.u32 %v4262, 2147483648
        %v4264 = vmul.f32 %v4263, 1.442695
        %v4265 = vpow.pop %v4264
        %v4266 = vadd.f32 %v4265, 1.0
        %v4267 = vrcp.pop %v4266
        %v4268 = vmul.f32 1.0, %v4267
        %4269 = vrot.lane.b32.xlu0 %v4260, 64
        %v4270 = vpop.permute.xlu0 %4269
        %v4272 = vmul.f32 %v4258, %v4270
        %4274 = vrot.lane.b32.xlu0 %v4272, 64
        %v4275 = vpop.permute.xlu0 %4274
        %v4277 = vadd.f32 %v2013, %v4275
        %v4278 = vtanh.pop %v4277
        %v4279 = vsub.f32 1.0, %v4268
        %4281 = vrot.lane.b32.xlu0 %v4278, 96
        %v4282 = vpop.permute.xlu0 %4281
        %v4284 = vmul.f32 %v4279, %v4282
        %v4285 = vrot.slane %v4114, 6
        %4286 = vrot.lane.b32.xlu0 %v4285, 96
        %v4287 = vpop.permute.xlu0 %4286
        %v4289 = vmul.f32 %v4268, %v4287
        %v4290 = vadd.f32 %v4284, %v4289
        %4292 = vrot.lane.b32.xlu0 %v4249, 96
        %v4293 = vpop.permute.xlu0 %4292
        %4295 = vst.msk [vmem:[#allocation2 + $0x8] sm:$0x8] %vm2768, %v4293
        %4297 = vrot.lane.b32.xlu0 %v4290, 32
        %v4298 = vpop.permute.xlu0 %4297
        %4300 = vst.msk [vmem:[#allocation2] sm:$0x10] %vm2774, %v4298
        %v4301 = vrot.slane %v4290, 1
        %4302 = vrot.lane.b32.xlu0 %v4301, 32
        %v4303 = vpop.permute.xlu0 %4302
        %v4305 = vsel %vm890, %v4293, %v4303
        %v4306 = vld [vmem:[%s18] sm:$0xff]
        %v4307 = vld [vmem:[%s18 + $0x8] sm:$0xff]
        %v4308 = vld [vmem:[%s18 + $0x10] sm:$0xff]
        %v4309 = vld [vmem:[%s18 + $0x18] sm:$0xff]
        %v4310 = vld [vmem:[%s18 + $0x20] sm:$0xff]
        %v4311 = vld [vmem:[%s18 + $0x28] sm:$0xff]
        %v4312 = vld [vmem:[%s18 + $0x30] sm:$0xff]
        %v4313 = vld [vmem:[%s18 + $0x38] sm:$0xff]
        %v4314 = vld [vmem:[%s18 + $0x40] sm:$0xff]
        %v4315 = vld [vmem:[%s18 + $0x48] sm:$0xff]
        %v4316 = vld [vmem:[%s18 + $0x50] sm:$0xff]
        %v4317 = vld [vmem:[%s18 + $0x58] sm:$0xff]
        %v4318 = vld [vmem:[%s18 + $0x60] sm:$0xff]
        %v4319 = vld [vmem:[%s18 + $0x68] sm:$0xff]
        %v4320 = vld [vmem:[%s18 + $0x70] sm:$0xff]
        %v4321 = vld [vmem:[%s18 + $0x78] sm:$0xff]
        %v4322 = vld [vmem:[%s19] sm:$0x3]
        %v4324 = vrot.slane %v4305, 3
        %v4326 = vlaneseq
        %v4327 = vshrl.u32 %v4326, 7
        %v4328 = vsub.s32 0, %v4327
        %v4329 = vrot.slane %v4322, %v4328
        %v4330 = vlaneseq
        %v4331 = vshrl.u32 %v4330, 7
        %v4332 = vsub.s32 1, %v4331
        %v4333 = vrot.slane %v4322, %v4332
        %v4336 = vsel %vm752, %v4324, 0
        %4338 = vmatprep.subr.mxu0 %v4307
        %4339 = vmatpush1.msra.mxu0 %v4306
        %4340 = vmatprep.subr.mxu0 %v4309
        %4341 = vmatpush1.msra.mxu0 %v4308
        %4342 = vmatprep.subr.mxu0 %v4311
        %4343 = vmatpush1.msra.mxu0 %v4310
        %4344 = vmatprep.subr.mxu0 %v4313
        %4345 = vmatpush1.msra.mxu0 %v4312
        %4346 = vmatprep.subr.mxu0 %v4315
        %4347 = vmatpush1.msra.mxu0 %v4314
        %4348 = vmatprep.subr.mxu0 %v4317
        %4349 = vmatpush1.msra.mxu0 %v4316
        %4350 = vmatprep.subr.mxu0 %v4319
        %4351 = vmatpush1.msra.mxu0 %v4318
        %4352 = vmatprep.subr.mxu0 %v4321
        %4353 = vmatpush1.msra.mxu0 %v4320
        %4354 = vmatprep.subr.mxu0 0.0
        %4355 = vmatpush1.msra.mxu0 0.0
        %4356 = vmatprep.subr.mxu0 0.0
        %4357 = vmatpush1.msra.mxu0 0.0
        %4358 = vmatprep.subr.mxu0 0.0
        %4359 = vmatpush1.msra.mxu0 0.0
        %4360 = vmatprep.subr.mxu0 0.0
        %4361 = vmatpush1.msra.mxu0 0.0
        %4362 = vmatprep.subr.mxu0 0.0
        %4363 = vmatpush1.msra.mxu0 0.0
        %4364 = vmatprep.subr.mxu0 0.0
        %4365 = vmatpush1.msra.mxu0 0.0
        %4366 = vmatprep.subr.mxu0 0.0
        %4367 = vmatpush1.msra.mxu0 0.0
        %4368 = vmatprep.subr.mxu0 0.0
        %4369 = vmatpush1.msra.mxu0 0.0
        %4370 = vmatprep.subr.mxu0 0.0
        %4371 = vmatpush1.msra.mxu0 0.0
        %4372 = vmatprep.subr.mxu0 0.0
        %4373 = vmatpush1.msra.mxu0 0.0
        %4374 = vmatprep.subr.mxu0 0.0
        %4375 = vmatpush1.msra.mxu0 0.0
        %4376 = vmatprep.subr.mxu0 0.0
        %4377 = vmatpush1.msra.mxu0 0.0
        %4378 = vmatprep.subr.mxu0 0.0
        %4379 = vmatpush1.msra.mxu0 0.0
        %4380 = vmatprep.subr.mxu0 0.0
        %4381 = vmatpush1.msra.mxu0 0.0
        %4382 = vmatprep.subr.mxu0 0.0
        %4383 = vmatpush1.msra.mxu0 0.0
        %4384 = vmatprep.subr.mxu0 0.0
        %4385 = vmatpush1.msra.mxu0 0.0
        %4386 = vmatprep.subr.mxu0 0.0
        %4387 = vmatpush1.msra.mxu0 0.0
        %4388 = vmatprep.subr.mxu0 0.0
        %4389 = vmatpush1.msra.mxu0 0.0
        %4390 = vmatprep.subr.mxu0 0.0
        %4391 = vmatpush1.msra.mxu0 0.0
        %4392 = vmatprep.subr.mxu0 0.0
        %4393 = vmatpush1.msra.mxu0 0.0
        %4394 = vmatprep.subr.mxu0 0.0
        %4395 = vmatpush1.msra.mxu0 0.0
        %4396 = vmatprep.subr.mxu0 0.0
        %4397 = vmatpush1.msra.mxu0 0.0
        %4398 = vmatprep.subr.mxu0 0.0
        %4399 = vmatpush1.msra.mxu0 0.0
        %4400 = vmatprep.subr.mxu0 0.0
        %4401 = vmatpush1.msra.mxu0 0.0
        %4402 = vmatprep.mubr.f32.mxu0 0.0
        %4403 = vmatmul.mubr.f32.gmra.mrb[0].mxu0 %v4336
        %v4404 = vpop.f32.mrb[0].mxu0
        %v4405 = vadd.f32 %v4329, %v4404
        %v4406 = vpop.f32.mrb[0].mxu0
        %v4407 = vadd.f32 %v4333, %v4406
        %4408 = vdwg.mxu0
        %v4410 = vrot.slane %v4405, 4
        %v4412 = vadd.f32 %v2017, %v4410
        %v4413 = vxor.u32 %v4412, 2147483648
        %v4414 = vmul.f32 %v4413, 1.442695
        %v4415 = vpow.pop %v4414
        %v4416 = vadd.f32 %v4415, 1.0
        %v4417 = vrcp.pop %v4416
        %v4418 = vmul.f32 1.0, %v4417
        %4419 = vrot.lane.b32.xlu0 %v4410, 64
        %v4420 = vpop.permute.xlu0 %4419
        %v4422 = vmul.f32 %v4418, %v4420
        %4424 = vrot.lane.b32.xlu0 %v4422, 64
        %v4425 = vpop.permute.xlu0 %4424
        %v4427 = vadd.f32 %v2017, %v4425
        %v4428 = vtanh.pop %v4427
        %v4429 = vsub.f32 1.0, %v4418
        %4431 = vrot.lane.b32.xlu0 %v4428, 96
        %v4432 = vpop.permute.xlu0 %4431
        %v4434 = vmul.f32 %v4429, %v4432
        %v4435 = vrot.slane %v4305, 7
        %4436 = vrot.lane.b32.xlu0 %v4435, 32
        %v4437 = vpop.permute.xlu0 %4436
        %v4439 = vmul.f32 %v4418, %v4437
        %v4440 = vadd.f32 %v4434, %v4439
        %v4441 = vrot.slane %v4405, 5
        %v4443 = vadd.f32 %v2011, %v4441
        %v4444 = vxor.u32 %v4443, 2147483648
        %v4445 = vmul.f32 %v4444, 1.442695
        %v4446 = vpow.pop %v4445
        %v4447 = vadd.f32 %v4446, 1.0
        %v4448 = vrcp.pop %v4447
        %v4449 = vmul.f32 1.0, %v4448
        %v4451 = vrot.slane %v4407, 5
        %v4453 = vadd.f32 %v2013, %v4451
        %v4454 = vxor.u32 %v4453, 2147483648
        %v4455 = vmul.f32 %v4454, 1.442695
        %v4456 = vpow.pop %v4455
        %v4457 = vadd.f32 %v4456, 1.0
        %v4458 = vrcp.pop %v4457
        %v4459 = vmul.f32 1.0, %v4458
        %4460 = vrot.lane.b32.xlu0 %v4451, 64
        %v4461 = vpop.permute.xlu0 %4460
        %v4463 = vmul.f32 %v4449, %v4461
        %4465 = vrot.lane.b32.xlu0 %v4463, 64
        %v4466 = vpop.permute.xlu0 %4465
        %v4468 = vadd.f32 %v2013, %v4466
        %v4469 = vtanh.pop %v4468
        %v4470 = vsub.f32 1.0, %v4459
        %4472 = vrot.lane.b32.xlu0 %v4469, 96
        %v4473 = vpop.permute.xlu0 %4472
        %v4475 = vmul.f32 %v4470, %v4473
        %4476 = vrot.lane.b32.xlu0 %v4305, 96
        %v4477 = vpop.permute.xlu0 %4476
        %v4479 = vmul.f32 %v4459, %v4477
        %v4480 = vadd.f32 %v4475, %v4479
        %4482 = vrot.lane.b32.xlu0 %v4440, 96
        %v4483 = vpop.permute.xlu0 %4482
        %4485 = vst.msk [vmem:[#allocation2 + $0x8] sm:$0x10] %vm2960, %v4483
        %4487 = vrot.lane.b32.xlu0 %v4480, 32
        %v4488 = vpop.permute.xlu0 %4487
        %4490 = vst.msk [vmem:[#allocation2] sm:$0x8] %vm2966, %v4488
        %v4491 = vrot.slane %v4480, 7
        %4492 = vrot.lane.b32.xlu0 %v4491, 32
        %v4493 = vpop.permute.xlu0 %4492
        %v4495 = vsel %vm890, %v4483, %v4493
        %v4496 = vld [vmem:[%s18] sm:$0xff]
        %v4497 = vld [vmem:[%s18 + $0x8] sm:$0xff]
        %v4498 = vld [vmem:[%s18 + $0x10] sm:$0xff]
        %v4499 = vld [vmem:[%s18 + $0x18] sm:$0xff]
        %v4500 = vld [vmem:[%s18 + $0x20] sm:$0xff]
        %v4501 = vld [vmem:[%s18 + $0x28] sm:$0xff]
        %v4502 = vld [vmem:[%s18 + $0x30] sm:$0xff]
        %v4503 = vld [vmem:[%s18 + $0x38] sm:$0xff]
        %v4504 = vld [vmem:[%s18 + $0x40] sm:$0xff]
        %v4505 = vld [vmem:[%s18 + $0x48] sm:$0xff]
        %v4506 = vld [vmem:[%s18 + $0x50] sm:$0xff]
        %v4507 = vld [vmem:[%s18 + $0x58] sm:$0xff]
        %v4508 = vld [vmem:[%s18 + $0x60] sm:$0xff]
        %v4509 = vld [vmem:[%s18 + $0x68] sm:$0xff]
        %v4510 = vld [vmem:[%s18 + $0x70] sm:$0xff]
        %v4511 = vld [vmem:[%s18 + $0x78] sm:$0xff]
        %v4512 = vld [vmem:[%s19] sm:$0x3]
        %v4514 = vrot.slane %v4495, 4
        %v4516 = vlaneseq
        %v4517 = vshrl.u32 %v4516, 7
        %v4518 = vsub.s32 0, %v4517
        %v4519 = vrot.slane %v4512, %v4518
        %v4520 = vlaneseq
        %v4521 = vshrl.u32 %v4520, 7
        %v4522 = vsub.s32 1, %v4521
        %v4523 = vrot.slane %v4512, %v4522
        %v4526 = vsel %vm752, %v4514, 0
        %4528 = vmatprep.subr.mxu0 %v4497
        %4529 = vmatpush1.msra.mxu0 %v4496
        %4530 = vmatprep.subr.mxu0 %v4499
        %4531 = vmatpush1.msra.mxu0 %v4498
        %4532 = vmatprep.subr.mxu0 %v4501
        %4533 = vmatpush1.msra.mxu0 %v4500
        %4534 = vmatprep.subr.mxu0 %v4503
        %4535 = vmatpush1.msra.mxu0 %v4502
        %4536 = vmatprep.subr.mxu0 %v4505
        %4537 = vmatpush1.msra.mxu0 %v4504
        %4538 = vmatprep.subr.mxu0 %v4507
        %4539 = vmatpush1.msra.mxu0 %v4506
        %4540 = vmatprep.subr.mxu0 %v4509
        %4541 = vmatpush1.msra.mxu0 %v4508
        %4542 = vmatprep.subr.mxu0 %v4511
        %4543 = vmatpush1.msra.mxu0 %v4510
        %4544 = vmatprep.subr.mxu0 0.0
        %4545 = vmatpush1.msra.mxu0 0.0
        %4546 = vmatprep.subr.mxu0 0.0
        %4547 = vmatpush1.msra.mxu0 0.0
        %4548 = vmatprep.subr.mxu0 0.0
        %4549 = vmatpush1.msra.mxu0 0.0
        %4550 = vmatprep.subr.mxu0 0.0
        %4551 = vmatpush1.msra.mxu0 0.0
        %4552 = vmatprep.subr.mxu0 0.0
        %4553 = vmatpush1.msra.mxu0 0.0
        %4554 = vmatprep.subr.mxu0 0.0
        %4555 = vmatpush1.msra.mxu0 0.0
        %4556 = vmatprep.subr.mxu0 0.0
        %4557 = vmatpush1.msra.mxu0 0.0
        %4558 = vmatprep.subr.mxu0 0.0
        %4559 = vmatpush1.msra.mxu0 0.0
        %4560 = vmatprep.subr.mxu0 0.0
        %4561 = vmatpush1.msra.mxu0 0.0
        %4562 = vmatprep.subr.mxu0 0.0
        %4563 = vmatpush1.msra.mxu0 0.0
        %4564 = vmatprep.subr.mxu0 0.0
        %4565 = vmatpush1.msra.mxu0 0.0
        %4566 = vmatprep.subr.mxu0 0.0
        %4567 = vmatpush1.msra.mxu0 0.0
        %4568 = vmatprep.subr.mxu0 0.0
        %4569 = vmatpush1.msra.mxu0 0.0
        %4570 = vmatprep.subr.mxu0 0.0
        %4571 = vmatpush1.msra.mxu0 0.0
        %4572 = vmatprep.subr.mxu0 0.0
        %4573 = vmatpush1.msra.mxu0 0.0
        %4574 = vmatprep.subr.mxu0 0.0
        %4575 = vmatpush1.msra.mxu0 0.0
        %4576 = vmatprep.subr.mxu0 0.0
        %4577 = vmatpush1.msra.mxu0 0.0
        %4578 = vmatprep.subr.mxu0 0.0
        %4579 = vmatpush1.msra.mxu0 0.0
        %4580 = vmatprep.subr.mxu0 0.0
        %4581 = vmatpush1.msra.mxu0 0.0
        %4582 = vmatprep.subr.mxu0 0.0
        %4583 = vmatpush1.msra.mxu0 0.0
        %4584 = vmatprep.subr.mxu0 0.0
        %4585 = vmatpush1.msra.mxu0 0.0
        %4586 = vmatprep.subr.mxu0 0.0
        %4587 = vmatpush1.msra.mxu0 0.0
        %4588 = vmatprep.subr.mxu0 0.0
        %4589 = vmatpush1.msra.mxu0 0.0
        %4590 = vmatprep.subr.mxu0 0.0
        %4591 = vmatpush1.msra.mxu0 0.0
        %4592 = vmatprep.mubr.f32.mxu0 0.0
        %4593 = vmatmul.mubr.f32.gmra.mrb[0].mxu0 %v4526
        %v4594 = vpop.f32.mrb[0].mxu0
        %v4595 = vadd.f32 %v4519, %v4594
        %v4596 = vpop.f32.mrb[0].mxu0
        %v4597 = vadd.f32 %v4523, %v4596
        %4598 = vdwg.mxu0
        %v4600 = vrot.slane %v4595, 3
        %v4602 = vadd.f32 %v2017, %v4600
        %v4603 = vxor.u32 %v4602, 2147483648
        %v4604 = vmul.f32 %v4603, 1.442695
        %v4605 = vpow.pop %v4604
        %v4606 = vadd.f32 %v4605, 1.0
        %v4607 = vrcp.pop %v4606
        %v4608 = vmul.f32 1.0, %v4607
        %4609 = vrot.lane.b32.xlu0 %v4600, 64
        %v4610 = vpop.permute.xlu0 %4609
        %v4612 = vmul.f32 %v4608, %v4610
        %4614 = vrot.lane.b32.xlu0 %v4612, 64
        %v4615 = vpop.permute.xlu0 %4614
        %v4617 = vadd.f32 %v2017, %v4615
        %v4618 = vtanh.pop %v4617
        %v4619 = vsub.f32 1.0, %v4608
        %4621 = vrot.lane.b32.xlu0 %v4618, 96
        %v4622 = vpop.permute.xlu0 %4621
        %v4624 = vmul.f32 %v4619, %v4622
        %v4625 = vrot.slane %v4495, 7
        %4626 = vrot.lane.b32.xlu0 %v4625, 32
        %v4627 = vpop.permute.xlu0 %4626
        %v4629 = vmul.f32 %v4608, %v4627
        %v4630 = vadd.f32 %v4624, %v4629
        %v4631 = vrot.slane %v4595, 6
        %v4633 = vadd.f32 %v2011, %v4631
        %v4634 = vxor.u32 %v4633, 2147483648
        %v4635 = vmul.f32 %v4634, 1.442695
        %v4636 = vpow.pop %v4635
        %v4637 = vadd.f32 %v4636, 1.0
        %v4638 = vrcp.pop %v4637
        %v4639 = vmul.f32 1.0, %v4638
        %v4641 = vrot.slane %v4597, 6
        %v4643 = vadd.f32 %v2013, %v4641
        %v4644 = vxor.u32 %v4643, 2147483648
        %v4645 = vmul.f32 %v4644, 1.442695
        %v4646 = vpow.pop %v4645
        %v4647 = vadd.f32 %v4646, 1.0
        %v4648 = vrcp.pop %v4647
        %v4649 = vmul.f32 1.0, %v4648
        %4650 = vrot.lane.b32.xlu0 %v4641, 64
        %v4651 = vpop.permute.xlu0 %4650
        %v4653 = vmul.f32 %v4639, %v4651
        %4655 = vrot.lane.b32.xlu0 %v4653, 64
        %v4656 = vpop.permute.xlu0 %4655
        %v4658 = vadd.f32 %v2013, %v4656
        %v4659 = vtanh.pop %v4658
        %v4660 = vsub.f32 1.0, %v4649
        %4662 = vrot.lane.b32.xlu0 %v4659, 96
        %v4663 = vpop.permute.xlu0 %4662
        %v4665 = vmul.f32 %v4660, %v4663
        %v4666 = vrot.slane %v4495, 2
        %4667 = vrot.lane.b32.xlu0 %v4666, 96
        %v4668 = vpop.permute.xlu0 %4667
        %v4670 = vmul.f32 %v4649, %v4668
        %v4671 = vadd.f32 %v4665, %v4670
        %4673 = vrot.lane.b32.xlu0 %v4630, 96
        %v4674 = vpop.permute.xlu0 %4673
        %4676 = vst.msk [vmem:[#allocation2 + $0x8] sm:$0x20] %vm3153, %v4674
        %4678 = vrot.lane.b32.xlu0 %v4671, 32
        %v4679 = vpop.permute.xlu0 %4678
        %4681 = vst.msk [vmem:[#allocation2] sm:$0x4] %vm3159, %v4679
        %v4682 = vrot.slane %v4671, 5
        %4683 = vrot.lane.b32.xlu0 %v4682, 32
        %v4684 = vpop.permute.xlu0 %4683
        %v4686 = vsel %vm890, %v4674, %v4684
        %v4687 = vld [vmem:[%s18] sm:$0xff]
        %v4688 = vld [vmem:[%s18 + $0x8] sm:$0xff]
        %v4689 = vld [vmem:[%s18 + $0x10] sm:$0xff]
        %v4690 = vld [vmem:[%s18 + $0x18] sm:$0xff]
        %v4691 = vld [vmem:[%s18 + $0x20] sm:$0xff]
        %v4692 = vld [vmem:[%s18 + $0x28] sm:$0xff]
        %v4693 = vld [vmem:[%s18 + $0x30] sm:$0xff]
        %v4694 = vld [vmem:[%s18 + $0x38] sm:$0xff]
        %v4695 = vld [vmem:[%s18 + $0x40] sm:$0xff]
        %v4696 = vld [vmem:[%s18 + $0x48] sm:$0xff]
        %v4697 = vld [vmem:[%s18 + $0x50] sm:$0xff]
        %v4698 = vld [vmem:[%s18 + $0x58] sm:$0xff]
        %v4699 = vld [vmem:[%s18 + $0x60] sm:$0xff]
        %v4700 = vld [vmem:[%s18 + $0x68] sm:$0xff]
        %v4701 = vld [vmem:[%s18 + $0x70] sm:$0xff]
        %v4702 = vld [vmem:[%s18 + $0x78] sm:$0xff]
        %v4703 = vld [vmem:[%s19] sm:$0x3]
        %v4705 = vrot.slane %v4686, 5
        %v4707 = vlaneseq
        %v4708 = vshrl.u32 %v4707, 7
        %v4709 = vsub.s32 0, %v4708
        %v4710 = vrot.slane %v4703, %v4709
        %v4711 = vlaneseq
        %v4712 = vshrl.u32 %v4711, 7
        %v4713 = vsub.s32 1, %v4712
        %v4714 = vrot.slane %v4703, %v4713
        %v4717 = vsel %vm752, %v4705, 0
        %4719 = vmatprep.subr.mxu0 %v4688
        %4720 = vmatpush1.msra.mxu0 %v4687
        %4721 = vmatprep.subr.mxu0 %v4690
        %4722 = vmatpush1.msra.mxu0 %v4689
        %4723 = vmatprep.subr.mxu0 %v4692
        %4724 = vmatpush1.msra.mxu0 %v4691
        %4725 = vmatprep.subr.mxu0 %v4694
        %4726 = vmatpush1.msra.mxu0 %v4693
        %4727 = vmatprep.subr.mxu0 %v4696
        %4728 = vmatpush1.msra.mxu0 %v4695
        %4729 = vmatprep.subr.mxu0 %v4698
        %4730 = vmatpush1.msra.mxu0 %v4697
        %4731 = vmatprep.subr.mxu0 %v4700
        %4732 = vmatpush1.msra.mxu0 %v4699
        %4733 = vmatprep.subr.mxu0 %v4702
        %4734 = vmatpush1.msra.mxu0 %v4701
        %4735 = vmatprep.subr.mxu0 0.0
        %4736 = vmatpush1.msra.mxu0 0.0
        %4737 = vmatprep.subr.mxu0 0.0
        %4738 = vmatpush1.msra.mxu0 0.0
        %4739 = vmatprep.subr.mxu0 0.0
        %4740 = vmatpush1.msra.mxu0 0.0
        %4741 = vmatprep.subr.mxu0 0.0
        %4742 = vmatpush1.msra.mxu0 0.0
        %4743 = vmatprep.subr.mxu0 0.0
        %4744 = vmatpush1.msra.mxu0 0.0
        %4745 = vmatprep.subr.mxu0 0.0
        %4746 = vmatpush1.msra.mxu0 0.0
        %4747 = vmatprep.subr.mxu0 0.0
        %4748 = vmatpush1.msra.mxu0 0.0
        %4749 = vmatprep.subr.mxu0 0.0
        %4750 = vmatpush1.msra.mxu0 0.0
        %4751 = vmatprep.subr.mxu0 0.0
        %4752 = vmatpush1.msra.mxu0 0.0
        %4753 = vmatprep.subr.mxu0 0.0
        %4754 = vmatpush1.msra.mxu0 0.0
        %4755 = vmatprep.subr.mxu0 0.0
        %4756 = vmatpush1.msra.mxu0 0.0
        %4757 = vmatprep.subr.mxu0 0.0
        %4758 = vmatpush1.msra.mxu0 0.0
        %4759 = vmatprep.subr.mxu0 0.0
        %4760 = vmatpush1.msra.mxu0 0.0
        %4761 = vmatprep.subr.mxu0 0.0
        %4762 = vmatpush1.msra.mxu0 0.0
        %4763 = vmatprep.subr.mxu0 0.0
        %4764 = vmatpush1.msra.mxu0 0.0
        %4765 = vmatprep.subr.mxu0 0.0
        %4766 = vmatpush1.msra.mxu0 0.0
        %4767 = vmatprep.subr.mxu0 0.0
        %4768 = vmatpush1.msra.mxu0 0.0
        %4769 = vmatprep.subr.mxu0 0.0
        %4770 = vmatpush1.msra.mxu0 0.0
        %4771 = vmatprep.subr.mxu0 0.0
        %4772 = vmatpush1.msra.mxu0 0.0
        %4773 = vmatprep.subr.mxu0 0.0
        %4774 = vmatpush1.msra.mxu0 0.0
        %4775 = vmatprep.subr.mxu0 0.0
        %4776 = vmatpush1.msra.mxu0 0.0
        %4777 = vmatprep.subr.mxu0 0.0
        %4778 = vmatpush1.msra.mxu0 0.0
        %4779 = vmatprep.subr.mxu0 0.0
        %4780 = vmatpush1.msra.mxu0 0.0
        %4781 = vmatprep.subr.mxu0 0.0
        %4782 = vmatpush1.msra.mxu0 0.0
        %4783 = vmatprep.mubr.f32.mxu0 0.0
        %4784 = vmatmul.mubr.f32.gmra.mrb[0].mxu0 %v4717
        %v4785 = vpop.f32.mrb[0].mxu0
        %v4786 = vadd.f32 %v4710, %v4785
        %v4787 = vpop.f32.mrb[0].mxu0
        %v4788 = vadd.f32 %v4714, %v4787
        %4789 = vdwg.mxu0
        %v4791 = vrot.slane %v4786, 2
        %v4793 = vadd.f32 %v2017, %v4791
        %v4794 = vxor.u32 %v4793, 2147483648
        %v4795 = vmul.f32 %v4794, 1.442695
        %v4796 = vpow.pop %v4795
        %v4797 = vadd.f32 %v4796, 1.0
        %v4798 = vrcp.pop %v4797
        %v4799 = vmul.f32 1.0, %v4798
        %4800 = vrot.lane.b32.xlu0 %v4791, 64
        %v4801 = vpop.permute.xlu0 %4800
        %v4803 = vmul.f32 %v4799, %v4801
        %4805 = vrot.lane.b32.xlu0 %v4803, 64
        %v4806 = vpop.permute.xlu0 %4805
        %v4808 = vadd.f32 %v2017, %v4806
        %v4809 = vtanh.pop %v4808
        %v4810 = vsub.f32 1.0, %v4799
        %4812 = vrot.lane.b32.xlu0 %v4809, 96
        %v4813 = vpop.permute.xlu0 %4812
        %v4815 = vmul.f32 %v4810, %v4813
        %v4816 = vrot.slane %v4686, 7
        %4817 = vrot.lane.b32.xlu0 %v4816, 32
        %v4818 = vpop.permute.xlu0 %4817
        %v4820 = vmul.f32 %v4799, %v4818
        %v4821 = vadd.f32 %v4815, %v4820
        %v4822 = vrot.slane %v4786, 7
        %v4824 = vadd.f32 %v2011, %v4822
        %v4825 = vxor.u32 %v4824, 2147483648
        %v4826 = vmul.f32 %v4825, 1.442695
        %v4827 = vpow.pop %v4826
        %v4828 = vadd.f32 %v4827, 1.0
        %v4829 = vrcp.pop %v4828
        %v4830 = vmul.f32 1.0, %v4829
        %v4832 = vrot.slane %v4788, 7
        %v4834 = vadd.f32 %v2013, %v4832
        %v4835 = vxor.u32 %v4834, 2147483648
        %v4836 = vmul.f32 %v4835, 1.442695
        %v4837 = vpow.pop %v4836
        %v4838 = vadd.f32 %v4837, 1.0
        %v4839 = vrcp.pop %v4838
        %v4840 = vmul.f32 1.0, %v4839
        %4841 = vrot.lane.b32.xlu0 %v4832, 64
        %v4842 = vpop.permute.xlu0 %4841
        %v4844 = vmul.f32 %v4830, %v4842
        %4846 = vrot.lane.b32.xlu0 %v4844, 64
        %v4847 = vpop.permute.xlu0 %4846
        %v4849 = vadd.f32 %v2013, %v4847
        %v4850 = vtanh.pop %v4849
        %v4851 = vsub.f32 1.0, %v4840
        %4853 = vrot.lane.b32.xlu0 %v4850, 96
        %v4854 = vpop.permute.xlu0 %4853
        %v4856 = vmul.f32 %v4851, %v4854
        %v4857 = vrot.slane %v4686, 4
        %4858 = vrot.lane.b32.xlu0 %v4857, 96
        %v4859 = vpop.permute.xlu0 %4858
        %v4861 = vmul.f32 %v4840, %v4859
        %v4862 = vadd.f32 %v4856, %v4861
        %4864 = vrot.lane.b32.xlu0 %v4821, 96
        %v4865 = vpop.permute.xlu0 %4864
        %4867 = vst.msk [vmem:[#allocation2 + $0x8] sm:$0x40] %vm3346, %v4865
        %4869 = vrot.lane.b32.xlu0 %v4862, 32
        %v4870 = vpop.permute.xlu0 %4869
        %4872 = vst.msk [vmem:[#allocation2] sm:$0x2] %vm3352, %v4870
        %v4873 = vrot.slane %v4862, 3
        %4874 = vrot.lane.b32.xlu0 %v4873, 32
        %v4875 = vpop.permute.xlu0 %4874
        %v4877 = vsel %vm890, %v4865, %v4875
        %v4878 = vld [vmem:[%s18] sm:$0xff]
        %v4879 = vld [vmem:[%s18 + $0x8] sm:$0xff]
        %v4880 = vld [vmem:[%s18 + $0x10] sm:$0xff]
        %v4881 = vld [vmem:[%s18 + $0x18] sm:$0xff]
        %v4882 = vld [vmem:[%s18 + $0x20] sm:$0xff]
        %v4883 = vld [vmem:[%s18 + $0x28] sm:$0xff]
        %v4884 = vld [vmem:[%s18 + $0x30] sm:$0xff]
        %v4885 = vld [vmem:[%s18 + $0x38] sm:$0xff]
        %v4886 = vld [vmem:[%s18 + $0x40] sm:$0xff]
        %v4887 = vld [vmem:[%s18 + $0x48] sm:$0xff]
        %v4888 = vld [vmem:[%s18 + $0x50] sm:$0xff]
        %v4889 = vld [vmem:[%s18 + $0x58] sm:$0xff]
        %v4890 = vld [vmem:[%s18 + $0x60] sm:$0xff]
        %v4891 = vld [vmem:[%s18 + $0x68] sm:$0xff]
        %v4892 = vld [vmem:[%s18 + $0x70] sm:$0xff]
        %v4893 = vld [vmem:[%s18 + $0x78] sm:$0xff]
        %v4894 = vld [vmem:[%s19] sm:$0x3]
        %v4896 = vrot.slane %v4877, 6
        %v4898 = vlaneseq
        %v4899 = vshrl.u32 %v4898, 7
        %v4900 = vsub.s32 0, %v4899
        %v4901 = vrot.slane %v4894, %v4900
        %v4902 = vlaneseq
        %v4903 = vshrl.u32 %v4902, 7
        %v4904 = vsub.s32 1, %v4903
        %v4905 = vrot.slane %v4894, %v4904
        %v4908 = vsel %vm752, %v4896, 0
        %4910 = vmatprep.subr.mxu0 %v4879
        %4911 = vmatpush1.msra.mxu0 %v4878
        %4912 = vmatprep.subr.mxu0 %v4881
        %4913 = vmatpush1.msra.mxu0 %v4880
        %4914 = vmatprep.subr.mxu0 %v4883
        %4915 = vmatpush1.msra.mxu0 %v4882
        %4916 = vmatprep.subr.mxu0 %v4885
        %4917 = vmatpush1.msra.mxu0 %v4884
        %4918 = vmatprep.subr.mxu0 %v4887
        %4919 = vmatpush1.msra.mxu0 %v4886
        %4920 = vmatprep.subr.mxu0 %v4889
        %4921 = vmatpush1.msra.mxu0 %v4888
        %4922 = vmatprep.subr.mxu0 %v4891
        %4923 = vmatpush1.msra.mxu0 %v4890
        %4924 = vmatprep.subr.mxu0 %v4893
        %4925 = vmatpush1.msra.mxu0 %v4892
        %4926 = vmatprep.subr.mxu0 0.0
        %4927 = vmatpush1.msra.mxu0 0.0
        %4928 = vmatprep.subr.mxu0 0.0
        %4929 = vmatpush1.msra.mxu0 0.0
        %4930 = vmatprep.subr.mxu0 0.0
        %4931 = vmatpush1.msra.mxu0 0.0
        %4932 = vmatprep.subr.mxu0 0.0
        %4933 = vmatpush1.msra.mxu0 0.0
        %4934 = vmatprep.subr.mxu0 0.0
        %4935 = vmatpush1.msra.mxu0 0.0
        %4936 = vmatprep.subr.mxu0 0.0
        %4937 = vmatpush1.msra.mxu0 0.0
        %4938 = vmatprep.subr.mxu0 0.0
        %4939 = vmatpush1.msra.mxu0 0.0
        %4940 = vmatprep.subr.mxu0 0.0
        %4941 = vmatpush1.msra.mxu0 0.0
        %4942 = vmatprep.subr.mxu0 0.0
        %4943 = vmatpush1.msra.mxu0 0.0
        %4944 = vmatprep.subr.mxu0 0.0
        %4945 = vmatpush1.msra.mxu0 0.0
        %4946 = vmatprep.subr.mxu0 0.0
        %4947 = vmatpush1.msra.mxu0 0.0
        %4948 = vmatprep.subr.mxu0 0.0
        %4949 = vmatpush1.msra.mxu0 0.0
        %4950 = vmatprep.subr.mxu0 0.0
        %4951 = vmatpush1.msra.mxu0 0.0
        %4952 = vmatprep.subr.mxu0 0.0
        %4953 = vmatpush1.msra.mxu0 0.0
        %4954 = vmatprep.subr.mxu0 0.0
        %4955 = vmatpush1.msra.mxu0 0.0
        %4956 = vmatprep.subr.mxu0 0.0
        %4957 = vmatpush1.msra.mxu0 0.0
        %4958 = vmatprep.subr.mxu0 0.0
        %4959 = vmatpush1.msra.mxu0 0.0
        %4960 = vmatprep.subr.mxu0 0.0
        %4961 = vmatpush1.msra.mxu0 0.0
        %4962 = vmatprep.subr.mxu0 0.0
        %4963 = vmatpush1.msra.mxu0 0.0
        %4964 = vmatprep.subr.mxu0 0.0
        %4965 = vmatpush1.msra.mxu0 0.0
        %4966 = vmatprep.subr.mxu0 0.0
        %4967 = vmatpush1.msra.mxu0 0.0
        %4968 = vmatprep.subr.mxu0 0.0
        %4969 = vmatpush1.msra.mxu0 0.0
        %4970 = vmatprep.subr.mxu0 0.0
        %4971 = vmatpush1.msra.mxu0 0.0
        %4972 = vmatprep.subr.mxu0 0.0
        %4973 = vmatpush1.msra.mxu0 0.0
        %4974 = vmatprep.mubr.f32.mxu0 0.0
        %4975 = vmatmul.mubr.f32.gmra.mrb[0].mxu0 %v4908
        %v4976 = vpop.f32.mrb[0].mxu0
        %v4977 = vadd.f32 %v4901, %v4976
        %v4978 = vpop.f32.mrb[0].mxu0
        %v4979 = vadd.f32 %v4905, %v4978
        %4980 = vdwg.mxu0
        %v4982 = vrot.slane %v4977, 1
        %v4984 = vadd.f32 %v2017, %v4982
        %v4985 = vxor.u32 %v4984, 2147483648
        %v4986 = vmul.f32 %v4985, 1.442695
        %v4987 = vpow.pop %v4986
        %v4988 = vadd.f32 %v4987, 1.0
        %v4989 = vrcp.pop %v4988
        %v4990 = vmul.f32 1.0, %v4989
        %4991 = vrot.lane.b32.xlu0 %v4982, 64
        %v4992 = vpop.permute.xlu0 %4991
        %v4994 = vmul.f32 %v4990, %v4992
        %4996 = vrot.lane.b32.xlu0 %v4994, 64
        %v4997 = vpop.permute.xlu0 %4996
        %v4999 = vadd.f32 %v2017, %v4997
        %v5000 = vtanh.pop %v4999
        %v5001 = vsub.f32 1.0, %v4990
        %5003 = vrot.lane.b32.xlu0 %v5000, 96
        %v5004 = vpop.permute.xlu0 %5003
        %v5006 = vmul.f32 %v5001, %v5004
        %v5007 = vrot.slane %v4877, 7
        %5008 = vrot.lane.b32.xlu0 %v5007, 32
        %v5009 = vpop.permute.xlu0 %5008
        %v5011 = vmul.f32 %v4990, %v5009
        %v5012 = vadd.f32 %v5006, %v5011
        %v5013 = vadd.f32 %v2011, %v4977
        %v5014 = vxor.u32 %v5013, 2147483648
        %v5015 = vmul.f32 %v5014, 1.442695
        %v5016 = vpow.pop %v5015
        %v5017 = vadd.f32 %v5016, 1.0
        %v5018 = vrcp.pop %v5017
        %v5019 = vmul.f32 1.0, %v5018
        %v5020 = vadd.f32 %v2013, %v4979
        %v5021 = vxor.u32 %v5020, 2147483648
        %v5022 = vmul.f32 %v5021, 1.442695
        %v5023 = vpow.pop %v5022
        %v5024 = vadd.f32 %v5023, 1.0
        %v5025 = vrcp.pop %v5024
        %v5026 = vmul.f32 1.0, %v5025
        %5028 = vrot.lane.b32.xlu0 %v4979, 64
        %v5029 = vpop.permute.xlu0 %5028
        %v5031 = vmul.f32 %v5019, %v5029
        %5033 = vrot.lane.b32.xlu0 %v5031, 64
        %v5034 = vpop.permute.xlu0 %5033
        %v5036 = vadd.f32 %v2013, %v5034
        %v5037 = vtanh.pop %v5036
        %v5038 = vsub.f32 1.0, %v5026
        %5040 = vrot.lane.b32.xlu0 %v5037, 96
        %v5041 = vpop.permute.xlu0 %5040
        %v5043 = vmul.f32 %v5038, %v5041
        %5044 = vrot.lane.b32.xlu0 %v4896, 96
        %v5045 = vpop.permute.xlu0 %5044
        %v5047 = vmul.f32 %v5026, %v5045
        %v5048 = vadd.f32 %v5043, %v5047
        %5050 = vrot.lane.b32.xlu0 %v5012, 96
        %v5051 = vpop.permute.xlu0 %5050
        %5053 = vst.msk [vmem:[#allocation2 + $0x8] sm:$0x80] %vm3534, %v5051
        %5055 = vrot.lane.b32.xlu0 %v5048, 32
        %v5056 = vpop.permute.xlu0 %5055
        %5058 = vst.msk [vmem:[#allocation2] sm:$0x1] %vm3540, %v5056
        %v5059 = vld [vmem:[#allocation2] sm:$0xff]
        %v5060 = vld [vmem:[#allocation2 + $0x8] sm:$0xff]
        %5061 = vst.msk [vmem:[%s622] sm:$0xff] %vm752, %v5059
        %5062 = vst.msk [vmem:[%s622 + $0x8] sm:$0xff] %vm752, %v5060
        %s5063 = sand.u32 %s467, 1
        %s5064 = scalar_lea.sflag [#allocation4], %s5063
        %s5065 = sand.u32 %s467, 1
        %s5066 = smul.addr %s5065, 16
        %s5067 = scalar_lea.vmem [#allocation3], %s5066
        // Predicated region
        $region101: #{encoder_forward.1} parent=99 // pred_check
          %p5068 = pneg %p477
        $region102: #{encoder_forward.1} parent=99 // pred_check_branch
          %5070 = sbr.rel (%p5068) target = $region104
        $region103: #{encoder_forward.1} parent=99 // pred_region
          %s5072 = ssub.s32 256, 256
          %5073 = vsyncadd %s5064, %s5072
          %s5074 = smul.addr %s34, 2
          %s5075 = smul.addr %s5074, 128
          %s5076 = scalar_lea.hbm %s20, %s5075
          %s5077 = sshll.u32 %s5067, 4
          %s5078 = int_to_ptr.vmem [resolvable:$true] %s5077
          %5083 = dma.vmem_to_hbm [thread:$0]  %s5078, 256, %s5076, %s5064, 128, 128, 8
        $region104: #{encoder_forward.1} parent=99 // pred_fallthru
          _
      $region100: #{encoder_forward.1} parent=5 // pred_fallthru
        _
      %p5084 = scmp.le.s32.totalorder 2, %s29
      // Predicated region
      $region105: #{encoder_forward.1} parent=5 // pred_check
        %p5085 = pneg %p5084
      $region106: #{encoder_forward.1} parent=5 // pred_check_branch
        %5087 = sbr.rel (%p5085) target = $region108
      $region107: #{encoder_forward.1} parent=5 // pred_region
        %s5088 = ssub.s32 %s29, 2
        // Predicated region
        $region109: #{encoder_forward.1} parent=107 // pred_check
          %p5089 = pneg %p483
        $region110: #{encoder_forward.1} parent=107 // pred_check_branch
          %5091 = sbr.rel (%p5089) target = $region112
        $region111: #{encoder_forward.1} parent=107 // pred_region
          %s5092 = sand.u32 %s468, 1
          %s5093 = scalar_lea.sflag [#allocation4], %s5092
          %s5094 = sand.u32 %s468, 1
          %s5095 = smul.addr %s5094, 16
          %s5096 = scalar_lea.vmem [#allocation3], %s5095
          %5097 = dma.done %s5093, 256
        $region112: #{encoder_forward.1} parent=107 // pred_fallthru
          _
      $region108: #{encoder_forward.1} parent=5 // pred_fallthru
        _
    $region6: #{encoder_forward.1} parent=1 // loop_footer
      %s33 = sadd.s32 1, %s29
    $region7: #{encoder_forward.1} parent=1 // loop_footer_branch
      %28 = sbr.rel target = $region3
    $region8: #{encoder_forward.1} parent=1 // loop_exit
      _
    %5098 = vsyncpa [#allocation4], 1
    %s5099 = scalar_lea.sflag [#allocation4], 1
    %5100 = vsyncpa %s5099, 1

</llo_original>
